<compile_context>
chip_gen: v7x
topology: tpu7x:2x2x1
jax: 0.10.0
libtpu: 0.0.40
codegen_flags: <defaults>
</compile_context>

<pallas_src>
import math
import functools

import jax
import jax.numpy as jnp
from jax import lax
from jax.experimental import pallas as pl
from jax.experimental.pallas import tpu as pltpu  # noqa: F401  (TPU backend)


# ----------------------------------------------------------------------------
# Fused bidirectional-LSTM-layer kernel (optionally with a sigmoid-Linear head)
# ----------------------------------------------------------------------------
def _make_bilstm_kernel(n_in, T, B, H, has_head):
    """Builds a kernel computing one bidirectional LSTM layer over the full
    sequence, with an optional fused sigmoid(Linear) head epilogue.

    Ref order (inputs then outputs):
      x_0..x_{n_in-1}   : (T*B, In_i)   time-major flattened inputs
      wih_0..wih_{n_in-1}: (In_i, 8H)   [fwd 4H | rev 4H] input-proj weights
      whh_f, whh_r      : (H, 4H)       recurrent weights per direction
      bias              : (1, 8H)       [fwd 4H | rev 4H], b_ih + b_hh
      [hw, hb]          : (2H, C), (1, C) head weights (if has_head)
      out               : (T*B, 2H)     [fwd H | rev H] hidden states
      [logits]          : (T*B, C)      sigmoid(out @ hw + hb) (if has_head)
    """
    H4 = 4 * H

    def kernel(*refs):
        x_refs = refs[0:n_in]
        wih_refs = refs[n_in:2 * n_in]
        whh_f_ref = refs[2 * n_in]
        whh_r_ref = refs[2 * n_in + 1]
        b_ref = refs[2 * n_in + 2]
        k = 2 * n_in + 3
        if has_head:
            hw_ref = refs[k]
            hb_ref = refs[k + 1]
            k += 2
        out_ref = refs[k]
        if has_head:
            logits_ref = refs[k + 1]

        # ---- Phase 1: batched input projection for BOTH directions --------
        # One (T*B, In) x (In, 8H) matmul (plus one per extra operand) instead
        # of T tiny per-step matmuls on the serial critical path.
        xp = jnp.dot(x_refs[0][...], wih_refs[0][...],
                     preferred_element_type=jnp.float32)
        for xr, wr in zip(x_refs[1:], wih_refs[1:]):
            xp = xp + jnp.dot(xr[...], wr[...],
                              preferred_element_type=jnp.float32)
        xp = xp + b_ref[...]                      # (T*B, 8H)

        whh_f = whh_f_ref[...]                    # (H, 4H), VMEM-resident once
        whh_r = whh_r_ref[...]

        def cell(gates, c):
            # One full-width sigmoid EUP pass; tanh only on the g band.
            sg = jax.nn.sigmoid(gates)            # (B, 4H)
            i = sg[:, 0:H]
            f = sg[:, H:2 * H]
            o = sg[:, 3 * H:4 * H]
            g = jnp.tanh(gates[:, 2 * H:3 * H])
            c_new = f * c + i * g
            h_new = o * jnp.tanh(c_new)
            return h_new, c_new

        zeros = jnp.zeros((B, H), jnp.float32)
        h_f, c_f = zeros, zeros
        h_r, c_r = zeros, zeros

        # ---- Phase 2: recurrence, both directions fused, fully unrolled ----
        for t in range(T):                        # static unroll (T is small)
            rt = T - 1 - t
            g_f = xp[t * B:(t + 1) * B, 0:H4] + jnp.dot(
                h_f, whh_f, preferred_element_type=jnp.float32)
            g_r = xp[rt * B:(rt + 1) * B, H4:2 * H4] + jnp.dot(
                h_r, whh_r, preferred_element_type=jnp.float32)
            h_f, c_f = cell(g_f, c_f)
            h_r, c_r = cell(g_r, c_r)
            # Writes land in the VMEM output window; HBM writeback is one
            # dense DMA of the whole (T*B, 2H) block at the end.
            out_ref[t * B:(t + 1) * B, 0:H] = h_f
            out_ref[rt * B:(rt + 1) * B, H:2 * H] = h_r

        # ---- Phase 3 (optional): fused sigmoid-Linear head epilogue --------
        if has_head:
            y = out_ref[...]                      # (T*B, 2H), fully written
            logits = jnp.dot(y, hw_ref[...],
                             preferred_element_type=jnp.float32) + hb_ref[...]
            logits_ref[...] = jax.nn.sigmoid(logits)

    return kernel


def bilstm_layer_pallas(inputs, wihs, whh_f, whh_r, bias, *, T, B, H, head=None):
    """One bidirectional LSTM layer over the full sequence (single pallas_call).

    inputs: list of (T*B, In_i) arrays; wihs: matching list of (In_i, 8H).
    head:   optional (w, b) with w: (2H, C), b: (1, C) -> also returns logits.
    """
    TB = T * B
    has_head = head is not None
    kernel = _make_bilstm_kernel(len(inputs), T, B, H, has_head)

    args = list(inputs) + list(wihs) + [whh_f, whh_r, bias]
    if has_head:
        hw, hb = head
        out_shape = (
            jax.ShapeDtypeStruct((TB, 2 * H), jnp.float32),
            jax.ShapeDtypeStruct((TB, hw.shape[1]), jnp.float32),
        )
        args += [hw, hb]
    else:
        out_shape = jax.ShapeDtypeStruct((TB, 2 * H), jnp.float32)

    # No grid: whole (tiny) arrays live in VMEM; weights are loaded once and
    # there is no per-step pipeline bookkeeping.
    return pl.pallas_call(kernel, out_shape=out_shape)(*args)


# ----------------------------------------------------------------------------
# Model assembly (glue in plain JAX; concat of rnn2 input is never materialized)
# ----------------------------------------------------------------------------
def _combine_dir_params(p_f, p_r):
    wih_f, whh_f, b_f = p_f
    wih_r, whh_r, b_r = p_r
    wih = jnp.concatenate([wih_f, wih_r], axis=1)   # (In, 8H)
    b = jnp.concatenate([b_f, b_r], axis=1)         # (1, 8H)
    return wih, whh_f, whh_r, b


def hedln_forward_pallas(x, params, cfg):
    assert cfg["num_directions"] == 2, "Pallas path implements the bidirectional config"
    T, B, In = x.shape
    H = cfg["hidden_size"]
    nl = cfg["num_layers"]
    x2d = x.reshape(T * B, In)

    # ---- rnn1 (+ fc1 fused into last layer) ----
    h = x2d
    logits1 = None
    for layer in range(nl):
        wih, whh_f, whh_r, b = _combine_dir_params(
            params["rnn1"][(layer, 0)], params["rnn1"][(layer, 1)])
        head = (params["fc1_w"], params["fc1_b"]) if layer == nl - 1 else None
        out = bilstm_layer_pallas([h], [wih], whh_f, whh_r, b,
                                  T=T, B=B, H=H, head=head)
        if head is None:
            h = out
        else:
            h, logits1 = out
    rnn1_out2d = h

    # ---- rnn2 (+ fc2 fused into last layer) ----
    logits2 = None
    for layer in range(nl):
        wih, whh_f, whh_r, b = _combine_dir_params(
            params["rnn2"][(layer, 0)], params["rnn2"][(layer, 1)])
        if layer == 0:
            # concat(x, rnn1_out) @ W == x @ W[:In] + rnn1_out @ W[In:]
            inputs = [x2d, rnn1_out2d]
            wihs = [wih[:In, :], wih[In:, :]]
        else:
            inputs = [h]
            wihs = [wih]
        head = (params["fc2_w"], params["fc2_b"]) if layer == nl - 1 else None
        out = bilstm_layer_pallas(inputs, wihs, whh_f, whh_r, b,
                                  T=T, B=B, H=H, head=head)
        if head is None:
            h = out
        else:
            h, logits2 = out

    logits1 = logits1.reshape(T, B, cfg["num_classes1"])
    logits2 = logits2.reshape(T, B, cfg["num_classes2"])
    return logits1, logits2


# ----------------------------------------------------------------------------
# Pure-JAX reference (for correctness check)
# ----------------------------------------------------------------------------
def _lstm_ref_single(x, wih, whh, b, reverse):
    T, B, _ = x.shape
    H = whh.shape[0]
    xs = x[::-1] if reverse else x

    def step(carry, xt):
        h, c = carry
        gates = xt @ wih + h @ whh + b
        i = jax.nn.sigmoid(gates[:, 0:H])
        f = jax.nn.sigmoid(gates[:, H:2 * H])
        g = jnp.tanh(gates[:, 2 * H:3 * H])
        o = jax.nn.sigmoid(gates[:, 3 * H:4 * H])
        c = f * c + i * g
        h = o * jnp.tanh(c)
        return (h, c), h

    init = (jnp.zeros((B, H), jnp.float32), jnp.zeros((B, H), jnp.float32))
    _, hs = lax.scan(step, init, xs)
    return hs[::-1] if reverse else hs


def _lstm_stack_ref(x, params, num_layers, num_directions):
    inp = x
    for layer in range(num_layers):
        outs = []
        for d in range(num_directions):
            wih, whh, b = params[(layer, d)]
            outs.append(_lstm_ref_single(inp, wih, whh, b, reverse=(d == 1)))
        inp = outs[0] if len(outs) == 1 else jnp.concatenate(outs, axis=-1)
    return inp


def hedln_forward_ref(x, params, cfg):
    T, B, _ = x.shape
    num_dir = cfg["num_directions"]
    D = num_dir * cfg["hidden_size"]

    rnn1_out = _lstm_stack_ref(x, params["rnn1"], cfg["num_layers"], num_dir)
    logits1 = jax.nn.sigmoid(
        rnn1_out.reshape(-1, D) @ params["fc1_w"] + params["fc1_b"]
    ).reshape(T, B, cfg["num_classes1"])

    rnn2_in = jnp.concatenate((x, rnn1_out), axis=2)
    rnn2_out = _lstm_stack_ref(rnn2_in, params["rnn2"], cfg["num_layers"], num_dir)
    logits2 = jax.nn.sigmoid(
        rnn2_out.reshape(-1, D) @ params["fc2_w"] + params["fc2_b"]
    ).reshape(T, B, cfg["num_classes2"])

    return logits1, logits2


# ----------------------------------------------------------------------------
# Deterministic parameter init (PyTorch-style uniform(-1/sqrt(H), 1/sqrt(H)))
# ----------------------------------------------------------------------------
def init_lstm_params(key, input_size, hidden_size, num_layers, num_directions):
    params = {}
    bound = 1.0 / math.sqrt(hidden_size)
    for layer in range(num_layers):
        in_l = input_size if layer == 0 else num_directions * hidden_size
        for d in range(num_directions):
            key, k1, k2, k3 = jax.random.split(key, 4)
            wih = jax.random.uniform(
                k1, (in_l, 4 * hidden_size), jnp.float32, -bound, bound)
            whh = jax.random.uniform(
                k2, (hidden_size, 4 * hidden_size), jnp.float32, -bound, bound)
            b = jax.random.uniform(
                k3, (1, 4 * hidden_size), jnp.float32, -bound, bound)
            params[(layer, d)] = (wih, whh, b)
    return params, key


def init_hedln_params(key, cfg):
    num_dir = cfg["num_directions"]
    H = cfg["hidden_size"]
    D = num_dir * H

    rnn1_params, key = init_lstm_params(
        key, cfg["input_size"], H, cfg["num_layers"], num_dir)
    rnn2_params, key = init_lstm_params(
        key, cfg["input_size"] + D, H, cfg["num_layers"], num_dir)

    bound = 1.0 / math.sqrt(D)
    key, k1, k2, k3, k4 = jax.random.split(key, 5)
    fc1_w = jax.random.uniform(k1, (D, cfg["num_classes1"]), jnp.float32, -bound, bound)
    fc1_b = jax.random.uniform(k2, (1, cfg["num_classes1"]), jnp.float32, -bound, bound)
    fc2_w = jax.random.uniform(k3, (D, cfg["num_classes2"]), jnp.float32, -bound, bound)
    fc2_b = jax.random.uniform(k4, (1, cfg["num_classes2"]), jnp.float32, -bound, bound)

    return {
        "rnn1": rnn1_params,
        "rnn2": rnn2_params,
        "fc1_w": fc1_w,
        "fc1_b": fc1_b,
        "fc2_w": fc2_w,
        "fc2_b": fc2_b,
    }


# ----------------------------------------------------------------------------
if __name__ == "__main__":
    cfg = dict(
        input_size=8,
        hidden_size=32,
        num_layers=2,
        dropout=0.0,
        num_directions=2,   # bidirectional=True
        num_classes1=2,
        num_classes2=3,
    )
    T, B = 8, 8             # B=8 fills the 8-sublane vreg; T*B rows are tile-aligned

    key = jax.random.PRNGKey(0)
    key, xkey = jax.random.split(key)
    x = jax.random.normal(xkey, (T, B, cfg["input_size"]), jnp.float32)

    params = init_hedln_params(key, cfg)

    fwd = jax.jit(functools.partial(hedln_forward_pallas, cfg=cfg))
    logits1, logits2 = fwd(x, params)
    jax.block_until_ready((logits1, logits2))

    # sanity check against pure-JAX reference
    ref1, ref2 = hedln_forward_ref(x, params, cfg)
    assert logits1.shape == (T, B, cfg["num_classes1"])
    assert logits2.shape == (T, B, cfg["num_classes2"])
    assert jnp.allclose(logits1, ref1, atol=1e-4, rtol=1e-4)
    assert jnp.allclose(logits2, ref2, atol=1e-4, rtol=1e-4)

    print("KERNEL_OK")
</pallas_src>

<mosaic_0001>
module attributes {stable_mosaic.version = 11 : i64} {
  func.func @kernel(%arg0: memref<64x8xf32, #tpu.memory_space<vmem>>, %arg1: memref<8x256xf32, #tpu.memory_space<vmem>>, %arg2: memref<32x128xf32, #tpu.memory_space<vmem>>, %arg3: memref<32x128xf32, #tpu.memory_space<vmem>>, %arg4: memref<1x256xf32, #tpu.memory_space<vmem>>, %arg5: memref<64x64xf32, #tpu.memory_space<vmem>>) attributes {dimension_semantics = [], scalar_prefetch = 0 : i64, scratch_operands = 0 : i64, tpu.core_type = #tpu.core_type<tc>} {
    %c0 = arith.constant 0 : index
    %c0_0 = arith.constant 0 : index
    %0 = vector.load %arg0[%c0, %c0_0] : memref<64x8xf32, #tpu.memory_space<vmem>>, vector<64x8xf32>
    %c0_1 = arith.constant 0 : index
    %c0_2 = arith.constant 0 : index
    %1 = vector.load %arg1[%c0_1, %c0_2] : memref<8x256xf32, #tpu.memory_space<vmem>>, vector<8x256xf32>
    %cst = arith.constant dense<0.000000e+00> : vector<64x256xf32>
    %2 = tpu.matmul %0, %1, %cst {dimension_numbers = #tpu.dot_dimension_numbers<[1], [0], [0], [1], [0, 0, 1, 1], [], []>} : vector<64x8xf32>, vector<8x256xf32>, vector<64x256xf32> -> vector<64x256xf32>
    %c0_3 = arith.constant 0 : index
    %c0_4 = arith.constant 0 : index
    %3 = vector.load %arg4[%c0_3, %c0_4] : memref<1x256xf32, #tpu.memory_space<vmem>>, vector<1x256xf32>
    %4 = vector.broadcast %3 : vector<1x256xf32> to vector<64x256xf32>
    %5 = arith.addf %2, %4 : vector<64x256xf32>
    %c0_5 = arith.constant 0 : index
    %c0_6 = arith.constant 0 : index
    %6 = vector.load %arg2[%c0_5, %c0_6] : memref<32x128xf32, #tpu.memory_space<vmem>>, vector<32x128xf32>
    %c0_7 = arith.constant 0 : index
    %c0_8 = arith.constant 0 : index
    %7 = vector.load %arg3[%c0_7, %c0_8] : memref<32x128xf32, #tpu.memory_space<vmem>>, vector<32x128xf32>
    %cst_9 = arith.constant 0.000000e+00 : f32
    %8 = vector.broadcast %cst_9 : f32 to vector<8x32xf32>
    %9 = vector.extract_strided_slice %5 {offsets = [0, 0], sizes = [8, 128], strides = [1, 1]} : vector<64x256xf32> to vector<8x128xf32>
    %cst_10 = arith.constant dense<0.000000e+00> : vector<8x128xf32>
    %10 = tpu.matmul %8, %6, %cst_10 {dimension_numbers = #tpu.dot_dimension_numbers<[1], [0], [0], [1], [0, 0, 1, 1], [], []>} : vector<8x32xf32>, vector<32x128xf32>, vector<8x128xf32> -> vector<8x128xf32>
    %11 = arith.addf %9, %10 : vector<8x128xf32>
    %12 = vector.extract_strided_slice %5 {offsets = [56, 128], sizes = [8, 128], strides = [1, 1]} : vector<64x256xf32> to vector<8x128xf32>
    %cst_11 = arith.constant dense<0.000000e+00> : vector<8x128xf32>
    %13 = tpu.matmul %8, %7, %cst_11 {dimension_numbers = #tpu.dot_dimension_numbers<[1], [0], [0], [1], [0, 0, 1, 1], [], []>} : vector<8x32xf32>, vector<32x128xf32>, vector<8x128xf32> -> vector<8x128xf32>
    %14 = arith.addf %12, %13 : vector<8x128xf32>
    %15 = arith.negf %11 : vector<8x128xf32>
    %16 = math.exp %15 : vector<8x128xf32>
    %cst_12 = arith.constant 1.000000e+00 : f32
    %17 = vector.broadcast %cst_12 : f32 to vector<8x128xf32>
    %18 = arith.addf %17, %16 : vector<8x128xf32>
    %19 = arith.divf %17, %18 : vector<8x128xf32>
    %20 = vector.extract_strided_slice %19 {offsets = [0, 0], sizes = [8, 32], strides = [1, 1]} : vector<8x128xf32> to vector<8x32xf32>
    %21 = vector.extract_strided_slice %19 {offsets = [0, 32], sizes = [8, 32], strides = [1, 1]} : vector<8x128xf32> to vector<8x32xf32>
    %22 = vector.extract_strided_slice %19 {offsets = [0, 96], sizes = [8, 32], strides = [1, 1]} : vector<8x128xf32> to vector<8x32xf32>
    %23 = vector.extract_strided_slice %11 {offsets = [0, 64], sizes = [8, 32], strides = [1, 1]} : vector<8x128xf32> to vector<8x32xf32>
    %24 = math.tanh %23 : vector<8x32xf32>
    %25 = arith.mulf %21, %8 : vector<8x32xf32>
    %26 = arith.mulf %20, %24 : vector<8x32xf32>
    %27 = arith.addf %25, %26 : vector<8x32xf32>
    %28 = math.tanh %27 : vector<8x32xf32>
    %29 = arith.mulf %22, %28 : vector<8x32xf32>
    %30 = arith.negf %14 : vector<8x128xf32>
    %31 = math.exp %30 : vector<8x128xf32>
    %cst_13 = arith.constant 1.000000e+00 : f32
    %32 = vector.broadcast %cst_13 : f32 to vector<8x128xf32>
    %33 = arith.addf %32, %31 : vector<8x128xf32>
    %34 = arith.divf %32, %33 : vector<8x128xf32>
    %35 = vector.extract_strided_slice %34 {offsets = [0, 0], sizes = [8, 32], strides = [1, 1]} : vector<8x128xf32> to vector<8x32xf32>
    %36 = vector.extract_strided_slice %34 {offsets = [0, 32], sizes = [8, 32], strides = [1, 1]} : vector<8x128xf32> to vector<8x32xf32>
    %37 = vector.extract_strided_slice %34 {offsets = [0, 96], sizes = [8, 32], strides = [1, 1]} : vector<8x128xf32> to vector<8x32xf32>
    %38 = vector.extract_strided_slice %14 {offsets = [0, 64], sizes = [8, 32], strides = [1, 1]} : vector<8x128xf32> to vector<8x32xf32>
    %39 = math.tanh %38 : vector<8x32xf32>
    %40 = arith.mulf %36, %8 : vector<8x32xf32>
    %41 = arith.mulf %35, %39 : vector<8x32xf32>
    %42 = arith.addf %40, %41 : vector<8x32xf32>
    %43 = math.tanh %42 : vector<8x32xf32>
    %44 = arith.mulf %37, %43 : vector<8x32xf32>
    %c0_14 = arith.constant 0 : index
    %c0_15 = arith.constant 0 : index
    %45 = vector.load %arg5[%c0_14, %c0_15] : memref<64x64xf32, #tpu.memory_space<vmem>>, vector<8x32xf32>
    tpu.vector_store %arg5[%c0_14, %c0_15], %29 {strides = array<i32>} : memref<64x64xf32, #tpu.memory_space<vmem>>, vector<8x32xf32>,
    %c56 = arith.constant 56 : index
    %c32 = arith.constant 32 : index
    %46 = vector.load %arg5[%c56, %c32] : memref<64x64xf32, #tpu.memory_space<vmem>>, vector<8x32xf32>
    tpu.vector_store %arg5[%c56, %c32], %44 {strides = array<i32>} : memref<64x64xf32, #tpu.memory_space<vmem>>, vector<8x32xf32>,
    %47 = vector.extract_strided_slice %5 {offsets = [8, 0], sizes = [8, 128], strides = [1, 1]} : vector<64x256xf32> to vector<8x128xf32>
    %cst_16 = arith.constant dense<0.000000e+00> : vector<8x128xf32>
    %48 = tpu.matmul %29, %6, %cst_16 {dimension_numbers = #tpu.dot_dimension_numbers<[1], [0], [0], [1], [0, 0, 1, 1], [], []>} : vector<8x32xf32>, vector<32x128xf32>, vector<8x128xf32> -> vector<8x128xf32>
    %49 = arith.addf %47, %48 : vector<8x128xf32>
    %50 = vector.extract_strided_slice %5 {offsets = [48, 128], sizes = [8, 128], strides = [1, 1]} : vector<64x256xf32> to vector<8x128xf32>
    %cst_17 = arith.constant dense<0.000000e+00> : vector<8x128xf32>
    %51 = tpu.matmul %44, %7, %cst_17 {dimension_numbers = #tpu.dot_dimension_numbers<[1], [0], [0], [1], [0, 0, 1, 1], [], []>} : vector<8x32xf32>, vector<32x128xf32>, vector<8x128xf32> -> vector<8x128xf32>
    %52 = arith.addf %50, %51 : vector<8x128xf32>
    %53 = arith.negf %49 : vector<8x128xf32>
    %54 = math.exp %53 : vector<8x128xf32>
    %cst_18 = arith.constant 1.000000e+00 : f32
    %55 = vector.broadcast %cst_18 : f32 to vector<8x128xf32>
    %56 = arith.addf %55, %54 : vector<8x128xf32>
    %57 = arith.divf %55, %56 : vector<8x128xf32>
    %58 = vector.extract_strided_slice %57 {offsets = [0, 0], sizes = [8, 32], strides = [1, 1]} : vector<8x128xf32> to vector<8x32xf32>
    %59 = vector.extract_strided_slice %57 {offsets = [0, 32], sizes = [8, 32], strides = [1, 1]} : vector<8x128xf32> to vector<8x32xf32>
    %60 = vector.extract_strided_slice %57 {offsets = [0, 96], sizes = [8, 32], strides = [1, 1]} : vector<8x128xf32> to vector<8x32xf32>
    %61 = vector.extract_strided_slice %49 {offsets = [0, 64], sizes = [8, 32], strides = [1, 1]} : vector<8x128xf32> to vector<8x32xf32>
    %62 = math.tanh %61 : vector<8x32xf32>
    %63 = arith.mulf %59, %27 : vector<8x32xf32>
    %64 = arith.mulf %58, %62 : vector<8x32xf32>
    %65 = arith.addf %63, %64 : vector<8x32xf32>
    %66 = math.tanh %65 : vector<8x32xf32>
    %67 = arith.mulf %60, %66 : vector<8x32xf32>
    %68 = arith.negf %52 : vector<8x128xf32>
    %69 = math.exp %68 : vector<8x128xf32>
    %cst_19 = arith.constant 1.000000e+00 : f32
    %70 = vector.broadcast %cst_19 : f32 to vector<8x128xf32>
    %71 = arith.addf %70, %69 : vector<8x128xf32>
    %72 = arith.divf %70, %71 : vector<8x128xf32>
    %73 = vector.extract_strided_slice %72 {offsets = [0, 0], sizes = [8, 32], strides = [1, 1]} : vector<8x128xf32> to vector<8x32xf32>
    %74 = vector.extract_strided_slice %72 {offsets = [0, 32], sizes = [8, 32], strides = [1, 1]} : vector<8x128xf32> to vector<8x32xf32>
    %75 = vector.extract_strided_slice %72 {offsets = [0, 96], sizes = [8, 32], strides = [1, 1]} : vector<8x128xf32> to vector<8x32xf32>
    %76 = vector.extract_strided_slice %52 {offsets = [0, 64], sizes = [8, 32], strides = [1, 1]} : vector<8x128xf32> to vector<8x32xf32>
    %77 = math.tanh %76 : vector<8x32xf32>
    %78 = arith.mulf %74, %42 : vector<8x32xf32>
    %79 = arith.mulf %73, %77 : vector<8x32xf32>
    %80 = arith.addf %78, %79 : vector<8x32xf32>
    %81 = math.tanh %80 : vector<8x32xf32>
    %82 = arith.mulf %75, %81 : vector<8x32xf32>
    %c8 = arith.constant 8 : index
    %c0_20 = arith.constant 0 : index
    %83 = vector.load %arg5[%c8, %c0_20] : memref<64x64xf32, #tpu.memory_space<vmem>>, vector<8x32xf32>
    tpu.vector_store %arg5[%c8, %c0_20], %67 {strides = array<i32>} : memref<64x64xf32, #tpu.memory_space<vmem>>, vector<8x32xf32>,
    %c48 = arith.constant 48 : index
    %c32_21 = arith.constant 32 : index
    %84 = vector.load %arg5[%c48, %c32_21] : memref<64x64xf32, #tpu.memory_space<vmem>>, vector<8x32xf32>
    tpu.vector_store %arg5[%c48, %c32_21], %82 {strides = array<i32>} : memref<64x64xf32, #tpu.memory_space<vmem>>, vector<8x32xf32>,
    %85 = vector.extract_strided_slice %5 {offsets = [16, 0], sizes = [8, 128], strides = [1, 1]} : vector<64x256xf32> to vector<8x128xf32>
    %cst_22 = arith.constant dense<0.000000e+00> : vector<8x128xf32>
    %86 = tpu.matmul %67, %6, %cst_22 {dimension_numbers = #tpu.dot_dimension_numbers<[1], [0], [0], [1], [0, 0, 1, 1], [], []>} : vector<8x32xf32>, vector<32x128xf32>, vector<8x128xf32> -> vector<8x128xf32>
    %87 = arith.addf %85, %86 : vector<8x128xf32>
    %88 = vector.extract_strided_slice %5 {offsets = [40, 128], sizes = [8, 128], strides = [1, 1]} : vector<64x256xf32> to vector<8x128xf32>
    %cst_23 = arith.constant dense<0.000000e+00> : vector<8x128xf32>
    %89 = tpu.matmul %82, %7, %cst_23 {dimension_numbers = #tpu.dot_dimension_numbers<[1], [0], [0], [1], [0, 0, 1, 1], [], []>} : vector<8x32xf32>, vector<32x128xf32>, vector<8x128xf32> -> vector<8x128xf32>
    %90 = arith.addf %88, %89 : vector<8x128xf32>
    %91 = arith.negf %87 : vector<8x128xf32>
    %92 = math.exp %91 : vector<8x128xf32>
    %cst_24 = arith.constant 1.000000e+00 : f32
    %93 = vector.broadcast %cst_24 : f32 to vector<8x128xf32>
    %94 = arith.addf %93, %92 : vector<8x128xf32>
    %95 = arith.divf %93, %94 : vector<8x128xf32>
    %96 = vector.extract_strided_slice %95 {offsets = [0, 0], sizes = [8, 32], strides = [1, 1]} : vector<8x128xf32> to vector<8x32xf32>
    %97 = vector.extract_strided_slice %95 {offsets = [0, 32], sizes = [8, 32], strides = [1, 1]} : vector<8x128xf32> to vector<8x32xf32>
    %98 = vector.extract_strided_slice %95 {offsets = [0, 96], sizes = [8, 32], strides = [1, 1]} : vector<8x128xf32> to vector<8x32xf32>
    %99 = vector.extract_strided_slice %87 {offsets = [0, 64], sizes = [8, 32], strides = [1, 1]} : vector<8x128xf32> to vector<8x32xf32>
    %100 = math.tanh %99 : vector<8x32xf32>
    %101 = arith.mulf %97, %65 : vector<8x32xf32>
    %102 = arith.mulf %96, %100 : vector<8x32xf32>
    %103 = arith.addf %101, %102 : vector<8x32xf32>
    %104 = math.tanh %103 : vector<8x32xf32>
    %105 = arith.mulf %98, %104 : vector<8x32xf32>
    %106 = arith.negf %90 : vector<8x128xf32>
    %107 = math.exp %106 : vector<8x128xf32>
    %cst_25 = arith.constant 1.000000e+00 : f32
    %108 = vector.broadcast %cst_25 : f32 to vector<8x128xf32>
    %109 = arith.addf %108, %107 : vector<8x128xf32>
    %110 = arith.divf %108, %109 : vector<8x128xf32>
    %111 = vector.extract_strided_slice %110 {offsets = [0, 0], sizes = [8, 32], strides = [1, 1]} : vector<8x128xf32> to vector<8x32xf32>
    %112 = vector.extract_strided_slice %110 {offsets = [0, 32], sizes = [8, 32], strides = [1, 1]} : vector<8x128xf32> to vector<8x32xf32>
    %113 = vector.extract_strided_slice %110 {offsets = [0, 96], sizes = [8, 32], strides = [1, 1]} : vector<8x128xf32> to vector<8x32xf32>
    %114 = vector.extract_strided_slice %90 {offsets = [0, 64], sizes = [8, 32], strides = [1, 1]} : vector<8x128xf32> to vector<8x32xf32>
    %115 = math.tanh %114 : vector<8x32xf32>
    %116 = arith.mulf %112, %80 : vector<8x32xf32>
    %117 = arith.mulf %111, %115 : vector<8x32xf32>
    %118 = arith.addf %116, %117 : vector<8x32xf32>
    %119 = math.tanh %118 : vector<8x32xf32>
    %120 = arith.mulf %113, %119 : vector<8x32xf32>
    %c16 = arith.constant 16 : index
    %c0_26 = arith.constant 0 : index
    %121 = vector.load %arg5[%c16, %c0_26] : memref<64x64xf32, #tpu.memory_space<vmem>>, vector<8x32xf32>
    tpu.vector_store %arg5[%c16, %c0_26], %105 {strides = array<i32>} : memref<64x64xf32, #tpu.memory_space<vmem>>, vector<8x32xf32>,
    %c40 = arith.constant 40 : index
    %c32_27 = arith.constant 32 : index
    %122 = vector.load %arg5[%c40, %c32_27] : memref<64x64xf32, #tpu.memory_space<vmem>>, vector<8x32xf32>
    tpu.vector_store %arg5[%c40, %c32_27], %120 {strides = array<i32>} : memref<64x64xf32, #tpu.memory_space<vmem>>, vector<8x32xf32>,
    %123 = vector.extract_strided_slice %5 {offsets = [24, 0], sizes = [8, 128], strides = [1, 1]} : vector<64x256xf32> to vector<8x128xf32>
    %cst_28 = arith.constant dense<0.000000e+00> : vector<8x128xf32>
    %124 = tpu.matmul %105, %6, %cst_28 {dimension_numbers = #tpu.dot_dimension_numbers<[1], [0], [0], [1], [0, 0, 1, 1], [], []>} : vector<8x32xf32>, vector<32x128xf32>, vector<8x128xf32> -> vector<8x128xf32>
    %125 = arith.addf %123, %124 : vector<8x128xf32>
    %126 = vector.extract_strided_slice %5 {offsets = [32, 128], sizes = [8, 128], strides = [1, 1]} : vector<64x256xf32> to vector<8x128xf32>
    %cst_29 = arith.constant dense<0.000000e+00> : vector<8x128xf32>
    %127 = tpu.matmul %120, %7, %cst_29 {dimension_numbers = #tpu.dot_dimension_numbers<[1], [0], [0], [1], [0, 0, 1, 1], [], []>} : vector<8x32xf32>, vector<32x128xf32>, vector<8x128xf32> -> vector<8x128xf32>
    %128 = arith.addf %126, %127 : vector<8x128xf32>
    %129 = arith.negf %125 : vector<8x128xf32>
    %130 = math.exp %129 : vector<8x128xf32>
    %cst_30 = arith.constant 1.000000e+00 : f32
    %131 = vector.broadcast %cst_30 : f32 to vector<8x128xf32>
    %132 = arith.addf %131, %130 : vector<8x128xf32>
    %133 = arith.divf %131, %132 : vector<8x128xf32>
    %134 = vector.extract_strided_slice %133 {offsets = [0, 0], sizes = [8, 32], strides = [1, 1]} : vector<8x128xf32> to vector<8x32xf32>
    %135 = vector.extract_strided_slice %133 {offsets = [0, 32], sizes = [8, 32], strides = [1, 1]} : vector<8x128xf32> to vector<8x32xf32>
    %136 = vector.extract_strided_slice %133 {offsets = [0, 96], sizes = [8, 32], strides = [1, 1]} : vector<8x128xf32> to vector<8x32xf32>
    %137 = vector.extract_strided_slice %125 {offsets = [0, 64], sizes = [8, 32], strides = [1, 1]} : vector<8x128xf32> to vector<8x32xf32>
    %138 = math.tanh %137 : vector<8x32xf32>
    %139 = arith.mulf %135, %103 : vector<8x32xf32>
    %140 = arith.mulf %134, %138 : vector<8x32xf32>
    %141 = arith.addf %139, %140 : vector<8x32xf32>
    %142 = math.tanh %141 : vector<8x32xf32>
    %143 = arith.mulf %136, %142 : vector<8x32xf32>
    %144 = arith.negf %128 : vector<8x128xf32>
    %145 = math.exp %144 : vector<8x128xf32>
    %cst_31 = arith.constant 1.000000e+00 : f32
    %146 = vector.broadcast %cst_31 : f32 to vector<8x128xf32>
    %147 = arith.addf %146, %145 : vector<8x128xf32>
    %148 = arith.divf %146, %147 : vector<8x128xf32>
    %149 = vector.extract_strided_slice %148 {offsets = [0, 0], sizes = [8, 32], strides = [1, 1]} : vector<8x128xf32> to vector<8x32xf32>
    %150 = vector.extract_strided_slice %148 {offsets = [0, 32], sizes = [8, 32], strides = [1, 1]} : vector<8x128xf32> to vector<8x32xf32>
    %151 = vector.extract_strided_slice %148 {offsets = [0, 96], sizes = [8, 32], strides = [1, 1]} : vector<8x128xf32> to vector<8x32xf32>
    %152 = vector.extract_strided_slice %128 {offsets = [0, 64], sizes = [8, 32], strides = [1, 1]} : vector<8x128xf32> to vector<8x32xf32>
    %153 = math.tanh %152 : vector<8x32xf32>
    %154 = arith.mulf %150, %118 : vector<8x32xf32>
    %155 = arith.mulf %149, %153 : vector<8x32xf32>
    %156 = arith.addf %154, %155 : vector<8x32xf32>
    %157 = math.tanh %156 : vector<8x32xf32>
    %158 = arith.mulf %151, %157 : vector<8x32xf32>
    %c24 = arith.constant 24 : index
    %c0_32 = arith.constant 0 : index
    %159 = vector.load %arg5[%c24, %c0_32] : memref<64x64xf32, #tpu.memory_space<vmem>>, vector<8x32xf32>
    tpu.vector_store %arg5[%c24, %c0_32], %143 {strides = array<i32>} : memref<64x64xf32, #tpu.memory_space<vmem>>, vector<8x32xf32>,
    %c32_33 = arith.constant 32 : index
    %c32_34 = arith.constant 32 : index
    %160 = vector.load %arg5[%c32_33, %c32_34] : memref<64x64xf32, #tpu.memory_space<vmem>>, vector<8x32xf32>
    tpu.vector_store %arg5[%c32_33, %c32_34], %158 {strides = array<i32>} : memref<64x64xf32, #tpu.memory_space<vmem>>, vector<8x32xf32>,
    %161 = vector.extract_strided_slice %5 {offsets = [32, 0], sizes = [8, 128], strides = [1, 1]} : vector<64x256xf32> to vector<8x128xf32>
    %cst_35 = arith.constant dense<0.000000e+00> : vector<8x128xf32>
    %162 = tpu.matmul %143, %6, %cst_35 {dimension_numbers = #tpu.dot_dimension_numbers<[1], [0], [0], [1], [0, 0, 1, 1], [], []>} : vector<8x32xf32>, vector<32x128xf32>, vector<8x128xf32> -> vector<8x128xf32>
    %163 = arith.addf %161, %162 : vector<8x128xf32>
    %164 = vector.extract_strided_slice %5 {offsets = [24, 128], sizes = [8, 128], strides = [1, 1]} : vector<64x256xf32> to vector<8x128xf32>
    %cst_36 = arith.constant dense<0.000000e+00> : vector<8x128xf32>
    %165 = tpu.matmul %158, %7, %cst_36 {dimension_numbers = #tpu.dot_dimension_numbers<[1], [0], [0], [1], [0, 0, 1, 1], [], []>} : vector<8x32xf32>, vector<32x128xf32>, vector<8x128xf32> -> vector<8x128xf32>
    %166 = arith.addf %164, %165 : vector<8x128xf32>
    %167 = arith.negf %163 : vector<8x128xf32>
    %168 = math.exp %167 : vector<8x128xf32>
    %cst_37 = arith.constant 1.000000e+00 : f32
    %169 = vector.broadcast %cst_37 : f32 to vector<8x128xf32>
    %170 = arith.addf %169, %168 : vector<8x128xf32>
    %171 = arith.divf %169, %170 : vector<8x128xf32>
    %172 = vector.extract_strided_slice %171 {offsets = [0, 0], sizes = [8, 32], strides = [1, 1]} : vector<8x128xf32> to vector<8x32xf32>
    %173 = vector.extract_strided_slice %171 {offsets = [0, 32], sizes = [8, 32], strides = [1, 1]} : vector<8x128xf32> to vector<8x32xf32>
    %174 = vector.extract_strided_slice %171 {offsets = [0, 96], sizes = [8, 32], strides = [1, 1]} : vector<8x128xf32> to vector<8x32xf32>
    %175 = vector.extract_strided_slice %163 {offsets = [0, 64], sizes = [8, 32], strides = [1, 1]} : vector<8x128xf32> to vector<8x32xf32>
    %176 = math.tanh %175 : vector<8x32xf32>
    %177 = arith.mulf %173, %141 : vector<8x32xf32>
    %178 = arith.mulf %172, %176 : vector<8x32xf32>
    %179 = arith.addf %177, %178 : vector<8x32xf32>
    %180 = math.tanh %179 : vector<8x32xf32>
    %181 = arith.mulf %174, %180 : vector<8x32xf32>
    %182 = arith.negf %166 : vector<8x128xf32>
    %183 = math.exp %182 : vector<8x128xf32>
    %cst_38 = arith.constant 1.000000e+00 : f32
    %184 = vector.broadcast %cst_38 : f32 to vector<8x128xf32>
    %185 = arith.addf %184, %183 : vector<8x128xf32>
    %186 = arith.divf %184, %185 : vector<8x128xf32>
    %187 = vector.extract_strided_slice %186 {offsets = [0, 0], sizes = [8, 32], strides = [1, 1]} : vector<8x128xf32> to vector<8x32xf32>
    %188 = vector.extract_strided_slice %186 {offsets = [0, 32], sizes = [8, 32], strides = [1, 1]} : vector<8x128xf32> to vector<8x32xf32>
    %189 = vector.extract_strided_slice %186 {offsets = [0, 96], sizes = [8, 32], strides = [1, 1]} : vector<8x128xf32> to vector<8x32xf32>
    %190 = vector.extract_strided_slice %166 {offsets = [0, 64], sizes = [8, 32], strides = [1, 1]} : vector<8x128xf32> to vector<8x32xf32>
    %191 = math.tanh %190 : vector<8x32xf32>
    %192 = arith.mulf %188, %156 : vector<8x32xf32>
    %193 = arith.mulf %187, %191 : vector<8x32xf32>
    %194 = arith.addf %192, %193 : vector<8x32xf32>
    %195 = math.tanh %194 : vector<8x32xf32>
    %196 = arith.mulf %189, %195 : vector<8x32xf32>
    %c32_39 = arith.constant 32 : index
    %c0_40 = arith.constant 0 : index
    %197 = vector.load %arg5[%c32_39, %c0_40] : memref<64x64xf32, #tpu.memory_space<vmem>>, vector<8x32xf32>
    tpu.vector_store %arg5[%c32_39, %c0_40], %181 {strides = array<i32>} : memref<64x64xf32, #tpu.memory_space<vmem>>, vector<8x32xf32>,
    %c24_41 = arith.constant 24 : index
    %c32_42 = arith.constant 32 : index
    %198 = vector.load %arg5[%c24_41, %c32_42] : memref<64x64xf32, #tpu.memory_space<vmem>>, vector<8x32xf32>
    tpu.vector_store %arg5[%c24_41, %c32_42], %196 {strides = array<i32>} : memref<64x64xf32, #tpu.memory_space<vmem>>, vector<8x32xf32>,
    %199 = vector.extract_strided_slice %5 {offsets = [40, 0], sizes = [8, 128], strides = [1, 1]} : vector<64x256xf32> to vector<8x128xf32>
    %cst_43 = arith.constant dense<0.000000e+00> : vector<8x128xf32>
    %200 = tpu.matmul %181, %6, %cst_43 {dimension_numbers = #tpu.dot_dimension_numbers<[1], [0], [0], [1], [0, 0, 1, 1], [], []>} : vector<8x32xf32>, vector<32x128xf32>, vector<8x128xf32> -> vector<8x128xf32>
    %201 = arith.addf %199, %200 : vector<8x128xf32>
    %202 = vector.extract_strided_slice %5 {offsets = [16, 128], sizes = [8, 128], strides = [1, 1]} : vector<64x256xf32> to vector<8x128xf32>
    %cst_44 = arith.constant dense<0.000000e+00> : vector<8x128xf32>
    %203 = tpu.matmul %196, %7, %cst_44 {dimension_numbers = #tpu.dot_dimension_numbers<[1], [0], [0], [1], [0, 0, 1, 1], [], []>} : vector<8x32xf32>, vector<32x128xf32>, vector<8x128xf32> -> vector<8x128xf32>
    %204 = arith.addf %202, %203 : vector<8x128xf32>
    %205 = arith.negf %201 : vector<8x128xf32>
    %206 = math.exp %205 : vector<8x128xf32>
    %cst_45 = arith.constant 1.000000e+00 : f32
    %207 = vector.broadcast %cst_45 : f32 to vector<8x128xf32>
    %208 = arith.addf %207, %206 : vector<8x128xf32>
    %209 = arith.divf %207, %208 : vector<8x128xf32>
    %210 = vector.extract_strided_slice %209 {offsets = [0, 0], sizes = [8, 32], strides = [1, 1]} : vector<8x128xf32> to vector<8x32xf32>
    %211 = vector.extract_strided_slice %209 {offsets = [0, 32], sizes = [8, 32], strides = [1, 1]} : vector<8x128xf32> to vector<8x32xf32>
    %212 = vector.extract_strided_slice %209 {offsets = [0, 96], sizes = [8, 32], strides = [1, 1]} : vector<8x128xf32> to vector<8x32xf32>
    %213 = vector.extract_strided_slice %201 {offsets = [0, 64], sizes = [8, 32], strides = [1, 1]} : vector<8x128xf32> to vector<8x32xf32>
    %214 = math.tanh %213 : vector<8x32xf32>
    %215 = arith.mulf %211, %179 : vector<8x32xf32>
    %216 = arith.mulf %210, %214 : vector<8x32xf32>
    %217 = arith.addf %215, %216 : vector<8x32xf32>
    %218 = math.tanh %217 : vector<8x32xf32>
    %219 = arith.mulf %212, %218 : vector<8x32xf32>
    %220 = arith.negf %204 : vector<8x128xf32>
    %221 = math.exp %220 : vector<8x128xf32>
    %cst_46 = arith.constant 1.000000e+00 : f32
    %222 = vector.broadcast %cst_46 : f32 to vector<8x128xf32>
    %223 = arith.addf %222, %221 : vector<8x128xf32>
    %224 = arith.divf %222, %223 : vector<8x128xf32>
    %225 = vector.extract_strided_slice %224 {offsets = [0, 0], sizes = [8, 32], strides = [1, 1]} : vector<8x128xf32> to vector<8x32xf32>
    %226 = vector.extract_strided_slice %224 {offsets = [0, 32], sizes = [8, 32], strides = [1, 1]} : vector<8x128xf32> to vector<8x32xf32>
    %227 = vector.extract_strided_slice %224 {offsets = [0, 96], sizes = [8, 32], strides = [1, 1]} : vector<8x128xf32> to vector<8x32xf32>
    %228 = vector.extract_strided_slice %204 {offsets = [0, 64], sizes = [8, 32], strides = [1, 1]} : vector<8x128xf32> to vector<8x32xf32>
    %229 = math.tanh %228 : vector<8x32xf32>
    %230 = arith.mulf %226, %194 : vector<8x32xf32>
    %231 = arith.mulf %225, %229 : vector<8x32xf32>
    %232 = arith.addf %230, %231 : vector<8x32xf32>
    %233 = math.tanh %232 : vector<8x32xf32>
    %234 = arith.mulf %227, %233 : vector<8x32xf32>
    %c40_47 = arith.constant 40 : index
    %c0_48 = arith.constant 0 : index
    %235 = vector.load %arg5[%c40_47, %c0_48] : memref<64x64xf32, #tpu.memory_space<vmem>>, vector<8x32xf32>
    tpu.vector_store %arg5[%c40_47, %c0_48], %219 {strides = array<i32>} : memref<64x64xf32, #tpu.memory_space<vmem>>, vector<8x32xf32>,
    %c16_49 = arith.constant 16 : index
    %c32_50 = arith.constant 32 : index
    %236 = vector.load %arg5[%c16_49, %c32_50] : memref<64x64xf32, #tpu.memory_space<vmem>>, vector<8x32xf32>
    tpu.vector_store %arg5[%c16_49, %c32_50], %234 {strides = array<i32>} : memref<64x64xf32, #tpu.memory_space<vmem>>, vector<8x32xf32>,
    %237 = vector.extract_strided_slice %5 {offsets = [48, 0], sizes = [8, 128], strides = [1, 1]} : vector<64x256xf32> to vector<8x128xf32>
    %cst_51 = arith.constant dense<0.000000e+00> : vector<8x128xf32>
    %238 = tpu.matmul %219, %6, %cst_51 {dimension_numbers = #tpu.dot_dimension_numbers<[1], [0], [0], [1], [0, 0, 1, 1], [], []>} : vector<8x32xf32>, vector<32x128xf32>, vector<8x128xf32> -> vector<8x128xf32>
    %239 = arith.addf %237, %238 : vector<8x128xf32>
    %240 = vector.extract_strided_slice %5 {offsets = [8, 128], sizes = [8, 128], strides = [1, 1]} : vector<64x256xf32> to vector<8x128xf32>
    %cst_52 = arith.constant dense<0.000000e+00> : vector<8x128xf32>
    %241 = tpu.matmul %234, %7, %cst_52 {dimension_numbers = #tpu.dot_dimension_numbers<[1], [0], [0], [1], [0, 0, 1, 1], [], []>} : vector<8x32xf32>, vector<32x128xf32>, vector<8x128xf32> -> vector<8x128xf32>
    %242 = arith.addf %240, %241 : vector<8x128xf32>
    %243 = arith.negf %239 : vector<8x128xf32>
    %244 = math.exp %243 : vector<8x128xf32>
    %cst_53 = arith.constant 1.000000e+00 : f32
    %245 = vector.broadcast %cst_53 : f32 to vector<8x128xf32>
    %246 = arith.addf %245, %244 : vector<8x128xf32>
    %247 = arith.divf %245, %246 : vector<8x128xf32>
    %248 = vector.extract_strided_slice %247 {offsets = [0, 0], sizes = [8, 32], strides = [1, 1]} : vector<8x128xf32> to vector<8x32xf32>
    %249 = vector.extract_strided_slice %247 {offsets = [0, 32], sizes = [8, 32], strides = [1, 1]} : vector<8x128xf32> to vector<8x32xf32>
    %250 = vector.extract_strided_slice %247 {offsets = [0, 96], sizes = [8, 32], strides = [1, 1]} : vector<8x128xf32> to vector<8x32xf32>
    %251 = vector.extract_strided_slice %239 {offsets = [0, 64], sizes = [8, 32], strides = [1, 1]} : vector<8x128xf32> to vector<8x32xf32>
    %252 = math.tanh %251 : vector<8x32xf32>
    %253 = arith.mulf %249, %217 : vector<8x32xf32>
    %254 = arith.mulf %248, %252 : vector<8x32xf32>
    %255 = arith.addf %253, %254 : vector<8x32xf32>
    %256 = math.tanh %255 : vector<8x32xf32>
    %257 = arith.mulf %250, %256 : vector<8x32xf32>
    %258 = arith.negf %242 : vector<8x128xf32>
    %259 = math.exp %258 : vector<8x128xf32>
    %cst_54 = arith.constant 1.000000e+00 : f32
    %260 = vector.broadcast %cst_54 : f32 to vector<8x128xf32>
    %261 = arith.addf %260, %259 : vector<8x128xf32>
    %262 = arith.divf %260, %261 : vector<8x128xf32>
    %263 = vector.extract_strided_slice %262 {offsets = [0, 0], sizes = [8, 32], strides = [1, 1]} : vector<8x128xf32> to vector<8x32xf32>
    %264 = vector.extract_strided_slice %262 {offsets = [0, 32], sizes = [8, 32], strides = [1, 1]} : vector<8x128xf32> to vector<8x32xf32>
    %265 = vector.extract_strided_slice %262 {offsets = [0, 96], sizes = [8, 32], strides = [1, 1]} : vector<8x128xf32> to vector<8x32xf32>
    %266 = vector.extract_strided_slice %242 {offsets = [0, 64], sizes = [8, 32], strides = [1, 1]} : vector<8x128xf32> to vector<8x32xf32>
    %267 = math.tanh %266 : vector<8x32xf32>
    %268 = arith.mulf %264, %232 : vector<8x32xf32>
    %269 = arith.mulf %263, %267 : vector<8x32xf32>
    %270 = arith.addf %268, %269 : vector<8x32xf32>
    %271 = math.tanh %270 : vector<8x32xf32>
    %272 = arith.mulf %265, %271 : vector<8x32xf32>
    %c48_55 = arith.constant 48 : index
    %c0_56 = arith.constant 0 : index
    %273 = vector.load %arg5[%c48_55, %c0_56] : memref<64x64xf32, #tpu.memory_space<vmem>>, vector<8x32xf32>
    tpu.vector_store %arg5[%c48_55, %c0_56], %257 {strides = array<i32>} : memref<64x64xf32, #tpu.memory_space<vmem>>, vector<8x32xf32>,
    %c8_57 = arith.constant 8 : index
    %c32_58 = arith.constant 32 : index
    %274 = vector.load %arg5[%c8_57, %c32_58] : memref<64x64xf32, #tpu.memory_space<vmem>>, vector<8x32xf32>
    tpu.vector_store %arg5[%c8_57, %c32_58], %272 {strides = array<i32>} : memref<64x64xf32, #tpu.memory_space<vmem>>, vector<8x32xf32>,
    %275 = vector.extract_strided_slice %5 {offsets = [56, 0], sizes = [8, 128], strides = [1, 1]} : vector<64x256xf32> to vector<8x128xf32>
    %cst_59 = arith.constant dense<0.000000e+00> : vector<8x128xf32>
    %276 = tpu.matmul %257, %6, %cst_59 {dimension_numbers = #tpu.dot_dimension_numbers<[1], [0], [0], [1], [0, 0, 1, 1], [], []>} : vector<8x32xf32>, vector<32x128xf32>, vector<8x128xf32> -> vector<8x128xf32>
    %277 = arith.addf %275, %276 : vector<8x128xf32>
    %278 = vector.extract_strided_slice %5 {offsets = [0, 128], sizes = [8, 128], strides = [1, 1]} : vector<64x256xf32> to vector<8x128xf32>
    %cst_60 = arith.constant dense<0.000000e+00> : vector<8x128xf32>
    %279 = tpu.matmul %272, %7, %cst_60 {dimension_numbers = #tpu.dot_dimension_numbers<[1], [0], [0], [1], [0, 0, 1, 1], [], []>} : vector<8x32xf32>, vector<32x128xf32>, vector<8x128xf32> -> vector<8x128xf32>
    %280 = arith.addf %278, %279 : vector<8x128xf32>
    %281 = arith.negf %277 : vector<8x128xf32>
    %282 = math.exp %281 : vector<8x128xf32>
    %cst_61 = arith.constant 1.000000e+00 : f32
    %283 = vector.broadcast %cst_61 : f32 to vector<8x128xf32>
    %284 = arith.addf %283, %282 : vector<8x128xf32>
    %285 = arith.divf %283, %284 : vector<8x128xf32>
    %286 = vector.extract_strided_slice %285 {offsets = [0, 0], sizes = [8, 32], strides = [1, 1]} : vector<8x128xf32> to vector<8x32xf32>
    %287 = vector.extract_strided_slice %285 {offsets = [0, 32], sizes = [8, 32], strides = [1, 1]} : vector<8x128xf32> to vector<8x32xf32>
    %288 = vector.extract_strided_slice %285 {offsets = [0, 96], sizes = [8, 32], strides = [1, 1]} : vector<8x128xf32> to vector<8x32xf32>
    %289 = vector.extract_strided_slice %277 {offsets = [0, 64], sizes = [8, 32], strides = [1, 1]} : vector<8x128xf32> to vector<8x32xf32>
    %290 = math.tanh %289 : vector<8x32xf32>
    %291 = arith.mulf %287, %255 : vector<8x32xf32>
    %292 = arith.mulf %286, %290 : vector<8x32xf32>
    %293 = arith.addf %291, %292 : vector<8x32xf32>
    %294 = math.tanh %293 : vector<8x32xf32>
    %295 = arith.mulf %288, %294 : vector<8x32xf32>
    %296 = arith.negf %280 : vector<8x128xf32>
    %297 = math.exp %296 : vector<8x128xf32>
    %cst_62 = arith.constant 1.000000e+00 : f32
    %298 = vector.broadcast %cst_62 : f32 to vector<8x128xf32>
    %299 = arith.addf %298, %297 : vector<8x128xf32>
    %300 = arith.divf %298, %299 : vector<8x128xf32>
    %301 = vector.extract_strided_slice %300 {offsets = [0, 0], sizes = [8, 32], strides = [1, 1]} : vector<8x128xf32> to vector<8x32xf32>
    %302 = vector.extract_strided_slice %300 {offsets = [0, 32], sizes = [8, 32], strides = [1, 1]} : vector<8x128xf32> to vector<8x32xf32>
    %303 = vector.extract_strided_slice %300 {offsets = [0, 96], sizes = [8, 32], strides = [1, 1]} : vector<8x128xf32> to vector<8x32xf32>
    %304 = vector.extract_strided_slice %280 {offsets = [0, 64], sizes = [8, 32], strides = [1, 1]} : vector<8x128xf32> to vector<8x32xf32>
    %305 = math.tanh %304 : vector<8x32xf32>
    %306 = arith.mulf %302, %270 : vector<8x32xf32>
    %307 = arith.mulf %301, %305 : vector<8x32xf32>
    %308 = arith.addf %306, %307 : vector<8x32xf32>
    %309 = math.tanh %308 : vector<8x32xf32>
    %310 = arith.mulf %303, %309 : vector<8x32xf32>
    %c56_63 = arith.constant 56 : index
    %c0_64 = arith.constant 0 : index
    %311 = vector.load %arg5[%c56_63, %c0_64] : memref<64x64xf32, #tpu.memory_space<vmem>>, vector<8x32xf32>
    tpu.vector_store %arg5[%c56_63, %c0_64], %295 {strides = array<i32>} : memref<64x64xf32, #tpu.memory_space<vmem>>, vector<8x32xf32>,
    %c0_65 = arith.constant 0 : index
    %c32_66 = arith.constant 32 : index
    %312 = vector.load %arg5[%c0_65, %c32_66] : memref<64x64xf32, #tpu.memory_space<vmem>>, vector<8x32xf32>
    tpu.vector_store %arg5[%c0_65, %c32_66], %310 {strides = array<i32>} : memref<64x64xf32, #tpu.memory_space<vmem>>, vector<8x32xf32>,
    return
  }
}

module attributes {stable_mosaic.version = 11 : i64} {
  func.func @kernel(%arg0: memref<64x64xf32, #tpu.memory_space<vmem>>, %arg1: memref<64x256xf32, #tpu.memory_space<vmem>>, %arg2: memref<32x128xf32, #tpu.memory_space<vmem>>, %arg3: memref<32x128xf32, #tpu.memory_space<vmem>>, %arg4: memref<1x256xf32, #tpu.memory_space<vmem>>, %arg5: memref<64x2xf32, #tpu.memory_space<vmem>>, %arg6: memref<1x2xf32, #tpu.memory_space<vmem>>, %arg7: memref<64x64xf32, #tpu.memory_space<vmem>>, %arg8: memref<64x2xf32, #tpu.memory_space<vmem>>) attributes {dimension_semantics = [], scalar_prefetch = 0 : i64, scratch_operands = 0 : i64, tpu.core_type = #tpu.core_type<tc>} {
    %c0 = arith.constant 0 : index
    %c0_0 = arith.constant 0 : index
    %0 = vector.load %arg0[%c0, %c0_0] : memref<64x64xf32, #tpu.memory_space<vmem>>, vector<64x64xf32>
    %c0_1 = arith.constant 0 : index
    %c0_2 = arith.constant 0 : index
    %1 = vector.load %arg1[%c0_1, %c0_2] : memref<64x256xf32, #tpu.memory_space<vmem>>, vector<64x256xf32>
    %cst = arith.constant dense<0.000000e+00> : vector<64x256xf32>
    %2 = tpu.matmul %0, %1, %cst {dimension_numbers = #tpu.dot_dimension_numbers<[1], [0], [0], [1], [0, 0, 1, 1], [], []>} : vector<64x64xf32>, vector<64x256xf32>, vector<64x256xf32> -> vector<64x256xf32>
    %c0_3 = arith.constant 0 : index
    %c0_4 = arith.constant 0 : index
    %3 = vector.load %arg4[%c0_3, %c0_4] : memref<1x256xf32, #tpu.memory_space<vmem>>, vector<1x256xf32>
    %4 = vector.broadcast %3 : vector<1x256xf32> to vector<64x256xf32>
    %5 = arith.addf %2, %4 : vector<64x256xf32>
    %c0_5 = arith.constant 0 : index
    %c0_6 = arith.constant 0 : index
    %6 = vector.load %arg2[%c0_5, %c0_6] : memref<32x128xf32, #tpu.memory_space<vmem>>, vector<32x128xf32>
    %c0_7 = arith.constant 0 : index
    %c0_8 = arith.constant 0 : index
    %7 = vector.load %arg3[%c0_7, %c0_8] : memref<32x128xf32, #tpu.memory_space<vmem>>, vector<32x128xf32>
    %cst_9 = arith.constant 0.000000e+00 : f32
    %8 = vector.broadcast %cst_9 : f32 to vector<8x32xf32>
    %9 = vector.extract_strided_slice %5 {offsets = [0, 0], sizes = [8, 128], strides = [1, 1]} : vector<64x256xf32> to vector<8x128xf32>
    %cst_10 = arith.constant dense<0.000000e+00> : vector<8x128xf32>
    %10 = tpu.matmul %8, %6, %cst_10 {dimension_numbers = #tpu.dot_dimension_numbers<[1], [0], [0], [1], [0, 0, 1, 1], [], []>} : vector<8x32xf32>, vector<32x128xf32>, vector<8x128xf32> -> vector<8x128xf32>
    %11 = arith.addf %9, %10 : vector<8x128xf32>
    %12 = vector.extract_strided_slice %5 {offsets = [56, 128], sizes = [8, 128], strides = [1, 1]} : vector<64x256xf32> to vector<8x128xf32>
    %cst_11 = arith.constant dense<0.000000e+00> : vector<8x128xf32>
    %13 = tpu.matmul %8, %7, %cst_11 {dimension_numbers = #tpu.dot_dimension_numbers<[1], [0], [0], [1], [0, 0, 1, 1], [], []>} : vector<8x32xf32>, vector<32x128xf32>, vector<8x128xf32> -> vector<8x128xf32>
    %14 = arith.addf %12, %13 : vector<8x128xf32>
    %15 = arith.negf %11 : vector<8x128xf32>
    %16 = math.exp %15 : vector<8x128xf32>
    %cst_12 = arith.constant 1.000000e+00 : f32
    %17 = vector.broadcast %cst_12 : f32 to vector<8x128xf32>
    %18 = arith.addf %17, %16 : vector<8x128xf32>
    %19 = arith.divf %17, %18 : vector<8x128xf32>
    %20 = vector.extract_strided_slice %19 {offsets = [0, 0], sizes = [8, 32], strides = [1, 1]} : vector<8x128xf32> to vector<8x32xf32>
    %21 = vector.extract_strided_slice %19 {offsets = [0, 32], sizes = [8, 32], strides = [1, 1]} : vector<8x128xf32> to vector<8x32xf32>
    %22 = vector.extract_strided_slice %19 {offsets = [0, 96], sizes = [8, 32], strides = [1, 1]} : vector<8x128xf32> to vector<8x32xf32>
    %23 = vector.extract_strided_slice %11 {offsets = [0, 64], sizes = [8, 32], strides = [1, 1]} : vector<8x128xf32> to vector<8x32xf32>
    %24 = math.tanh %23 : vector<8x32xf32>
    %25 = arith.mulf %21, %8 : vector<8x32xf32>
    %26 = arith.mulf %20, %24 : vector<8x32xf32>
    %27 = arith.addf %25, %26 : vector<8x32xf32>
    %28 = math.tanh %27 : vector<8x32xf32>
    %29 = arith.mulf %22, %28 : vector<8x32xf32>
    %30 = arith.negf %14 : vector<8x128xf32>
    %31 = math.exp %30 : vector<8x128xf32>
    %cst_13 = arith.constant 1.000000e+00 : f32
    %32 = vector.broadcast %cst_13 : f32 to vector<8x128xf32>
    %33 = arith.addf %32, %31 : vector<8x128xf32>
    %34 = arith.divf %32, %33 : vector<8x128xf32>
    %35 = vector.extract_strided_slice %34 {offsets = [0, 0], sizes = [8, 32], strides = [1, 1]} : vector<8x128xf32> to vector<8x32xf32>
    %36 = vector.extract_strided_slice %34 {offsets = [0, 32], sizes = [8, 32], strides = [1, 1]} : vector<8x128xf32> to vector<8x32xf32>
    %37 = vector.extract_strided_slice %34 {offsets = [0, 96], sizes = [8, 32], strides = [1, 1]} : vector<8x128xf32> to vector<8x32xf32>
    %38 = vector.extract_strided_slice %14 {offsets = [0, 64], sizes = [8, 32], strides = [1, 1]} : vector<8x128xf32> to vector<8x32xf32>
    %39 = math.tanh %38 : vector<8x32xf32>
    %40 = arith.mulf %36, %8 : vector<8x32xf32>
    %41 = arith.mulf %35, %39 : vector<8x32xf32>
    %42 = arith.addf %40, %41 : vector<8x32xf32>
    %43 = math.tanh %42 : vector<8x32xf32>
    %44 = arith.mulf %37, %43 : vector<8x32xf32>
    %c0_14 = arith.constant 0 : index
    %c0_15 = arith.constant 0 : index
    %45 = vector.load %arg7[%c0_14, %c0_15] : memref<64x64xf32, #tpu.memory_space<vmem>>, vector<8x32xf32>
    tpu.vector_store %arg7[%c0_14, %c0_15], %29 {strides = array<i32>} : memref<64x64xf32, #tpu.memory_space<vmem>>, vector<8x32xf32>,
    %c56 = arith.constant 56 : index
    %c32 = arith.constant 32 : index
    %46 = vector.load %arg7[%c56, %c32] : memref<64x64xf32, #tpu.memory_space<vmem>>, vector<8x32xf32>
    tpu.vector_store %arg7[%c56, %c32], %44 {strides = array<i32>} : memref<64x64xf32, #tpu.memory_space<vmem>>, vector<8x32xf32>,
    %47 = vector.extract_strided_slice %5 {offsets = [8, 0], sizes = [8, 128], strides = [1, 1]} : vector<64x256xf32> to vector<8x128xf32>
    %cst_16 = arith.constant dense<0.000000e+00> : vector<8x128xf32>
    %48 = tpu.matmul %29, %6, %cst_16 {dimension_numbers = #tpu.dot_dimension_numbers<[1], [0], [0], [1], [0, 0, 1, 1], [], []>} : vector<8x32xf32>, vector<32x128xf32>, vector<8x128xf32> -> vector<8x128xf32>
    %49 = arith.addf %47, %48 : vector<8x128xf32>
    %50 = vector.extract_strided_slice %5 {offsets = [48, 128], sizes = [8, 128], strides = [1, 1]} : vector<64x256xf32> to vector<8x128xf32>
    %cst_17 = arith.constant dense<0.000000e+00> : vector<8x128xf32>
    %51 = tpu.matmul %44, %7, %cst_17 {dimension_numbers = #tpu.dot_dimension_numbers<[1], [0], [0], [1], [0, 0, 1, 1], [], []>} : vector<8x32xf32>, vector<32x128xf32>, vector<8x128xf32> -> vector<8x128xf32>
    %52 = arith.addf %50, %51 : vector<8x128xf32>
    %53 = arith.negf %49 : vector<8x128xf32>
    %54 = math.exp %53 : vector<8x128xf32>
    %cst_18 = arith.constant 1.000000e+00 : f32
    %55 = vector.broadcast %cst_18 : f32 to vector<8x128xf32>
    %56 = arith.addf %55, %54 : vector<8x128xf32>
    %57 = arith.divf %55, %56 : vector<8x128xf32>
    %58 = vector.extract_strided_slice %57 {offsets = [0, 0], sizes = [8, 32], strides = [1, 1]} : vector<8x128xf32> to vector<8x32xf32>
    %59 = vector.extract_strided_slice %57 {offsets = [0, 32], sizes = [8, 32], strides = [1, 1]} : vector<8x128xf32> to vector<8x32xf32>
    %60 = vector.extract_strided_slice %57 {offsets = [0, 96], sizes = [8, 32], strides = [1, 1]} : vector<8x128xf32> to vector<8x32xf32>
    %61 = vector.extract_strided_slice %49 {offsets = [0, 64], sizes = [8, 32], strides = [1, 1]} : vector<8x128xf32> to vector<8x32xf32>
    %62 = math.tanh %61 : vector<8x32xf32>
    %63 = arith.mulf %59, %27 : vector<8x32xf32>
    %64 = arith.mulf %58, %62 : vector<8x32xf32>
    %65 = arith.addf %63, %64 : vector<8x32xf32>
    %66 = math.tanh %65 : vector<8x32xf32>
    %67 = arith.mulf %60, %66 : vector<8x32xf32>
    %68 = arith.negf %52 : vector<8x128xf32>
    %69 = math.exp %68 : vector<8x128xf32>
    %cst_19 = arith.constant 1.000000e+00 : f32
    %70 = vector.broadcast %cst_19 : f32 to vector<8x128xf32>
    %71 = arith.addf %70, %69 : vector<8x128xf32>
    %72 = arith.divf %70, %71 : vector<8x128xf32>
    %73 = vector.extract_strided_slice %72 {offsets = [0, 0], sizes = [8, 32], strides = [1, 1]} : vector<8x128xf32> to vector<8x32xf32>
    %74 = vector.extract_strided_slice %72 {offsets = [0, 32], sizes = [8, 32], strides = [1, 1]} : vector<8x128xf32> to vector<8x32xf32>
    %75 = vector.extract_strided_slice %72 {offsets = [0, 96], sizes = [8, 32], strides = [1, 1]} : vector<8x128xf32> to vector<8x32xf32>
    %76 = vector.extract_strided_slice %52 {offsets = [0, 64], sizes = [8, 32], strides = [1, 1]} : vector<8x128xf32> to vector<8x32xf32>
    %77 = math.tanh %76 : vector<8x32xf32>
    %78 = arith.mulf %74, %42 : vector<8x32xf32>
    %79 = arith.mulf %73, %77 : vector<8x32xf32>
    %80 = arith.addf %78, %79 : vector<8x32xf32>
    %81 = math.tanh %80 : vector<8x32xf32>
    %82 = arith.mulf %75, %81 : vector<8x32xf32>
    %c8 = arith.constant 8 : index
    %c0_20 = arith.constant 0 : index
    %83 = vector.load %arg7[%c8, %c0_20] : memref<64x64xf32, #tpu.memory_space<vmem>>, vector<8x32xf32>
    tpu.vector_store %arg7[%c8, %c0_20], %67 {strides = array<i32>} : memref<64x64xf32, #tpu.memory_space<vmem>>, vector<8x32xf32>,
    %c48 = arith.constant 48 : index
    %c32_21 = arith.constant 32 : index
    %84 = vector.load %arg7[%c48, %c32_21] : memref<64x64xf32, #tpu.memory_space<vmem>>, vector<8x32xf32>
    tpu.vector_store %arg7[%c48, %c32_21], %82 {strides = array<i32>} : memref<64x64xf32, #tpu.memory_space<vmem>>, vector<8x32xf32>,
    %85 = vector.extract_strided_slice %5 {offsets = [16, 0], sizes = [8, 128], strides = [1, 1]} : vector<64x256xf32> to vector<8x128xf32>
    %cst_22 = arith.constant dense<0.000000e+00> : vector<8x128xf32>
    %86 = tpu.matmul %67, %6, %cst_22 {dimension_numbers = #tpu.dot_dimension_numbers<[1], [0], [0], [1], [0, 0, 1, 1], [], []>} : vector<8x32xf32>, vector<32x128xf32>, vector<8x128xf32> -> vector<8x128xf32>
    %87 = arith.addf %85, %86 : vector<8x128xf32>
    %88 = vector.extract_strided_slice %5 {offsets = [40, 128], sizes = [8, 128], strides = [1, 1]} : vector<64x256xf32> to vector<8x128xf32>
    %cst_23 = arith.constant dense<0.000000e+00> : vector<8x128xf32>
    %89 = tpu.matmul %82, %7, %cst_23 {dimension_numbers = #tpu.dot_dimension_numbers<[1], [0], [0], [1], [0, 0, 1, 1], [], []>} : vector<8x32xf32>, vector<32x128xf32>, vector<8x128xf32> -> vector<8x128xf32>
    %90 = arith.addf %88, %89 : vector<8x128xf32>
    %91 = arith.negf %87 : vector<8x128xf32>
    %92 = math.exp %91 : vector<8x128xf32>
    %cst_24 = arith.constant 1.000000e+00 : f32
    %93 = vector.broadcast %cst_24 : f32 to vector<8x128xf32>
    %94 = arith.addf %93, %92 : vector<8x128xf32>
    %95 = arith.divf %93, %94 : vector<8x128xf32>
    %96 = vector.extract_strided_slice %95 {offsets = [0, 0], sizes = [8, 32], strides = [1, 1]} : vector<8x128xf32> to vector<8x32xf32>
    %97 = vector.extract_strided_slice %95 {offsets = [0, 32], sizes = [8, 32], strides = [1, 1]} : vector<8x128xf32> to vector<8x32xf32>
    %98 = vector.extract_strided_slice %95 {offsets = [0, 96], sizes = [8, 32], strides = [1, 1]} : vector<8x128xf32> to vector<8x32xf32>
    %99 = vector.extract_strided_slice %87 {offsets = [0, 64], sizes = [8, 32], strides = [1, 1]} : vector<8x128xf32> to vector<8x32xf32>
    %100 = math.tanh %99 : vector<8x32xf32>
    %101 = arith.mulf %97, %65 : vector<8x32xf32>
    %102 = arith.mulf %96, %100 : vector<8x32xf32>
    %103 = arith.addf %101, %102 : vector<8x32xf32>
    %104 = math.tanh %103 : vector<8x32xf32>
    %105 = arith.mulf %98, %104 : vector<8x32xf32>
    %106 = arith.negf %90 : vector<8x128xf32>
    %107 = math.exp %106 : vector<8x128xf32>
    %cst_25 = arith.constant 1.000000e+00 : f32
    %108 = vector.broadcast %cst_25 : f32 to vector<8x128xf32>
    %109 = arith.addf %108, %107 : vector<8x128xf32>
    %110 = arith.divf %108, %109 : vector<8x128xf32>
    %111 = vector.extract_strided_slice %110 {offsets = [0, 0], sizes = [8, 32], strides = [1, 1]} : vector<8x128xf32> to vector<8x32xf32>
    %112 = vector.extract_strided_slice %110 {offsets = [0, 32], sizes = [8, 32], strides = [1, 1]} : vector<8x128xf32> to vector<8x32xf32>
    %113 = vector.extract_strided_slice %110 {offsets = [0, 96], sizes = [8, 32], strides = [1, 1]} : vector<8x128xf32> to vector<8x32xf32>
    %114 = vector.extract_strided_slice %90 {offsets = [0, 64], sizes = [8, 32], strides = [1, 1]} : vector<8x128xf32> to vector<8x32xf32>
    %115 = math.tanh %114 : vector<8x32xf32>
    %116 = arith.mulf %112, %80 : vector<8x32xf32>
    %117 = arith.mulf %111, %115 : vector<8x32xf32>
    %118 = arith.addf %116, %117 : vector<8x32xf32>
    %119 = math.tanh %118 : vector<8x32xf32>
    %120 = arith.mulf %113, %119 : vector<8x32xf32>
    %c16 = arith.constant 16 : index
    %c0_26 = arith.constant 0 : index
    %121 = vector.load %arg7[%c16, %c0_26] : memref<64x64xf32, #tpu.memory_space<vmem>>, vector<8x32xf32>
    tpu.vector_store %arg7[%c16, %c0_26], %105 {strides = array<i32>} : memref<64x64xf32, #tpu.memory_space<vmem>>, vector<8x32xf32>,
    %c40 = arith.constant 40 : index
    %c32_27 = arith.constant 32 : index
    %122 = vector.load %arg7[%c40, %c32_27] : memref<64x64xf32, #tpu.memory_space<vmem>>, vector<8x32xf32>
    tpu.vector_store %arg7[%c40, %c32_27], %120 {strides = array<i32>} : memref<64x64xf32, #tpu.memory_space<vmem>>, vector<8x32xf32>,
    %123 = vector.extract_strided_slice %5 {offsets = [24, 0], sizes = [8, 128], strides = [1, 1]} : vector<64x256xf32> to vector<8x128xf32>
    %cst_28 = arith.constant dense<0.000000e+00> : vector<8x128xf32>
    %124 = tpu.matmul %105, %6, %cst_28 {dimension_numbers = #tpu.dot_dimension_numbers<[1], [0], [0], [1], [0, 0, 1, 1], [], []>} : vector<8x32xf32>, vector<32x128xf32>, vector<8x128xf32> -> vector<8x128xf32>
    %125 = arith.addf %123, %124 : vector<8x128xf32>
    %126 = vector.extract_strided_slice %5 {offsets = [32, 128], sizes = [8, 128], strides = [1, 1]} : vector<64x256xf32> to vector<8x128xf32>
    %cst_29 = arith.constant dense<0.000000e+00> : vector<8x128xf32>
    %127 = tpu.matmul %120, %7, %cst_29 {dimension_numbers = #tpu.dot_dimension_numbers<[1], [0], [0], [1], [0, 0, 1, 1], [], []>} : vector<8x32xf32>, vector<32x128xf32>, vector<8x128xf32> -> vector<8x128xf32>
    %128 = arith.addf %126, %127 : vector<8x128xf32>
    %129 = arith.negf %125 : vector<8x128xf32>
    %130 = math.exp %129 : vector<8x128xf32>
    %cst_30 = arith.constant 1.000000e+00 : f32
    %131 = vector.broadcast %cst_30 : f32 to vector<8x128xf32>
    %132 = arith.addf %131, %130 : vector<8x128xf32>
    %133 = arith.divf %131, %132 : vector<8x128xf32>
    %134 = vector.extract_strided_slice %133 {offsets = [0, 0], sizes = [8, 32], strides = [1, 1]} : vector<8x128xf32> to vector<8x32xf32>
    %135 = vector.extract_strided_slice %133 {offsets = [0, 32], sizes = [8, 32], strides = [1, 1]} : vector<8x128xf32> to vector<8x32xf32>
    %136 = vector.extract_strided_slice %133 {offsets = [0, 96], sizes = [8, 32], strides = [1, 1]} : vector<8x128xf32> to vector<8x32xf32>
    %137 = vector.extract_strided_slice %125 {offsets = [0, 64], sizes = [8, 32], strides = [1, 1]} : vector<8x128xf32> to vector<8x32xf32>
    %138 = math.tanh %137 : vector<8x32xf32>
    %139 = arith.mulf %135, %103 : vector<8x32xf32>
    %140 = arith.mulf %134, %138 : vector<8x32xf32>
    %141 = arith.addf %139, %140 : vector<8x32xf32>
    %142 = math.tanh %141 : vector<8x32xf32>
    %143 = arith.mulf %136, %142 : vector<8x32xf32>
    %144 = arith.negf %128 : vector<8x128xf32>
    %145 = math.exp %144 : vector<8x128xf32>
    %cst_31 = arith.constant 1.000000e+00 : f32
    %146 = vector.broadcast %cst_31 : f32 to vector<8x128xf32>
    %147 = arith.addf %146, %145 : vector<8x128xf32>
    %148 = arith.divf %146, %147 : vector<8x128xf32>
    %149 = vector.extract_strided_slice %148 {offsets = [0, 0], sizes = [8, 32], strides = [1, 1]} : vector<8x128xf32> to vector<8x32xf32>
    %150 = vector.extract_strided_slice %148 {offsets = [0, 32], sizes = [8, 32], strides = [1, 1]} : vector<8x128xf32> to vector<8x32xf32>
    %151 = vector.extract_strided_slice %148 {offsets = [0, 96], sizes = [8, 32], strides = [1, 1]} : vector<8x128xf32> to vector<8x32xf32>
    %152 = vector.extract_strided_slice %128 {offsets = [0, 64], sizes = [8, 32], strides = [1, 1]} : vector<8x128xf32> to vector<8x32xf32>
    %153 = math.tanh %152 : vector<8x32xf32>
    %154 = arith.mulf %150, %118 : vector<8x32xf32>
    %155 = arith.mulf %149, %153 : vector<8x32xf32>
    %156 = arith.addf %154, %155 : vector<8x32xf32>
    %157 = math.tanh %156 : vector<8x32xf32>
    %158 = arith.mulf %151, %157 : vector<8x32xf32>
    %c24 = arith.constant 24 : index
    %c0_32 = arith.constant 0 : index
    %159 = vector.load %arg7[%c24, %c0_32] : memref<64x64xf32, #tpu.memory_space<vmem>>, vector<8x32xf32>
    tpu.vector_store %arg7[%c24, %c0_32], %143 {strides = array<i32>} : memref<64x64xf32, #tpu.memory_space<vmem>>, vector<8x32xf32>,
    %c32_33 = arith.constant 32 : index
    %c32_34 = arith.constant 32 : index
    %160 = vector.load %arg7[%c32_33, %c32_34] : memref<64x64xf32, #tpu.memory_space<vmem>>, vector<8x32xf32>
    tpu.vector_store %arg7[%c32_33, %c32_34], %158 {strides = array<i32>} : memref<64x64xf32, #tpu.memory_space<vmem>>, vector<8x32xf32>,
    %161 = vector.extract_strided_slice %5 {offsets = [32, 0], sizes = [8, 128], strides = [1, 1]} : vector<64x256xf32> to vector<8x128xf32>
    %cst_35 = arith.constant dense<0.000000e+00> : vector<8x128xf32>
    %162 = tpu.matmul %143, %6, %cst_35 {dimension_numbers = #tpu.dot_dimension_numbers<[1], [0], [0], [1], [0, 0, 1, 1], [], []>} : vector<8x32xf32>, vector<32x128xf32>, vector<8x128xf32> -> vector<8x128xf32>
    %163 = arith.addf %161, %162 : vector<8x128xf32>
    %164 = vector.extract_strided_slice %5 {offsets = [24, 128], sizes = [8, 128], strides = [1, 1]} : vector<64x256xf32> to vector<8x128xf32>
    %cst_36 = arith.constant dense<0.000000e+00> : vector<8x128xf32>
    %165 = tpu.matmul %158, %7, %cst_36 {dimension_numbers = #tpu.dot_dimension_numbers<[1], [0], [0], [1], [0, 0, 1, 1], [], []>} : vector<8x32xf32>, vector<32x128xf32>, vector<8x128xf32> -> vector<8x128xf32>
    %166 = arith.addf %164, %165 : vector<8x128xf32>
    %167 = arith.negf %163 : vector<8x128xf32>
    %168 = math.exp %167 : vector<8x128xf32>
    %cst_37 = arith.constant 1.000000e+00 : f32
    %169 = vector.broadcast %cst_37 : f32 to vector<8x128xf32>
    %170 = arith.addf %169, %168 : vector<8x128xf32>
    %171 = arith.divf %169, %170 : vector<8x128xf32>
    %172 = vector.extract_strided_slice %171 {offsets = [0, 0], sizes = [8, 32], strides = [1, 1]} : vector<8x128xf32> to vector<8x32xf32>
    %173 = vector.extract_strided_slice %171 {offsets = [0, 32], sizes = [8, 32], strides = [1, 1]} : vector<8x128xf32> to vector<8x32xf32>
    %174 = vector.extract_strided_slice %171 {offsets = [0, 96], sizes = [8, 32], strides = [1, 1]} : vector<8x128xf32> to vector<8x32xf32>
    %175 = vector.extract_strided_slice %163 {offsets = [0, 64], sizes = [8, 32], strides = [1, 1]} : vector<8x128xf32> to vector<8x32xf32>
    %176 = math.tanh %175 : vector<8x32xf32>
    %177 = arith.mulf %173, %141 : vector<8x32xf32>
    %178 = arith.mulf %172, %176 : vector<8x32xf32>
    %179 = arith.addf %177, %178 : vector<8x32xf32>
    %180 = math.tanh %179 : vector<8x32xf32>
    %181 = arith.mulf %174, %180 : vector<8x32xf32>
    %182 = arith.negf %166 : vector<8x128xf32>
    %183 = math.exp %182 : vector<8x128xf32>
    %cst_38 = arith.constant 1.000000e+00 : f32
    %184 = vector.broadcast %cst_38 : f32 to vector<8x128xf32>
    %185 = arith.addf %184, %183 : vector<8x128xf32>
    %186 = arith.divf %184, %185 : vector<8x128xf32>
    %187 = vector.extract_strided_slice %186 {offsets = [0, 0], sizes = [8, 32], strides = [1, 1]} : vector<8x128xf32> to vector<8x32xf32>
    %188 = vector.extract_strided_slice %186 {offsets = [0, 32], sizes = [8, 32], strides = [1, 1]} : vector<8x128xf32> to vector<8x32xf32>
    %189 = vector.extract_strided_slice %186 {offsets = [0, 96], sizes = [8, 32], strides = [1, 1]} : vector<8x128xf32> to vector<8x32xf32>
    %190 = vector.extract_strided_slice %166 {offsets = [0, 64], sizes = [8, 32], strides = [1, 1]} : vector<8x128xf32> to vector<8x32xf32>
    %191 = math.tanh %190 : vector<8x32xf32>
    %192 = arith.mulf %188, %156 : vector<8x32xf32>
    %193 = arith.mulf %187, %191 : vector<8x32xf32>
    %194 = arith.addf %192, %193 : vector<8x32xf32>
    %195 = math.tanh %194 : vector<8x32xf32>
    %196 = arith.mulf %189, %195 : vector<8x32xf32>
    %c32_39 = arith.constant 32 : index
    %c0_40 = arith.constant 0 : index
    %197 = vector.load %arg7[%c32_39, %c0_40] : memref<64x64xf32, #tpu.memory_space<vmem>>, vector<8x32xf32>
    tpu.vector_store %arg7[%c32_39, %c0_40], %181 {strides = array<i32>} : memref<64x64xf32, #tpu.memory_space<vmem>>, vector<8x32xf32>,
    %c24_41 = arith.constant 24 : index
    %c32_42 = arith.constant 32 : index
    %198 = vector.load %arg7[%c24_41, %c32_42] : memref<64x64xf32, #tpu.memory_space<vmem>>, vector<8x32xf32>
    tpu.vector_store %arg7[%c24_41, %c32_42], %196 {strides = array<i32>} : memref<64x64xf32, #tpu.memory_space<vmem>>, vector<8x32xf32>,
    %199 = vector.extract_strided_slice %5 {offsets = [40, 0], sizes = [8, 128], strides = [1, 1]} : vector<64x256xf32> to vector<8x128xf32>
    %cst_43 = arith.constant dense<0.000000e+00> : vector<8x128xf32>
    %200 = tpu.matmul %181, %6, %cst_43 {dimension_numbers = #tpu.dot_dimension_numbers<[1], [0], [0], [1], [0, 0, 1, 1], [], []>} : vector<8x32xf32>, vector<32x128xf32>, vector<8x128xf32> -> vector<8x128xf32>
    %201 = arith.addf %199, %200 : vector<8x128xf32>
    %202 = vector.extract_strided_slice %5 {offsets = [16, 128], sizes = [8, 128], strides = [1, 1]} : vector<64x256xf32> to vector<8x128xf32>
    %cst_44 = arith.constant dense<0.000000e+00> : vector<8x128xf32>
    %203 = tpu.matmul %196, %7, %cst_44 {dimension_numbers = #tpu.dot_dimension_numbers<[1], [0], [0], [1], [0, 0, 1, 1], [], []>} : vector<8x32xf32>, vector<32x128xf32>, vector<8x128xf32> -> vector<8x128xf32>
    %204 = arith.addf %202, %203 : vector<8x128xf32>
    %205 = arith.negf %201 : vector<8x128xf32>
    %206 = math.exp %205 : vector<8x128xf32>
    %cst_45 = arith.constant 1.000000e+00 : f32
    %207 = vector.broadcast %cst_45 : f32 to vector<8x128xf32>
    %208 = arith.addf %207, %206 : vector<8x128xf32>
    %209 = arith.divf %207, %208 : vector<8x128xf32>
    %210 = vector.extract_strided_slice %209 {offsets = [0, 0], sizes = [8, 32], strides = [1, 1]} : vector<8x128xf32> to vector<8x32xf32>
    %211 = vector.extract_strided_slice %209 {offsets = [0, 32], sizes = [8, 32], strides = [1, 1]} : vector<8x128xf32> to vector<8x32xf32>
    %212 = vector.extract_strided_slice %209 {offsets = [0, 96], sizes = [8, 32], strides = [1, 1]} : vector<8x128xf32> to vector<8x32xf32>
    %213 = vector.extract_strided_slice %201 {offsets = [0, 64], sizes = [8, 32], strides = [1, 1]} : vector<8x128xf32> to vector<8x32xf32>
    %214 = math.tanh %213 : vector<8x32xf32>
    %215 = arith.mulf %211, %179 : vector<8x32xf32>
    %216 = arith.mulf %210, %214 : vector<8x32xf32>
    %217 = arith.addf %215, %216 : vector<8x32xf32>
    %218 = math.tanh %217 : vector<8x32xf32>
    %219 = arith.mulf %212, %218 : vector<8x32xf32>
    %220 = arith.negf %204 : vector<8x128xf32>
    %221 = math.exp %220 : vector<8x128xf32>
    %cst_46 = arith.constant 1.000000e+00 : f32
    %222 = vector.broadcast %cst_46 : f32 to vector<8x128xf32>
    %223 = arith.addf %222, %221 : vector<8x128xf32>
    %224 = arith.divf %222, %223 : vector<8x128xf32>
    %225 = vector.extract_strided_slice %224 {offsets = [0, 0], sizes = [8, 32], strides = [1, 1]} : vector<8x128xf32> to vector<8x32xf32>
    %226 = vector.extract_strided_slice %224 {offsets = [0, 32], sizes = [8, 32], strides = [1, 1]} : vector<8x128xf32> to vector<8x32xf32>
    %227 = vector.extract_strided_slice %224 {offsets = [0, 96], sizes = [8, 32], strides = [1, 1]} : vector<8x128xf32> to vector<8x32xf32>
    %228 = vector.extract_strided_slice %204 {offsets = [0, 64], sizes = [8, 32], strides = [1, 1]} : vector<8x128xf32> to vector<8x32xf32>
    %229 = math.tanh %228 : vector<8x32xf32>
    %230 = arith.mulf %226, %194 : vector<8x32xf32>
    %231 = arith.mulf %225, %229 : vector<8x32xf32>
    %232 = arith.addf %230, %231 : vector<8x32xf32>
    %233 = math.tanh %232 : vector<8x32xf32>
    %234 = arith.mulf %227, %233 : vector<8x32xf32>
    %c40_47 = arith.constant 40 : index
    %c0_48 = arith.constant 0 : index
    %235 = vector.load %arg7[%c40_47, %c0_48] : memref<64x64xf32, #tpu.memory_space<vmem>>, vector<8x32xf32>
    tpu.vector_store %arg7[%c40_47, %c0_48], %219 {strides = array<i32>} : memref<64x64xf32, #tpu.memory_space<vmem>>, vector<8x32xf32>,
    %c16_49 = arith.constant 16 : index
    %c32_50 = arith.constant 32 : index
    %236 = vector.load %arg7[%c16_49, %c32_50] : memref<64x64xf32, #tpu.memory_space<vmem>>, vector<8x32xf32>
    tpu.vector_store %arg7[%c16_49, %c32_50], %234 {strides = array<i32>} : memref<64x64xf32, #tpu.memory_space<vmem>>, vector<8x32xf32>,
    %237 = vector.extract_strided_slice %5 {offsets = [48, 0], sizes = [8, 128], strides = [1, 1]} : vector<64x256xf32> to vector<8x128xf32>
    %cst_51 = arith.constant dense<0.000000e+00> : vector<8x128xf32>
    %238 = tpu.matmul %219, %6, %cst_51 {dimension_numbers = #tpu.dot_dimension_numbers<[1], [0], [0], [1], [0, 0, 1, 1], [], []>} : vector<8x32xf32>, vector<32x128xf32>, vector<8x128xf32> -> vector<8x128xf32>
    %239 = arith.addf %237, %238 : vector<8x128xf32>
    %240 = vector.extract_strided_slice %5 {offsets = [8, 128], sizes = [8, 128], strides = [1, 1]} : vector<64x256xf32> to vector<8x128xf32>
    %cst_52 = arith.constant dense<0.000000e+00> : vector<8x128xf32>
    %241 = tpu.matmul %234, %7, %cst_52 {dimension_numbers = #tpu.dot_dimension_numbers<[1], [0], [0], [1], [0, 0, 1, 1], [], []>} : vector<8x32xf32>, vector<32x128xf32>, vector<8x128xf32> -> vector<8x128xf32>
    %242 = arith.addf %240, %241 : vector<8x128xf32>
    %243 = arith.negf %239 : vector<8x128xf32>
    %244 = math.exp %243 : vector<8x128xf32>
    %cst_53 = arith.constant 1.000000e+00 : f32
    %245 = vector.broadcast %cst_53 : f32 to vector<8x128xf32>
    %246 = arith.addf %245, %244 : vector<8x128xf32>
    %247 = arith.divf %245, %246 : vector<8x128xf32>
    %248 = vector.extract_strided_slice %247 {offsets = [0, 0], sizes = [8, 32], strides = [1, 1]} : vector<8x128xf32> to vector<8x32xf32>
    %249 = vector.extract_strided_slice %247 {offsets = [0, 32], sizes = [8, 32], strides = [1, 1]} : vector<8x128xf32> to vector<8x32xf32>
    %250 = vector.extract_strided_slice %247 {offsets = [0, 96], sizes = [8, 32], strides = [1, 1]} : vector<8x128xf32> to vector<8x32xf32>
    %251 = vector.extract_strided_slice %239 {offsets = [0, 64], sizes = [8, 32], strides = [1, 1]} : vector<8x128xf32> to vector<8x32xf32>
    %252 = math.tanh %251 : vector<8x32xf32>
    %253 = arith.mulf %249, %217 : vector<8x32xf32>
    %254 = arith.mulf %248, %252 : vector<8x32xf32>
    %255 = arith.addf %253, %254 : vector<8x32xf32>
    %256 = math.tanh %255 : vector<8x32xf32>
    %257 = arith.mulf %250, %256 : vector<8x32xf32>
    %258 = arith.negf %242 : vector<8x128xf32>
    %259 = math.exp %258 : vector<8x128xf32>
    %cst_54 = arith.constant 1.000000e+00 : f32
    %260 = vector.broadcast %cst_54 : f32 to vector<8x128xf32>
    %261 = arith.addf %260, %259 : vector<8x128xf32>
    %262 = arith.divf %260, %261 : vector<8x128xf32>
    %263 = vector.extract_strided_slice %262 {offsets = [0, 0], sizes = [8, 32], strides = [1, 1]} : vector<8x128xf32> to vector<8x32xf32>
    %264 = vector.extract_strided_slice %262 {offsets = [0, 32], sizes = [8, 32], strides = [1, 1]} : vector<8x128xf32> to vector<8x32xf32>
    %265 = vector.extract_strided_slice %262 {offsets = [0, 96], sizes = [8, 32], strides = [1, 1]} : vector<8x128xf32> to vector<8x32xf32>
    %266 = vector.extract_strided_slice %242 {offsets = [0, 64], sizes = [8, 32], strides = [1, 1]} : vector<8x128xf32> to vector<8x32xf32>
    %267 = math.tanh %266 : vector<8x32xf32>
    %268 = arith.mulf %264, %232 : vector<8x32xf32>
    %269 = arith.mulf %263, %267 : vector<8x32xf32>
    %270 = arith.addf %268, %269 : vector<8x32xf32>
    %271 = math.tanh %270 : vector<8x32xf32>
    %272 = arith.mulf %265, %271 : vector<8x32xf32>
    %c48_55 = arith.constant 48 : index
    %c0_56 = arith.constant 0 : index
    %273 = vector.load %arg7[%c48_55, %c0_56] : memref<64x64xf32, #tpu.memory_space<vmem>>, vector<8x32xf32>
    tpu.vector_store %arg7[%c48_55, %c0_56], %257 {strides = array<i32>} : memref<64x64xf32, #tpu.memory_space<vmem>>, vector<8x32xf32>,
    %c8_57 = arith.constant 8 : index
    %c32_58 = arith.constant 32 : index
    %274 = vector.load %arg7[%c8_57, %c32_58] : memref<64x64xf32, #tpu.memory_space<vmem>>, vector<8x32xf32>
    tpu.vector_store %arg7[%c8_57, %c32_58], %272 {strides = array<i32>} : memref<64x64xf32, #tpu.memory_space<vmem>>, vector<8x32xf32>,
    %275 = vector.extract_strided_slice %5 {offsets = [56, 0], sizes = [8, 128], strides = [1, 1]} : vector<64x256xf32> to vector<8x128xf32>
    %cst_59 = arith.constant dense<0.000000e+00> : vector<8x128xf32>
    %276 = tpu.matmul %257, %6, %cst_59 {dimension_numbers = #tpu.dot_dimension_numbers<[1], [0], [0], [1], [0, 0, 1, 1], [], []>} : vector<8x32xf32>, vector<32x128xf32>, vector<8x128xf32> -> vector<8x128xf32>
    %277 = arith.addf %275, %276 : vector<8x128xf32>
    %278 = vector.extract_strided_slice %5 {offsets = [0, 128], sizes = [8, 128], strides = [1, 1]} : vector<64x256xf32> to vector<8x128xf32>
    %cst_60 = arith.constant dense<0.000000e+00> : vector<8x128xf32>
    %279 = tpu.matmul %272, %7, %cst_60 {dimension_numbers = #tpu.dot_dimension_numbers<[1], [0], [0], [1], [0, 0, 1, 1], [], []>} : vector<8x32xf32>, vector<32x128xf32>, vector<8x128xf32> -> vector<8x128xf32>
    %280 = arith.addf %278, %279 : vector<8x128xf32>
    %281 = arith.negf %277 : vector<8x128xf32>
    %282 = math.exp %281 : vector<8x128xf32>
    %cst_61 = arith.constant 1.000000e+00 : f32
    %283 = vector.broadcast %cst_61 : f32 to vector<8x128xf32>
    %284 = arith.addf %283, %282 : vector<8x128xf32>
    %285 = arith.divf %283, %284 : vector<8x128xf32>
    %286 = vector.extract_strided_slice %285 {offsets = [0, 0], sizes = [8, 32], strides = [1, 1]} : vector<8x128xf32> to vector<8x32xf32>
    %287 = vector.extract_strided_slice %285 {offsets = [0, 32], sizes = [8, 32], strides = [1, 1]} : vector<8x128xf32> to vector<8x32xf32>
    %288 = vector.extract_strided_slice %285 {offsets = [0, 96], sizes = [8, 32], strides = [1, 1]} : vector<8x128xf32> to vector<8x32xf32>
    %289 = vector.extract_strided_slice %277 {offsets = [0, 64], sizes = [8, 32], strides = [1, 1]} : vector<8x128xf32> to vector<8x32xf32>
    %290 = math.tanh %289 : vector<8x32xf32>
    %291 = arith.mulf %287, %255 : vector<8x32xf32>
    %292 = arith.mulf %286, %290 : vector<8x32xf32>
    %293 = arith.addf %291, %292 : vector<8x32xf32>
    %294 = math.tanh %293 : vector<8x32xf32>
    %295 = arith.mulf %288, %294 : vector<8x32xf32>
    %296 = arith.negf %280 : vector<8x128xf32>
    %297 = math.exp %296 : vector<8x128xf32>
    %cst_62 = arith.constant 1.000000e+00 : f32
    %298 = vector.broadcast %cst_62 : f32 to vector<8x128xf32>
    %299 = arith.addf %298, %297 : vector<8x128xf32>
    %300 = arith.divf %298, %299 : vector<8x128xf32>
    %301 = vector.extract_strided_slice %300 {offsets = [0, 0], sizes = [8, 32], strides = [1, 1]} : vector<8x128xf32> to vector<8x32xf32>
    %302 = vector.extract_strided_slice %300 {offsets = [0, 32], sizes = [8, 32], strides = [1, 1]} : vector<8x128xf32> to vector<8x32xf32>
    %303 = vector.extract_strided_slice %300 {offsets = [0, 96], sizes = [8, 32], strides = [1, 1]} : vector<8x128xf32> to vector<8x32xf32>
    %304 = vector.extract_strided_slice %280 {offsets = [0, 64], sizes = [8, 32], strides = [1, 1]} : vector<8x128xf32> to vector<8x32xf32>
    %305 = math.tanh %304 : vector<8x32xf32>
    %306 = arith.mulf %302, %270 : vector<8x32xf32>
    %307 = arith.mulf %301, %305 : vector<8x32xf32>
    %308 = arith.addf %306, %307 : vector<8x32xf32>
    %309 = math.tanh %308 : vector<8x32xf32>
    %310 = arith.mulf %303, %309 : vector<8x32xf32>
    %c56_63 = arith.constant 56 : index
    %c0_64 = arith.constant 0 : index
    %311 = vector.load %arg7[%c56_63, %c0_64] : memref<64x64xf32, #tpu.memory_space<vmem>>, vector<8x32xf32>
    tpu.vector_store %arg7[%c56_63, %c0_64], %295 {strides = array<i32>} : memref<64x64xf32, #tpu.memory_space<vmem>>, vector<8x32xf32>,
    %c0_65 = arith.constant 0 : index
    %c32_66 = arith.constant 32 : index
    %312 = vector.load %arg7[%c0_65, %c32_66] : memref<64x64xf32, #tpu.memory_space<vmem>>, vector<8x32xf32>
    tpu.vector_store %arg7[%c0_65, %c32_66], %310 {strides = array<i32>} : memref<64x64xf32, #tpu.memory_space<vmem>>, vector<8x32xf32>,
    %c0_67 = arith.constant 0 : index
    %c0_68 = arith.constant 0 : index
    %313 = vector.load %arg7[%c0_67, %c0_68] : memref<64x64xf32, #tpu.memory_space<vmem>>, vector<64x64xf32>
    %c0_69 = arith.constant 0 : index
    %c0_70 = arith.constant 0 : index
    %314 = vector.load %arg5[%c0_69, %c0_70] : memref<64x2xf32, #tpu.memory_space<vmem>>, vector<64x2xf32>
    %cst_71 = arith.constant dense<0.000000e+00> : vector<64x2xf32>
    %315 = tpu.matmul %313, %314, %cst_71 {dimension_numbers = #tpu.dot_dimension_numbers<[1], [0], [0], [1], [0, 0, 1, 1], [], []>} : vector<64x64xf32>, vector<64x2xf32>, vector<64x2xf32> -> vector<64x2xf32>
    %c0_72 = arith.constant 0 : index
    %c0_73 = arith.constant 0 : index
    %316 = vector.load %arg6[%c0_72, %c0_73] : memref<1x2xf32, #tpu.memory_space<vmem>>, vector<1x2xf32>
    %317 = vector.broadcast %316 : vector<1x2xf32> to vector<64x2xf32>
    %318 = arith.addf %315, %317 : vector<64x2xf32>
    %319 = arith.negf %318 : vector<64x2xf32>
    %320 = math.exp %319 : vector<64x2xf32>
    %cst_74 = arith.constant 1.000000e+00 : f32
    %321 = vector.broadcast %cst_74 : f32 to vector<64x2xf32>
    %322 = arith.addf %321, %320 : vector<64x2xf32>
    %323 = arith.divf %321, %322 : vector<64x2xf32>
    %c0_75 = arith.constant 0 : index
    %c0_76 = arith.constant 0 : index
    %324 = vector.load %arg8[%c0_75, %c0_76] : memref<64x2xf32, #tpu.memory_space<vmem>>, vector<64x2xf32>
    tpu.vector_store %arg8[%c0_75, %c0_76], %323 {strides = array<i32>} : memref<64x2xf32, #tpu.memory_space<vmem>>, vector<64x2xf32>,
    return
  }
}

module attributes {stable_mosaic.version = 11 : i64} {
  func.func @kernel(%arg0: memref<64x8xf32, #tpu.memory_space<vmem>>, %arg1: memref<64x64xf32, #tpu.memory_space<vmem>>, %arg2: memref<8x256xf32, #tpu.memory_space<vmem>>, %arg3: memref<64x256xf32, #tpu.memory_space<vmem>>, %arg4: memref<32x128xf32, #tpu.memory_space<vmem>>, %arg5: memref<32x128xf32, #tpu.memory_space<vmem>>, %arg6: memref<1x256xf32, #tpu.memory_space<vmem>>, %arg7: memref<64x64xf32, #tpu.memory_space<vmem>>) attributes {dimension_semantics = [], scalar_prefetch = 0 : i64, scratch_operands = 0 : i64, tpu.core_type = #tpu.core_type<tc>} {
    %c0 = arith.constant 0 : index
    %c0_0 = arith.constant 0 : index
    %0 = vector.load %arg0[%c0, %c0_0] : memref<64x8xf32, #tpu.memory_space<vmem>>, vector<64x8xf32>
    %c0_1 = arith.constant 0 : index
    %c0_2 = arith.constant 0 : index
    %1 = vector.load %arg2[%c0_1, %c0_2] : memref<8x256xf32, #tpu.memory_space<vmem>>, vector<8x256xf32>
    %cst = arith.constant dense<0.000000e+00> : vector<64x256xf32>
    %2 = tpu.matmul %0, %1, %cst {dimension_numbers = #tpu.dot_dimension_numbers<[1], [0], [0], [1], [0, 0, 1, 1], [], []>} : vector<64x8xf32>, vector<8x256xf32>, vector<64x256xf32> -> vector<64x256xf32>
    %c0_3 = arith.constant 0 : index
    %c0_4 = arith.constant 0 : index
    %3 = vector.load %arg1[%c0_3, %c0_4] : memref<64x64xf32, #tpu.memory_space<vmem>>, vector<64x64xf32>
    %c0_5 = arith.constant 0 : index
    %c0_6 = arith.constant 0 : index
    %4 = vector.load %arg3[%c0_5, %c0_6] : memref<64x256xf32, #tpu.memory_space<vmem>>, vector<64x256xf32>
    %cst_7 = arith.constant dense<0.000000e+00> : vector<64x256xf32>
    %5 = tpu.matmul %3, %4, %cst_7 {dimension_numbers = #tpu.dot_dimension_numbers<[1], [0], [0], [1], [0, 0, 1, 1], [], []>} : vector<64x64xf32>, vector<64x256xf32>, vector<64x256xf32> -> vector<64x256xf32>
    %6 = arith.addf %2, %5 : vector<64x256xf32>
    %c0_8 = arith.constant 0 : index
    %c0_9 = arith.constant 0 : index
    %7 = vector.load %arg6[%c0_8, %c0_9] : memref<1x256xf32, #tpu.memory_space<vmem>>, vector<1x256xf32>
    %8 = vector.broadcast %7 : vector<1x256xf32> to vector<64x256xf32>
    %9 = arith.addf %6, %8 : vector<64x256xf32>
    %c0_10 = arith.constant 0 : index
    %c0_11 = arith.constant 0 : index
    %10 = vector.load %arg4[%c0_10, %c0_11] : memref<32x128xf32, #tpu.memory_space<vmem>>, vector<32x128xf32>
    %c0_12 = arith.constant 0 : index
    %c0_13 = arith.constant 0 : index
    %11 = vector.load %arg5[%c0_12, %c0_13] : memref<32x128xf32, #tpu.memory_space<vmem>>, vector<32x128xf32>
    %cst_14 = arith.constant 0.000000e+00 : f32
    %12 = vector.broadcast %cst_14 : f32 to vector<8x32xf32>
    %13 = vector.extract_strided_slice %9 {offsets = [0, 0], sizes = [8, 128], strides = [1, 1]} : vector<64x256xf32> to vector<8x128xf32>
    %cst_15 = arith.constant dense<0.000000e+00> : vector<8x128xf32>
    %14 = tpu.matmul %12, %10, %cst_15 {dimension_numbers = #tpu.dot_dimension_numbers<[1], [0], [0], [1], [0, 0, 1, 1], [], []>} : vector<8x32xf32>, vector<32x128xf32>, vector<8x128xf32> -> vector<8x128xf32>
    %15 = arith.addf %13, %14 : vector<8x128xf32>
    %16 = vector.extract_strided_slice %9 {offsets = [56, 128], sizes = [8, 128], strides = [1, 1]} : vector<64x256xf32> to vector<8x128xf32>
    %cst_16 = arith.constant dense<0.000000e+00> : vector<8x128xf32>
    %17 = tpu.matmul %12, %11, %cst_16 {dimension_numbers = #tpu.dot_dimension_numbers<[1], [0], [0], [1], [0, 0, 1, 1], [], []>} : vector<8x32xf32>, vector<32x128xf32>, vector<8x128xf32> -> vector<8x128xf32>
    %18 = arith.addf %16, %17 : vector<8x128xf32>
    %19 = arith.negf %15 : vector<8x128xf32>
    %20 = math.exp %19 : vector<8x128xf32>
    %cst_17 = arith.constant 1.000000e+00 : f32
    %21 = vector.broadcast %cst_17 : f32 to vector<8x128xf32>
    %22 = arith.addf %21, %20 : vector<8x128xf32>
    %23 = arith.divf %21, %22 : vector<8x128xf32>
    %24 = vector.extract_strided_slice %23 {offsets = [0, 0], sizes = [8, 32], strides = [1, 1]} : vector<8x128xf32> to vector<8x32xf32>
    %25 = vector.extract_strided_slice %23 {offsets = [0, 32], sizes = [8, 32], strides = [1, 1]} : vector<8x128xf32> to vector<8x32xf32>
    %26 = vector.extract_strided_slice %23 {offsets = [0, 96], sizes = [8, 32], strides = [1, 1]} : vector<8x128xf32> to vector<8x32xf32>
    %27 = vector.extract_strided_slice %15 {offsets = [0, 64], sizes = [8, 32], strides = [1, 1]} : vector<8x128xf32> to vector<8x32xf32>
    %28 = math.tanh %27 : vector<8x32xf32>
    %29 = arith.mulf %25, %12 : vector<8x32xf32>
    %30 = arith.mulf %24, %28 : vector<8x32xf32>
    %31 = arith.addf %29, %30 : vector<8x32xf32>
    %32 = math.tanh %31 : vector<8x32xf32>
    %33 = arith.mulf %26, %32 : vector<8x32xf32>
    %34 = arith.negf %18 : vector<8x128xf32>
    %35 = math.exp %34 : vector<8x128xf32>
    %cst_18 = arith.constant 1.000000e+00 : f32
    %36 = vector.broadcast %cst_18 : f32 to vector<8x128xf32>
    %37 = arith.addf %36, %35 : vector<8x128xf32>
    %38 = arith.divf %36, %37 : vector<8x128xf32>
    %39 = vector.extract_strided_slice %38 {offsets = [0, 0], sizes = [8, 32], strides = [1, 1]} : vector<8x128xf32> to vector<8x32xf32>
    %40 = vector.extract_strided_slice %38 {offsets = [0, 32], sizes = [8, 32], strides = [1, 1]} : vector<8x128xf32> to vector<8x32xf32>
    %41 = vector.extract_strided_slice %38 {offsets = [0, 96], sizes = [8, 32], strides = [1, 1]} : vector<8x128xf32> to vector<8x32xf32>
    %42 = vector.extract_strided_slice %18 {offsets = [0, 64], sizes = [8, 32], strides = [1, 1]} : vector<8x128xf32> to vector<8x32xf32>
    %43 = math.tanh %42 : vector<8x32xf32>
    %44 = arith.mulf %40, %12 : vector<8x32xf32>
    %45 = arith.mulf %39, %43 : vector<8x32xf32>
    %46 = arith.addf %44, %45 : vector<8x32xf32>
    %47 = math.tanh %46 : vector<8x32xf32>
    %48 = arith.mulf %41, %47 : vector<8x32xf32>
    %c0_19 = arith.constant 0 : index
    %c0_20 = arith.constant 0 : index
    %49 = vector.load %arg7[%c0_19, %c0_20] : memref<64x64xf32, #tpu.memory_space<vmem>>, vector<8x32xf32>
    tpu.vector_store %arg7[%c0_19, %c0_20], %33 {strides = array<i32>} : memref<64x64xf32, #tpu.memory_space<vmem>>, vector<8x32xf32>,
    %c56 = arith.constant 56 : index
    %c32 = arith.constant 32 : index
    %50 = vector.load %arg7[%c56, %c32] : memref<64x64xf32, #tpu.memory_space<vmem>>, vector<8x32xf32>
    tpu.vector_store %arg7[%c56, %c32], %48 {strides = array<i32>} : memref<64x64xf32, #tpu.memory_space<vmem>>, vector<8x32xf32>,
    %51 = vector.extract_strided_slice %9 {offsets = [8, 0], sizes = [8, 128], strides = [1, 1]} : vector<64x256xf32> to vector<8x128xf32>
    %cst_21 = arith.constant dense<0.000000e+00> : vector<8x128xf32>
    %52 = tpu.matmul %33, %10, %cst_21 {dimension_numbers = #tpu.dot_dimension_numbers<[1], [0], [0], [1], [0, 0, 1, 1], [], []>} : vector<8x32xf32>, vector<32x128xf32>, vector<8x128xf32> -> vector<8x128xf32>
    %53 = arith.addf %51, %52 : vector<8x128xf32>
    %54 = vector.extract_strided_slice %9 {offsets = [48, 128], sizes = [8, 128], strides = [1, 1]} : vector<64x256xf32> to vector<8x128xf32>
    %cst_22 = arith.constant dense<0.000000e+00> : vector<8x128xf32>
    %55 = tpu.matmul %48, %11, %cst_22 {dimension_numbers = #tpu.dot_dimension_numbers<[1], [0], [0], [1], [0, 0, 1, 1], [], []>} : vector<8x32xf32>, vector<32x128xf32>, vector<8x128xf32> -> vector<8x128xf32>
    %56 = arith.addf %54, %55 : vector<8x128xf32>
    %57 = arith.negf %53 : vector<8x128xf32>
    %58 = math.exp %57 : vector<8x128xf32>
    %cst_23 = arith.constant 1.000000e+00 : f32
    %59 = vector.broadcast %cst_23 : f32 to vector<8x128xf32>
    %60 = arith.addf %59, %58 : vector<8x128xf32>
    %61 = arith.divf %59, %60 : vector<8x128xf32>
    %62 = vector.extract_strided_slice %61 {offsets = [0, 0], sizes = [8, 32], strides = [1, 1]} : vector<8x128xf32> to vector<8x32xf32>
    %63 = vector.extract_strided_slice %61 {offsets = [0, 32], sizes = [8, 32], strides = [1, 1]} : vector<8x128xf32> to vector<8x32xf32>
    %64 = vector.extract_strided_slice %61 {offsets = [0, 96], sizes = [8, 32], strides = [1, 1]} : vector<8x128xf32> to vector<8x32xf32>
    %65 = vector.extract_strided_slice %53 {offsets = [0, 64], sizes = [8, 32], strides = [1, 1]} : vector<8x128xf32> to vector<8x32xf32>
    %66 = math.tanh %65 : vector<8x32xf32>
    %67 = arith.mulf %63, %31 : vector<8x32xf32>
    %68 = arith.mulf %62, %66 : vector<8x32xf32>
    %69 = arith.addf %67, %68 : vector<8x32xf32>
    %70 = math.tanh %69 : vector<8x32xf32>
    %71 = arith.mulf %64, %70 : vector<8x32xf32>
    %72 = arith.negf %56 : vector<8x128xf32>
    %73 = math.exp %72 : vector<8x128xf32>
    %cst_24 = arith.constant 1.000000e+00 : f32
    %74 = vector.broadcast %cst_24 : f32 to vector<8x128xf32>
    %75 = arith.addf %74, %73 : vector<8x128xf32>
    %76 = arith.divf %74, %75 : vector<8x128xf32>
    %77 = vector.extract_strided_slice %76 {offsets = [0, 0], sizes = [8, 32], strides = [1, 1]} : vector<8x128xf32> to vector<8x32xf32>
    %78 = vector.extract_strided_slice %76 {offsets = [0, 32], sizes = [8, 32], strides = [1, 1]} : vector<8x128xf32> to vector<8x32xf32>
    %79 = vector.extract_strided_slice %76 {offsets = [0, 96], sizes = [8, 32], strides = [1, 1]} : vector<8x128xf32> to vector<8x32xf32>
    %80 = vector.extract_strided_slice %56 {offsets = [0, 64], sizes = [8, 32], strides = [1, 1]} : vector<8x128xf32> to vector<8x32xf32>
    %81 = math.tanh %80 : vector<8x32xf32>
    %82 = arith.mulf %78, %46 : vector<8x32xf32>
    %83 = arith.mulf %77, %81 : vector<8x32xf32>
    %84 = arith.addf %82, %83 : vector<8x32xf32>
    %85 = math.tanh %84 : vector<8x32xf32>
    %86 = arith.mulf %79, %85 : vector<8x32xf32>
    %c8 = arith.constant 8 : index
    %c0_25 = arith.constant 0 : index
    %87 = vector.load %arg7[%c8, %c0_25] : memref<64x64xf32, #tpu.memory_space<vmem>>, vector<8x32xf32>
    tpu.vector_store %arg7[%c8, %c0_25], %71 {strides = array<i32>} : memref<64x64xf32, #tpu.memory_space<vmem>>, vector<8x32xf32>,
    %c48 = arith.constant 48 : index
    %c32_26 = arith.constant 32 : index
    %88 = vector.load %arg7[%c48, %c32_26] : memref<64x64xf32, #tpu.memory_space<vmem>>, vector<8x32xf32>
    tpu.vector_store %arg7[%c48, %c32_26], %86 {strides = array<i32>} : memref<64x64xf32, #tpu.memory_space<vmem>>, vector<8x32xf32>,
    %89 = vector.extract_strided_slice %9 {offsets = [16, 0], sizes = [8, 128], strides = [1, 1]} : vector<64x256xf32> to vector<8x128xf32>
    %cst_27 = arith.constant dense<0.000000e+00> : vector<8x128xf32>
    %90 = tpu.matmul %71, %10, %cst_27 {dimension_numbers = #tpu.dot_dimension_numbers<[1], [0], [0], [1], [0, 0, 1, 1], [], []>} : vector<8x32xf32>, vector<32x128xf32>, vector<8x128xf32> -> vector<8x128xf32>
    %91 = arith.addf %89, %90 : vector<8x128xf32>
    %92 = vector.extract_strided_slice %9 {offsets = [40, 128], sizes = [8, 128], strides = [1, 1]} : vector<64x256xf32> to vector<8x128xf32>
    %cst_28 = arith.constant dense<0.000000e+00> : vector<8x128xf32>
    %93 = tpu.matmul %86, %11, %cst_28 {dimension_numbers = #tpu.dot_dimension_numbers<[1], [0], [0], [1], [0, 0, 1, 1], [], []>} : vector<8x32xf32>, vector<32x128xf32>, vector<8x128xf32> -> vector<8x128xf32>
    %94 = arith.addf %92, %93 : vector<8x128xf32>
    %95 = arith.negf %91 : vector<8x128xf32>
    %96 = math.exp %95 : vector<8x128xf32>
    %cst_29 = arith.constant 1.000000e+00 : f32
    %97 = vector.broadcast %cst_29 : f32 to vector<8x128xf32>
    %98 = arith.addf %97, %96 : vector<8x128xf32>
    %99 = arith.divf %97, %98 : vector<8x128xf32>
    %100 = vector.extract_strided_slice %99 {offsets = [0, 0], sizes = [8, 32], strides = [1, 1]} : vector<8x128xf32> to vector<8x32xf32>
    %101 = vector.extract_strided_slice %99 {offsets = [0, 32], sizes = [8, 32], strides = [1, 1]} : vector<8x128xf32> to vector<8x32xf32>
    %102 = vector.extract_strided_slice %99 {offsets = [0, 96], sizes = [8, 32], strides = [1, 1]} : vector<8x128xf32> to vector<8x32xf32>
    %103 = vector.extract_strided_slice %91 {offsets = [0, 64], sizes = [8, 32], strides = [1, 1]} : vector<8x128xf32> to vector<8x32xf32>
    %104 = math.tanh %103 : vector<8x32xf32>
    %105 = arith.mulf %101, %69 : vector<8x32xf32>
    %106 = arith.mulf %100, %104 : vector<8x32xf32>
    %107 = arith.addf %105, %106 : vector<8x32xf32>
    %108 = math.tanh %107 : vector<8x32xf32>
    %109 = arith.mulf %102, %108 : vector<8x32xf32>
    %110 = arith.negf %94 : vector<8x128xf32>
    %111 = math.exp %110 : vector<8x128xf32>
    %cst_30 = arith.constant 1.000000e+00 : f32
    %112 = vector.broadcast %cst_30 : f32 to vector<8x128xf32>
    %113 = arith.addf %112, %111 : vector<8x128xf32>
    %114 = arith.divf %112, %113 : vector<8x128xf32>
    %115 = vector.extract_strided_slice %114 {offsets = [0, 0], sizes = [8, 32], strides = [1, 1]} : vector<8x128xf32> to vector<8x32xf32>
    %116 = vector.extract_strided_slice %114 {offsets = [0, 32], sizes = [8, 32], strides = [1, 1]} : vector<8x128xf32> to vector<8x32xf32>
    %117 = vector.extract_strided_slice %114 {offsets = [0, 96], sizes = [8, 32], strides = [1, 1]} : vector<8x128xf32> to vector<8x32xf32>
    %118 = vector.extract_strided_slice %94 {offsets = [0, 64], sizes = [8, 32], strides = [1, 1]} : vector<8x128xf32> to vector<8x32xf32>
    %119 = math.tanh %118 : vector<8x32xf32>
    %120 = arith.mulf %116, %84 : vector<8x32xf32>
    %121 = arith.mulf %115, %119 : vector<8x32xf32>
    %122 = arith.addf %120, %121 : vector<8x32xf32>
    %123 = math.tanh %122 : vector<8x32xf32>
    %124 = arith.mulf %117, %123 : vector<8x32xf32>
    %c16 = arith.constant 16 : index
    %c0_31 = arith.constant 0 : index
    %125 = vector.load %arg7[%c16, %c0_31] : memref<64x64xf32, #tpu.memory_space<vmem>>, vector<8x32xf32>
    tpu.vector_store %arg7[%c16, %c0_31], %109 {strides = array<i32>} : memref<64x64xf32, #tpu.memory_space<vmem>>, vector<8x32xf32>,
    %c40 = arith.constant 40 : index
    %c32_32 = arith.constant 32 : index
    %126 = vector.load %arg7[%c40, %c32_32] : memref<64x64xf32, #tpu.memory_space<vmem>>, vector<8x32xf32>
    tpu.vector_store %arg7[%c40, %c32_32], %124 {strides = array<i32>} : memref<64x64xf32, #tpu.memory_space<vmem>>, vector<8x32xf32>,
    %127 = vector.extract_strided_slice %9 {offsets = [24, 0], sizes = [8, 128], strides = [1, 1]} : vector<64x256xf32> to vector<8x128xf32>
    %cst_33 = arith.constant dense<0.000000e+00> : vector<8x128xf32>
    %128 = tpu.matmul %109, %10, %cst_33 {dimension_numbers = #tpu.dot_dimension_numbers<[1], [0], [0], [1], [0, 0, 1, 1], [], []>} : vector<8x32xf32>, vector<32x128xf32>, vector<8x128xf32> -> vector<8x128xf32>
    %129 = arith.addf %127, %128 : vector<8x128xf32>
    %130 = vector.extract_strided_slice %9 {offsets = [32, 128], sizes = [8, 128], strides = [1, 1]} : vector<64x256xf32> to vector<8x128xf32>
    %cst_34 = arith.constant dense<0.000000e+00> : vector<8x128xf32>
    %131 = tpu.matmul %124, %11, %cst_34 {dimension_numbers = #tpu.dot_dimension_numbers<[1], [0], [0], [1], [0, 0, 1, 1], [], []>} : vector<8x32xf32>, vector<32x128xf32>, vector<8x128xf32> -> vector<8x128xf32>
    %132 = arith.addf %130, %131 : vector<8x128xf32>
    %133 = arith.negf %129 : vector<8x128xf32>
    %134 = math.exp %133 : vector<8x128xf32>
    %cst_35 = arith.constant 1.000000e+00 : f32
    %135 = vector.broadcast %cst_35 : f32 to vector<8x128xf32>
    %136 = arith.addf %135, %134 : vector<8x128xf32>
    %137 = arith.divf %135, %136 : vector<8x128xf32>
    %138 = vector.extract_strided_slice %137 {offsets = [0, 0], sizes = [8, 32], strides = [1, 1]} : vector<8x128xf32> to vector<8x32xf32>
    %139 = vector.extract_strided_slice %137 {offsets = [0, 32], sizes = [8, 32], strides = [1, 1]} : vector<8x128xf32> to vector<8x32xf32>
    %140 = vector.extract_strided_slice %137 {offsets = [0, 96], sizes = [8, 32], strides = [1, 1]} : vector<8x128xf32> to vector<8x32xf32>
    %141 = vector.extract_strided_slice %129 {offsets = [0, 64], sizes = [8, 32], strides = [1, 1]} : vector<8x128xf32> to vector<8x32xf32>
    %142 = math.tanh %141 : vector<8x32xf32>
    %143 = arith.mulf %139, %107 : vector<8x32xf32>
    %144 = arith.mulf %138, %142 : vector<8x32xf32>
    %145 = arith.addf %143, %144 : vector<8x32xf32>
    %146 = math.tanh %145 : vector<8x32xf32>
    %147 = arith.mulf %140, %146 : vector<8x32xf32>
    %148 = arith.negf %132 : vector<8x128xf32>
    %149 = math.exp %148 : vector<8x128xf32>
    %cst_36 = arith.constant 1.000000e+00 : f32
    %150 = vector.broadcast %cst_36 : f32 to vector<8x128xf32>
    %151 = arith.addf %150, %149 : vector<8x128xf32>
    %152 = arith.divf %150, %151 : vector<8x128xf32>
    %153 = vector.extract_strided_slice %152 {offsets = [0, 0], sizes = [8, 32], strides = [1, 1]} : vector<8x128xf32> to vector<8x32xf32>
    %154 = vector.extract_strided_slice %152 {offsets = [0, 32], sizes = [8, 32], strides = [1, 1]} : vector<8x128xf32> to vector<8x32xf32>
    %155 = vector.extract_strided_slice %152 {offsets = [0, 96], sizes = [8, 32], strides = [1, 1]} : vector<8x128xf32> to vector<8x32xf32>
    %156 = vector.extract_strided_slice %132 {offsets = [0, 64], sizes = [8, 32], strides = [1, 1]} : vector<8x128xf32> to vector<8x32xf32>
    %157 = math.tanh %156 : vector<8x32xf32>
    %158 = arith.mulf %154, %122 : vector<8x32xf32>
    %159 = arith.mulf %153, %157 : vector<8x32xf32>
    %160 = arith.addf %158, %159 : vector<8x32xf32>
    %161 = math.tanh %160 : vector<8x32xf32>
    %162 = arith.mulf %155, %161 : vector<8x32xf32>
    %c24 = arith.constant 24 : index
    %c0_37 = arith.constant 0 : index
    %163 = vector.load %arg7[%c24, %c0_37] : memref<64x64xf32, #tpu.memory_space<vmem>>, vector<8x32xf32>
    tpu.vector_store %arg7[%c24, %c0_37], %147 {strides = array<i32>} : memref<64x64xf32, #tpu.memory_space<vmem>>, vector<8x32xf32>,
    %c32_38 = arith.constant 32 : index
    %c32_39 = arith.constant 32 : index
    %164 = vector.load %arg7[%c32_38, %c32_39] : memref<64x64xf32, #tpu.memory_space<vmem>>, vector<8x32xf32>
    tpu.vector_store %arg7[%c32_38, %c32_39], %162 {strides = array<i32>} : memref<64x64xf32, #tpu.memory_space<vmem>>, vector<8x32xf32>,
    %165 = vector.extract_strided_slice %9 {offsets = [32, 0], sizes = [8, 128], strides = [1, 1]} : vector<64x256xf32> to vector<8x128xf32>
    %cst_40 = arith.constant dense<0.000000e+00> : vector<8x128xf32>
    %166 = tpu.matmul %147, %10, %cst_40 {dimension_numbers = #tpu.dot_dimension_numbers<[1], [0], [0], [1], [0, 0, 1, 1], [], []>} : vector<8x32xf32>, vector<32x128xf32>, vector<8x128xf32> -> vector<8x128xf32>
    %167 = arith.addf %165, %166 : vector<8x128xf32>
    %168 = vector.extract_strided_slice %9 {offsets = [24, 128], sizes = [8, 128], strides = [1, 1]} : vector<64x256xf32> to vector<8x128xf32>
    %cst_41 = arith.constant dense<0.000000e+00> : vector<8x128xf32>
    %169 = tpu.matmul %162, %11, %cst_41 {dimension_numbers = #tpu.dot_dimension_numbers<[1], [0], [0], [1], [0, 0, 1, 1], [], []>} : vector<8x32xf32>, vector<32x128xf32>, vector<8x128xf32> -> vector<8x128xf32>
    %170 = arith.addf %168, %169 : vector<8x128xf32>
    %171 = arith.negf %167 : vector<8x128xf32>
    %172 = math.exp %171 : vector<8x128xf32>
    %cst_42 = arith.constant 1.000000e+00 : f32
    %173 = vector.broadcast %cst_42 : f32 to vector<8x128xf32>
    %174 = arith.addf %173, %172 : vector<8x128xf32>
    %175 = arith.divf %173, %174 : vector<8x128xf32>
    %176 = vector.extract_strided_slice %175 {offsets = [0, 0], sizes = [8, 32], strides = [1, 1]} : vector<8x128xf32> to vector<8x32xf32>
    %177 = vector.extract_strided_slice %175 {offsets = [0, 32], sizes = [8, 32], strides = [1, 1]} : vector<8x128xf32> to vector<8x32xf32>
    %178 = vector.extract_strided_slice %175 {offsets = [0, 96], sizes = [8, 32], strides = [1, 1]} : vector<8x128xf32> to vector<8x32xf32>
    %179 = vector.extract_strided_slice %167 {offsets = [0, 64], sizes = [8, 32], strides = [1, 1]} : vector<8x128xf32> to vector<8x32xf32>
    %180 = math.tanh %179 : vector<8x32xf32>
    %181 = arith.mulf %177, %145 : vector<8x32xf32>
    %182 = arith.mulf %176, %180 : vector<8x32xf32>
    %183 = arith.addf %181, %182 : vector<8x32xf32>
    %184 = math.tanh %183 : vector<8x32xf32>
    %185 = arith.mulf %178, %184 : vector<8x32xf32>
    %186 = arith.negf %170 : vector<8x128xf32>
    %187 = math.exp %186 : vector<8x128xf32>
    %cst_43 = arith.constant 1.000000e+00 : f32
    %188 = vector.broadcast %cst_43 : f32 to vector<8x128xf32>
    %189 = arith.addf %188, %187 : vector<8x128xf32>
    %190 = arith.divf %188, %189 : vector<8x128xf32>
    %191 = vector.extract_strided_slice %190 {offsets = [0, 0], sizes = [8, 32], strides = [1, 1]} : vector<8x128xf32> to vector<8x32xf32>
    %192 = vector.extract_strided_slice %190 {offsets = [0, 32], sizes = [8, 32], strides = [1, 1]} : vector<8x128xf32> to vector<8x32xf32>
    %193 = vector.extract_strided_slice %190 {offsets = [0, 96], sizes = [8, 32], strides = [1, 1]} : vector<8x128xf32> to vector<8x32xf32>
    %194 = vector.extract_strided_slice %170 {offsets = [0, 64], sizes = [8, 32], strides = [1, 1]} : vector<8x128xf32> to vector<8x32xf32>
    %195 = math.tanh %194 : vector<8x32xf32>
    %196 = arith.mulf %192, %160 : vector<8x32xf32>
    %197 = arith.mulf %191, %195 : vector<8x32xf32>
    %198 = arith.addf %196, %197 : vector<8x32xf32>
    %199 = math.tanh %198 : vector<8x32xf32>
    %200 = arith.mulf %193, %199 : vector<8x32xf32>
    %c32_44 = arith.constant 32 : index
    %c0_45 = arith.constant 0 : index
    %201 = vector.load %arg7[%c32_44, %c0_45] : memref<64x64xf32, #tpu.memory_space<vmem>>, vector<8x32xf32>
    tpu.vector_store %arg7[%c32_44, %c0_45], %185 {strides = array<i32>} : memref<64x64xf32, #tpu.memory_space<vmem>>, vector<8x32xf32>,
    %c24_46 = arith.constant 24 : index
    %c32_47 = arith.constant 32 : index
    %202 = vector.load %arg7[%c24_46, %c32_47] : memref<64x64xf32, #tpu.memory_space<vmem>>, vector<8x32xf32>
    tpu.vector_store %arg7[%c24_46, %c32_47], %200 {strides = array<i32>} : memref<64x64xf32, #tpu.memory_space<vmem>>, vector<8x32xf32>,
    %203 = vector.extract_strided_slice %9 {offsets = [40, 0], sizes = [8, 128], strides = [1, 1]} : vector<64x256xf32> to vector<8x128xf32>
    %cst_48 = arith.constant dense<0.000000e+00> : vector<8x128xf32>
    %204 = tpu.matmul %185, %10, %cst_48 {dimension_numbers = #tpu.dot_dimension_numbers<[1], [0], [0], [1], [0, 0, 1, 1], [], []>} : vector<8x32xf32>, vector<32x128xf32>, vector<8x128xf32> -> vector<8x128xf32>
    %205 = arith.addf %203, %204 : vector<8x128xf32>
    %206 = vector.extract_strided_slice %9 {offsets = [16, 128], sizes = [8, 128], strides = [1, 1]} : vector<64x256xf32> to vector<8x128xf32>
    %cst_49 = arith.constant dense<0.000000e+00> : vector<8x128xf32>
    %207 = tpu.matmul %200, %11, %cst_49 {dimension_numbers = #tpu.dot_dimension_numbers<[1], [0], [0], [1], [0, 0, 1, 1], [], []>} : vector<8x32xf32>, vector<32x128xf32>, vector<8x128xf32> -> vector<8x128xf32>
    %208 = arith.addf %206, %207 : vector<8x128xf32>
    %209 = arith.negf %205 : vector<8x128xf32>
    %210 = math.exp %209 : vector<8x128xf32>
    %cst_50 = arith.constant 1.000000e+00 : f32
    %211 = vector.broadcast %cst_50 : f32 to vector<8x128xf32>
    %212 = arith.addf %211, %210 : vector<8x128xf32>
    %213 = arith.divf %211, %212 : vector<8x128xf32>
    %214 = vector.extract_strided_slice %213 {offsets = [0, 0], sizes = [8, 32], strides = [1, 1]} : vector<8x128xf32> to vector<8x32xf32>
    %215 = vector.extract_strided_slice %213 {offsets = [0, 32], sizes = [8, 32], strides = [1, 1]} : vector<8x128xf32> to vector<8x32xf32>
    %216 = vector.extract_strided_slice %213 {offsets = [0, 96], sizes = [8, 32], strides = [1, 1]} : vector<8x128xf32> to vector<8x32xf32>
    %217 = vector.extract_strided_slice %205 {offsets = [0, 64], sizes = [8, 32], strides = [1, 1]} : vector<8x128xf32> to vector<8x32xf32>
    %218 = math.tanh %217 : vector<8x32xf32>
    %219 = arith.mulf %215, %183 : vector<8x32xf32>
    %220 = arith.mulf %214, %218 : vector<8x32xf32>
    %221 = arith.addf %219, %220 : vector<8x32xf32>
    %222 = math.tanh %221 : vector<8x32xf32>
    %223 = arith.mulf %216, %222 : vector<8x32xf32>
    %224 = arith.negf %208 : vector<8x128xf32>
    %225 = math.exp %224 : vector<8x128xf32>
    %cst_51 = arith.constant 1.000000e+00 : f32
    %226 = vector.broadcast %cst_51 : f32 to vector<8x128xf32>
    %227 = arith.addf %226, %225 : vector<8x128xf32>
    %228 = arith.divf %226, %227 : vector<8x128xf32>
    %229 = vector.extract_strided_slice %228 {offsets = [0, 0], sizes = [8, 32], strides = [1, 1]} : vector<8x128xf32> to vector<8x32xf32>
    %230 = vector.extract_strided_slice %228 {offsets = [0, 32], sizes = [8, 32], strides = [1, 1]} : vector<8x128xf32> to vector<8x32xf32>
    %231 = vector.extract_strided_slice %228 {offsets = [0, 96], sizes = [8, 32], strides = [1, 1]} : vector<8x128xf32> to vector<8x32xf32>
    %232 = vector.extract_strided_slice %208 {offsets = [0, 64], sizes = [8, 32], strides = [1, 1]} : vector<8x128xf32> to vector<8x32xf32>
    %233 = math.tanh %232 : vector<8x32xf32>
    %234 = arith.mulf %230, %198 : vector<8x32xf32>
    %235 = arith.mulf %229, %233 : vector<8x32xf32>
    %236 = arith.addf %234, %235 : vector<8x32xf32>
    %237 = math.tanh %236 : vector<8x32xf32>
    %238 = arith.mulf %231, %237 : vector<8x32xf32>
    %c40_52 = arith.constant 40 : index
    %c0_53 = arith.constant 0 : index
    %239 = vector.load %arg7[%c40_52, %c0_53] : memref<64x64xf32, #tpu.memory_space<vmem>>, vector<8x32xf32>
    tpu.vector_store %arg7[%c40_52, %c0_53], %223 {strides = array<i32>} : memref<64x64xf32, #tpu.memory_space<vmem>>, vector<8x32xf32>,
    %c16_54 = arith.constant 16 : index
    %c32_55 = arith.constant 32 : index
    %240 = vector.load %arg7[%c16_54, %c32_55] : memref<64x64xf32, #tpu.memory_space<vmem>>, vector<8x32xf32>
    tpu.vector_store %arg7[%c16_54, %c32_55], %238 {strides = array<i32>} : memref<64x64xf32, #tpu.memory_space<vmem>>, vector<8x32xf32>,
    %241 = vector.extract_strided_slice %9 {offsets = [48, 0], sizes = [8, 128], strides = [1, 1]} : vector<64x256xf32> to vector<8x128xf32>
    %cst_56 = arith.constant dense<0.000000e+00> : vector<8x128xf32>
    %242 = tpu.matmul %223, %10, %cst_56 {dimension_numbers = #tpu.dot_dimension_numbers<[1], [0], [0], [1], [0, 0, 1, 1], [], []>} : vector<8x32xf32>, vector<32x128xf32>, vector<8x128xf32> -> vector<8x128xf32>
    %243 = arith.addf %241, %242 : vector<8x128xf32>
    %244 = vector.extract_strided_slice %9 {offsets = [8, 128], sizes = [8, 128], strides = [1, 1]} : vector<64x256xf32> to vector<8x128xf32>
    %cst_57 = arith.constant dense<0.000000e+00> : vector<8x128xf32>
    %245 = tpu.matmul %238, %11, %cst_57 {dimension_numbers = #tpu.dot_dimension_numbers<[1], [0], [0], [1], [0, 0, 1, 1], [], []>} : vector<8x32xf32>, vector<32x128xf32>, vector<8x128xf32> -> vector<8x128xf32>
    %246 = arith.addf %244, %245 : vector<8x128xf32>
    %247 = arith.negf %243 : vector<8x128xf32>
    %248 = math.exp %247 : vector<8x128xf32>
    %cst_58 = arith.constant 1.000000e+00 : f32
    %249 = vector.broadcast %cst_58 : f32 to vector<8x128xf32>
    %250 = arith.addf %249, %248 : vector<8x128xf32>
    %251 = arith.divf %249, %250 : vector<8x128xf32>
    %252 = vector.extract_strided_slice %251 {offsets = [0, 0], sizes = [8, 32], strides = [1, 1]} : vector<8x128xf32> to vector<8x32xf32>
    %253 = vector.extract_strided_slice %251 {offsets = [0, 32], sizes = [8, 32], strides = [1, 1]} : vector<8x128xf32> to vector<8x32xf32>
    %254 = vector.extract_strided_slice %251 {offsets = [0, 96], sizes = [8, 32], strides = [1, 1]} : vector<8x128xf32> to vector<8x32xf32>
    %255 = vector.extract_strided_slice %243 {offsets = [0, 64], sizes = [8, 32], strides = [1, 1]} : vector<8x128xf32> to vector<8x32xf32>
    %256 = math.tanh %255 : vector<8x32xf32>
    %257 = arith.mulf %253, %221 : vector<8x32xf32>
    %258 = arith.mulf %252, %256 : vector<8x32xf32>
    %259 = arith.addf %257, %258 : vector<8x32xf32>
    %260 = math.tanh %259 : vector<8x32xf32>
    %261 = arith.mulf %254, %260 : vector<8x32xf32>
    %262 = arith.negf %246 : vector<8x128xf32>
    %263 = math.exp %262 : vector<8x128xf32>
    %cst_59 = arith.constant 1.000000e+00 : f32
    %264 = vector.broadcast %cst_59 : f32 to vector<8x128xf32>
    %265 = arith.addf %264, %263 : vector<8x128xf32>
    %266 = arith.divf %264, %265 : vector<8x128xf32>
    %267 = vector.extract_strided_slice %266 {offsets = [0, 0], sizes = [8, 32], strides = [1, 1]} : vector<8x128xf32> to vector<8x32xf32>
    %268 = vector.extract_strided_slice %266 {offsets = [0, 32], sizes = [8, 32], strides = [1, 1]} : vector<8x128xf32> to vector<8x32xf32>
    %269 = vector.extract_strided_slice %266 {offsets = [0, 96], sizes = [8, 32], strides = [1, 1]} : vector<8x128xf32> to vector<8x32xf32>
    %270 = vector.extract_strided_slice %246 {offsets = [0, 64], sizes = [8, 32], strides = [1, 1]} : vector<8x128xf32> to vector<8x32xf32>
    %271 = math.tanh %270 : vector<8x32xf32>
    %272 = arith.mulf %268, %236 : vector<8x32xf32>
    %273 = arith.mulf %267, %271 : vector<8x32xf32>
    %274 = arith.addf %272, %273 : vector<8x32xf32>
    %275 = math.tanh %274 : vector<8x32xf32>
    %276 = arith.mulf %269, %275 : vector<8x32xf32>
    %c48_60 = arith.constant 48 : index
    %c0_61 = arith.constant 0 : index
    %277 = vector.load %arg7[%c48_60, %c0_61] : memref<64x64xf32, #tpu.memory_space<vmem>>, vector<8x32xf32>
    tpu.vector_store %arg7[%c48_60, %c0_61], %261 {strides = array<i32>} : memref<64x64xf32, #tpu.memory_space<vmem>>, vector<8x32xf32>,
    %c8_62 = arith.constant 8 : index
    %c32_63 = arith.constant 32 : index
    %278 = vector.load %arg7[%c8_62, %c32_63] : memref<64x64xf32, #tpu.memory_space<vmem>>, vector<8x32xf32>
    tpu.vector_store %arg7[%c8_62, %c32_63], %276 {strides = array<i32>} : memref<64x64xf32, #tpu.memory_space<vmem>>, vector<8x32xf32>,
    %279 = vector.extract_strided_slice %9 {offsets = [56, 0], sizes = [8, 128], strides = [1, 1]} : vector<64x256xf32> to vector<8x128xf32>
    %cst_64 = arith.constant dense<0.000000e+00> : vector<8x128xf32>
    %280 = tpu.matmul %261, %10, %cst_64 {dimension_numbers = #tpu.dot_dimension_numbers<[1], [0], [0], [1], [0, 0, 1, 1], [], []>} : vector<8x32xf32>, vector<32x128xf32>, vector<8x128xf32> -> vector<8x128xf32>
    %281 = arith.addf %279, %280 : vector<8x128xf32>
    %282 = vector.extract_strided_slice %9 {offsets = [0, 128], sizes = [8, 128], strides = [1, 1]} : vector<64x256xf32> to vector<8x128xf32>
    %cst_65 = arith.constant dense<0.000000e+00> : vector<8x128xf32>
    %283 = tpu.matmul %276, %11, %cst_65 {dimension_numbers = #tpu.dot_dimension_numbers<[1], [0], [0], [1], [0, 0, 1, 1], [], []>} : vector<8x32xf32>, vector<32x128xf32>, vector<8x128xf32> -> vector<8x128xf32>
    %284 = arith.addf %282, %283 : vector<8x128xf32>
    %285 = arith.negf %281 : vector<8x128xf32>
    %286 = math.exp %285 : vector<8x128xf32>
    %cst_66 = arith.constant 1.000000e+00 : f32
    %287 = vector.broadcast %cst_66 : f32 to vector<8x128xf32>
    %288 = arith.addf %287, %286 : vector<8x128xf32>
    %289 = arith.divf %287, %288 : vector<8x128xf32>
    %290 = vector.extract_strided_slice %289 {offsets = [0, 0], sizes = [8, 32], strides = [1, 1]} : vector<8x128xf32> to vector<8x32xf32>
    %291 = vector.extract_strided_slice %289 {offsets = [0, 32], sizes = [8, 32], strides = [1, 1]} : vector<8x128xf32> to vector<8x32xf32>
    %292 = vector.extract_strided_slice %289 {offsets = [0, 96], sizes = [8, 32], strides = [1, 1]} : vector<8x128xf32> to vector<8x32xf32>
    %293 = vector.extract_strided_slice %281 {offsets = [0, 64], sizes = [8, 32], strides = [1, 1]} : vector<8x128xf32> to vector<8x32xf32>
    %294 = math.tanh %293 : vector<8x32xf32>
    %295 = arith.mulf %291, %259 : vector<8x32xf32>
    %296 = arith.mulf %290, %294 : vector<8x32xf32>
    %297 = arith.addf %295, %296 : vector<8x32xf32>
    %298 = math.tanh %297 : vector<8x32xf32>
    %299 = arith.mulf %292, %298 : vector<8x32xf32>
    %300 = arith.negf %284 : vector<8x128xf32>
    %301 = math.exp %300 : vector<8x128xf32>
    %cst_67 = arith.constant 1.000000e+00 : f32
    %302 = vector.broadcast %cst_67 : f32 to vector<8x128xf32>
    %303 = arith.addf %302, %301 : vector<8x128xf32>
    %304 = arith.divf %302, %303 : vector<8x128xf32>
    %305 = vector.extract_strided_slice %304 {offsets = [0, 0], sizes = [8, 32], strides = [1, 1]} : vector<8x128xf32> to vector<8x32xf32>
    %306 = vector.extract_strided_slice %304 {offsets = [0, 32], sizes = [8, 32], strides = [1, 1]} : vector<8x128xf32> to vector<8x32xf32>
    %307 = vector.extract_strided_slice %304 {offsets = [0, 96], sizes = [8, 32], strides = [1, 1]} : vector<8x128xf32> to vector<8x32xf32>
    %308 = vector.extract_strided_slice %284 {offsets = [0, 64], sizes = [8, 32], strides = [1, 1]} : vector<8x128xf32> to vector<8x32xf32>
    %309 = math.tanh %308 : vector<8x32xf32>
    %310 = arith.mulf %306, %274 : vector<8x32xf32>
    %311 = arith.mulf %305, %309 : vector<8x32xf32>
    %312 = arith.addf %310, %311 : vector<8x32xf32>
    %313 = math.tanh %312 : vector<8x32xf32>
    %314 = arith.mulf %307, %313 : vector<8x32xf32>
    %c56_68 = arith.constant 56 : index
    %c0_69 = arith.constant 0 : index
    %315 = vector.load %arg7[%c56_68, %c0_69] : memref<64x64xf32, #tpu.memory_space<vmem>>, vector<8x32xf32>
    tpu.vector_store %arg7[%c56_68, %c0_69], %299 {strides = array<i32>} : memref<64x64xf32, #tpu.memory_space<vmem>>, vector<8x32xf32>,
    %c0_70 = arith.constant 0 : index
    %c32_71 = arith.constant 32 : index
    %316 = vector.load %arg7[%c0_70, %c32_71] : memref<64x64xf32, #tpu.memory_space<vmem>>, vector<8x32xf32>
    tpu.vector_store %arg7[%c0_70, %c32_71], %314 {strides = array<i32>} : memref<64x64xf32, #tpu.memory_space<vmem>>, vector<8x32xf32>,
    return
  }
}

module attributes {stable_mosaic.version = 11 : i64} {
  func.func @kernel(%arg0: memref<64x64xf32, #tpu.memory_space<vmem>>, %arg1: memref<64x256xf32, #tpu.memory_space<vmem>>, %arg2: memref<32x128xf32, #tpu.memory_space<vmem>>, %arg3: memref<32x128xf32, #tpu.memory_space<vmem>>, %arg4: memref<1x256xf32, #tpu.memory_space<vmem>>, %arg5: memref<64x3xf32, #tpu.memory_space<vmem>>, %arg6: memref<1x3xf32, #tpu.memory_space<vmem>>, %arg7: memref<64x64xf32, #tpu.memory_space<vmem>>, %arg8: memref<64x3xf32, #tpu.memory_space<vmem>>) attributes {dimension_semantics = [], scalar_prefetch = 0 : i64, scratch_operands = 0 : i64, tpu.core_type = #tpu.core_type<tc>} {
    %c0 = arith.constant 0 : index
    %c0_0 = arith.constant 0 : index
    %0 = vector.load %arg0[%c0, %c0_0] : memref<64x64xf32, #tpu.memory_space<vmem>>, vector<64x64xf32>
    %c0_1 = arith.constant 0 : index
    %c0_2 = arith.constant 0 : index
    %1 = vector.load %arg1[%c0_1, %c0_2] : memref<64x256xf32, #tpu.memory_space<vmem>>, vector<64x256xf32>
    %cst = arith.constant dense<0.000000e+00> : vector<64x256xf32>
    %2 = tpu.matmul %0, %1, %cst {dimension_numbers = #tpu.dot_dimension_numbers<[1], [0], [0], [1], [0, 0, 1, 1], [], []>} : vector<64x64xf32>, vector<64x256xf32>, vector<64x256xf32> -> vector<64x256xf32>
    %c0_3 = arith.constant 0 : index
    %c0_4 = arith.constant 0 : index
    %3 = vector.load %arg4[%c0_3, %c0_4] : memref<1x256xf32, #tpu.memory_space<vmem>>, vector<1x256xf32>
    %4 = vector.broadcast %3 : vector<1x256xf32> to vector<64x256xf32>
    %5 = arith.addf %2, %4 : vector<64x256xf32>
    %c0_5 = arith.constant 0 : index
    %c0_6 = arith.constant 0 : index
    %6 = vector.load %arg2[%c0_5, %c0_6] : memref<32x128xf32, #tpu.memory_space<vmem>>, vector<32x128xf32>
    %c0_7 = arith.constant 0 : index
    %c0_8 = arith.constant 0 : index
    %7 = vector.load %arg3[%c0_7, %c0_8] : memref<32x128xf32, #tpu.memory_space<vmem>>, vector<32x128xf32>
    %cst_9 = arith.constant 0.000000e+00 : f32
    %8 = vector.broadcast %cst_9 : f32 to vector<8x32xf32>
    %9 = vector.extract_strided_slice %5 {offsets = [0, 0], sizes = [8, 128], strides = [1, 1]} : vector<64x256xf32> to vector<8x128xf32>
    %cst_10 = arith.constant dense<0.000000e+00> : vector<8x128xf32>
    %10 = tpu.matmul %8, %6, %cst_10 {dimension_numbers = #tpu.dot_dimension_numbers<[1], [0], [0], [1], [0, 0, 1, 1], [], []>} : vector<8x32xf32>, vector<32x128xf32>, vector<8x128xf32> -> vector<8x128xf32>
    %11 = arith.addf %9, %10 : vector<8x128xf32>
    %12 = vector.extract_strided_slice %5 {offsets = [56, 128], sizes = [8, 128], strides = [1, 1]} : vector<64x256xf32> to vector<8x128xf32>
    %cst_11 = arith.constant dense<0.000000e+00> : vector<8x128xf32>
    %13 = tpu.matmul %8, %7, %cst_11 {dimension_numbers = #tpu.dot_dimension_numbers<[1], [0], [0], [1], [0, 0, 1, 1], [], []>} : vector<8x32xf32>, vector<32x128xf32>, vector<8x128xf32> -> vector<8x128xf32>
    %14 = arith.addf %12, %13 : vector<8x128xf32>
    %15 = arith.negf %11 : vector<8x128xf32>
    %16 = math.exp %15 : vector<8x128xf32>
    %cst_12 = arith.constant 1.000000e+00 : f32
    %17 = vector.broadcast %cst_12 : f32 to vector<8x128xf32>
    %18 = arith.addf %17, %16 : vector<8x128xf32>
    %19 = arith.divf %17, %18 : vector<8x128xf32>
    %20 = vector.extract_strided_slice %19 {offsets = [0, 0], sizes = [8, 32], strides = [1, 1]} : vector<8x128xf32> to vector<8x32xf32>
    %21 = vector.extract_strided_slice %19 {offsets = [0, 32], sizes = [8, 32], strides = [1, 1]} : vector<8x128xf32> to vector<8x32xf32>
    %22 = vector.extract_strided_slice %19 {offsets = [0, 96], sizes = [8, 32], strides = [1, 1]} : vector<8x128xf32> to vector<8x32xf32>
    %23 = vector.extract_strided_slice %11 {offsets = [0, 64], sizes = [8, 32], strides = [1, 1]} : vector<8x128xf32> to vector<8x32xf32>
    %24 = math.tanh %23 : vector<8x32xf32>
    %25 = arith.mulf %21, %8 : vector<8x32xf32>
    %26 = arith.mulf %20, %24 : vector<8x32xf32>
    %27 = arith.addf %25, %26 : vector<8x32xf32>
    %28 = math.tanh %27 : vector<8x32xf32>
    %29 = arith.mulf %22, %28 : vector<8x32xf32>
    %30 = arith.negf %14 : vector<8x128xf32>
    %31 = math.exp %30 : vector<8x128xf32>
    %cst_13 = arith.constant 1.000000e+00 : f32
    %32 = vector.broadcast %cst_13 : f32 to vector<8x128xf32>
    %33 = arith.addf %32, %31 : vector<8x128xf32>
    %34 = arith.divf %32, %33 : vector<8x128xf32>
    %35 = vector.extract_strided_slice %34 {offsets = [0, 0], sizes = [8, 32], strides = [1, 1]} : vector<8x128xf32> to vector<8x32xf32>
    %36 = vector.extract_strided_slice %34 {offsets = [0, 32], sizes = [8, 32], strides = [1, 1]} : vector<8x128xf32> to vector<8x32xf32>
    %37 = vector.extract_strided_slice %34 {offsets = [0, 96], sizes = [8, 32], strides = [1, 1]} : vector<8x128xf32> to vector<8x32xf32>
    %38 = vector.extract_strided_slice %14 {offsets = [0, 64], sizes = [8, 32], strides = [1, 1]} : vector<8x128xf32> to vector<8x32xf32>
    %39 = math.tanh %38 : vector<8x32xf32>
    %40 = arith.mulf %36, %8 : vector<8x32xf32>
    %41 = arith.mulf %35, %39 : vector<8x32xf32>
    %42 = arith.addf %40, %41 : vector<8x32xf32>
    %43 = math.tanh %42 : vector<8x32xf32>
    %44 = arith.mulf %37, %43 : vector<8x32xf32>
    %c0_14 = arith.constant 0 : index
    %c0_15 = arith.constant 0 : index
    %45 = vector.load %arg7[%c0_14, %c0_15] : memref<64x64xf32, #tpu.memory_space<vmem>>, vector<8x32xf32>
    tpu.vector_store %arg7[%c0_14, %c0_15], %29 {strides = array<i32>} : memref<64x64xf32, #tpu.memory_space<vmem>>, vector<8x32xf32>,
    %c56 = arith.constant 56 : index
    %c32 = arith.constant 32 : index
    %46 = vector.load %arg7[%c56, %c32] : memref<64x64xf32, #tpu.memory_space<vmem>>, vector<8x32xf32>
    tpu.vector_store %arg7[%c56, %c32], %44 {strides = array<i32>} : memref<64x64xf32, #tpu.memory_space<vmem>>, vector<8x32xf32>,
    %47 = vector.extract_strided_slice %5 {offsets = [8, 0], sizes = [8, 128], strides = [1, 1]} : vector<64x256xf32> to vector<8x128xf32>
    %cst_16 = arith.constant dense<0.000000e+00> : vector<8x128xf32>
    %48 = tpu.matmul %29, %6, %cst_16 {dimension_numbers = #tpu.dot_dimension_numbers<[1], [0], [0], [1], [0, 0, 1, 1], [], []>} : vector<8x32xf32>, vector<32x128xf32>, vector<8x128xf32> -> vector<8x128xf32>
    %49 = arith.addf %47, %48 : vector<8x128xf32>
    %50 = vector.extract_strided_slice %5 {offsets = [48, 128], sizes = [8, 128], strides = [1, 1]} : vector<64x256xf32> to vector<8x128xf32>
    %cst_17 = arith.constant dense<0.000000e+00> : vector<8x128xf32>
    %51 = tpu.matmul %44, %7, %cst_17 {dimension_numbers = #tpu.dot_dimension_numbers<[1], [0], [0], [1], [0, 0, 1, 1], [], []>} : vector<8x32xf32>, vector<32x128xf32>, vector<8x128xf32> -> vector<8x128xf32>
    %52 = arith.addf %50, %51 : vector<8x128xf32>
    %53 = arith.negf %49 : vector<8x128xf32>
    %54 = math.exp %53 : vector<8x128xf32>
    %cst_18 = arith.constant 1.000000e+00 : f32
    %55 = vector.broadcast %cst_18 : f32 to vector<8x128xf32>
    %56 = arith.addf %55, %54 : vector<8x128xf32>
    %57 = arith.divf %55, %56 : vector<8x128xf32>
    %58 = vector.extract_strided_slice %57 {offsets = [0, 0], sizes = [8, 32], strides = [1, 1]} : vector<8x128xf32> to vector<8x32xf32>
    %59 = vector.extract_strided_slice %57 {offsets = [0, 32], sizes = [8, 32], strides = [1, 1]} : vector<8x128xf32> to vector<8x32xf32>
    %60 = vector.extract_strided_slice %57 {offsets = [0, 96], sizes = [8, 32], strides = [1, 1]} : vector<8x128xf32> to vector<8x32xf32>
    %61 = vector.extract_strided_slice %49 {offsets = [0, 64], sizes = [8, 32], strides = [1, 1]} : vector<8x128xf32> to vector<8x32xf32>
    %62 = math.tanh %61 : vector<8x32xf32>
    %63 = arith.mulf %59, %27 : vector<8x32xf32>
    %64 = arith.mulf %58, %62 : vector<8x32xf32>
    %65 = arith.addf %63, %64 : vector<8x32xf32>
    %66 = math.tanh %65 : vector<8x32xf32>
    %67 = arith.mulf %60, %66 : vector<8x32xf32>
    %68 = arith.negf %52 : vector<8x128xf32>
    %69 = math.exp %68 : vector<8x128xf32>
    %cst_19 = arith.constant 1.000000e+00 : f32
    %70 = vector.broadcast %cst_19 : f32 to vector<8x128xf32>
    %71 = arith.addf %70, %69 : vector<8x128xf32>
    %72 = arith.divf %70, %71 : vector<8x128xf32>
    %73 = vector.extract_strided_slice %72 {offsets = [0, 0], sizes = [8, 32], strides = [1, 1]} : vector<8x128xf32> to vector<8x32xf32>
    %74 = vector.extract_strided_slice %72 {offsets = [0, 32], sizes = [8, 32], strides = [1, 1]} : vector<8x128xf32> to vector<8x32xf32>
    %75 = vector.extract_strided_slice %72 {offsets = [0, 96], sizes = [8, 32], strides = [1, 1]} : vector<8x128xf32> to vector<8x32xf32>
    %76 = vector.extract_strided_slice %52 {offsets = [0, 64], sizes = [8, 32], strides = [1, 1]} : vector<8x128xf32> to vector<8x32xf32>
    %77 = math.tanh %76 : vector<8x32xf32>
    %78 = arith.mulf %74, %42 : vector<8x32xf32>
    %79 = arith.mulf %73, %77 : vector<8x32xf32>
    %80 = arith.addf %78, %79 : vector<8x32xf32>
    %81 = math.tanh %80 : vector<8x32xf32>
    %82 = arith.mulf %75, %81 : vector<8x32xf32>
    %c8 = arith.constant 8 : index
    %c0_20 = arith.constant 0 : index
    %83 = vector.load %arg7[%c8, %c0_20] : memref<64x64xf32, #tpu.memory_space<vmem>>, vector<8x32xf32>
    tpu.vector_store %arg7[%c8, %c0_20], %67 {strides = array<i32>} : memref<64x64xf32, #tpu.memory_space<vmem>>, vector<8x32xf32>,
    %c48 = arith.constant 48 : index
    %c32_21 = arith.constant 32 : index
    %84 = vector.load %arg7[%c48, %c32_21] : memref<64x64xf32, #tpu.memory_space<vmem>>, vector<8x32xf32>
    tpu.vector_store %arg7[%c48, %c32_21], %82 {strides = array<i32>} : memref<64x64xf32, #tpu.memory_space<vmem>>, vector<8x32xf32>,
    %85 = vector.extract_strided_slice %5 {offsets = [16, 0], sizes = [8, 128], strides = [1, 1]} : vector<64x256xf32> to vector<8x128xf32>
    %cst_22 = arith.constant dense<0.000000e+00> : vector<8x128xf32>
    %86 = tpu.matmul %67, %6, %cst_22 {dimension_numbers = #tpu.dot_dimension_numbers<[1], [0], [0], [1], [0, 0, 1, 1], [], []>} : vector<8x32xf32>, vector<32x128xf32>, vector<8x128xf32> -> vector<8x128xf32>
    %87 = arith.addf %85, %86 : vector<8x128xf32>
    %88 = vector.extract_strided_slice %5 {offsets = [40, 128], sizes = [8, 128], strides = [1, 1]} : vector<64x256xf32> to vector<8x128xf32>
    %cst_23 = arith.constant dense<0.000000e+00> : vector<8x128xf32>
    %89 = tpu.matmul %82, %7, %cst_23 {dimension_numbers = #tpu.dot_dimension_numbers<[1], [0], [0], [1], [0, 0, 1, 1], [], []>} : vector<8x32xf32>, vector<32x128xf32>, vector<8x128xf32> -> vector<8x128xf32>
    %90 = arith.addf %88, %89 : vector<8x128xf32>
    %91 = arith.negf %87 : vector<8x128xf32>
    %92 = math.exp %91 : vector<8x128xf32>
    %cst_24 = arith.constant 1.000000e+00 : f32
    %93 = vector.broadcast %cst_24 : f32 to vector<8x128xf32>
    %94 = arith.addf %93, %92 : vector<8x128xf32>
    %95 = arith.divf %93, %94 : vector<8x128xf32>
    %96 = vector.extract_strided_slice %95 {offsets = [0, 0], sizes = [8, 32], strides = [1, 1]} : vector<8x128xf32> to vector<8x32xf32>
    %97 = vector.extract_strided_slice %95 {offsets = [0, 32], sizes = [8, 32], strides = [1, 1]} : vector<8x128xf32> to vector<8x32xf32>
    %98 = vector.extract_strided_slice %95 {offsets = [0, 96], sizes = [8, 32], strides = [1, 1]} : vector<8x128xf32> to vector<8x32xf32>
    %99 = vector.extract_strided_slice %87 {offsets = [0, 64], sizes = [8, 32], strides = [1, 1]} : vector<8x128xf32> to vector<8x32xf32>
    %100 = math.tanh %99 : vector<8x32xf32>
    %101 = arith.mulf %97, %65 : vector<8x32xf32>
    %102 = arith.mulf %96, %100 : vector<8x32xf32>
    %103 = arith.addf %101, %102 : vector<8x32xf32>
    %104 = math.tanh %103 : vector<8x32xf32>
    %105 = arith.mulf %98, %104 : vector<8x32xf32>
    %106 = arith.negf %90 : vector<8x128xf32>
    %107 = math.exp %106 : vector<8x128xf32>
    %cst_25 = arith.constant 1.000000e+00 : f32
    %108 = vector.broadcast %cst_25 : f32 to vector<8x128xf32>
    %109 = arith.addf %108, %107 : vector<8x128xf32>
    %110 = arith.divf %108, %109 : vector<8x128xf32>
    %111 = vector.extract_strided_slice %110 {offsets = [0, 0], sizes = [8, 32], strides = [1, 1]} : vector<8x128xf32> to vector<8x32xf32>
    %112 = vector.extract_strided_slice %110 {offsets = [0, 32], sizes = [8, 32], strides = [1, 1]} : vector<8x128xf32> to vector<8x32xf32>
    %113 = vector.extract_strided_slice %110 {offsets = [0, 96], sizes = [8, 32], strides = [1, 1]} : vector<8x128xf32> to vector<8x32xf32>
    %114 = vector.extract_strided_slice %90 {offsets = [0, 64], sizes = [8, 32], strides = [1, 1]} : vector<8x128xf32> to vector<8x32xf32>
    %115 = math.tanh %114 : vector<8x32xf32>
    %116 = arith.mulf %112, %80 : vector<8x32xf32>
    %117 = arith.mulf %111, %115 : vector<8x32xf32>
    %118 = arith.addf %116, %117 : vector<8x32xf32>
    %119 = math.tanh %118 : vector<8x32xf32>
    %120 = arith.mulf %113, %119 : vector<8x32xf32>
    %c16 = arith.constant 16 : index
    %c0_26 = arith.constant 0 : index
    %121 = vector.load %arg7[%c16, %c0_26] : memref<64x64xf32, #tpu.memory_space<vmem>>, vector<8x32xf32>
    tpu.vector_store %arg7[%c16, %c0_26], %105 {strides = array<i32>} : memref<64x64xf32, #tpu.memory_space<vmem>>, vector<8x32xf32>,
    %c40 = arith.constant 40 : index
    %c32_27 = arith.constant 32 : index
    %122 = vector.load %arg7[%c40, %c32_27] : memref<64x64xf32, #tpu.memory_space<vmem>>, vector<8x32xf32>
    tpu.vector_store %arg7[%c40, %c32_27], %120 {strides = array<i32>} : memref<64x64xf32, #tpu.memory_space<vmem>>, vector<8x32xf32>,
    %123 = vector.extract_strided_slice %5 {offsets = [24, 0], sizes = [8, 128], strides = [1, 1]} : vector<64x256xf32> to vector<8x128xf32>
    %cst_28 = arith.constant dense<0.000000e+00> : vector<8x128xf32>
    %124 = tpu.matmul %105, %6, %cst_28 {dimension_numbers = #tpu.dot_dimension_numbers<[1], [0], [0], [1], [0, 0, 1, 1], [], []>} : vector<8x32xf32>, vector<32x128xf32>, vector<8x128xf32> -> vector<8x128xf32>
    %125 = arith.addf %123, %124 : vector<8x128xf32>
    %126 = vector.extract_strided_slice %5 {offsets = [32, 128], sizes = [8, 128], strides = [1, 1]} : vector<64x256xf32> to vector<8x128xf32>
    %cst_29 = arith.constant dense<0.000000e+00> : vector<8x128xf32>
    %127 = tpu.matmul %120, %7, %cst_29 {dimension_numbers = #tpu.dot_dimension_numbers<[1], [0], [0], [1], [0, 0, 1, 1], [], []>} : vector<8x32xf32>, vector<32x128xf32>, vector<8x128xf32> -> vector<8x128xf32>
    %128 = arith.addf %126, %127 : vector<8x128xf32>
    %129 = arith.negf %125 : vector<8x128xf32>
    %130 = math.exp %129 : vector<8x128xf32>
    %cst_30 = arith.constant 1.000000e+00 : f32
    %131 = vector.broadcast %cst_30 : f32 to vector<8x128xf32>
    %132 = arith.addf %131, %130 : vector<8x128xf32>
    %133 = arith.divf %131, %132 : vector<8x128xf32>
    %134 = vector.extract_strided_slice %133 {offsets = [0, 0], sizes = [8, 32], strides = [1, 1]} : vector<8x128xf32> to vector<8x32xf32>
    %135 = vector.extract_strided_slice %133 {offsets = [0, 32], sizes = [8, 32], strides = [1, 1]} : vector<8x128xf32> to vector<8x32xf32>
    %136 = vector.extract_strided_slice %133 {offsets = [0, 96], sizes = [8, 32], strides = [1, 1]} : vector<8x128xf32> to vector<8x32xf32>
    %137 = vector.extract_strided_slice %125 {offsets = [0, 64], sizes = [8, 32], strides = [1, 1]} : vector<8x128xf32> to vector<8x32xf32>
    %138 = math.tanh %137 : vector<8x32xf32>
    %139 = arith.mulf %135, %103 : vector<8x32xf32>
    %140 = arith.mulf %134, %138 : vector<8x32xf32>
    %141 = arith.addf %139, %140 : vector<8x32xf32>
    %142 = math.tanh %141 : vector<8x32xf32>
    %143 = arith.mulf %136, %142 : vector<8x32xf32>
    %144 = arith.negf %128 : vector<8x128xf32>
    %145 = math.exp %144 : vector<8x128xf32>
    %cst_31 = arith.constant 1.000000e+00 : f32
    %146 = vector.broadcast %cst_31 : f32 to vector<8x128xf32>
    %147 = arith.addf %146, %145 : vector<8x128xf32>
    %148 = arith.divf %146, %147 : vector<8x128xf32>
    %149 = vector.extract_strided_slice %148 {offsets = [0, 0], sizes = [8, 32], strides = [1, 1]} : vector<8x128xf32> to vector<8x32xf32>
    %150 = vector.extract_strided_slice %148 {offsets = [0, 32], sizes = [8, 32], strides = [1, 1]} : vector<8x128xf32> to vector<8x32xf32>
    %151 = vector.extract_strided_slice %148 {offsets = [0, 96], sizes = [8, 32], strides = [1, 1]} : vector<8x128xf32> to vector<8x32xf32>
    %152 = vector.extract_strided_slice %128 {offsets = [0, 64], sizes = [8, 32], strides = [1, 1]} : vector<8x128xf32> to vector<8x32xf32>
    %153 = math.tanh %152 : vector<8x32xf32>
    %154 = arith.mulf %150, %118 : vector<8x32xf32>
    %155 = arith.mulf %149, %153 : vector<8x32xf32>
    %156 = arith.addf %154, %155 : vector<8x32xf32>
    %157 = math.tanh %156 : vector<8x32xf32>
    %158 = arith.mulf %151, %157 : vector<8x32xf32>
    %c24 = arith.constant 24 : index
    %c0_32 = arith.constant 0 : index
    %159 = vector.load %arg7[%c24, %c0_32] : memref<64x64xf32, #tpu.memory_space<vmem>>, vector<8x32xf32>
    tpu.vector_store %arg7[%c24, %c0_32], %143 {strides = array<i32>} : memref<64x64xf32, #tpu.memory_space<vmem>>, vector<8x32xf32>,
    %c32_33 = arith.constant 32 : index
    %c32_34 = arith.constant 32 : index
    %160 = vector.load %arg7[%c32_33, %c32_34] : memref<64x64xf32, #tpu.memory_space<vmem>>, vector<8x32xf32>
    tpu.vector_store %arg7[%c32_33, %c32_34], %158 {strides = array<i32>} : memref<64x64xf32, #tpu.memory_space<vmem>>, vector<8x32xf32>,
    %161 = vector.extract_strided_slice %5 {offsets = [32, 0], sizes = [8, 128], strides = [1, 1]} : vector<64x256xf32> to vector<8x128xf32>
    %cst_35 = arith.constant dense<0.000000e+00> : vector<8x128xf32>
    %162 = tpu.matmul %143, %6, %cst_35 {dimension_numbers = #tpu.dot_dimension_numbers<[1], [0], [0], [1], [0, 0, 1, 1], [], []>} : vector<8x32xf32>, vector<32x128xf32>, vector<8x128xf32> -> vector<8x128xf32>
    %163 = arith.addf %161, %162 : vector<8x128xf32>
    %164 = vector.extract_strided_slice %5 {offsets = [24, 128], sizes = [8, 128], strides = [1, 1]} : vector<64x256xf32> to vector<8x128xf32>
    %cst_36 = arith.constant dense<0.000000e+00> : vector<8x128xf32>
    %165 = tpu.matmul %158, %7, %cst_36 {dimension_numbers = #tpu.dot_dimension_numbers<[1], [0], [0], [1], [0, 0, 1, 1], [], []>} : vector<8x32xf32>, vector<32x128xf32>, vector<8x128xf32> -> vector<8x128xf32>
    %166 = arith.addf %164, %165 : vector<8x128xf32>
    %167 = arith.negf %163 : vector<8x128xf32>
    %168 = math.exp %167 : vector<8x128xf32>
    %cst_37 = arith.constant 1.000000e+00 : f32
    %169 = vector.broadcast %cst_37 : f32 to vector<8x128xf32>
    %170 = arith.addf %169, %168 : vector<8x128xf32>
    %171 = arith.divf %169, %170 : vector<8x128xf32>
    %172 = vector.extract_strided_slice %171 {offsets = [0, 0], sizes = [8, 32], strides = [1, 1]} : vector<8x128xf32> to vector<8x32xf32>
    %173 = vector.extract_strided_slice %171 {offsets = [0, 32], sizes = [8, 32], strides = [1, 1]} : vector<8x128xf32> to vector<8x32xf32>
    %174 = vector.extract_strided_slice %171 {offsets = [0, 96], sizes = [8, 32], strides = [1, 1]} : vector<8x128xf32> to vector<8x32xf32>
    %175 = vector.extract_strided_slice %163 {offsets = [0, 64], sizes = [8, 32], strides = [1, 1]} : vector<8x128xf32> to vector<8x32xf32>
    %176 = math.tanh %175 : vector<8x32xf32>
    %177 = arith.mulf %173, %141 : vector<8x32xf32>
    %178 = arith.mulf %172, %176 : vector<8x32xf32>
    %179 = arith.addf %177, %178 : vector<8x32xf32>
    %180 = math.tanh %179 : vector<8x32xf32>
    %181 = arith.mulf %174, %180 : vector<8x32xf32>
    %182 = arith.negf %166 : vector<8x128xf32>
    %183 = math.exp %182 : vector<8x128xf32>
    %cst_38 = arith.constant 1.000000e+00 : f32
    %184 = vector.broadcast %cst_38 : f32 to vector<8x128xf32>
    %185 = arith.addf %184, %183 : vector<8x128xf32>
    %186 = arith.divf %184, %185 : vector<8x128xf32>
    %187 = vector.extract_strided_slice %186 {offsets = [0, 0], sizes = [8, 32], strides = [1, 1]} : vector<8x128xf32> to vector<8x32xf32>
    %188 = vector.extract_strided_slice %186 {offsets = [0, 32], sizes = [8, 32], strides = [1, 1]} : vector<8x128xf32> to vector<8x32xf32>
    %189 = vector.extract_strided_slice %186 {offsets = [0, 96], sizes = [8, 32], strides = [1, 1]} : vector<8x128xf32> to vector<8x32xf32>
    %190 = vector.extract_strided_slice %166 {offsets = [0, 64], sizes = [8, 32], strides = [1, 1]} : vector<8x128xf32> to vector<8x32xf32>
    %191 = math.tanh %190 : vector<8x32xf32>
    %192 = arith.mulf %188, %156 : vector<8x32xf32>
    %193 = arith.mulf %187, %191 : vector<8x32xf32>
    %194 = arith.addf %192, %193 : vector<8x32xf32>
    %195 = math.tanh %194 : vector<8x32xf32>
    %196 = arith.mulf %189, %195 : vector<8x32xf32>
    %c32_39 = arith.constant 32 : index
    %c0_40 = arith.constant 0 : index
    %197 = vector.load %arg7[%c32_39, %c0_40] : memref<64x64xf32, #tpu.memory_space<vmem>>, vector<8x32xf32>
    tpu.vector_store %arg7[%c32_39, %c0_40], %181 {strides = array<i32>} : memref<64x64xf32, #tpu.memory_space<vmem>>, vector<8x32xf32>,
    %c24_41 = arith.constant 24 : index
    %c32_42 = arith.constant 32 : index
    %198 = vector.load %arg7[%c24_41, %c32_42] : memref<64x64xf32, #tpu.memory_space<vmem>>, vector<8x32xf32>
    tpu.vector_store %arg7[%c24_41, %c32_42], %196 {strides = array<i32>} : memref<64x64xf32, #tpu.memory_space<vmem>>, vector<8x32xf32>,
    %199 = vector.extract_strided_slice %5 {offsets = [40, 0], sizes = [8, 128], strides = [1, 1]} : vector<64x256xf32> to vector<8x128xf32>
    %cst_43 = arith.constant dense<0.000000e+00> : vector<8x128xf32>
    %200 = tpu.matmul %181, %6, %cst_43 {dimension_numbers = #tpu.dot_dimension_numbers<[1], [0], [0], [1], [0, 0, 1, 1], [], []>} : vector<8x32xf32>, vector<32x128xf32>, vector<8x128xf32> -> vector<8x128xf32>
    %201 = arith.addf %199, %200 : vector<8x128xf32>
    %202 = vector.extract_strided_slice %5 {offsets = [16, 128], sizes = [8, 128], strides = [1, 1]} : vector<64x256xf32> to vector<8x128xf32>
    %cst_44 = arith.constant dense<0.000000e+00> : vector<8x128xf32>
    %203 = tpu.matmul %196, %7, %cst_44 {dimension_numbers = #tpu.dot_dimension_numbers<[1], [0], [0], [1], [0, 0, 1, 1], [], []>} : vector<8x32xf32>, vector<32x128xf32>, vector<8x128xf32> -> vector<8x128xf32>
    %204 = arith.addf %202, %203 : vector<8x128xf32>
    %205 = arith.negf %201 : vector<8x128xf32>
    %206 = math.exp %205 : vector<8x128xf32>
    %cst_45 = arith.constant 1.000000e+00 : f32
    %207 = vector.broadcast %cst_45 : f32 to vector<8x128xf32>
    %208 = arith.addf %207, %206 : vector<8x128xf32>
    %209 = arith.divf %207, %208 : vector<8x128xf32>
    %210 = vector.extract_strided_slice %209 {offsets = [0, 0], sizes = [8, 32], strides = [1, 1]} : vector<8x128xf32> to vector<8x32xf32>
    %211 = vector.extract_strided_slice %209 {offsets = [0, 32], sizes = [8, 32], strides = [1, 1]} : vector<8x128xf32> to vector<8x32xf32>
    %212 = vector.extract_strided_slice %209 {offsets = [0, 96], sizes = [8, 32], strides = [1, 1]} : vector<8x128xf32> to vector<8x32xf32>
    %213 = vector.extract_strided_slice %201 {offsets = [0, 64], sizes = [8, 32], strides = [1, 1]} : vector<8x128xf32> to vector<8x32xf32>
    %214 = math.tanh %213 : vector<8x32xf32>
    %215 = arith.mulf %211, %179 : vector<8x32xf32>
    %216 = arith.mulf %210, %214 : vector<8x32xf32>
    %217 = arith.addf %215, %216 : vector<8x32xf32>
    %218 = math.tanh %217 : vector<8x32xf32>
    %219 = arith.mulf %212, %218 : vector<8x32xf32>
    %220 = arith.negf %204 : vector<8x128xf32>
    %221 = math.exp %220 : vector<8x128xf32>
    %cst_46 = arith.constant 1.000000e+00 : f32
    %222 = vector.broadcast %cst_46 : f32 to vector<8x128xf32>
    %223 = arith.addf %222, %221 : vector<8x128xf32>
    %224 = arith.divf %222, %223 : vector<8x128xf32>
    %225 = vector.extract_strided_slice %224 {offsets = [0, 0], sizes = [8, 32], strides = [1, 1]} : vector<8x128xf32> to vector<8x32xf32>
    %226 = vector.extract_strided_slice %224 {offsets = [0, 32], sizes = [8, 32], strides = [1, 1]} : vector<8x128xf32> to vector<8x32xf32>
    %227 = vector.extract_strided_slice %224 {offsets = [0, 96], sizes = [8, 32], strides = [1, 1]} : vector<8x128xf32> to vector<8x32xf32>
    %228 = vector.extract_strided_slice %204 {offsets = [0, 64], sizes = [8, 32], strides = [1, 1]} : vector<8x128xf32> to vector<8x32xf32>
    %229 = math.tanh %228 : vector<8x32xf32>
    %230 = arith.mulf %226, %194 : vector<8x32xf32>
    %231 = arith.mulf %225, %229 : vector<8x32xf32>
    %232 = arith.addf %230, %231 : vector<8x32xf32>
    %233 = math.tanh %232 : vector<8x32xf32>
    %234 = arith.mulf %227, %233 : vector<8x32xf32>
    %c40_47 = arith.constant 40 : index
    %c0_48 = arith.constant 0 : index
    %235 = vector.load %arg7[%c40_47, %c0_48] : memref<64x64xf32, #tpu.memory_space<vmem>>, vector<8x32xf32>
    tpu.vector_store %arg7[%c40_47, %c0_48], %219 {strides = array<i32>} : memref<64x64xf32, #tpu.memory_space<vmem>>, vector<8x32xf32>,
    %c16_49 = arith.constant 16 : index
    %c32_50 = arith.constant 32 : index
    %236 = vector.load %arg7[%c16_49, %c32_50] : memref<64x64xf32, #tpu.memory_space<vmem>>, vector<8x32xf32>
    tpu.vector_store %arg7[%c16_49, %c32_50], %234 {strides = array<i32>} : memref<64x64xf32, #tpu.memory_space<vmem>>, vector<8x32xf32>,
    %237 = vector.extract_strided_slice %5 {offsets = [48, 0], sizes = [8, 128], strides = [1, 1]} : vector<64x256xf32> to vector<8x128xf32>
    %cst_51 = arith.constant dense<0.000000e+00> : vector<8x128xf32>
    %238 = tpu.matmul %219, %6, %cst_51 {dimension_numbers = #tpu.dot_dimension_numbers<[1], [0], [0], [1], [0, 0, 1, 1], [], []>} : vector<8x32xf32>, vector<32x128xf32>, vector<8x128xf32> -> vector<8x128xf32>
    %239 = arith.addf %237, %238 : vector<8x128xf32>
    %240 = vector.extract_strided_slice %5 {offsets = [8, 128], sizes = [8, 128], strides = [1, 1]} : vector<64x256xf32> to vector<8x128xf32>
    %cst_52 = arith.constant dense<0.000000e+00> : vector<8x128xf32>
    %241 = tpu.matmul %234, %7, %cst_52 {dimension_numbers = #tpu.dot_dimension_numbers<[1], [0], [0], [1], [0, 0, 1, 1], [], []>} : vector<8x32xf32>, vector<32x128xf32>, vector<8x128xf32> -> vector<8x128xf32>
    %242 = arith.addf %240, %241 : vector<8x128xf32>
    %243 = arith.negf %239 : vector<8x128xf32>
    %244 = math.exp %243 : vector<8x128xf32>
    %cst_53 = arith.constant 1.000000e+00 : f32
    %245 = vector.broadcast %cst_53 : f32 to vector<8x128xf32>
    %246 = arith.addf %245, %244 : vector<8x128xf32>
    %247 = arith.divf %245, %246 : vector<8x128xf32>
    %248 = vector.extract_strided_slice %247 {offsets = [0, 0], sizes = [8, 32], strides = [1, 1]} : vector<8x128xf32> to vector<8x32xf32>
    %249 = vector.extract_strided_slice %247 {offsets = [0, 32], sizes = [8, 32], strides = [1, 1]} : vector<8x128xf32> to vector<8x32xf32>
    %250 = vector.extract_strided_slice %247 {offsets = [0, 96], sizes = [8, 32], strides = [1, 1]} : vector<8x128xf32> to vector<8x32xf32>
    %251 = vector.extract_strided_slice %239 {offsets = [0, 64], sizes = [8, 32], strides = [1, 1]} : vector<8x128xf32> to vector<8x32xf32>
    %252 = math.tanh %251 : vector<8x32xf32>
    %253 = arith.mulf %249, %217 : vector<8x32xf32>
    %254 = arith.mulf %248, %252 : vector<8x32xf32>
    %255 = arith.addf %253, %254 : vector<8x32xf32>
    %256 = math.tanh %255 : vector<8x32xf32>
    %257 = arith.mulf %250, %256 : vector<8x32xf32>
    %258 = arith.negf %242 : vector<8x128xf32>
    %259 = math.exp %258 : vector<8x128xf32>
    %cst_54 = arith.constant 1.000000e+00 : f32
    %260 = vector.broadcast %cst_54 : f32 to vector<8x128xf32>
    %261 = arith.addf %260, %259 : vector<8x128xf32>
    %262 = arith.divf %260, %261 : vector<8x128xf32>
    %263 = vector.extract_strided_slice %262 {offsets = [0, 0], sizes = [8, 32], strides = [1, 1]} : vector<8x128xf32> to vector<8x32xf32>
    %264 = vector.extract_strided_slice %262 {offsets = [0, 32], sizes = [8, 32], strides = [1, 1]} : vector<8x128xf32> to vector<8x32xf32>
    %265 = vector.extract_strided_slice %262 {offsets = [0, 96], sizes = [8, 32], strides = [1, 1]} : vector<8x128xf32> to vector<8x32xf32>
    %266 = vector.extract_strided_slice %242 {offsets = [0, 64], sizes = [8, 32], strides = [1, 1]} : vector<8x128xf32> to vector<8x32xf32>
    %267 = math.tanh %266 : vector<8x32xf32>
    %268 = arith.mulf %264, %232 : vector<8x32xf32>
    %269 = arith.mulf %263, %267 : vector<8x32xf32>
    %270 = arith.addf %268, %269 : vector<8x32xf32>
    %271 = math.tanh %270 : vector<8x32xf32>
    %272 = arith.mulf %265, %271 : vector<8x32xf32>
    %c48_55 = arith.constant 48 : index
    %c0_56 = arith.constant 0 : index
    %273 = vector.load %arg7[%c48_55, %c0_56] : memref<64x64xf32, #tpu.memory_space<vmem>>, vector<8x32xf32>
    tpu.vector_store %arg7[%c48_55, %c0_56], %257 {strides = array<i32>} : memref<64x64xf32, #tpu.memory_space<vmem>>, vector<8x32xf32>,
    %c8_57 = arith.constant 8 : index
    %c32_58 = arith.constant 32 : index
    %274 = vector.load %arg7[%c8_57, %c32_58] : memref<64x64xf32, #tpu.memory_space<vmem>>, vector<8x32xf32>
    tpu.vector_store %arg7[%c8_57, %c32_58], %272 {strides = array<i32>} : memref<64x64xf32, #tpu.memory_space<vmem>>, vector<8x32xf32>,
    %275 = vector.extract_strided_slice %5 {offsets = [56, 0], sizes = [8, 128], strides = [1, 1]} : vector<64x256xf32> to vector<8x128xf32>
    %cst_59 = arith.constant dense<0.000000e+00> : vector<8x128xf32>
    %276 = tpu.matmul %257, %6, %cst_59 {dimension_numbers = #tpu.dot_dimension_numbers<[1], [0], [0], [1], [0, 0, 1, 1], [], []>} : vector<8x32xf32>, vector<32x128xf32>, vector<8x128xf32> -> vector<8x128xf32>
    %277 = arith.addf %275, %276 : vector<8x128xf32>
    %278 = vector.extract_strided_slice %5 {offsets = [0, 128], sizes = [8, 128], strides = [1, 1]} : vector<64x256xf32> to vector<8x128xf32>
    %cst_60 = arith.constant dense<0.000000e+00> : vector<8x128xf32>
    %279 = tpu.matmul %272, %7, %cst_60 {dimension_numbers = #tpu.dot_dimension_numbers<[1], [0], [0], [1], [0, 0, 1, 1], [], []>} : vector<8x32xf32>, vector<32x128xf32>, vector<8x128xf32> -> vector<8x128xf32>
    %280 = arith.addf %278, %279 : vector<8x128xf32>
    %281 = arith.negf %277 : vector<8x128xf32>
    %282 = math.exp %281 : vector<8x128xf32>
    %cst_61 = arith.constant 1.000000e+00 : f32
    %283 = vector.broadcast %cst_61 : f32 to vector<8x128xf32>
    %284 = arith.addf %283, %282 : vector<8x128xf32>
    %285 = arith.divf %283, %284 : vector<8x128xf32>
    %286 = vector.extract_strided_slice %285 {offsets = [0, 0], sizes = [8, 32], strides = [1, 1]} : vector<8x128xf32> to vector<8x32xf32>
    %287 = vector.extract_strided_slice %285 {offsets = [0, 32], sizes = [8, 32], strides = [1, 1]} : vector<8x128xf32> to vector<8x32xf32>
    %288 = vector.extract_strided_slice %285 {offsets = [0, 96], sizes = [8, 32], strides = [1, 1]} : vector<8x128xf32> to vector<8x32xf32>
    %289 = vector.extract_strided_slice %277 {offsets = [0, 64], sizes = [8, 32], strides = [1, 1]} : vector<8x128xf32> to vector<8x32xf32>
    %290 = math.tanh %289 : vector<8x32xf32>
    %291 = arith.mulf %287, %255 : vector<8x32xf32>
    %292 = arith.mulf %286, %290 : vector<8x32xf32>
    %293 = arith.addf %291, %292 : vector<8x32xf32>
    %294 = math.tanh %293 : vector<8x32xf32>
    %295 = arith.mulf %288, %294 : vector<8x32xf32>
    %296 = arith.negf %280 : vector<8x128xf32>
    %297 = math.exp %296 : vector<8x128xf32>
    %cst_62 = arith.constant 1.000000e+00 : f32
    %298 = vector.broadcast %cst_62 : f32 to vector<8x128xf32>
    %299 = arith.addf %298, %297 : vector<8x128xf32>
    %300 = arith.divf %298, %299 : vector<8x128xf32>
    %301 = vector.extract_strided_slice %300 {offsets = [0, 0], sizes = [8, 32], strides = [1, 1]} : vector<8x128xf32> to vector<8x32xf32>
    %302 = vector.extract_strided_slice %300 {offsets = [0, 32], sizes = [8, 32], strides = [1, 1]} : vector<8x128xf32> to vector<8x32xf32>
    %303 = vector.extract_strided_slice %300 {offsets = [0, 96], sizes = [8, 32], strides = [1, 1]} : vector<8x128xf32> to vector<8x32xf32>
    %304 = vector.extract_strided_slice %280 {offsets = [0, 64], sizes = [8, 32], strides = [1, 1]} : vector<8x128xf32> to vector<8x32xf32>
    %305 = math.tanh %304 : vector<8x32xf32>
    %306 = arith.mulf %302, %270 : vector<8x32xf32>
    %307 = arith.mulf %301, %305 : vector<8x32xf32>
    %308 = arith.addf %306, %307 : vector<8x32xf32>
    %309 = math.tanh %308 : vector<8x32xf32>
    %310 = arith.mulf %303, %309 : vector<8x32xf32>
    %c56_63 = arith.constant 56 : index
    %c0_64 = arith.constant 0 : index
    %311 = vector.load %arg7[%c56_63, %c0_64] : memref<64x64xf32, #tpu.memory_space<vmem>>, vector<8x32xf32>
    tpu.vector_store %arg7[%c56_63, %c0_64], %295 {strides = array<i32>} : memref<64x64xf32, #tpu.memory_space<vmem>>, vector<8x32xf32>,
    %c0_65 = arith.constant 0 : index
    %c32_66 = arith.constant 32 : index
    %312 = vector.load %arg7[%c0_65, %c32_66] : memref<64x64xf32, #tpu.memory_space<vmem>>, vector<8x32xf32>
    tpu.vector_store %arg7[%c0_65, %c32_66], %310 {strides = array<i32>} : memref<64x64xf32, #tpu.memory_space<vmem>>, vector<8x32xf32>,
    %c0_67 = arith.constant 0 : index
    %c0_68 = arith.constant 0 : index
    %313 = vector.load %arg7[%c0_67, %c0_68] : memref<64x64xf32, #tpu.memory_space<vmem>>, vector<64x64xf32>
    %c0_69 = arith.constant 0 : index
    %c0_70 = arith.constant 0 : index
    %314 = vector.load %arg5[%c0_69, %c0_70] : memref<64x3xf32, #tpu.memory_space<vmem>>, vector<64x3xf32>
    %cst_71 = arith.constant dense<0.000000e+00> : vector<64x3xf32>
    %315 = tpu.matmul %313, %314, %cst_71 {dimension_numbers = #tpu.dot_dimension_numbers<[1], [0], [0], [1], [0, 0, 1, 1], [], []>} : vector<64x64xf32>, vector<64x3xf32>, vector<64x3xf32> -> vector<64x3xf32>
    %c0_72 = arith.constant 0 : index
    %c0_73 = arith.constant 0 : index
    %316 = vector.load %arg6[%c0_72, %c0_73] : memref<1x3xf32, #tpu.memory_space<vmem>>, vector<1x3xf32>
    %317 = vector.broadcast %316 : vector<1x3xf32> to vector<64x3xf32>
    %318 = arith.addf %315, %317 : vector<64x3xf32>
    %319 = arith.negf %318 : vector<64x3xf32>
    %320 = math.exp %319 : vector<64x3xf32>
    %cst_74 = arith.constant 1.000000e+00 : f32
    %321 = vector.broadcast %cst_74 : f32 to vector<64x3xf32>
    %322 = arith.addf %321, %320 : vector<64x3xf32>
    %323 = arith.divf %321, %322 : vector<64x3xf32>
    %c0_75 = arith.constant 0 : index
    %c0_76 = arith.constant 0 : index
    %324 = vector.load %arg8[%c0_75, %c0_76] : memref<64x3xf32, #tpu.memory_space<vmem>>, vector<64x3xf32>
    tpu.vector_store %arg8[%c0_75, %c0_76], %323 {strides = array<i32>} : memref<64x3xf32, #tpu.memory_space<vmem>>, vector<64x3xf32>,
    return
  }
}

</mosaic_0001>

<llo_original>
// kernel: hedln_forward_pallas.5
$region0: #{hedln_forward_pallas.5}
  #allocation0 [shape = 'u32[]', space=smem, size = 0x4, offset = 0x4, fixed_abs, tag = 'smem constant byte address 0x4 - core index']
  #allocation1 [shape = 'u32[144,128]{1,0:T(1,128)}', space=vmem, size = 0x12000, scoped, tag = 'internal scratch']
  %s0 = inlined_call_operand.vmem [shape: f32[64,64], index: 0, kind: input, shape index: {}]
  %s1 = inlined_call_operand.vmem [shape: f32[64,256], index: 1, kind: input, shape index: {}]
  %s2 = inlined_call_operand.vmem [shape: f32[32,128], index: 2, kind: input, shape index: {}]
  %s3 = inlined_call_operand.vmem [shape: f32[32,128], index: 3, kind: input, shape index: {}]
  %s4 = inlined_call_operand.vmem [shape: f32[1,256], index: 4, kind: input, shape index: {}]
  %s5 = inlined_call_operand.vmem [shape: f32[64,2], index: 5, kind: input, shape index: {}]
  %s6 = inlined_call_operand.vmem [shape: f32[1,2], index: 6, kind: input, shape index: {}]
  %s7 = inlined_call_operand.vmem [shape: f32[64,64], index: 7, kind: output, shape index: {0}]
  %s8 = inlined_call_operand.vmem [shape: f32[64,2], index: 8, kind: output, shape index: {1}]
  %9 = xla_tuple %s7, %s8
  %s10 = sld [smem:[#allocation0]]
  $region46: #{hedln_forward_pallas.5} parent=0
    _
  %s12 = ssub.s32 1, %s10
  %s13 = scalar_select 0, %s12, %s10
  // Predicated region
  $region2: #{hedln_forward_pallas.5} parent=0 // pred_check
    _
  $region3: #{hedln_forward_pallas.5} parent=0 // pred_check_branch
    %15 = sbr.rel (0) target = $region5
  $region4: #{hedln_forward_pallas.5} parent=0 // pred_region
    _
  $region5: #{hedln_forward_pallas.5} parent=0 // pred_fallthru
    _
  // Predicated region
  $region6: #{hedln_forward_pallas.5} parent=0 // pred_check
    _
  $region7: #{hedln_forward_pallas.5} parent=0 // pred_check_branch
    %17 = sbr.rel (0) target = $region9
  $region8: #{hedln_forward_pallas.5} parent=0 // pred_region
    _
  $region9: #{hedln_forward_pallas.5} parent=0 // pred_fallthru
    _
  // Predicated region
  $region10: #{hedln_forward_pallas.5} parent=0 // pred_check
    _
  $region11: #{hedln_forward_pallas.5} parent=0 // pred_check_branch
    %19 = sbr.rel (0) target = $region13
  $region12: #{hedln_forward_pallas.5} parent=0 // pred_region
    _
  $region13: #{hedln_forward_pallas.5} parent=0 // pred_fallthru
    _
  // Predicated region
  $region14: #{hedln_forward_pallas.5} parent=0 // pred_check
    _
  $region15: #{hedln_forward_pallas.5} parent=0 // pred_check_branch
    %21 = sbr.rel (0) target = $region17
  $region16: #{hedln_forward_pallas.5} parent=0 // pred_region
    _
  $region17: #{hedln_forward_pallas.5} parent=0 // pred_fallthru
    _
  // Predicated region
  $region18: #{hedln_forward_pallas.5} parent=0 // pred_check
    _
  $region19: #{hedln_forward_pallas.5} parent=0 // pred_check_branch
    %23 = sbr.rel (0) target = $region21
  $region20: #{hedln_forward_pallas.5} parent=0 // pred_region
    _
  $region21: #{hedln_forward_pallas.5} parent=0 // pred_fallthru
    _
  // Predicated region
  $region22: #{hedln_forward_pallas.5} parent=0 // pred_check
    _
  $region23: #{hedln_forward_pallas.5} parent=0 // pred_check_branch
    %25 = sbr.rel (0) target = $region25
  $region24: #{hedln_forward_pallas.5} parent=0 // pred_region
    _
  $region25: #{hedln_forward_pallas.5} parent=0 // pred_fallthru
    _
  // Predicated region
  $region26: #{hedln_forward_pallas.5} parent=0 // pred_check
    _
  $region27: #{hedln_forward_pallas.5} parent=0 // pred_check_branch
    %27 = sbr.rel (0) target = $region29
  $region28: #{hedln_forward_pallas.5} parent=0 // pred_region
    _
  $region29: #{hedln_forward_pallas.5} parent=0 // pred_fallthru
    _
  %v28 = vld [vmem:[%s0] sm:$0xff]
  %v29 = vld [vmem:[%s0 + $0x8] sm:$0xff]
  %v30 = vld [vmem:[%s0 + $0x10] sm:$0xff]
  %v31 = vld [vmem:[%s0 + $0x18] sm:$0xff]
  %v32 = vld [vmem:[%s0 + $0x20] sm:$0xff]
  %v33 = vld [vmem:[%s0 + $0x28] sm:$0xff]
  %v34 = vld [vmem:[%s0 + $0x30] sm:$0xff]
  %v35 = vld [vmem:[%s0 + $0x38] sm:$0xff]
  %v36 = vld [vmem:[%s1] sm:$0xff]
  %v37 = vld [vmem:[%s1 + $0x8] sm:$0xff]
  %v38 = vld [vmem:[%s1 + $0x10] sm:$0xff]
  %v39 = vld [vmem:[%s1 + $0x18] sm:$0xff]
  %v40 = vld [vmem:[%s1 + $0x20] sm:$0xff]
  %v41 = vld [vmem:[%s1 + $0x28] sm:$0xff]
  %v42 = vld [vmem:[%s1 + $0x30] sm:$0xff]
  %v43 = vld [vmem:[%s1 + $0x38] sm:$0xff]
  %v44 = vld [vmem:[%s1 + $0x40] sm:$0xff]
  %v45 = vld [vmem:[%s1 + $0x48] sm:$0xff]
  %v46 = vld [vmem:[%s1 + $0x50] sm:$0xff]
  %v47 = vld [vmem:[%s1 + $0x58] sm:$0xff]
  %v48 = vld [vmem:[%s1 + $0x60] sm:$0xff]
  %v49 = vld [vmem:[%s1 + $0x68] sm:$0xff]
  %v50 = vld [vmem:[%s1 + $0x70] sm:$0xff]
  %v51 = vld [vmem:[%s1 + $0x78] sm:$0xff]
  %v52 = vld [vmem:[%s4] sm:$0x3]
  %v54 = vlaneseq
  %v55 = vshrl.u32 %v54, 7
  %v56 = vsub.s32 0, %v55
  %v57 = vrot.slane %v52, %v56
  %v58 = vlaneseq
  %v59 = vshrl.u32 %v58, 7
  %v60 = vsub.s32 1, %v59
  %v61 = vrot.slane %v52, %v60
  %vm64 = vcmask 523264
  %v66 = vsel %vm64, %v28, 0
  %v69 = vsel %vm64, %v29, 0
  %v72 = vsel %vm64, %v30, 0
  %v75 = vsel %vm64, %v31, 0
  %v78 = vsel %vm64, %v32, 0
  %v81 = vsel %vm64, %v33, 0
  %v84 = vsel %vm64, %v34, 0
  %v87 = vsel %vm64, %v35, 0
  %89 = vmatprep.subr.mxu0 %v37
  %90 = vmatpush1.msra.mxu0 %v36
  %91 = vmatprep.subr.mxu0 %v39
  %92 = vmatpush1.msra.mxu0 %v38
  %93 = vmatprep.subr.mxu0 %v41
  %94 = vmatpush1.msra.mxu0 %v40
  %95 = vmatprep.subr.mxu0 %v43
  %96 = vmatpush1.msra.mxu0 %v42
  %97 = vmatprep.subr.mxu0 %v45
  %98 = vmatpush1.msra.mxu0 %v44
  %99 = vmatprep.subr.mxu0 %v47
  %100 = vmatpush1.msra.mxu0 %v46
  %101 = vmatprep.subr.mxu0 %v49
  %102 = vmatpush1.msra.mxu0 %v48
  %103 = vmatprep.subr.mxu0 %v51
  %104 = vmatpush1.msra.mxu0 %v50
  %105 = vmatprep.subr.mxu0 0.0
  %106 = vmatpush1.msra.mxu0 0.0
  %107 = vmatprep.subr.mxu0 0.0
  %108 = vmatpush1.msra.mxu0 0.0
  %109 = vmatprep.subr.mxu0 0.0
  %110 = vmatpush1.msra.mxu0 0.0
  %111 = vmatprep.subr.mxu0 0.0
  %112 = vmatpush1.msra.mxu0 0.0
  %113 = vmatprep.subr.mxu0 0.0
  %114 = vmatpush1.msra.mxu0 0.0
  %115 = vmatprep.subr.mxu0 0.0
  %116 = vmatpush1.msra.mxu0 0.0
  %117 = vmatprep.subr.mxu0 0.0
  %118 = vmatpush1.msra.mxu0 0.0
  %119 = vmatprep.subr.mxu0 0.0
  %120 = vmatpush1.msra.mxu0 0.0
  %121 = vmatprep.subr.mxu0 0.0
  %122 = vmatpush1.msra.mxu0 0.0
  %123 = vmatprep.subr.mxu0 0.0
  %124 = vmatpush1.msra.mxu0 0.0
  %125 = vmatprep.subr.mxu0 0.0
  %126 = vmatpush1.msra.mxu0 0.0
  %127 = vmatprep.subr.mxu0 0.0
  %128 = vmatpush1.msra.mxu0 0.0
  %129 = vmatprep.subr.mxu0 0.0
  %130 = vmatpush1.msra.mxu0 0.0
  %131 = vmatprep.subr.mxu0 0.0
  %132 = vmatpush1.msra.mxu0 0.0
  %133 = vmatprep.subr.mxu0 0.0
  %134 = vmatpush1.msra.mxu0 0.0
  %135 = vmatprep.subr.mxu0 0.0
  %136 = vmatpush1.msra.mxu0 0.0
  %137 = vmatprep.subr.mxu0 0.0
  %138 = vmatpush1.msra.mxu0 0.0
  %139 = vmatprep.subr.mxu0 0.0
  %140 = vmatpush1.msra.mxu0 0.0
  %141 = vmatprep.subr.mxu0 0.0
  %142 = vmatpush1.msra.mxu0 0.0
  %143 = vmatprep.subr.mxu0 0.0
  %144 = vmatpush1.msra.mxu0 0.0
  %145 = vmatprep.subr.mxu0 0.0
  %146 = vmatpush1.msra.mxu0 0.0
  %147 = vmatprep.subr.mxu0 0.0
  %148 = vmatpush1.msra.mxu0 0.0
  %149 = vmatprep.subr.mxu0 0.0
  %150 = vmatpush1.msra.mxu0 0.0
  %151 = vmatprep.subr.mxu0 0.0
  %152 = vmatpush1.msra.mxu0 0.0
  %153 = vmatprep.mubr.f32.mxu0 0.0
  %154 = vmatmul.mubr.f32.gmra.mrb[0].mxu0 %v66
  %v155 = vpop.f32.mrb[0].mxu0
  %v156 = vadd.f32 %v57, %v155
  %v157 = vpop.f32.mrb[0].mxu0
  %v158 = vadd.f32 %v61, %v157
  %159 = vmatprep.mubr.f32.mxu0 0.0
  %160 = vmatmul.mubr.f32.gmra.mrb[0].mxu0 %v69
  %v161 = vpop.f32.mrb[0].mxu0
  %v162 = vadd.f32 %v57, %v161
  %v163 = vpop.f32.mrb[0].mxu0
  %v164 = vadd.f32 %v61, %v163
  %165 = vmatprep.mubr.f32.mxu0 0.0
  %166 = vmatmul.mubr.f32.gmra.mrb[0].mxu0 %v72
  %v167 = vpop.f32.mrb[0].mxu0
  %v168 = vadd.f32 %v57, %v167
  %v169 = vpop.f32.mrb[0].mxu0
  %v170 = vadd.f32 %v61, %v169
  %171 = vmatprep.mubr.f32.mxu0 0.0
  %172 = vmatmul.mubr.f32.gmra.mrb[0].mxu0 %v75
  %v173 = vpop.f32.mrb[0].mxu0
  %v174 = vadd.f32 %v57, %v173
  %v175 = vpop.f32.mrb[0].mxu0
  %v176 = vadd.f32 %v61, %v175
  %177 = vmatprep.mubr.f32.mxu0 0.0
  %178 = vmatmul.mubr.f32.gmra.mrb[0].mxu0 %v78
  %v179 = vpop.f32.mrb[0].mxu0
  %v180 = vadd.f32 %v57, %v179
  %v181 = vpop.f32.mrb[0].mxu0
  %v182 = vadd.f32 %v61, %v181
  %183 = vmatprep.mubr.f32.mxu0 0.0
  %184 = vmatmul.mubr.f32.gmra.mrb[0].mxu0 %v81
  %v185 = vpop.f32.mrb[0].mxu0
  %v186 = vadd.f32 %v57, %v185
  %v187 = vpop.f32.mrb[0].mxu0
  %v188 = vadd.f32 %v61, %v187
  %189 = vmatprep.mubr.f32.mxu0 0.0
  %190 = vmatmul.mubr.f32.gmra.mrb[0].mxu0 %v84
  %v191 = vpop.f32.mrb[0].mxu0
  %v192 = vadd.f32 %v57, %v191
  %v193 = vpop.f32.mrb[0].mxu0
  %v194 = vadd.f32 %v61, %v193
  %195 = vmatprep.mubr.f32.mxu0 0.0
  %196 = vmatmul.mubr.f32.gmra.mrb[0].mxu0 %v87
  %v197 = vpop.f32.mrb[0].mxu0
  %v198 = vadd.f32 %v57, %v197
  %v199 = vpop.f32.mrb[0].mxu0
  %v200 = vadd.f32 %v61, %v199
  %201 = vdwg.mxu0
  %v202 = vld [vmem:[%s2] sm:$0xff]
  %v203 = vld [vmem:[%s2 + $0x8] sm:$0xff]
  %v204 = vld [vmem:[%s2 + $0x10] sm:$0xff]
  %v205 = vld [vmem:[%s2 + $0x18] sm:$0xff]
  %v206 = vld [vmem:[%s3] sm:$0xff]
  %v207 = vld [vmem:[%s3 + $0x8] sm:$0xff]
  %v208 = vld [vmem:[%s3 + $0x10] sm:$0xff]
  %v209 = vld [vmem:[%s3 + $0x18] sm:$0xff]
  %vm210 = vcmask 261120
  %v212 = vsel %vm210, 0.0, 0
  %214 = vmatprep.subr.mxu0 0.0
  %215 = vmatpush1.msra.mxu0 %v202
  %216 = vmatprep.subr.mxu0 0.0
  %217 = vmatpush1.msra.mxu0 %v203
  %218 = vmatprep.subr.mxu0 0.0
  %219 = vmatpush1.msra.mxu0 %v204
  %220 = vmatprep.subr.mxu0 0.0
  %221 = vmatpush1.msra.mxu0 %v205
  %222 = vmatprep.subr.mxu0 0.0
  %223 = vmatpush1.msra.mxu0 0.0
  %224 = vmatprep.subr.mxu0 0.0
  %225 = vmatpush1.msra.mxu0 0.0
  %226 = vmatprep.subr.mxu0 0.0
  %227 = vmatpush1.msra.mxu0 0.0
  %228 = vmatprep.subr.mxu0 0.0
  %229 = vmatpush1.msra.mxu0 0.0
  %230 = vmatprep.subr.mxu0 0.0
  %231 = vmatpush1.msra.mxu0 0.0
  %232 = vmatprep.subr.mxu0 0.0
  %233 = vmatpush1.msra.mxu0 0.0
  %234 = vmatprep.subr.mxu0 0.0
  %235 = vmatpush1.msra.mxu0 0.0
  %236 = vmatprep.subr.mxu0 0.0
  %237 = vmatpush1.msra.mxu0 0.0
  %238 = vmatprep.subr.mxu0 0.0
  %239 = vmatpush1.msra.mxu0 0.0
  %240 = vmatprep.subr.mxu0 0.0
  %241 = vmatpush1.msra.mxu0 0.0
  %242 = vmatprep.subr.mxu0 0.0
  %243 = vmatpush1.msra.mxu0 0.0
  %244 = vmatprep.subr.mxu0 0.0
  %245 = vmatpush1.msra.mxu0 0.0
  %246 = vmatprep.subr.mxu0 0.0
  %247 = vmatpush1.msra.mxu0 0.0
  %248 = vmatprep.subr.mxu0 0.0
  %249 = vmatpush1.msra.mxu0 0.0
  %250 = vmatprep.subr.mxu0 0.0
  %251 = vmatpush1.msra.mxu0 0.0
  %252 = vmatprep.subr.mxu0 0.0
  %253 = vmatpush1.msra.mxu0 0.0
  %254 = vmatprep.subr.mxu0 0.0
  %255 = vmatpush1.msra.mxu0 0.0
  %256 = vmatprep.subr.mxu0 0.0
  %257 = vmatpush1.msra.mxu0 0.0
  %258 = vmatprep.subr.mxu0 0.0
  %259 = vmatpush1.msra.mxu0 0.0
  %260 = vmatprep.subr.mxu0 0.0
  %261 = vmatpush1.msra.mxu0 0.0
  %262 = vmatprep.subr.mxu0 0.0
  %263 = vmatpush1.msra.mxu0 0.0
  %264 = vmatprep.subr.mxu0 0.0
  %265 = vmatpush1.msra.mxu0 0.0
  %266 = vmatprep.subr.mxu0 0.0
  %267 = vmatpush1.msra.mxu0 0.0
  %268 = vmatprep.subr.mxu0 0.0
  %269 = vmatpush1.msra.mxu0 0.0
  %270 = vmatprep.subr.mxu0 0.0
  %271 = vmatpush1.msra.mxu0 0.0
  %272 = vmatprep.subr.mxu0 0.0
  %273 = vmatpush1.msra.mxu0 0.0
  %274 = vmatprep.subr.mxu0 0.0
  %275 = vmatpush1.msra.mxu0 0.0
  %276 = vmatprep.subr.mxu0 0.0
  %277 = vmatpush1.msra.mxu0 0.0
  %278 = vmatprep.mubr.f32.mxu0 0.0
  %279 = vmatmul.mubr.f32.gmra.mrb[0].mxu0 %v212
  %v280 = vpop.f32.mrb[0].mxu0
  %v281 = vadd.f32 0.0, %v280
  %v282 = vpop.f32.mrb[0].mxu0
  %283 = vdwg.mxu0
  %v284 = vadd.f32 %v156, %v281
  %285 = vmatprep.subr.mxu0 0.0
  %286 = vmatpush1.msra.mxu0 %v206
  %287 = vmatprep.subr.mxu0 0.0
  %288 = vmatpush1.msra.mxu0 %v207
  %289 = vmatprep.subr.mxu0 0.0
  %290 = vmatpush1.msra.mxu0 %v208
  %291 = vmatprep.subr.mxu0 0.0
  %292 = vmatpush1.msra.mxu0 %v209
  %293 = vmatprep.subr.mxu0 0.0
  %294 = vmatpush1.msra.mxu0 0.0
  %295 = vmatprep.subr.mxu0 0.0
  %296 = vmatpush1.msra.mxu0 0.0
  %297 = vmatprep.subr.mxu0 0.0
  %298 = vmatpush1.msra.mxu0 0.0
  %299 = vmatprep.subr.mxu0 0.0
  %300 = vmatpush1.msra.mxu0 0.0
  %301 = vmatprep.subr.mxu0 0.0
  %302 = vmatpush1.msra.mxu0 0.0
  %303 = vmatprep.subr.mxu0 0.0
  %304 = vmatpush1.msra.mxu0 0.0
  %305 = vmatprep.subr.mxu0 0.0
  %306 = vmatpush1.msra.mxu0 0.0
  %307 = vmatprep.subr.mxu0 0.0
  %308 = vmatpush1.msra.mxu0 0.0
  %309 = vmatprep.subr.mxu0 0.0
  %310 = vmatpush1.msra.mxu0 0.0
  %311 = vmatprep.subr.mxu0 0.0
  %312 = vmatpush1.msra.mxu0 0.0
  %313 = vmatprep.subr.mxu0 0.0
  %314 = vmatpush1.msra.mxu0 0.0
  %315 = vmatprep.subr.mxu0 0.0
  %316 = vmatpush1.msra.mxu0 0.0
  %317 = vmatprep.subr.mxu0 0.0
  %318 = vmatpush1.msra.mxu0 0.0
  %319 = vmatprep.subr.mxu0 0.0
  %320 = vmatpush1.msra.mxu0 0.0
  %321 = vmatprep.subr.mxu0 0.0
  %322 = vmatpush1.msra.mxu0 0.0
  %323 = vmatprep.subr.mxu0 0.0
  %324 = vmatpush1.msra.mxu0 0.0
  %325 = vmatprep.subr.mxu0 0.0
  %326 = vmatpush1.msra.mxu0 0.0
  %327 = vmatprep.subr.mxu0 0.0
  %328 = vmatpush1.msra.mxu0 0.0
  %329 = vmatprep.subr.mxu0 0.0
  %330 = vmatpush1.msra.mxu0 0.0
  %331 = vmatprep.subr.mxu0 0.0
  %332 = vmatpush1.msra.mxu0 0.0
  %333 = vmatprep.subr.mxu0 0.0
  %334 = vmatpush1.msra.mxu0 0.0
  %335 = vmatprep.subr.mxu0 0.0
  %336 = vmatpush1.msra.mxu0 0.0
  %337 = vmatprep.subr.mxu0 0.0
  %338 = vmatpush1.msra.mxu0 0.0
  %339 = vmatprep.subr.mxu0 0.0
  %340 = vmatpush1.msra.mxu0 0.0
  %341 = vmatprep.subr.mxu0 0.0
  %342 = vmatpush1.msra.mxu0 0.0
  %343 = vmatprep.subr.mxu0 0.0
  %344 = vmatpush1.msra.mxu0 0.0
  %345 = vmatprep.subr.mxu0 0.0
  %346 = vmatpush1.msra.mxu0 0.0
  %347 = vmatprep.subr.mxu0 0.0
  %348 = vmatpush1.msra.mxu0 0.0
  %349 = vmatprep.mubr.f32.mxu0 0.0
  %350 = vmatmul.mubr.f32.gmra.mrb[0].mxu0 %v212
  %v351 = vpop.f32.mrb[0].mxu0
  %v352 = vadd.f32 0.0, %v351
  %v353 = vpop.f32.mrb[0].mxu0
  %354 = vdwg.mxu0
  %v355 = vadd.f32 %v200, %v352
  %v356 = vxor.u32 %v284, 2147483648
  %v357 = vmul.f32 %v356, 1.442695
  %v358 = vpow.pop %v357
  %v359 = vadd.f32 %v358, 1.0
  %v360 = vrcp.pop %v359
  %v361 = vmul.f32 1.0, %v360
  %v362 = vtanh.pop %v284
  %v363 = vmul.f32 %v361, 0.0
  %365 = vrot.lane.b32.xlu0 %v362, 64
  %v366 = vpop.permute.xlu0 %365
  %v368 = vmul.f32 %v361, %v366
  %370 = vrot.lane.b32.xlu0 %v368, 32
  %v371 = vpop.permute.xlu0 %370
  %v373 = vadd.f32 %v363, %v371
  %v374 = vtanh.pop %v373
  %376 = vrot.lane.b32.xlu0 %v374, 64
  %v377 = vpop.permute.xlu0 %376
  %v379 = vmul.f32 %v361, %v377
  %v380 = vxor.u32 %v355, 2147483648
  %v381 = vmul.f32 %v380, 1.442695
  %v382 = vpow.pop %v381
  %v383 = vadd.f32 %v382, 1.0
  %v384 = vrcp.pop %v383
  %v385 = vmul.f32 1.0, %v384
  %v386 = vtanh.pop %v355
  %v387 = vmul.f32 %v385, 0.0
  %389 = vrot.lane.b32.xlu0 %v386, 64
  %v390 = vpop.permute.xlu0 %389
  %v392 = vmul.f32 %v385, %v390
  %394 = vrot.lane.b32.xlu0 %v392, 32
  %v395 = vpop.permute.xlu0 %394
  %v397 = vadd.f32 %v387, %v395
  %v398 = vtanh.pop %v397
  %400 = vrot.lane.b32.xlu0 %v398, 64
  %v401 = vpop.permute.xlu0 %400
  %v403 = vmul.f32 %v385, %v401
  %405 = vrot.lane.b32.xlu0 %v379, 32
  %v406 = vpop.permute.xlu0 %405
  %408 = vst.msk [vmem:[%s7] sm:$0xff] %vm210, %v406
  %410 = vrot.lane.b32.xlu0 %v403, 64
  %v411 = vpop.permute.xlu0 %410
  %vm413 = vcmask 523520
  %414 = vst.msk [vmem:[%s7 + $0x38] sm:$0xff] %vm413, %v411
  %v415 = vsel %vm210, %v406, 0
  %417 = vmatprep.subr.mxu0 0.0
  %418 = vmatpush1.msra.mxu0 %v202
  %419 = vmatprep.subr.mxu0 0.0
  %420 = vmatpush1.msra.mxu0 %v203
  %421 = vmatprep.subr.mxu0 0.0
  %422 = vmatpush1.msra.mxu0 %v204
  %423 = vmatprep.subr.mxu0 0.0
  %424 = vmatpush1.msra.mxu0 %v205
  %425 = vmatprep.subr.mxu0 0.0
  %426 = vmatpush1.msra.mxu0 0.0
  %427 = vmatprep.subr.mxu0 0.0
  %428 = vmatpush1.msra.mxu0 0.0
  %429 = vmatprep.subr.mxu0 0.0
  %430 = vmatpush1.msra.mxu0 0.0
  %431 = vmatprep.subr.mxu0 0.0
  %432 = vmatpush1.msra.mxu0 0.0
  %433 = vmatprep.subr.mxu0 0.0
  %434 = vmatpush1.msra.mxu0 0.0
  %435 = vmatprep.subr.mxu0 0.0
  %436 = vmatpush1.msra.mxu0 0.0
  %437 = vmatprep.subr.mxu0 0.0
  %438 = vmatpush1.msra.mxu0 0.0
  %439 = vmatprep.subr.mxu0 0.0
  %440 = vmatpush1.msra.mxu0 0.0
  %441 = vmatprep.subr.mxu0 0.0
  %442 = vmatpush1.msra.mxu0 0.0
  %443 = vmatprep.subr.mxu0 0.0
  %444 = vmatpush1.msra.mxu0 0.0
  %445 = vmatprep.subr.mxu0 0.0
  %446 = vmatpush1.msra.mxu0 0.0
  %447 = vmatprep.subr.mxu0 0.0
  %448 = vmatpush1.msra.mxu0 0.0
  %449 = vmatprep.subr.mxu0 0.0
  %450 = vmatpush1.msra.mxu0 0.0
  %451 = vmatprep.subr.mxu0 0.0
  %452 = vmatpush1.msra.mxu0 0.0
  %453 = vmatprep.subr.mxu0 0.0
  %454 = vmatpush1.msra.mxu0 0.0
  %455 = vmatprep.subr.mxu0 0.0
  %456 = vmatpush1.msra.mxu0 0.0
  %457 = vmatprep.subr.mxu0 0.0
  %458 = vmatpush1.msra.mxu0 0.0
  %459 = vmatprep.subr.mxu0 0.0
  %460 = vmatpush1.msra.mxu0 0.0
  %461 = vmatprep.subr.mxu0 0.0
  %462 = vmatpush1.msra.mxu0 0.0
  %463 = vmatprep.subr.mxu0 0.0
  %464 = vmatpush1.msra.mxu0 0.0
  %465 = vmatprep.subr.mxu0 0.0
  %466 = vmatpush1.msra.mxu0 0.0
  %467 = vmatprep.subr.mxu0 0.0
  %468 = vmatpush1.msra.mxu0 0.0
  %469 = vmatprep.subr.mxu0 0.0
  %470 = vmatpush1.msra.mxu0 0.0
  %471 = vmatprep.subr.mxu0 0.0
  %472 = vmatpush1.msra.mxu0 0.0
  %473 = vmatprep.subr.mxu0 0.0
  %474 = vmatpush1.msra.mxu0 0.0
  %475 = vmatprep.subr.mxu0 0.0
  %476 = vmatpush1.msra.mxu0 0.0
  %477 = vmatprep.subr.mxu0 0.0
  %478 = vmatpush1.msra.mxu0 0.0
  %479 = vmatprep.subr.mxu0 0.0
  %480 = vmatpush1.msra.mxu0 0.0
  %481 = vmatprep.mubr.f32.mxu0 0.0
  %482 = vmatmul.mubr.f32.gmra.mrb[0].mxu0 %v415
  %v483 = vpop.f32.mrb[0].mxu0
  %v484 = vadd.f32 0.0, %v483
  %v485 = vpop.f32.mrb[0].mxu0
  %486 = vdwg.mxu0
  %v487 = vadd.f32 %v162, %v484
  %488 = vrot.lane.b32.xlu0 %v403, 32
  %v489 = vpop.permute.xlu0 %488
  %v490 = vsel %vm210, %v489, 0
  %492 = vmatprep.subr.mxu0 0.0
  %493 = vmatpush1.msra.mxu0 %v206
  %494 = vmatprep.subr.mxu0 0.0
  %495 = vmatpush1.msra.mxu0 %v207
  %496 = vmatprep.subr.mxu0 0.0
  %497 = vmatpush1.msra.mxu0 %v208
  %498 = vmatprep.subr.mxu0 0.0
  %499 = vmatpush1.msra.mxu0 %v209
  %500 = vmatprep.subr.mxu0 0.0
  %501 = vmatpush1.msra.mxu0 0.0
  %502 = vmatprep.subr.mxu0 0.0
  %503 = vmatpush1.msra.mxu0 0.0
  %504 = vmatprep.subr.mxu0 0.0
  %505 = vmatpush1.msra.mxu0 0.0
  %506 = vmatprep.subr.mxu0 0.0
  %507 = vmatpush1.msra.mxu0 0.0
  %508 = vmatprep.subr.mxu0 0.0
  %509 = vmatpush1.msra.mxu0 0.0
  %510 = vmatprep.subr.mxu0 0.0
  %511 = vmatpush1.msra.mxu0 0.0
  %512 = vmatprep.subr.mxu0 0.0
  %513 = vmatpush1.msra.mxu0 0.0
  %514 = vmatprep.subr.mxu0 0.0
  %515 = vmatpush1.msra.mxu0 0.0
  %516 = vmatprep.subr.mxu0 0.0
  %517 = vmatpush1.msra.mxu0 0.0
  %518 = vmatprep.subr.mxu0 0.0
  %519 = vmatpush1.msra.mxu0 0.0
  %520 = vmatprep.subr.mxu0 0.0
  %521 = vmatpush1.msra.mxu0 0.0
  %522 = vmatprep.subr.mxu0 0.0
  %523 = vmatpush1.msra.mxu0 0.0
  %524 = vmatprep.subr.mxu0 0.0
  %525 = vmatpush1.msra.mxu0 0.0
  %526 = vmatprep.subr.mxu0 0.0
  %527 = vmatpush1.msra.mxu0 0.0
  %528 = vmatprep.subr.mxu0 0.0
  %529 = vmatpush1.msra.mxu0 0.0
  %530 = vmatprep.subr.mxu0 0.0
  %531 = vmatpush1.msra.mxu0 0.0
  %532 = vmatprep.subr.mxu0 0.0
  %533 = vmatpush1.msra.mxu0 0.0
  %534 = vmatprep.subr.mxu0 0.0
  %535 = vmatpush1.msra.mxu0 0.0
  %536 = vmatprep.subr.mxu0 0.0
  %537 = vmatpush1.msra.mxu0 0.0
  %538 = vmatprep.subr.mxu0 0.0
  %539 = vmatpush1.msra.mxu0 0.0
  %540 = vmatprep.subr.mxu0 0.0
  %541 = vmatpush1.msra.mxu0 0.0
  %542 = vmatprep.subr.mxu0 0.0
  %543 = vmatpush1.msra.mxu0 0.0
  %544 = vmatprep.subr.mxu0 0.0
  %545 = vmatpush1.msra.mxu0 0.0
  %546 = vmatprep.subr.mxu0 0.0
  %547 = vmatpush1.msra.mxu0 0.0
  %548 = vmatprep.subr.mxu0 0.0
  %549 = vmatpush1.msra.mxu0 0.0
  %550 = vmatprep.subr.mxu0 0.0
  %551 = vmatpush1.msra.mxu0 0.0
  %552 = vmatprep.subr.mxu0 0.0
  %553 = vmatpush1.msra.mxu0 0.0
  %554 = vmatprep.subr.mxu0 0.0
  %555 = vmatpush1.msra.mxu0 0.0
  %556 = vmatprep.mubr.f32.mxu0 0.0
  %557 = vmatmul.mubr.f32.gmra.mrb[0].mxu0 %v490
  %v558 = vpop.f32.mrb[0].mxu0
  %v559 = vadd.f32 0.0, %v558
  %v560 = vpop.f32.mrb[0].mxu0
  %561 = vdwg.mxu0
  %v562 = vadd.f32 %v194, %v559
  %v563 = vxor.u32 %v487, 2147483648
  %v564 = vmul.f32 %v563, 1.442695
  %v565 = vpow.pop %v564
  %v566 = vadd.f32 %v565, 1.0
  %v567 = vrcp.pop %v566
  %v568 = vmul.f32 1.0, %v567
  %v569 = vtanh.pop %v487
  %v570 = vmul.f32 %v568, %v373
  %572 = vrot.lane.b32.xlu0 %v569, 64
  %v573 = vpop.permute.xlu0 %572
  %v575 = vmul.f32 %v568, %v573
  %577 = vrot.lane.b32.xlu0 %v575, 32
  %v578 = vpop.permute.xlu0 %577
  %v580 = vadd.f32 %v570, %v578
  %v581 = vtanh.pop %v580
  %583 = vrot.lane.b32.xlu0 %v581, 64
  %v584 = vpop.permute.xlu0 %583
  %v586 = vmul.f32 %v568, %v584
  %v587 = vxor.u32 %v562, 2147483648
  %v588 = vmul.f32 %v587, 1.442695
  %v589 = vpow.pop %v588
  %v590 = vadd.f32 %v589, 1.0
  %v591 = vrcp.pop %v590
  %v592 = vmul.f32 1.0, %v591
  %v593 = vtanh.pop %v562
  %v594 = vmul.f32 %v592, %v397
  %596 = vrot.lane.b32.xlu0 %v593, 64
  %v597 = vpop.permute.xlu0 %596
  %v599 = vmul.f32 %v592, %v597
  %601 = vrot.lane.b32.xlu0 %v599, 32
  %v602 = vpop.permute.xlu0 %601
  %v604 = vadd.f32 %v594, %v602
  %v605 = vtanh.pop %v604
  %607 = vrot.lane.b32.xlu0 %v605, 64
  %v608 = vpop.permute.xlu0 %607
  %v610 = vmul.f32 %v592, %v608
  %612 = vrot.lane.b32.xlu0 %v586, 32
  %v613 = vpop.permute.xlu0 %612
  %615 = vst.msk [vmem:[%s7 + $0x8] sm:$0xff] %vm210, %v613
  %617 = vrot.lane.b32.xlu0 %v610, 64
  %v618 = vpop.permute.xlu0 %617
  %620 = vst.msk [vmem:[%s7 + $0x30] sm:$0xff] %vm413, %v618
  %v621 = vsel %vm210, %v613, 0
  %623 = vmatprep.subr.mxu0 0.0
  %624 = vmatpush1.msra.mxu0 %v202
  %625 = vmatprep.subr.mxu0 0.0
  %626 = vmatpush1.msra.mxu0 %v203
  %627 = vmatprep.subr.mxu0 0.0
  %628 = vmatpush1.msra.mxu0 %v204
  %629 = vmatprep.subr.mxu0 0.0
  %630 = vmatpush1.msra.mxu0 %v205
  %631 = vmatprep.subr.mxu0 0.0
  %632 = vmatpush1.msra.mxu0 0.0
  %633 = vmatprep.subr.mxu0 0.0
  %634 = vmatpush1.msra.mxu0 0.0
  %635 = vmatprep.subr.mxu0 0.0
  %636 = vmatpush1.msra.mxu0 0.0
  %637 = vmatprep.subr.mxu0 0.0
  %638 = vmatpush1.msra.mxu0 0.0
  %639 = vmatprep.subr.mxu0 0.0
  %640 = vmatpush1.msra.mxu0 0.0
  %641 = vmatprep.subr.mxu0 0.0
  %642 = vmatpush1.msra.mxu0 0.0
  %643 = vmatprep.subr.mxu0 0.0
  %644 = vmatpush1.msra.mxu0 0.0
  %645 = vmatprep.subr.mxu0 0.0
  %646 = vmatpush1.msra.mxu0 0.0
  %647 = vmatprep.subr.mxu0 0.0
  %648 = vmatpush1.msra.mxu0 0.0
  %649 = vmatprep.subr.mxu0 0.0
  %650 = vmatpush1.msra.mxu0 0.0
  %651 = vmatprep.subr.mxu0 0.0
  %652 = vmatpush1.msra.mxu0 0.0
  %653 = vmatprep.subr.mxu0 0.0
  %654 = vmatpush1.msra.mxu0 0.0
  %655 = vmatprep.subr.mxu0 0.0
  %656 = vmatpush1.msra.mxu0 0.0
  %657 = vmatprep.subr.mxu0 0.0
  %658 = vmatpush1.msra.mxu0 0.0
  %659 = vmatprep.subr.mxu0 0.0
  %660 = vmatpush1.msra.mxu0 0.0
  %661 = vmatprep.subr.mxu0 0.0
  %662 = vmatpush1.msra.mxu0 0.0
  %663 = vmatprep.subr.mxu0 0.0
  %664 = vmatpush1.msra.mxu0 0.0
  %665 = vmatprep.subr.mxu0 0.0
  %666 = vmatpush1.msra.mxu0 0.0
  %667 = vmatprep.subr.mxu0 0.0
  %668 = vmatpush1.msra.mxu0 0.0
  %669 = vmatprep.subr.mxu0 0.0
  %670 = vmatpush1.msra.mxu0 0.0
  %671 = vmatprep.subr.mxu0 0.0
  %672 = vmatpush1.msra.mxu0 0.0
  %673 = vmatprep.subr.mxu0 0.0
  %674 = vmatpush1.msra.mxu0 0.0
  %675 = vmatprep.subr.mxu0 0.0
  %676 = vmatpush1.msra.mxu0 0.0
  %677 = vmatprep.subr.mxu0 0.0
  %678 = vmatpush1.msra.mxu0 0.0
  %679 = vmatprep.subr.mxu0 0.0
  %680 = vmatpush1.msra.mxu0 0.0
  %681 = vmatprep.subr.mxu0 0.0
  %682 = vmatpush1.msra.mxu0 0.0
  %683 = vmatprep.subr.mxu0 0.0
  %684 = vmatpush1.msra.mxu0 0.0
  %685 = vmatprep.subr.mxu0 0.0
  %686 = vmatpush1.msra.mxu0 0.0
  %687 = vmatprep.mubr.f32.mxu0 0.0
  %688 = vmatmul.mubr.f32.gmra.mrb[0].mxu0 %v621
  %v689 = vpop.f32.mrb[0].mxu0
  %v690 = vadd.f32 0.0, %v689
  %v691 = vpop.f32.mrb[0].mxu0
  %692 = vdwg.mxu0
  %v693 = vadd.f32 %v168, %v690
  %694 = vrot.lane.b32.xlu0 %v610, 32
  %v695 = vpop.permute.xlu0 %694
  %v696 = vsel %vm210, %v695, 0
  %698 = vmatprep.subr.mxu0 0.0
  %699 = vmatpush1.msra.mxu0 %v206
  %700 = vmatprep.subr.mxu0 0.0
  %701 = vmatpush1.msra.mxu0 %v207
  %702 = vmatprep.subr.mxu0 0.0
  %703 = vmatpush1.msra.mxu0 %v208
  %704 = vmatprep.subr.mxu0 0.0
  %705 = vmatpush1.msra.mxu0 %v209
  %706 = vmatprep.subr.mxu0 0.0
  %707 = vmatpush1.msra.mxu0 0.0
  %708 = vmatprep.subr.mxu0 0.0
  %709 = vmatpush1.msra.mxu0 0.0
  %710 = vmatprep.subr.mxu0 0.0
  %711 = vmatpush1.msra.mxu0 0.0
  %712 = vmatprep.subr.mxu0 0.0
  %713 = vmatpush1.msra.mxu0 0.0
  %714 = vmatprep.subr.mxu0 0.0
  %715 = vmatpush1.msra.mxu0 0.0
  %716 = vmatprep.subr.mxu0 0.0
  %717 = vmatpush1.msra.mxu0 0.0
  %718 = vmatprep.subr.mxu0 0.0
  %719 = vmatpush1.msra.mxu0 0.0
  %720 = vmatprep.subr.mxu0 0.0
  %721 = vmatpush1.msra.mxu0 0.0
  %722 = vmatprep.subr.mxu0 0.0
  %723 = vmatpush1.msra.mxu0 0.0
  %724 = vmatprep.subr.mxu0 0.0
  %725 = vmatpush1.msra.mxu0 0.0
  %726 = vmatprep.subr.mxu0 0.0
  %727 = vmatpush1.msra.mxu0 0.0
  %728 = vmatprep.subr.mxu0 0.0
  %729 = vmatpush1.msra.mxu0 0.0
  %730 = vmatprep.subr.mxu0 0.0
  %731 = vmatpush1.msra.mxu0 0.0
  %732 = vmatprep.subr.mxu0 0.0
  %733 = vmatpush1.msra.mxu0 0.0
  %734 = vmatprep.subr.mxu0 0.0
  %735 = vmatpush1.msra.mxu0 0.0
  %736 = vmatprep.subr.mxu0 0.0
  %737 = vmatpush1.msra.mxu0 0.0
  %738 = vmatprep.subr.mxu0 0.0
  %739 = vmatpush1.msra.mxu0 0.0
  %740 = vmatprep.subr.mxu0 0.0
  %741 = vmatpush1.msra.mxu0 0.0
  %742 = vmatprep.subr.mxu0 0.0
  %743 = vmatpush1.msra.mxu0 0.0
  %744 = vmatprep.subr.mxu0 0.0
  %745 = vmatpush1.msra.mxu0 0.0
  %746 = vmatprep.subr.mxu0 0.0
  %747 = vmatpush1.msra.mxu0 0.0
  %748 = vmatprep.subr.mxu0 0.0
  %749 = vmatpush1.msra.mxu0 0.0
  %750 = vmatprep.subr.mxu0 0.0
  %751 = vmatpush1.msra.mxu0 0.0
  %752 = vmatprep.subr.mxu0 0.0
  %753 = vmatpush1.msra.mxu0 0.0
  %754 = vmatprep.subr.mxu0 0.0
  %755 = vmatpush1.msra.mxu0 0.0
  %756 = vmatprep.subr.mxu0 0.0
  %757 = vmatpush1.msra.mxu0 0.0
  %758 = vmatprep.subr.mxu0 0.0
  %759 = vmatpush1.msra.mxu0 0.0
  %760 = vmatprep.subr.mxu0 0.0
  %761 = vmatpush1.msra.mxu0 0.0
  %762 = vmatprep.mubr.f32.mxu0 0.0
  %763 = vmatmul.mubr.f32.gmra.mrb[0].mxu0 %v696
  %v764 = vpop.f32.mrb[0].mxu0
  %v765 = vadd.f32 0.0, %v764
  %v766 = vpop.f32.mrb[0].mxu0
  %767 = vdwg.mxu0
  %v768 = vadd.f32 %v188, %v765
  %v769 = vxor.u32 %v693, 2147483648
  %v770 = vmul.f32 %v769, 1.442695
  %v771 = vpow.pop %v770
  %v772 = vadd.f32 %v771, 1.0
  %v773 = vrcp.pop %v772
  %v774 = vmul.f32 1.0, %v773
  %v775 = vtanh.pop %v693
  %v776 = vmul.f32 %v774, %v580
  %778 = vrot.lane.b32.xlu0 %v775, 64
  %v779 = vpop.permute.xlu0 %778
  %v781 = vmul.f32 %v774, %v779
  %783 = vrot.lane.b32.xlu0 %v781, 32
  %v784 = vpop.permute.xlu0 %783
  %v786 = vadd.f32 %v776, %v784
  %v787 = vtanh.pop %v786
  %789 = vrot.lane.b32.xlu0 %v787, 64
  %v790 = vpop.permute.xlu0 %789
  %v792 = vmul.f32 %v774, %v790
  %v793 = vxor.u32 %v768, 2147483648
  %v794 = vmul.f32 %v793, 1.442695
  %v795 = vpow.pop %v794
  %v796 = vadd.f32 %v795, 1.0
  %v797 = vrcp.pop %v796
  %v798 = vmul.f32 1.0, %v797
  %v799 = vtanh.pop %v768
  %v800 = vmul.f32 %v798, %v604
  %802 = vrot.lane.b32.xlu0 %v799, 64
  %v803 = vpop.permute.xlu0 %802
  %v805 = vmul.f32 %v798, %v803
  %807 = vrot.lane.b32.xlu0 %v805, 32
  %v808 = vpop.permute.xlu0 %807
  %v810 = vadd.f32 %v800, %v808
  %v811 = vtanh.pop %v810
  %813 = vrot.lane.b32.xlu0 %v811, 64
  %v814 = vpop.permute.xlu0 %813
  %v816 = vmul.f32 %v798, %v814
  %818 = vrot.lane.b32.xlu0 %v792, 32
  %v819 = vpop.permute.xlu0 %818
  %821 = vst.msk [vmem:[%s7 + $0x10] sm:$0xff] %vm210, %v819
  %823 = vrot.lane.b32.xlu0 %v816, 64
  %v824 = vpop.permute.xlu0 %823
  %826 = vst.msk [vmem:[%s7 + $0x28] sm:$0xff] %vm413, %v824
  %v827 = vsel %vm210, %v819, 0
  %829 = vmatprep.subr.mxu0 0.0
  %830 = vmatpush1.msra.mxu0 %v202
  %831 = vmatprep.subr.mxu0 0.0
  %832 = vmatpush1.msra.mxu0 %v203
  %833 = vmatprep.subr.mxu0 0.0
  %834 = vmatpush1.msra.mxu0 %v204
  %835 = vmatprep.subr.mxu0 0.0
  %836 = vmatpush1.msra.mxu0 %v205
  %837 = vmatprep.subr.mxu0 0.0
  %838 = vmatpush1.msra.mxu0 0.0
  %839 = vmatprep.subr.mxu0 0.0
  %840 = vmatpush1.msra.mxu0 0.0
  %841 = vmatprep.subr.mxu0 0.0
  %842 = vmatpush1.msra.mxu0 0.0
  %843 = vmatprep.subr.mxu0 0.0
  %844 = vmatpush1.msra.mxu0 0.0
  %845 = vmatprep.subr.mxu0 0.0
  %846 = vmatpush1.msra.mxu0 0.0
  %847 = vmatprep.subr.mxu0 0.0
  %848 = vmatpush1.msra.mxu0 0.0
  %849 = vmatprep.subr.mxu0 0.0
  %850 = vmatpush1.msra.mxu0 0.0
  %851 = vmatprep.subr.mxu0 0.0
  %852 = vmatpush1.msra.mxu0 0.0
  %853 = vmatprep.subr.mxu0 0.0
  %854 = vmatpush1.msra.mxu0 0.0
  %855 = vmatprep.subr.mxu0 0.0
  %856 = vmatpush1.msra.mxu0 0.0
  %857 = vmatprep.subr.mxu0 0.0
  %858 = vmatpush1.msra.mxu0 0.0
  %859 = vmatprep.subr.mxu0 0.0
  %860 = vmatpush1.msra.mxu0 0.0
  %861 = vmatprep.subr.mxu0 0.0
  %862 = vmatpush1.msra.mxu0 0.0
  %863 = vmatprep.subr.mxu0 0.0
  %864 = vmatpush1.msra.mxu0 0.0
  %865 = vmatprep.subr.mxu0 0.0
  %866 = vmatpush1.msra.mxu0 0.0
  %867 = vmatprep.subr.mxu0 0.0
  %868 = vmatpush1.msra.mxu0 0.0
  %869 = vmatprep.subr.mxu0 0.0
  %870 = vmatpush1.msra.mxu0 0.0
  %871 = vmatprep.subr.mxu0 0.0
  %872 = vmatpush1.msra.mxu0 0.0
  %873 = vmatprep.subr.mxu0 0.0
  %874 = vmatpush1.msra.mxu0 0.0
  %875 = vmatprep.subr.mxu0 0.0
  %876 = vmatpush1.msra.mxu0 0.0
  %877 = vmatprep.subr.mxu0 0.0
  %878 = vmatpush1.msra.mxu0 0.0
  %879 = vmatprep.subr.mxu0 0.0
  %880 = vmatpush1.msra.mxu0 0.0
  %881 = vmatprep.subr.mxu0 0.0
  %882 = vmatpush1.msra.mxu0 0.0
  %883 = vmatprep.subr.mxu0 0.0
  %884 = vmatpush1.msra.mxu0 0.0
  %885 = vmatprep.subr.mxu0 0.0
  %886 = vmatpush1.msra.mxu0 0.0
  %887 = vmatprep.subr.mxu0 0.0
  %888 = vmatpush1.msra.mxu0 0.0
  %889 = vmatprep.subr.mxu0 0.0
  %890 = vmatpush1.msra.mxu0 0.0
  %891 = vmatprep.subr.mxu0 0.0
  %892 = vmatpush1.msra.mxu0 0.0
  %893 = vmatprep.mubr.f32.mxu0 0.0
  %894 = vmatmul.mubr.f32.gmra.mrb[0].mxu0 %v827
  %v895 = vpop.f32.mrb[0].mxu0
  %v896 = vadd.f32 0.0, %v895
  %v897 = vpop.f32.mrb[0].mxu0
  %898 = vdwg.mxu0
  %v899 = vadd.f32 %v174, %v896
  %900 = vrot.lane.b32.xlu0 %v816, 32
  %v901 = vpop.permute.xlu0 %900
  %v902 = vsel %vm210, %v901, 0
  %904 = vmatprep.subr.mxu0 0.0
  %905 = vmatpush1.msra.mxu0 %v206
  %906 = vmatprep.subr.mxu0 0.0
  %907 = vmatpush1.msra.mxu0 %v207
  %908 = vmatprep.subr.mxu0 0.0
  %909 = vmatpush1.msra.mxu0 %v208
  %910 = vmatprep.subr.mxu0 0.0
  %911 = vmatpush1.msra.mxu0 %v209
  %912 = vmatprep.subr.mxu0 0.0
  %913 = vmatpush1.msra.mxu0 0.0
  %914 = vmatprep.subr.mxu0 0.0
  %915 = vmatpush1.msra.mxu0 0.0
  %916 = vmatprep.subr.mxu0 0.0
  %917 = vmatpush1.msra.mxu0 0.0
  %918 = vmatprep.subr.mxu0 0.0
  %919 = vmatpush1.msra.mxu0 0.0
  %920 = vmatprep.subr.mxu0 0.0
  %921 = vmatpush1.msra.mxu0 0.0
  %922 = vmatprep.subr.mxu0 0.0
  %923 = vmatpush1.msra.mxu0 0.0
  %924 = vmatprep.subr.mxu0 0.0
  %925 = vmatpush1.msra.mxu0 0.0
  %926 = vmatprep.subr.mxu0 0.0
  %927 = vmatpush1.msra.mxu0 0.0
  %928 = vmatprep.subr.mxu0 0.0
  %929 = vmatpush1.msra.mxu0 0.0
  %930 = vmatprep.subr.mxu0 0.0
  %931 = vmatpush1.msra.mxu0 0.0
  %932 = vmatprep.subr.mxu0 0.0
  %933 = vmatpush1.msra.mxu0 0.0
  %934 = vmatprep.subr.mxu0 0.0
  %935 = vmatpush1.msra.mxu0 0.0
  %936 = vmatprep.subr.mxu0 0.0
  %937 = vmatpush1.msra.mxu0 0.0
  %938 = vmatprep.subr.mxu0 0.0
  %939 = vmatpush1.msra.mxu0 0.0
  %940 = vmatprep.subr.mxu0 0.0
  %941 = vmatpush1.msra.mxu0 0.0
  %942 = vmatprep.subr.mxu0 0.0
  %943 = vmatpush1.msra.mxu0 0.0
  %944 = vmatprep.subr.mxu0 0.0
  %945 = vmatpush1.msra.mxu0 0.0
  %946 = vmatprep.subr.mxu0 0.0
  %947 = vmatpush1.msra.mxu0 0.0
  %948 = vmatprep.subr.mxu0 0.0
  %949 = vmatpush1.msra.mxu0 0.0
  %950 = vmatprep.subr.mxu0 0.0
  %951 = vmatpush1.msra.mxu0 0.0
  %952 = vmatprep.subr.mxu0 0.0
  %953 = vmatpush1.msra.mxu0 0.0
  %954 = vmatprep.subr.mxu0 0.0
  %955 = vmatpush1.msra.mxu0 0.0
  %956 = vmatprep.subr.mxu0 0.0
  %957 = vmatpush1.msra.mxu0 0.0
  %958 = vmatprep.subr.mxu0 0.0
  %959 = vmatpush1.msra.mxu0 0.0
  %960 = vmatprep.subr.mxu0 0.0
  %961 = vmatpush1.msra.mxu0 0.0
  %962 = vmatprep.subr.mxu0 0.0
  %963 = vmatpush1.msra.mxu0 0.0
  %964 = vmatprep.subr.mxu0 0.0
  %965 = vmatpush1.msra.mxu0 0.0
  %966 = vmatprep.subr.mxu0 0.0
  %967 = vmatpush1.msra.mxu0 0.0
  %968 = vmatprep.mubr.f32.mxu0 0.0
  %969 = vmatmul.mubr.f32.gmra.mrb[0].mxu0 %v902
  %v970 = vpop.f32.mrb[0].mxu0
  %v971 = vadd.f32 0.0, %v970
  %v972 = vpop.f32.mrb[0].mxu0
  %973 = vdwg.mxu0
  %v974 = vadd.f32 %v182, %v971
  %v975 = vxor.u32 %v899, 2147483648
  %v976 = vmul.f32 %v975, 1.442695
  %v977 = vpow.pop %v976
  %v978 = vadd.f32 %v977, 1.0
  %v979 = vrcp.pop %v978
  %v980 = vmul.f32 1.0, %v979
  %v981 = vtanh.pop %v899
  %v982 = vmul.f32 %v980, %v786
  %984 = vrot.lane.b32.xlu0 %v981, 64
  %v985 = vpop.permute.xlu0 %984
  %v987 = vmul.f32 %v980, %v985
  %989 = vrot.lane.b32.xlu0 %v987, 32
  %v990 = vpop.permute.xlu0 %989
  %v992 = vadd.f32 %v982, %v990
  %v993 = vtanh.pop %v992
  %995 = vrot.lane.b32.xlu0 %v993, 64
  %v996 = vpop.permute.xlu0 %995
  %v998 = vmul.f32 %v980, %v996
  %v999 = vxor.u32 %v974, 2147483648
  %v1000 = vmul.f32 %v999, 1.442695
  %v1001 = vpow.pop %v1000
  %v1002 = vadd.f32 %v1001, 1.0
  %v1003 = vrcp.pop %v1002
  %v1004 = vmul.f32 1.0, %v1003
  %v1005 = vtanh.pop %v974
  %v1006 = vmul.f32 %v1004, %v810
  %1008 = vrot.lane.b32.xlu0 %v1005, 64
  %v1009 = vpop.permute.xlu0 %1008
  %v1011 = vmul.f32 %v1004, %v1009
  %1013 = vrot.lane.b32.xlu0 %v1011, 32
  %v1014 = vpop.permute.xlu0 %1013
  %v1016 = vadd.f32 %v1006, %v1014
  %v1017 = vtanh.pop %v1016
  %1019 = vrot.lane.b32.xlu0 %v1017, 64
  %v1020 = vpop.permute.xlu0 %1019
  %v1022 = vmul.f32 %v1004, %v1020
  %1024 = vrot.lane.b32.xlu0 %v998, 32
  %v1025 = vpop.permute.xlu0 %1024
  %1027 = vst.msk [vmem:[%s7 + $0x18] sm:$0xff] %vm210, %v1025
  %1029 = vrot.lane.b32.xlu0 %v1022, 64
  %v1030 = vpop.permute.xlu0 %1029
  %1032 = vst.msk [vmem:[%s7 + $0x20] sm:$0xff] %vm413, %v1030
  %v1033 = vsel %vm210, %v1025, 0
  %1035 = vmatprep.subr.mxu0 0.0
  %1036 = vmatpush1.msra.mxu0 %v202
  %1037 = vmatprep.subr.mxu0 0.0
  %1038 = vmatpush1.msra.mxu0 %v203
  %1039 = vmatprep.subr.mxu0 0.0
  %1040 = vmatpush1.msra.mxu0 %v204
  %1041 = vmatprep.subr.mxu0 0.0
  %1042 = vmatpush1.msra.mxu0 %v205
  %1043 = vmatprep.subr.mxu0 0.0
  %1044 = vmatpush1.msra.mxu0 0.0
  %1045 = vmatprep.subr.mxu0 0.0
  %1046 = vmatpush1.msra.mxu0 0.0
  %1047 = vmatprep.subr.mxu0 0.0
  %1048 = vmatpush1.msra.mxu0 0.0
  %1049 = vmatprep.subr.mxu0 0.0
  %1050 = vmatpush1.msra.mxu0 0.0
  %1051 = vmatprep.subr.mxu0 0.0
  %1052 = vmatpush1.msra.mxu0 0.0
  %1053 = vmatprep.subr.mxu0 0.0
  %1054 = vmatpush1.msra.mxu0 0.0
  %1055 = vmatprep.subr.mxu0 0.0
  %1056 = vmatpush1.msra.mxu0 0.0
  %1057 = vmatprep.subr.mxu0 0.0
  %1058 = vmatpush1.msra.mxu0 0.0
  %1059 = vmatprep.subr.mxu0 0.0
  %1060 = vmatpush1.msra.mxu0 0.0
  %1061 = vmatprep.subr.mxu0 0.0
  %1062 = vmatpush1.msra.mxu0 0.0
  %1063 = vmatprep.subr.mxu0 0.0
  %1064 = vmatpush1.msra.mxu0 0.0
  %1065 = vmatprep.subr.mxu0 0.0
  %1066 = vmatpush1.msra.mxu0 0.0
  %1067 = vmatprep.subr.mxu0 0.0
  %1068 = vmatpush1.msra.mxu0 0.0
  %1069 = vmatprep.subr.mxu0 0.0
  %1070 = vmatpush1.msra.mxu0 0.0
  %1071 = vmatprep.subr.mxu0 0.0
  %1072 = vmatpush1.msra.mxu0 0.0
  %1073 = vmatprep.subr.mxu0 0.0
  %1074 = vmatpush1.msra.mxu0 0.0
  %1075 = vmatprep.subr.mxu0 0.0
  %1076 = vmatpush1.msra.mxu0 0.0
  %1077 = vmatprep.subr.mxu0 0.0
  %1078 = vmatpush1.msra.mxu0 0.0
  %1079 = vmatprep.subr.mxu0 0.0
  %1080 = vmatpush1.msra.mxu0 0.0
  %1081 = vmatprep.subr.mxu0 0.0
  %1082 = vmatpush1.msra.mxu0 0.0
  %1083 = vmatprep.subr.mxu0 0.0
  %1084 = vmatpush1.msra.mxu0 0.0
  %1085 = vmatprep.subr.mxu0 0.0
  %1086 = vmatpush1.msra.mxu0 0.0
  %1087 = vmatprep.subr.mxu0 0.0
  %1088 = vmatpush1.msra.mxu0 0.0
  %1089 = vmatprep.subr.mxu0 0.0
  %1090 = vmatpush1.msra.mxu0 0.0
  %1091 = vmatprep.subr.mxu0 0.0
  %1092 = vmatpush1.msra.mxu0 0.0
  %1093 = vmatprep.subr.mxu0 0.0
  %1094 = vmatpush1.msra.mxu0 0.0
  %1095 = vmatprep.subr.mxu0 0.0
  %1096 = vmatpush1.msra.mxu0 0.0
  %1097 = vmatprep.subr.mxu0 0.0
  %1098 = vmatpush1.msra.mxu0 0.0
  %1099 = vmatprep.mubr.f32.mxu0 0.0
  %1100 = vmatmul.mubr.f32.gmra.mrb[0].mxu0 %v1033
  %v1101 = vpop.f32.mrb[0].mxu0
  %v1102 = vadd.f32 0.0, %v1101
  %v1103 = vpop.f32.mrb[0].mxu0
  %1104 = vdwg.mxu0
  %v1105 = vadd.f32 %v180, %v1102
  %1106 = vrot.lane.b32.xlu0 %v1022, 32
  %v1107 = vpop.permute.xlu0 %1106
  %v1108 = vsel %vm210, %v1107, 0
  %1110 = vmatprep.subr.mxu0 0.0
  %1111 = vmatpush1.msra.mxu0 %v206
  %1112 = vmatprep.subr.mxu0 0.0
  %1113 = vmatpush1.msra.mxu0 %v207
  %1114 = vmatprep.subr.mxu0 0.0
  %1115 = vmatpush1.msra.mxu0 %v208
  %1116 = vmatprep.subr.mxu0 0.0
  %1117 = vmatpush1.msra.mxu0 %v209
  %1118 = vmatprep.subr.mxu0 0.0
  %1119 = vmatpush1.msra.mxu0 0.0
  %1120 = vmatprep.subr.mxu0 0.0
  %1121 = vmatpush1.msra.mxu0 0.0
  %1122 = vmatprep.subr.mxu0 0.0
  %1123 = vmatpush1.msra.mxu0 0.0
  %1124 = vmatprep.subr.mxu0 0.0
  %1125 = vmatpush1.msra.mxu0 0.0
  %1126 = vmatprep.subr.mxu0 0.0
  %1127 = vmatpush1.msra.mxu0 0.0
  %1128 = vmatprep.subr.mxu0 0.0
  %1129 = vmatpush1.msra.mxu0 0.0
  %1130 = vmatprep.subr.mxu0 0.0
  %1131 = vmatpush1.msra.mxu0 0.0
  %1132 = vmatprep.subr.mxu0 0.0
  %1133 = vmatpush1.msra.mxu0 0.0
  %1134 = vmatprep.subr.mxu0 0.0
  %1135 = vmatpush1.msra.mxu0 0.0
  %1136 = vmatprep.subr.mxu0 0.0
  %1137 = vmatpush1.msra.mxu0 0.0
  %1138 = vmatprep.subr.mxu0 0.0
  %1139 = vmatpush1.msra.mxu0 0.0
  %1140 = vmatprep.subr.mxu0 0.0
  %1141 = vmatpush1.msra.mxu0 0.0
  %1142 = vmatprep.subr.mxu0 0.0
  %1143 = vmatpush1.msra.mxu0 0.0
  %1144 = vmatprep.subr.mxu0 0.0
  %1145 = vmatpush1.msra.mxu0 0.0
  %1146 = vmatprep.subr.mxu0 0.0
  %1147 = vmatpush1.msra.mxu0 0.0
  %1148 = vmatprep.subr.mxu0 0.0
  %1149 = vmatpush1.msra.mxu0 0.0
  %1150 = vmatprep.subr.mxu0 0.0
  %1151 = vmatpush1.msra.mxu0 0.0
  %1152 = vmatprep.subr.mxu0 0.0
  %1153 = vmatpush1.msra.mxu0 0.0
  %1154 = vmatprep.subr.mxu0 0.0
  %1155 = vmatpush1.msra.mxu0 0.0
  %1156 = vmatprep.subr.mxu0 0.0
  %1157 = vmatpush1.msra.mxu0 0.0
  %1158 = vmatprep.subr.mxu0 0.0
  %1159 = vmatpush1.msra.mxu0 0.0
  %1160 = vmatprep.subr.mxu0 0.0
  %1161 = vmatpush1.msra.mxu0 0.0
  %1162 = vmatprep.subr.mxu0 0.0
  %1163 = vmatpush1.msra.mxu0 0.0
  %1164 = vmatprep.subr.mxu0 0.0
  %1165 = vmatpush1.msra.mxu0 0.0
  %1166 = vmatprep.subr.mxu0 0.0
  %1167 = vmatpush1.msra.mxu0 0.0
  %1168 = vmatprep.subr.mxu0 0.0
  %1169 = vmatpush1.msra.mxu0 0.0
  %1170 = vmatprep.subr.mxu0 0.0
  %1171 = vmatpush1.msra.mxu0 0.0
  %1172 = vmatprep.subr.mxu0 0.0
  %1173 = vmatpush1.msra.mxu0 0.0
  %1174 = vmatprep.mubr.f32.mxu0 0.0
  %1175 = vmatmul.mubr.f32.gmra.mrb[0].mxu0 %v1108
  %v1176 = vpop.f32.mrb[0].mxu0
  %v1177 = vadd.f32 0.0, %v1176
  %v1178 = vpop.f32.mrb[0].mxu0
  %1179 = vdwg.mxu0
  %v1180 = vadd.f32 %v176, %v1177
  %v1181 = vxor.u32 %v1105, 2147483648
  %v1182 = vmul.f32 %v1181, 1.442695
  %v1183 = vpow.pop %v1182
  %v1184 = vadd.f32 %v1183, 1.0
  %v1185 = vrcp.pop %v1184
  %v1186 = vmul.f32 1.0, %v1185
  %v1187 = vtanh.pop %v1105
  %v1188 = vmul.f32 %v1186, %v992
  %1190 = vrot.lane.b32.xlu0 %v1187, 64
  %v1191 = vpop.permute.xlu0 %1190
  %v1193 = vmul.f32 %v1186, %v1191
  %1195 = vrot.lane.b32.xlu0 %v1193, 32
  %v1196 = vpop.permute.xlu0 %1195
  %v1198 = vadd.f32 %v1188, %v1196
  %v1199 = vtanh.pop %v1198
  %1201 = vrot.lane.b32.xlu0 %v1199, 64
  %v1202 = vpop.permute.xlu0 %1201
  %v1204 = vmul.f32 %v1186, %v1202
  %v1205 = vxor.u32 %v1180, 2147483648
  %v1206 = vmul.f32 %v1205, 1.442695
  %v1207 = vpow.pop %v1206
  %v1208 = vadd.f32 %v1207, 1.0
  %v1209 = vrcp.pop %v1208
  %v1210 = vmul.f32 1.0, %v1209
  %v1211 = vtanh.pop %v1180
  %v1212 = vmul.f32 %v1210, %v1016
  %1214 = vrot.lane.b32.xlu0 %v1211, 64
  %v1215 = vpop.permute.xlu0 %1214
  %v1217 = vmul.f32 %v1210, %v1215
  %1219 = vrot.lane.b32.xlu0 %v1217, 32
  %v1220 = vpop.permute.xlu0 %1219
  %v1222 = vadd.f32 %v1212, %v1220
  %v1223 = vtanh.pop %v1222
  %1225 = vrot.lane.b32.xlu0 %v1223, 64
  %v1226 = vpop.permute.xlu0 %1225
  %v1228 = vmul.f32 %v1210, %v1226
  %1230 = vrot.lane.b32.xlu0 %v1204, 32
  %v1231 = vpop.permute.xlu0 %1230
  %1233 = vst.msk [vmem:[%s7 + $0x20] sm:$0xff] %vm210, %v1231
  %1235 = vrot.lane.b32.xlu0 %v1228, 64
  %v1236 = vpop.permute.xlu0 %1235
  %1238 = vst.msk [vmem:[%s7 + $0x18] sm:$0xff] %vm413, %v1236
  %v1239 = vsel %vm210, %v1231, 0
  %1241 = vmatprep.subr.mxu0 0.0
  %1242 = vmatpush1.msra.mxu0 %v202
  %1243 = vmatprep.subr.mxu0 0.0
  %1244 = vmatpush1.msra.mxu0 %v203
  %1245 = vmatprep.subr.mxu0 0.0
  %1246 = vmatpush1.msra.mxu0 %v204
  %1247 = vmatprep.subr.mxu0 0.0
  %1248 = vmatpush1.msra.mxu0 %v205
  %1249 = vmatprep.subr.mxu0 0.0
  %1250 = vmatpush1.msra.mxu0 0.0
  %1251 = vmatprep.subr.mxu0 0.0
  %1252 = vmatpush1.msra.mxu0 0.0
  %1253 = vmatprep.subr.mxu0 0.0
  %1254 = vmatpush1.msra.mxu0 0.0
  %1255 = vmatprep.subr.mxu0 0.0
  %1256 = vmatpush1.msra.mxu0 0.0
  %1257 = vmatprep.subr.mxu0 0.0
  %1258 = vmatpush1.msra.mxu0 0.0
  %1259 = vmatprep.subr.mxu0 0.0
  %1260 = vmatpush1.msra.mxu0 0.0
  %1261 = vmatprep.subr.mxu0 0.0
  %1262 = vmatpush1.msra.mxu0 0.0
  %1263 = vmatprep.subr.mxu0 0.0
  %1264 = vmatpush1.msra.mxu0 0.0
  %1265 = vmatprep.subr.mxu0 0.0
  %1266 = vmatpush1.msra.mxu0 0.0
  %1267 = vmatprep.subr.mxu0 0.0
  %1268 = vmatpush1.msra.mxu0 0.0
  %1269 = vmatprep.subr.mxu0 0.0
  %1270 = vmatpush1.msra.mxu0 0.0
  %1271 = vmatprep.subr.mxu0 0.0
  %1272 = vmatpush1.msra.mxu0 0.0
  %1273 = vmatprep.subr.mxu0 0.0
  %1274 = vmatpush1.msra.mxu0 0.0
  %1275 = vmatprep.subr.mxu0 0.0
  %1276 = vmatpush1.msra.mxu0 0.0
  %1277 = vmatprep.subr.mxu0 0.0
  %1278 = vmatpush1.msra.mxu0 0.0
  %1279 = vmatprep.subr.mxu0 0.0
  %1280 = vmatpush1.msra.mxu0 0.0
  %1281 = vmatprep.subr.mxu0 0.0
  %1282 = vmatpush1.msra.mxu0 0.0
  %1283 = vmatprep.subr.mxu0 0.0
  %1284 = vmatpush1.msra.mxu0 0.0
  %1285 = vmatprep.subr.mxu0 0.0
  %1286 = vmatpush1.msra.mxu0 0.0
  %1287 = vmatprep.subr.mxu0 0.0
  %1288 = vmatpush1.msra.mxu0 0.0
  %1289 = vmatprep.subr.mxu0 0.0
  %1290 = vmatpush1.msra.mxu0 0.0
  %1291 = vmatprep.subr.mxu0 0.0
  %1292 = vmatpush1.msra.mxu0 0.0
  %1293 = vmatprep.subr.mxu0 0.0
  %1294 = vmatpush1.msra.mxu0 0.0
  %1295 = vmatprep.subr.mxu0 0.0
  %1296 = vmatpush1.msra.mxu0 0.0
  %1297 = vmatprep.subr.mxu0 0.0
  %1298 = vmatpush1.msra.mxu0 0.0
  %1299 = vmatprep.subr.mxu0 0.0
  %1300 = vmatpush1.msra.mxu0 0.0
  %1301 = vmatprep.subr.mxu0 0.0
  %1302 = vmatpush1.msra.mxu0 0.0
  %1303 = vmatprep.subr.mxu0 0.0
  %1304 = vmatpush1.msra.mxu0 0.0
  %1305 = vmatprep.mubr.f32.mxu0 0.0
  %1306 = vmatmul.mubr.f32.gmra.mrb[0].mxu0 %v1239
  %v1307 = vpop.f32.mrb[0].mxu0
  %v1308 = vadd.f32 0.0, %v1307
  %v1309 = vpop.f32.mrb[0].mxu0
  %1310 = vdwg.mxu0
  %v1311 = vadd.f32 %v186, %v1308
  %1312 = vrot.lane.b32.xlu0 %v1228, 32
  %v1313 = vpop.permute.xlu0 %1312
  %v1314 = vsel %vm210, %v1313, 0
  %1316 = vmatprep.subr.mxu0 0.0
  %1317 = vmatpush1.msra.mxu0 %v206
  %1318 = vmatprep.subr.mxu0 0.0
  %1319 = vmatpush1.msra.mxu0 %v207
  %1320 = vmatprep.subr.mxu0 0.0
  %1321 = vmatpush1.msra.mxu0 %v208
  %1322 = vmatprep.subr.mxu0 0.0
  %1323 = vmatpush1.msra.mxu0 %v209
  %1324 = vmatprep.subr.mxu0 0.0
  %1325 = vmatpush1.msra.mxu0 0.0
  %1326 = vmatprep.subr.mxu0 0.0
  %1327 = vmatpush1.msra.mxu0 0.0
  %1328 = vmatprep.subr.mxu0 0.0
  %1329 = vmatpush1.msra.mxu0 0.0
  %1330 = vmatprep.subr.mxu0 0.0
  %1331 = vmatpush1.msra.mxu0 0.0
  %1332 = vmatprep.subr.mxu0 0.0
  %1333 = vmatpush1.msra.mxu0 0.0
  %1334 = vmatprep.subr.mxu0 0.0
  %1335 = vmatpush1.msra.mxu0 0.0
  %1336 = vmatprep.subr.mxu0 0.0
  %1337 = vmatpush1.msra.mxu0 0.0
  %1338 = vmatprep.subr.mxu0 0.0
  %1339 = vmatpush1.msra.mxu0 0.0
  %1340 = vmatprep.subr.mxu0 0.0
  %1341 = vmatpush1.msra.mxu0 0.0
  %1342 = vmatprep.subr.mxu0 0.0
  %1343 = vmatpush1.msra.mxu0 0.0
  %1344 = vmatprep.subr.mxu0 0.0
  %1345 = vmatpush1.msra.mxu0 0.0
  %1346 = vmatprep.subr.mxu0 0.0
  %1347 = vmatpush1.msra.mxu0 0.0
  %1348 = vmatprep.subr.mxu0 0.0
  %1349 = vmatpush1.msra.mxu0 0.0
  %1350 = vmatprep.subr.mxu0 0.0
  %1351 = vmatpush1.msra.mxu0 0.0
  %1352 = vmatprep.subr.mxu0 0.0
  %1353 = vmatpush1.msra.mxu0 0.0
  %1354 = vmatprep.subr.mxu0 0.0
  %1355 = vmatpush1.msra.mxu0 0.0
  %1356 = vmatprep.subr.mxu0 0.0
  %1357 = vmatpush1.msra.mxu0 0.0
  %1358 = vmatprep.subr.mxu0 0.0
  %1359 = vmatpush1.msra.mxu0 0.0
  %1360 = vmatprep.subr.mxu0 0.0
  %1361 = vmatpush1.msra.mxu0 0.0
  %1362 = vmatprep.subr.mxu0 0.0
  %1363 = vmatpush1.msra.mxu0 0.0
  %1364 = vmatprep.subr.mxu0 0.0
  %1365 = vmatpush1.msra.mxu0 0.0
  %1366 = vmatprep.subr.mxu0 0.0
  %1367 = vmatpush1.msra.mxu0 0.0
  %1368 = vmatprep.subr.mxu0 0.0
  %1369 = vmatpush1.msra.mxu0 0.0
  %1370 = vmatprep.subr.mxu0 0.0
  %1371 = vmatpush1.msra.mxu0 0.0
  %1372 = vmatprep.subr.mxu0 0.0
  %1373 = vmatpush1.msra.mxu0 0.0
  %1374 = vmatprep.subr.mxu0 0.0
  %1375 = vmatpush1.msra.mxu0 0.0
  %1376 = vmatprep.subr.mxu0 0.0
  %1377 = vmatpush1.msra.mxu0 0.0
  %1378 = vmatprep.subr.mxu0 0.0
  %1379 = vmatpush1.msra.mxu0 0.0
  %1380 = vmatprep.mubr.f32.mxu0 0.0
  %1381 = vmatmul.mubr.f32.gmra.mrb[0].mxu0 %v1314
  %v1382 = vpop.f32.mrb[0].mxu0
  %v1383 = vadd.f32 0.0, %v1382
  %v1384 = vpop.f32.mrb[0].mxu0
  %1385 = vdwg.mxu0
  %v1386 = vadd.f32 %v170, %v1383
  %v1387 = vxor.u32 %v1311, 2147483648
  %v1388 = vmul.f32 %v1387, 1.442695
  %v1389 = vpow.pop %v1388
  %v1390 = vadd.f32 %v1389, 1.0
  %v1391 = vrcp.pop %v1390
  %v1392 = vmul.f32 1.0, %v1391
  %v1393 = vtanh.pop %v1311
  %v1394 = vmul.f32 %v1392, %v1198
  %1396 = vrot.lane.b32.xlu0 %v1393, 64
  %v1397 = vpop.permute.xlu0 %1396
  %v1399 = vmul.f32 %v1392, %v1397
  %1401 = vrot.lane.b32.xlu0 %v1399, 32
  %v1402 = vpop.permute.xlu0 %1401
  %v1404 = vadd.f32 %v1394, %v1402
  %v1405 = vtanh.pop %v1404
  %1407 = vrot.lane.b32.xlu0 %v1405, 64
  %v1408 = vpop.permute.xlu0 %1407
  %v1410 = vmul.f32 %v1392, %v1408
  %v1411 = vxor.u32 %v1386, 2147483648
  %v1412 = vmul.f32 %v1411, 1.442695
  %v1413 = vpow.pop %v1412
  %v1414 = vadd.f32 %v1413, 1.0
  %v1415 = vrcp.pop %v1414
  %v1416 = vmul.f32 1.0, %v1415
  %v1417 = vtanh.pop %v1386
  %v1418 = vmul.f32 %v1416, %v1222
  %1420 = vrot.lane.b32.xlu0 %v1417, 64
  %v1421 = vpop.permute.xlu0 %1420
  %v1423 = vmul.f32 %v1416, %v1421
  %1425 = vrot.lane.b32.xlu0 %v1423, 32
  %v1426 = vpop.permute.xlu0 %1425
  %v1428 = vadd.f32 %v1418, %v1426
  %v1429 = vtanh.pop %v1428
  %1431 = vrot.lane.b32.xlu0 %v1429, 64
  %v1432 = vpop.permute.xlu0 %1431
  %v1434 = vmul.f32 %v1416, %v1432
  %1436 = vrot.lane.b32.xlu0 %v1410, 32
  %v1437 = vpop.permute.xlu0 %1436
  %1439 = vst.msk [vmem:[%s7 + $0x28] sm:$0xff] %vm210, %v1437
  %1441 = vrot.lane.b32.xlu0 %v1434, 64
  %v1442 = vpop.permute.xlu0 %1441
  %1444 = vst.msk [vmem:[%s7 + $0x10] sm:$0xff] %vm413, %v1442
  %v1445 = vsel %vm210, %v1437, 0
  %1447 = vmatprep.subr.mxu0 0.0
  %1448 = vmatpush1.msra.mxu0 %v202
  %1449 = vmatprep.subr.mxu0 0.0
  %1450 = vmatpush1.msra.mxu0 %v203
  %1451 = vmatprep.subr.mxu0 0.0
  %1452 = vmatpush1.msra.mxu0 %v204
  %1453 = vmatprep.subr.mxu0 0.0
  %1454 = vmatpush1.msra.mxu0 %v205
  %1455 = vmatprep.subr.mxu0 0.0
  %1456 = vmatpush1.msra.mxu0 0.0
  %1457 = vmatprep.subr.mxu0 0.0
  %1458 = vmatpush1.msra.mxu0 0.0
  %1459 = vmatprep.subr.mxu0 0.0
  %1460 = vmatpush1.msra.mxu0 0.0
  %1461 = vmatprep.subr.mxu0 0.0
  %1462 = vmatpush1.msra.mxu0 0.0
  %1463 = vmatprep.subr.mxu0 0.0
  %1464 = vmatpush1.msra.mxu0 0.0
  %1465 = vmatprep.subr.mxu0 0.0
  %1466 = vmatpush1.msra.mxu0 0.0
  %1467 = vmatprep.subr.mxu0 0.0
  %1468 = vmatpush1.msra.mxu0 0.0
  %1469 = vmatprep.subr.mxu0 0.0
  %1470 = vmatpush1.msra.mxu0 0.0
  %1471 = vmatprep.subr.mxu0 0.0
  %1472 = vmatpush1.msra.mxu0 0.0
  %1473 = vmatprep.subr.mxu0 0.0
  %1474 = vmatpush1.msra.mxu0 0.0
  %1475 = vmatprep.subr.mxu0 0.0
  %1476 = vmatpush1.msra.mxu0 0.0
  %1477 = vmatprep.subr.mxu0 0.0
  %1478 = vmatpush1.msra.mxu0 0.0
  %1479 = vmatprep.subr.mxu0 0.0
  %1480 = vmatpush1.msra.mxu0 0.0
  %1481 = vmatprep.subr.mxu0 0.0
  %1482 = vmatpush1.msra.mxu0 0.0
  %1483 = vmatprep.subr.mxu0 0.0
  %1484 = vmatpush1.msra.mxu0 0.0
  %1485 = vmatprep.subr.mxu0 0.0
  %1486 = vmatpush1.msra.mxu0 0.0
  %1487 = vmatprep.subr.mxu0 0.0
  %1488 = vmatpush1.msra.mxu0 0.0
  %1489 = vmatprep.subr.mxu0 0.0
  %1490 = vmatpush1.msra.mxu0 0.0
  %1491 = vmatprep.subr.mxu0 0.0
  %1492 = vmatpush1.msra.mxu0 0.0
  %1493 = vmatprep.subr.mxu0 0.0
  %1494 = vmatpush1.msra.mxu0 0.0
  %1495 = vmatprep.subr.mxu0 0.0
  %1496 = vmatpush1.msra.mxu0 0.0
  %1497 = vmatprep.subr.mxu0 0.0
  %1498 = vmatpush1.msra.mxu0 0.0
  %1499 = vmatprep.subr.mxu0 0.0
  %1500 = vmatpush1.msra.mxu0 0.0
  %1501 = vmatprep.subr.mxu0 0.0
  %1502 = vmatpush1.msra.mxu0 0.0
  %1503 = vmatprep.subr.mxu0 0.0
  %1504 = vmatpush1.msra.mxu0 0.0
  %1505 = vmatprep.subr.mxu0 0.0
  %1506 = vmatpush1.msra.mxu0 0.0
  %1507 = vmatprep.subr.mxu0 0.0
  %1508 = vmatpush1.msra.mxu0 0.0
  %1509 = vmatprep.subr.mxu0 0.0
  %1510 = vmatpush1.msra.mxu0 0.0
  %1511 = vmatprep.mubr.f32.mxu0 0.0
  %1512 = vmatmul.mubr.f32.gmra.mrb[0].mxu0 %v1445
  %v1513 = vpop.f32.mrb[0].mxu0
  %v1514 = vadd.f32 0.0, %v1513
  %v1515 = vpop.f32.mrb[0].mxu0
  %1516 = vdwg.mxu0
  %v1517 = vadd.f32 %v192, %v1514
  %1518 = vrot.lane.b32.xlu0 %v1434, 32
  %v1519 = vpop.permute.xlu0 %1518
  %v1520 = vsel %vm210, %v1519, 0
  %1522 = vmatprep.subr.mxu0 0.0
  %1523 = vmatpush1.msra.mxu0 %v206
  %1524 = vmatprep.subr.mxu0 0.0
  %1525 = vmatpush1.msra.mxu0 %v207
  %1526 = vmatprep.subr.mxu0 0.0
  %1527 = vmatpush1.msra.mxu0 %v208
  %1528 = vmatprep.subr.mxu0 0.0
  %1529 = vmatpush1.msra.mxu0 %v209
  %1530 = vmatprep.subr.mxu0 0.0
  %1531 = vmatpush1.msra.mxu0 0.0
  %1532 = vmatprep.subr.mxu0 0.0
  %1533 = vmatpush1.msra.mxu0 0.0
  %1534 = vmatprep.subr.mxu0 0.0
  %1535 = vmatpush1.msra.mxu0 0.0
  %1536 = vmatprep.subr.mxu0 0.0
  %1537 = vmatpush1.msra.mxu0 0.0
  %1538 = vmatprep.subr.mxu0 0.0
  %1539 = vmatpush1.msra.mxu0 0.0
  %1540 = vmatprep.subr.mxu0 0.0
  %1541 = vmatpush1.msra.mxu0 0.0
  %1542 = vmatprep.subr.mxu0 0.0
  %1543 = vmatpush1.msra.mxu0 0.0
  %1544 = vmatprep.subr.mxu0 0.0
  %1545 = vmatpush1.msra.mxu0 0.0
  %1546 = vmatprep.subr.mxu0 0.0
  %1547 = vmatpush1.msra.mxu0 0.0
  %1548 = vmatprep.subr.mxu0 0.0
  %1549 = vmatpush1.msra.mxu0 0.0
  %1550 = vmatprep.subr.mxu0 0.0
  %1551 = vmatpush1.msra.mxu0 0.0
  %1552 = vmatprep.subr.mxu0 0.0
  %1553 = vmatpush1.msra.mxu0 0.0
  %1554 = vmatprep.subr.mxu0 0.0
  %1555 = vmatpush1.msra.mxu0 0.0
  %1556 = vmatprep.subr.mxu0 0.0
  %1557 = vmatpush1.msra.mxu0 0.0
  %1558 = vmatprep.subr.mxu0 0.0
  %1559 = vmatpush1.msra.mxu0 0.0
  %1560 = vmatprep.subr.mxu0 0.0
  %1561 = vmatpush1.msra.mxu0 0.0
  %1562 = vmatprep.subr.mxu0 0.0
  %1563 = vmatpush1.msra.mxu0 0.0
  %1564 = vmatprep.subr.mxu0 0.0
  %1565 = vmatpush1.msra.mxu0 0.0
  %1566 = vmatprep.subr.mxu0 0.0
  %1567 = vmatpush1.msra.mxu0 0.0
  %1568 = vmatprep.subr.mxu0 0.0
  %1569 = vmatpush1.msra.mxu0 0.0
  %1570 = vmatprep.subr.mxu0 0.0
  %1571 = vmatpush1.msra.mxu0 0.0
  %1572 = vmatprep.subr.mxu0 0.0
  %1573 = vmatpush1.msra.mxu0 0.0
  %1574 = vmatprep.subr.mxu0 0.0
  %1575 = vmatpush1.msra.mxu0 0.0
  %1576 = vmatprep.subr.mxu0 0.0
  %1577 = vmatpush1.msra.mxu0 0.0
  %1578 = vmatprep.subr.mxu0 0.0
  %1579 = vmatpush1.msra.mxu0 0.0
  %1580 = vmatprep.subr.mxu0 0.0
  %1581 = vmatpush1.msra.mxu0 0.0
  %1582 = vmatprep.subr.mxu0 0.0
  %1583 = vmatpush1.msra.mxu0 0.0
  %1584 = vmatprep.subr.mxu0 0.0
  %1585 = vmatpush1.msra.mxu0 0.0
  %1586 = vmatprep.mubr.f32.mxu0 0.0
  %1587 = vmatmul.mubr.f32.gmra.mrb[0].mxu0 %v1520
  %v1588 = vpop.f32.mrb[0].mxu0
  %v1589 = vadd.f32 0.0, %v1588
  %v1590 = vpop.f32.mrb[0].mxu0
  %1591 = vdwg.mxu0
  %v1592 = vadd.f32 %v164, %v1589
  %v1593 = vxor.u32 %v1517, 2147483648
  %v1594 = vmul.f32 %v1593, 1.442695
  %v1595 = vpow.pop %v1594
  %v1596 = vadd.f32 %v1595, 1.0
  %v1597 = vrcp.pop %v1596
  %v1598 = vmul.f32 1.0, %v1597
  %v1599 = vtanh.pop %v1517
  %v1600 = vmul.f32 %v1598, %v1404
  %1602 = vrot.lane.b32.xlu0 %v1599, 64
  %v1603 = vpop.permute.xlu0 %1602
  %v1605 = vmul.f32 %v1598, %v1603
  %1607 = vrot.lane.b32.xlu0 %v1605, 32
  %v1608 = vpop.permute.xlu0 %1607
  %v1610 = vadd.f32 %v1600, %v1608
  %v1611 = vtanh.pop %v1610
  %1613 = vrot.lane.b32.xlu0 %v1611, 64
  %v1614 = vpop.permute.xlu0 %1613
  %v1616 = vmul.f32 %v1598, %v1614
  %v1617 = vxor.u32 %v1592, 2147483648
  %v1618 = vmul.f32 %v1617, 1.442695
  %v1619 = vpow.pop %v1618
  %v1620 = vadd.f32 %v1619, 1.0
  %v1621 = vrcp.pop %v1620
  %v1622 = vmul.f32 1.0, %v1621
  %v1623 = vtanh.pop %v1592
  %v1624 = vmul.f32 %v1622, %v1428
  %1626 = vrot.lane.b32.xlu0 %v1623, 64
  %v1627 = vpop.permute.xlu0 %1626
  %v1629 = vmul.f32 %v1622, %v1627
  %1631 = vrot.lane.b32.xlu0 %v1629, 32
  %v1632 = vpop.permute.xlu0 %1631
  %v1634 = vadd.f32 %v1624, %v1632
  %v1635 = vtanh.pop %v1634
  %1637 = vrot.lane.b32.xlu0 %v1635, 64
  %v1638 = vpop.permute.xlu0 %1637
  %v1640 = vmul.f32 %v1622, %v1638
  %1642 = vrot.lane.b32.xlu0 %v1616, 32
  %v1643 = vpop.permute.xlu0 %1642
  %1645 = vst.msk [vmem:[%s7 + $0x30] sm:$0xff] %vm210, %v1643
  %1647 = vrot.lane.b32.xlu0 %v1640, 64
  %v1648 = vpop.permute.xlu0 %1647
  %1650 = vst.msk [vmem:[%s7 + $0x8] sm:$0xff] %vm413, %v1648
  %v1651 = vsel %vm210, %v1643, 0
  %1653 = vmatprep.subr.mxu0 0.0
  %1654 = vmatpush1.msra.mxu0 %v202
  %1655 = vmatprep.subr.mxu0 0.0
  %1656 = vmatpush1.msra.mxu0 %v203
  %1657 = vmatprep.subr.mxu0 0.0
  %1658 = vmatpush1.msra.mxu0 %v204
  %1659 = vmatprep.subr.mxu0 0.0
  %1660 = vmatpush1.msra.mxu0 %v205
  %1661 = vmatprep.subr.mxu0 0.0
  %1662 = vmatpush1.msra.mxu0 0.0
  %1663 = vmatprep.subr.mxu0 0.0
  %1664 = vmatpush1.msra.mxu0 0.0
  %1665 = vmatprep.subr.mxu0 0.0
  %1666 = vmatpush1.msra.mxu0 0.0
  %1667 = vmatprep.subr.mxu0 0.0
  %1668 = vmatpush1.msra.mxu0 0.0
  %1669 = vmatprep.subr.mxu0 0.0
  %1670 = vmatpush1.msra.mxu0 0.0
  %1671 = vmatprep.subr.mxu0 0.0
  %1672 = vmatpush1.msra.mxu0 0.0
  %1673 = vmatprep.subr.mxu0 0.0
  %1674 = vmatpush1.msra.mxu0 0.0
  %1675 = vmatprep.subr.mxu0 0.0
  %1676 = vmatpush1.msra.mxu0 0.0
  %1677 = vmatprep.subr.mxu0 0.0
  %1678 = vmatpush1.msra.mxu0 0.0
  %1679 = vmatprep.subr.mxu0 0.0
  %1680 = vmatpush1.msra.mxu0 0.0
  %1681 = vmatprep.subr.mxu0 0.0
  %1682 = vmatpush1.msra.mxu0 0.0
  %1683 = vmatprep.subr.mxu0 0.0
  %1684 = vmatpush1.msra.mxu0 0.0
  %1685 = vmatprep.subr.mxu0 0.0
  %1686 = vmatpush1.msra.mxu0 0.0
  %1687 = vmatprep.subr.mxu0 0.0
  %1688 = vmatpush1.msra.mxu0 0.0
  %1689 = vmatprep.subr.mxu0 0.0
  %1690 = vmatpush1.msra.mxu0 0.0
  %1691 = vmatprep.subr.mxu0 0.0
  %1692 = vmatpush1.msra.mxu0 0.0
  %1693 = vmatprep.subr.mxu0 0.0
  %1694 = vmatpush1.msra.mxu0 0.0
  %1695 = vmatprep.subr.mxu0 0.0
  %1696 = vmatpush1.msra.mxu0 0.0
  %1697 = vmatprep.subr.mxu0 0.0
  %1698 = vmatpush1.msra.mxu0 0.0
  %1699 = vmatprep.subr.mxu0 0.0
  %1700 = vmatpush1.msra.mxu0 0.0
  %1701 = vmatprep.subr.mxu0 0.0
  %1702 = vmatpush1.msra.mxu0 0.0
  %1703 = vmatprep.subr.mxu0 0.0
  %1704 = vmatpush1.msra.mxu0 0.0
  %1705 = vmatprep.subr.mxu0 0.0
  %1706 = vmatpush1.msra.mxu0 0.0
  %1707 = vmatprep.subr.mxu0 0.0
  %1708 = vmatpush1.msra.mxu0 0.0
  %1709 = vmatprep.subr.mxu0 0.0
  %1710 = vmatpush1.msra.mxu0 0.0
  %1711 = vmatprep.subr.mxu0 0.0
  %1712 = vmatpush1.msra.mxu0 0.0
  %1713 = vmatprep.subr.mxu0 0.0
  %1714 = vmatpush1.msra.mxu0 0.0
  %1715 = vmatprep.subr.mxu0 0.0
  %1716 = vmatpush1.msra.mxu0 0.0
  %1717 = vmatprep.mubr.f32.mxu0 0.0
  %1718 = vmatmul.mubr.f32.gmra.mrb[0].mxu0 %v1651
  %v1719 = vpop.f32.mrb[0].mxu0
  %v1720 = vadd.f32 0.0, %v1719
  %v1721 = vpop.f32.mrb[0].mxu0
  %1722 = vdwg.mxu0
  %v1723 = vadd.f32 %v198, %v1720
  %1724 = vrot.lane.b32.xlu0 %v1640, 32
  %v1725 = vpop.permute.xlu0 %1724
  %v1726 = vsel %vm210, %v1725, 0
  %1728 = vmatprep.subr.mxu0 0.0
  %1729 = vmatpush1.msra.mxu0 %v206
  %1730 = vmatprep.subr.mxu0 0.0
  %1731 = vmatpush1.msra.mxu0 %v207
  %1732 = vmatprep.subr.mxu0 0.0
  %1733 = vmatpush1.msra.mxu0 %v208
  %1734 = vmatprep.subr.mxu0 0.0
  %1735 = vmatpush1.msra.mxu0 %v209
  %1736 = vmatprep.subr.mxu0 0.0
  %1737 = vmatpush1.msra.mxu0 0.0
  %1738 = vmatprep.subr.mxu0 0.0
  %1739 = vmatpush1.msra.mxu0 0.0
  %1740 = vmatprep.subr.mxu0 0.0
  %1741 = vmatpush1.msra.mxu0 0.0
  %1742 = vmatprep.subr.mxu0 0.0
  %1743 = vmatpush1.msra.mxu0 0.0
  %1744 = vmatprep.subr.mxu0 0.0
  %1745 = vmatpush1.msra.mxu0 0.0
  %1746 = vmatprep.subr.mxu0 0.0
  %1747 = vmatpush1.msra.mxu0 0.0
  %1748 = vmatprep.subr.mxu0 0.0
  %1749 = vmatpush1.msra.mxu0 0.0
  %1750 = vmatprep.subr.mxu0 0.0
  %1751 = vmatpush1.msra.mxu0 0.0
  %1752 = vmatprep.subr.mxu0 0.0
  %1753 = vmatpush1.msra.mxu0 0.0
  %1754 = vmatprep.subr.mxu0 0.0
  %1755 = vmatpush1.msra.mxu0 0.0
  %1756 = vmatprep.subr.mxu0 0.0
  %1757 = vmatpush1.msra.mxu0 0.0
  %1758 = vmatprep.subr.mxu0 0.0
  %1759 = vmatpush1.msra.mxu0 0.0
  %1760 = vmatprep.subr.mxu0 0.0
  %1761 = vmatpush1.msra.mxu0 0.0
  %1762 = vmatprep.subr.mxu0 0.0
  %1763 = vmatpush1.msra.mxu0 0.0
  %1764 = vmatprep.subr.mxu0 0.0
  %1765 = vmatpush1.msra.mxu0 0.0
  %1766 = vmatprep.subr.mxu0 0.0
  %1767 = vmatpush1.msra.mxu0 0.0
  %1768 = vmatprep.subr.mxu0 0.0
  %1769 = vmatpush1.msra.mxu0 0.0
  %1770 = vmatprep.subr.mxu0 0.0
  %1771 = vmatpush1.msra.mxu0 0.0
  %1772 = vmatprep.subr.mxu0 0.0
  %1773 = vmatpush1.msra.mxu0 0.0
  %1774 = vmatprep.subr.mxu0 0.0
  %1775 = vmatpush1.msra.mxu0 0.0
  %1776 = vmatprep.subr.mxu0 0.0
  %1777 = vmatpush1.msra.mxu0 0.0
  %1778 = vmatprep.subr.mxu0 0.0
  %1779 = vmatpush1.msra.mxu0 0.0
  %1780 = vmatprep.subr.mxu0 0.0
  %1781 = vmatpush1.msra.mxu0 0.0
  %1782 = vmatprep.subr.mxu0 0.0
  %1783 = vmatpush1.msra.mxu0 0.0
  %1784 = vmatprep.subr.mxu0 0.0
  %1785 = vmatpush1.msra.mxu0 0.0
  %1786 = vmatprep.subr.mxu0 0.0
  %1787 = vmatpush1.msra.mxu0 0.0
  %1788 = vmatprep.subr.mxu0 0.0
  %1789 = vmatpush1.msra.mxu0 0.0
  %1790 = vmatprep.subr.mxu0 0.0
  %1791 = vmatpush1.msra.mxu0 0.0
  %1792 = vmatprep.mubr.f32.mxu0 0.0
  %1793 = vmatmul.mubr.f32.gmra.mrb[0].mxu0 %v1726
  %v1794 = vpop.f32.mrb[0].mxu0
  %v1795 = vadd.f32 0.0, %v1794
  %v1796 = vpop.f32.mrb[0].mxu0
  %1797 = vdwg.mxu0
  %v1798 = vadd.f32 %v158, %v1795
  %v1799 = vxor.u32 %v1723, 2147483648
  %v1800 = vmul.f32 %v1799, 1.442695
  %v1801 = vpow.pop %v1800
  %v1802 = vadd.f32 %v1801, 1.0
  %v1803 = vrcp.pop %v1802
  %v1804 = vmul.f32 1.0, %v1803
  %v1805 = vtanh.pop %v1723
  %v1806 = vmul.f32 %v1804, %v1610
  %1808 = vrot.lane.b32.xlu0 %v1805, 64
  %v1809 = vpop.permute.xlu0 %1808
  %v1811 = vmul.f32 %v1804, %v1809
  %1813 = vrot.lane.b32.xlu0 %v1811, 32
  %v1814 = vpop.permute.xlu0 %1813
  %v1816 = vadd.f32 %v1806, %v1814
  %v1817 = vtanh.pop %v1816
  %1819 = vrot.lane.b32.xlu0 %v1817, 64
  %v1820 = vpop.permute.xlu0 %1819
  %v1822 = vmul.f32 %v1804, %v1820
  %v1823 = vxor.u32 %v1798, 2147483648
  %v1824 = vmul.f32 %v1823, 1.442695
  %v1825 = vpow.pop %v1824
  %v1826 = vadd.f32 %v1825, 1.0
  %v1827 = vrcp.pop %v1826
  %v1828 = vmul.f32 1.0, %v1827
  %v1829 = vtanh.pop %v1798
  %v1830 = vmul.f32 %v1828, %v1634
  %1832 = vrot.lane.b32.xlu0 %v1829, 64
  %v1833 = vpop.permute.xlu0 %1832
  %v1835 = vmul.f32 %v1828, %v1833
  %1837 = vrot.lane.b32.xlu0 %v1835, 32
  %v1838 = vpop.permute.xlu0 %1837
  %v1840 = vadd.f32 %v1830, %v1838
  %v1841 = vtanh.pop %v1840
  %1843 = vrot.lane.b32.xlu0 %v1841, 64
  %v1844 = vpop.permute.xlu0 %1843
  %v1846 = vmul.f32 %v1828, %v1844
  %1848 = vrot.lane.b32.xlu0 %v1822, 32
  %v1849 = vpop.permute.xlu0 %1848
  %1851 = vst.msk [vmem:[%s7 + $0x38] sm:$0xff] %vm210, %v1849
  %1853 = vrot.lane.b32.xlu0 %v1846, 64
  %v1854 = vpop.permute.xlu0 %1853
  %1856 = vst.msk [vmem:[%s7] sm:$0xff] %vm413, %v1854
  %v1857 = vld [vmem:[%s7] sm:$0xff]
  %v1858 = vld [vmem:[%s7 + $0x8] sm:$0xff]
  %v1859 = vld [vmem:[%s7 + $0x10] sm:$0xff]
  %v1860 = vld [vmem:[%s7 + $0x18] sm:$0xff]
  %v1861 = vld [vmem:[%s7 + $0x20] sm:$0xff]
  %v1862 = vld [vmem:[%s7 + $0x28] sm:$0xff]
  %v1863 = vld [vmem:[%s7 + $0x30] sm:$0xff]
  %v1864 = vld [vmem:[%s7 + $0x38] sm:$0xff]
  %v1865 = vld [vmem:[%s5] sm:$0xff]
  %v1866 = vld [vmem:[%s5 + $0x8] sm:$0xff]
  %v1867 = vld [vmem:[%s5 + $0x10] sm:$0xff]
  %v1868 = vld [vmem:[%s5 + $0x18] sm:$0xff]
  %v1869 = vld [vmem:[%s5 + $0x20] sm:$0xff]
  %v1870 = vld [vmem:[%s5 + $0x28] sm:$0xff]
  %v1871 = vld [vmem:[%s5 + $0x30] sm:$0xff]
  %v1872 = vld [vmem:[%s5 + $0x38] sm:$0xff]
  %v1873 = vld [vmem:[%s6] sm:$0x1]
  %v1875 = vlaneseq
  %v1876 = vshrl.u32 %v1875, 7
  %v1877 = vsub.s32 0, %v1876
  %v1878 = vrot.slane %v1873, %v1877
  %v1881 = vsel %vm64, %v1857, 0
  %v1884 = vsel %vm64, %v1858, 0
  %v1887 = vsel %vm64, %v1859, 0
  %v1890 = vsel %vm64, %v1860, 0
  %v1893 = vsel %vm64, %v1861, 0
  %v1896 = vsel %vm64, %v1862, 0
  %v1899 = vsel %vm64, %v1863, 0
  %v1902 = vsel %vm64, %v1864, 0
  %1904 = vmatprep.subr.mxu0 0.0
  %1905 = vmatpush1.msra.mxu0 %v1865
  %1906 = vmatprep.subr.mxu0 0.0
  %1907 = vmatpush1.msra.mxu0 %v1866
  %1908 = vmatprep.subr.mxu0 0.0
  %1909 = vmatpush1.msra.mxu0 %v1867
  %1910 = vmatprep.subr.mxu0 0.0
  %1911 = vmatpush1.msra.mxu0 %v1868
  %1912 = vmatprep.subr.mxu0 0.0
  %1913 = vmatpush1.msra.mxu0 %v1869
  %1914 = vmatprep.subr.mxu0 0.0
  %1915 = vmatpush1.msra.mxu0 %v1870
  %1916 = vmatprep.subr.mxu0 0.0
  %1917 = vmatpush1.msra.mxu0 %v1871
  %1918 = vmatprep.subr.mxu0 0.0
  %1919 = vmatpush1.msra.mxu0 %v1872
  %1920 = vmatprep.subr.mxu0 0.0
  %1921 = vmatpush1.msra.mxu0 0.0
  %1922 = vmatprep.subr.mxu0 0.0
  %1923 = vmatpush1.msra.mxu0 0.0
  %1924 = vmatprep.subr.mxu0 0.0
  %1925 = vmatpush1.msra.mxu0 0.0
  %1926 = vmatprep.subr.mxu0 0.0
  %1927 = vmatpush1.msra.mxu0 0.0
  %1928 = vmatprep.subr.mxu0 0.0
  %1929 = vmatpush1.msra.mxu0 0.0
  %1930 = vmatprep.subr.mxu0 0.0
  %1931 = vmatpush1.msra.mxu0 0.0
  %1932 = vmatprep.subr.mxu0 0.0
  %1933 = vmatpush1.msra.mxu0 0.0
  %1934 = vmatprep.subr.mxu0 0.0
  %1935 = vmatpush1.msra.mxu0 0.0
  %1936 = vmatprep.subr.mxu0 0.0
  %1937 = vmatpush1.msra.mxu0 0.0
  %1938 = vmatprep.subr.mxu0 0.0
  %1939 = vmatpush1.msra.mxu0 0.0
  %1940 = vmatprep.subr.mxu0 0.0
  %1941 = vmatpush1.msra.mxu0 0.0
  %1942 = vmatprep.subr.mxu0 0.0
  %1943 = vmatpush1.msra.mxu0 0.0
  %1944 = vmatprep.subr.mxu0 0.0
  %1945 = vmatpush1.msra.mxu0 0.0
  %1946 = vmatprep.subr.mxu0 0.0
  %1947 = vmatpush1.msra.mxu0 0.0
  %1948 = vmatprep.subr.mxu0 0.0
  %1949 = vmatpush1.msra.mxu0 0.0
  %1950 = vmatprep.subr.mxu0 0.0
  %1951 = vmatpush1.msra.mxu0 0.0
  %1952 = vmatprep.subr.mxu0 0.0
  %1953 = vmatpush1.msra.mxu0 0.0
  %1954 = vmatprep.subr.mxu0 0.0
  %1955 = vmatpush1.msra.mxu0 0.0
  %1956 = vmatprep.subr.mxu0 0.0
  %1957 = vmatpush1.msra.mxu0 0.0
  %1958 = vmatprep.subr.mxu0 0.0
  %1959 = vmatpush1.msra.mxu0 0.0
  %1960 = vmatprep.subr.mxu0 0.0
  %1961 = vmatpush1.msra.mxu0 0.0
  %1962 = vmatprep.subr.mxu0 0.0
  %1963 = vmatpush1.msra.mxu0 0.0
  %1964 = vmatprep.subr.mxu0 0.0
  %1965 = vmatpush1.msra.mxu0 0.0
  %1966 = vmatprep.subr.mxu0 0.0
  %1967 = vmatpush1.msra.mxu0 0.0
  %1968 = vmatprep.mubr.f32.mxu0 0.0
  %1969 = vmatmul.mubr.f32.gmra.mrb[0].mxu0 %v1881
  %v1970 = vpop.f32.mrb[0].mxu0
  %v1971 = vadd.f32 %v1878, %v1970
  %v1972 = vpop.f32.mrb[0].mxu0
  %1973 = vmatprep.mubr.f32.mxu0 0.0
  %1974 = vmatmul.mubr.f32.gmra.mrb[0].mxu0 %v1884
  %v1975 = vpop.f32.mrb[0].mxu0
  %v1976 = vadd.f32 %v1878, %v1975
  %v1977 = vpop.f32.mrb[0].mxu0
  %1978 = vmatprep.mubr.f32.mxu0 0.0
  %1979 = vmatmul.mubr.f32.gmra.mrb[0].mxu0 %v1887
  %v1980 = vpop.f32.mrb[0].mxu0
  %v1981 = vadd.f32 %v1878, %v1980
  %v1982 = vpop.f32.mrb[0].mxu0
  %1983 = vmatprep.mubr.f32.mxu0 0.0
  %1984 = vmatmul.mubr.f32.gmra.mrb[0].mxu0 %v1890
  %v1985 = vpop.f32.mrb[0].mxu0
  %v1986 = vadd.f32 %v1878, %v1985
  %v1987 = vpop.f32.mrb[0].mxu0
  %1988 = vmatprep.mubr.f32.mxu0 0.0
  %1989 = vmatmul.mubr.f32.gmra.mrb[0].mxu0 %v1893
  %v1990 = vpop.f32.mrb[0].mxu0
  %v1991 = vadd.f32 %v1878, %v1990
  %v1992 = vpop.f32.mrb[0].mxu0
  %1993 = vmatprep.mubr.f32.mxu0 0.0
  %1994 = vmatmul.mubr.f32.gmra.mrb[0].mxu0 %v1896
  %v1995 = vpop.f32.mrb[0].mxu0
  %v1996 = vadd.f32 %v1878, %v1995
  %v1997 = vpop.f32.mrb[0].mxu0
  %1998 = vmatprep.mubr.f32.mxu0 0.0
  %1999 = vmatmul.mubr.f32.gmra.mrb[0].mxu0 %v1899
  %v2000 = vpop.f32.mrb[0].mxu0
  %v2001 = vadd.f32 %v1878, %v2000
  %v2002 = vpop.f32.mrb[0].mxu0
  %2003 = vmatprep.mubr.f32.mxu0 0.0
  %2004 = vmatmul.mubr.f32.gmra.mrb[0].mxu0 %v1902
  %v2005 = vpop.f32.mrb[0].mxu0
  %v2006 = vadd.f32 %v1878, %v2005
  %v2007 = vpop.f32.mrb[0].mxu0
  %2008 = vdwg.mxu0
  %v2009 = vxor.u32 %v1971, 2147483648
  %v2010 = vxor.u32 %v1976, 2147483648
  %v2011 = vxor.u32 %v1981, 2147483648
  %v2012 = vxor.u32 %v1986, 2147483648
  %v2013 = vxor.u32 %v1991, 2147483648
  %v2014 = vxor.u32 %v1996, 2147483648
  %v2015 = vxor.u32 %v2001, 2147483648
  %v2016 = vxor.u32 %v2006, 2147483648
  %v2017 = vmul.f32 %v2009, 1.442695
  %v2018 = vpow.pop %v2017
  %v2019 = vmul.f32 %v2010, 1.442695
  %v2020 = vpow.pop %v2019
  %v2021 = vmul.f32 %v2011, 1.442695
  %v2022 = vpow.pop %v2021
  %v2023 = vmul.f32 %v2012, 1.442695
  %v2024 = vpow.pop %v2023
  %v2025 = vmul.f32 %v2013, 1.442695
  %v2026 = vpow.pop %v2025
  %v2027 = vmul.f32 %v2014, 1.442695
  %v2028 = vpow.pop %v2027
  %v2029 = vmul.f32 %v2015, 1.442695
  %v2030 = vpow.pop %v2029
  %v2031 = vmul.f32 %v2016, 1.442695
  %v2032 = vpow.pop %v2031
  %v2033 = vadd.f32 %v2018, 1.0
  %v2034 = vadd.f32 %v2020, 1.0
  %v2035 = vadd.f32 %v2022, 1.0
  %v2036 = vadd.f32 %v2024, 1.0
  %v2037 = vadd.f32 %v2026, 1.0
  %v2038 = vadd.f32 %v2028, 1.0
  %v2039 = vadd.f32 %v2030, 1.0
  %v2040 = vadd.f32 %v2032, 1.0
  %v2041 = vrcp.pop %v2033
  %v2042 = vmul.f32 1.0, %v2041
  %v2043 = vrcp.pop %v2034
  %v2044 = vmul.f32 1.0, %v2043
  %v2045 = vrcp.pop %v2035
  %v2046 = vmul.f32 1.0, %v2045
  %v2047 = vrcp.pop %v2036
  %v2048 = vmul.f32 1.0, %v2047
  %v2049 = vrcp.pop %v2037
  %v2050 = vmul.f32 1.0, %v2049
  %v2051 = vrcp.pop %v2038
  %v2052 = vmul.f32 1.0, %v2051
  %v2053 = vrcp.pop %v2039
  %v2054 = vmul.f32 1.0, %v2053
  %v2055 = vrcp.pop %v2040
  %v2056 = vmul.f32 1.0, %v2055
  %vm2057 = vcmask 15360
  %2058 = vst.msk [vmem:[%s8] sm:$0xff] %vm2057, %v2042
  %2059 = vst.msk [vmem:[%s8 + $0x8] sm:$0xff] %vm2057, %v2044
  %2060 = vst.msk [vmem:[%s8 + $0x10] sm:$0xff] %vm2057, %v2046
  %2061 = vst.msk [vmem:[%s8 + $0x18] sm:$0xff] %vm2057, %v2048
  %2062 = vst.msk [vmem:[%s8 + $0x20] sm:$0xff] %vm2057, %v2050
  %2063 = vst.msk [vmem:[%s8 + $0x28] sm:$0xff] %vm2057, %v2052
  %2064 = vst.msk [vmem:[%s8 + $0x30] sm:$0xff] %vm2057, %v2054
  %2065 = vst.msk [vmem:[%s8 + $0x38] sm:$0xff] %vm2057, %v2056
  // Predicated region
  $region30: #{hedln_forward_pallas.5} parent=0 // pred_check
    _
  $region31: #{hedln_forward_pallas.5} parent=0 // pred_check_branch
    %2067 = sbr.rel (0) target = $region33
  $region32: #{hedln_forward_pallas.5} parent=0 // pred_region
    _
  $region33: #{hedln_forward_pallas.5} parent=0 // pred_fallthru
    _
  // Predicated region
  $region34: #{hedln_forward_pallas.5} parent=0 // pred_check
    _
  $region35: #{hedln_forward_pallas.5} parent=0 // pred_check_branch
    %2069 = sbr.rel (0) target = $region37
  $region36: #{hedln_forward_pallas.5} parent=0 // pred_region
    _
  $region37: #{hedln_forward_pallas.5} parent=0 // pred_fallthru
    _
  // Predicated region
  $region38: #{hedln_forward_pallas.5} parent=0 // pred_check
    _
  $region39: #{hedln_forward_pallas.5} parent=0 // pred_check_branch
    %2071 = sbr.rel (0) target = $region41
  $region40: #{hedln_forward_pallas.5} parent=0 // pred_region
    _
  $region41: #{hedln_forward_pallas.5} parent=0 // pred_fallthru
    _
  // Predicated region
  $region42: #{hedln_forward_pallas.5} parent=0 // pred_check
    _
  $region43: #{hedln_forward_pallas.5} parent=0 // pred_check_branch
    %2073 = sbr.rel (0) target = $region45
  $region44: #{hedln_forward_pallas.5} parent=0 // pred_region
    _
  $region45: #{hedln_forward_pallas.5} parent=0 // pred_fallthru
    _

// kernel: hedln_forward_pallas.6
$region0: #{hedln_forward_pallas.6}
  #allocation0 [shape = 'u32[]', space=smem, size = 0x4, offset = 0x4, fixed_abs, tag = 'smem constant byte address 0x4 - core index']
  #allocation1 [shape = 'u32[144,128]{1,0:T(1,128)}', space=vmem, size = 0x12000, scoped, tag = 'internal scratch']
  %s0 = inlined_call_operand.vmem [shape: f32[64,8], index: 0, kind: input, shape index: {}]
  %s1 = inlined_call_operand.vmem [shape: f32[64,64], index: 1, kind: input, shape index: {}]
  %s2 = inlined_call_operand.vmem [shape: f32[8,256], index: 2, kind: input, shape index: {}]
  %s3 = inlined_call_operand.vmem [shape: f32[64,256], index: 3, kind: input, shape index: {}]
  %s4 = inlined_call_operand.vmem [shape: f32[32,128], index: 4, kind: input, shape index: {}]
  %s5 = inlined_call_operand.vmem [shape: f32[32,128], index: 5, kind: input, shape index: {}]
  %s6 = inlined_call_operand.vmem [shape: f32[1,256], index: 6, kind: input, shape index: {}]
  %s7 = inlined_call_operand.vmem [shape: f32[64,64], index: 7, kind: output, shape index: {}]
  %s8 = sld [smem:[#allocation0]]
  $region38: #{hedln_forward_pallas.6} parent=0
    _
  %s10 = ssub.s32 1, %s8
  %s11 = scalar_select 0, %s10, %s8
  // Predicated region
  $region2: #{hedln_forward_pallas.6} parent=0 // pred_check
    _
  $region3: #{hedln_forward_pallas.6} parent=0 // pred_check_branch
    %13 = sbr.rel (0) target = $region5
  $region4: #{hedln_forward_pallas.6} parent=0 // pred_region
    _
  $region5: #{hedln_forward_pallas.6} parent=0 // pred_fallthru
    _
  // Predicated region
  $region6: #{hedln_forward_pallas.6} parent=0 // pred_check
    _
  $region7: #{hedln_forward_pallas.6} parent=0 // pred_check_branch
    %15 = sbr.rel (0) target = $region9
  $region8: #{hedln_forward_pallas.6} parent=0 // pred_region
    _
  $region9: #{hedln_forward_pallas.6} parent=0 // pred_fallthru
    _
  // Predicated region
  $region10: #{hedln_forward_pallas.6} parent=0 // pred_check
    _
  $region11: #{hedln_forward_pallas.6} parent=0 // pred_check_branch
    %17 = sbr.rel (0) target = $region13
  $region12: #{hedln_forward_pallas.6} parent=0 // pred_region
    _
  $region13: #{hedln_forward_pallas.6} parent=0 // pred_fallthru
    _
  // Predicated region
  $region14: #{hedln_forward_pallas.6} parent=0 // pred_check
    _
  $region15: #{hedln_forward_pallas.6} parent=0 // pred_check_branch
    %19 = sbr.rel (0) target = $region17
  $region16: #{hedln_forward_pallas.6} parent=0 // pred_region
    _
  $region17: #{hedln_forward_pallas.6} parent=0 // pred_fallthru
    _
  // Predicated region
  $region18: #{hedln_forward_pallas.6} parent=0 // pred_check
    _
  $region19: #{hedln_forward_pallas.6} parent=0 // pred_check_branch
    %21 = sbr.rel (0) target = $region21
  $region20: #{hedln_forward_pallas.6} parent=0 // pred_region
    _
  $region21: #{hedln_forward_pallas.6} parent=0 // pred_fallthru
    _
  // Predicated region
  $region22: #{hedln_forward_pallas.6} parent=0 // pred_check
    _
  $region23: #{hedln_forward_pallas.6} parent=0 // pred_check_branch
    %23 = sbr.rel (0) target = $region25
  $region24: #{hedln_forward_pallas.6} parent=0 // pred_region
    _
  $region25: #{hedln_forward_pallas.6} parent=0 // pred_fallthru
    _
  // Predicated region
  $region26: #{hedln_forward_pallas.6} parent=0 // pred_check
    _
  $region27: #{hedln_forward_pallas.6} parent=0 // pred_check_branch
    %25 = sbr.rel (0) target = $region29
  $region28: #{hedln_forward_pallas.6} parent=0 // pred_region
    _
  $region29: #{hedln_forward_pallas.6} parent=0 // pred_fallthru
    _
  %v26 = vld [vmem:[%s0] sm:$0xff]
  %v27 = vld [vmem:[%s0 + $0x8] sm:$0xff]
  %v28 = vld [vmem:[%s0 + $0x10] sm:$0xff]
  %v29 = vld [vmem:[%s0 + $0x18] sm:$0xff]
  %v30 = vld [vmem:[%s0 + $0x20] sm:$0xff]
  %v31 = vld [vmem:[%s0 + $0x28] sm:$0xff]
  %v32 = vld [vmem:[%s0 + $0x30] sm:$0xff]
  %v33 = vld [vmem:[%s0 + $0x38] sm:$0xff]
  %v34 = vld [vmem:[%s2] sm:$0xff]
  %v35 = vld [vmem:[%s2 + $0x8] sm:$0xff]
  %v36 = vld [vmem:[%s1] sm:$0xff]
  %v37 = vld [vmem:[%s1 + $0x8] sm:$0xff]
  %v38 = vld [vmem:[%s1 + $0x10] sm:$0xff]
  %v39 = vld [vmem:[%s1 + $0x18] sm:$0xff]
  %v40 = vld [vmem:[%s1 + $0x20] sm:$0xff]
  %v41 = vld [vmem:[%s1 + $0x28] sm:$0xff]
  %v42 = vld [vmem:[%s1 + $0x30] sm:$0xff]
  %v43 = vld [vmem:[%s1 + $0x38] sm:$0xff]
  %v44 = vld [vmem:[%s3] sm:$0xff]
  %v45 = vld [vmem:[%s3 + $0x8] sm:$0xff]
  %v46 = vld [vmem:[%s3 + $0x10] sm:$0xff]
  %v47 = vld [vmem:[%s3 + $0x18] sm:$0xff]
  %v48 = vld [vmem:[%s3 + $0x20] sm:$0xff]
  %v49 = vld [vmem:[%s3 + $0x28] sm:$0xff]
  %v50 = vld [vmem:[%s3 + $0x30] sm:$0xff]
  %v51 = vld [vmem:[%s3 + $0x38] sm:$0xff]
  %v52 = vld [vmem:[%s3 + $0x40] sm:$0xff]
  %v53 = vld [vmem:[%s3 + $0x48] sm:$0xff]
  %v54 = vld [vmem:[%s3 + $0x50] sm:$0xff]
  %v55 = vld [vmem:[%s3 + $0x58] sm:$0xff]
  %v56 = vld [vmem:[%s3 + $0x60] sm:$0xff]
  %v57 = vld [vmem:[%s3 + $0x68] sm:$0xff]
  %v58 = vld [vmem:[%s3 + $0x70] sm:$0xff]
  %v59 = vld [vmem:[%s3 + $0x78] sm:$0xff]
  %vm60 = vcmask 523264
  %v62 = vsel %vm60, %v36, 0
  %v65 = vsel %vm60, %v37, 0
  %v68 = vsel %vm60, %v38, 0
  %v71 = vsel %vm60, %v39, 0
  %v74 = vsel %vm60, %v40, 0
  %v77 = vsel %vm60, %v41, 0
  %v80 = vsel %vm60, %v42, 0
  %v83 = vsel %vm60, %v43, 0
  %85 = vmatprep.subr.mxu0 %v45
  %86 = vmatpush1.msra.mxu0 %v44
  %87 = vmatprep.subr.mxu0 %v47
  %88 = vmatpush1.msra.mxu0 %v46
  %89 = vmatprep.subr.mxu0 %v49
  %90 = vmatpush1.msra.mxu0 %v48
  %91 = vmatprep.subr.mxu0 %v51
  %92 = vmatpush1.msra.mxu0 %v50
  %93 = vmatprep.subr.mxu0 %v53
  %94 = vmatpush1.msra.mxu0 %v52
  %95 = vmatprep.subr.mxu0 %v55
  %96 = vmatpush1.msra.mxu0 %v54
  %97 = vmatprep.subr.mxu0 %v57
  %98 = vmatpush1.msra.mxu0 %v56
  %99 = vmatprep.subr.mxu0 %v59
  %100 = vmatpush1.msra.mxu0 %v58
  %101 = vmatprep.subr.mxu0 0.0
  %102 = vmatpush1.msra.mxu0 0.0
  %103 = vmatprep.subr.mxu0 0.0
  %104 = vmatpush1.msra.mxu0 0.0
  %105 = vmatprep.subr.mxu0 0.0
  %106 = vmatpush1.msra.mxu0 0.0
  %107 = vmatprep.subr.mxu0 0.0
  %108 = vmatpush1.msra.mxu0 0.0
  %109 = vmatprep.subr.mxu0 0.0
  %110 = vmatpush1.msra.mxu0 0.0
  %111 = vmatprep.subr.mxu0 0.0
  %112 = vmatpush1.msra.mxu0 0.0
  %113 = vmatprep.subr.mxu0 0.0
  %114 = vmatpush1.msra.mxu0 0.0
  %115 = vmatprep.subr.mxu0 0.0
  %116 = vmatpush1.msra.mxu0 0.0
  %117 = vmatprep.subr.mxu0 0.0
  %118 = vmatpush1.msra.mxu0 0.0
  %119 = vmatprep.subr.mxu0 0.0
  %120 = vmatpush1.msra.mxu0 0.0
  %121 = vmatprep.subr.mxu0 0.0
  %122 = vmatpush1.msra.mxu0 0.0
  %123 = vmatprep.subr.mxu0 0.0
  %124 = vmatpush1.msra.mxu0 0.0
  %125 = vmatprep.subr.mxu0 0.0
  %126 = vmatpush1.msra.mxu0 0.0
  %127 = vmatprep.subr.mxu0 0.0
  %128 = vmatpush1.msra.mxu0 0.0
  %129 = vmatprep.subr.mxu0 0.0
  %130 = vmatpush1.msra.mxu0 0.0
  %131 = vmatprep.subr.mxu0 0.0
  %132 = vmatpush1.msra.mxu0 0.0
  %133 = vmatprep.subr.mxu0 0.0
  %134 = vmatpush1.msra.mxu0 0.0
  %135 = vmatprep.subr.mxu0 0.0
  %136 = vmatpush1.msra.mxu0 0.0
  %137 = vmatprep.subr.mxu0 0.0
  %138 = vmatpush1.msra.mxu0 0.0
  %139 = vmatprep.subr.mxu0 0.0
  %140 = vmatpush1.msra.mxu0 0.0
  %141 = vmatprep.subr.mxu0 0.0
  %142 = vmatpush1.msra.mxu0 0.0
  %143 = vmatprep.subr.mxu0 0.0
  %144 = vmatpush1.msra.mxu0 0.0
  %145 = vmatprep.subr.mxu0 0.0
  %146 = vmatpush1.msra.mxu0 0.0
  %147 = vmatprep.subr.mxu0 0.0
  %148 = vmatpush1.msra.mxu0 0.0
  %149 = vmatprep.mubr.f32.mxu0 0.0
  %150 = vmatmul.mubr.f32.gmra.mrb[0].mxu0 %v62
  %v151 = vpop.f32.mrb[0].mxu0
  %v152 = vadd.f32 0.0, %v151
  %v153 = vpop.f32.mrb[0].mxu0
  %v154 = vadd.f32 0.0, %v153
  %155 = vmatprep.mubr.f32.mxu0 0.0
  %156 = vmatmul.mubr.f32.gmra.mrb[0].mxu0 %v65
  %v157 = vpop.f32.mrb[0].mxu0
  %v158 = vadd.f32 0.0, %v157
  %v159 = vpop.f32.mrb[0].mxu0
  %v160 = vadd.f32 0.0, %v159
  %161 = vmatprep.mubr.f32.mxu0 0.0
  %162 = vmatmul.mubr.f32.gmra.mrb[0].mxu0 %v68
  %v163 = vpop.f32.mrb[0].mxu0
  %v164 = vadd.f32 0.0, %v163
  %v165 = vpop.f32.mrb[0].mxu0
  %v166 = vadd.f32 0.0, %v165
  %167 = vmatprep.mubr.f32.mxu0 0.0
  %168 = vmatmul.mubr.f32.gmra.mrb[0].mxu0 %v71
  %v169 = vpop.f32.mrb[0].mxu0
  %v170 = vadd.f32 0.0, %v169
  %v171 = vpop.f32.mrb[0].mxu0
  %v172 = vadd.f32 0.0, %v171
  %173 = vmatprep.mubr.f32.mxu0 0.0
  %174 = vmatmul.mubr.f32.gmra.mrb[0].mxu0 %v74
  %v175 = vpop.f32.mrb[0].mxu0
  %v176 = vadd.f32 0.0, %v175
  %v177 = vpop.f32.mrb[0].mxu0
  %v178 = vadd.f32 0.0, %v177
  %179 = vmatprep.mubr.f32.mxu0 0.0
  %180 = vmatmul.mubr.f32.gmra.mrb[0].mxu0 %v77
  %v181 = vpop.f32.mrb[0].mxu0
  %v182 = vadd.f32 0.0, %v181
  %v183 = vpop.f32.mrb[0].mxu0
  %v184 = vadd.f32 0.0, %v183
  %185 = vmatprep.mubr.f32.mxu0 0.0
  %186 = vmatmul.mubr.f32.gmra.mrb[0].mxu0 %v80
  %v187 = vpop.f32.mrb[0].mxu0
  %v188 = vadd.f32 0.0, %v187
  %v189 = vpop.f32.mrb[0].mxu0
  %v190 = vadd.f32 0.0, %v189
  %191 = vmatprep.mubr.f32.mxu0 0.0
  %192 = vmatmul.mubr.f32.gmra.mrb[0].mxu0 %v83
  %v193 = vpop.f32.mrb[0].mxu0
  %v194 = vadd.f32 0.0, %v193
  %v195 = vpop.f32.mrb[0].mxu0
  %v196 = vadd.f32 0.0, %v195
  %197 = vdwg.mxu0
  %vm198 = vcmask 64512
  %v200 = vsel %vm198, %v26, 0
  %v203 = vsel %vm198, %v27, 0
  %v206 = vsel %vm198, %v28, 0
  %v209 = vsel %vm198, %v29, 0
  %v212 = vsel %vm198, %v30, 0
  %v215 = vsel %vm198, %v31, 0
  %v218 = vsel %vm198, %v32, 0
  %v221 = vsel %vm198, %v33, 0
  %223 = vmatprep.subr.mxu0 %v35
  %224 = vmatpush1.msra.mxu0 %v34
  %225 = vmatprep.subr.mxu0 0.0
  %226 = vmatpush1.msra.mxu0 0.0
  %227 = vmatprep.subr.mxu0 0.0
  %228 = vmatpush1.msra.mxu0 0.0
  %229 = vmatprep.subr.mxu0 0.0
  %230 = vmatpush1.msra.mxu0 0.0
  %231 = vmatprep.subr.mxu0 0.0
  %232 = vmatpush1.msra.mxu0 0.0
  %233 = vmatprep.subr.mxu0 0.0
  %234 = vmatpush1.msra.mxu0 0.0
  %235 = vmatprep.subr.mxu0 0.0
  %236 = vmatpush1.msra.mxu0 0.0
  %237 = vmatprep.subr.mxu0 0.0
  %238 = vmatpush1.msra.mxu0 0.0
  %239 = vmatprep.subr.mxu0 0.0
  %240 = vmatpush1.msra.mxu0 0.0
  %241 = vmatprep.subr.mxu0 0.0
  %242 = vmatpush1.msra.mxu0 0.0
  %243 = vmatprep.subr.mxu0 0.0
  %244 = vmatpush1.msra.mxu0 0.0
  %245 = vmatprep.subr.mxu0 0.0
  %246 = vmatpush1.msra.mxu0 0.0
  %247 = vmatprep.subr.mxu0 0.0
  %248 = vmatpush1.msra.mxu0 0.0
  %249 = vmatprep.subr.mxu0 0.0
  %250 = vmatpush1.msra.mxu0 0.0
  %251 = vmatprep.subr.mxu0 0.0
  %252 = vmatpush1.msra.mxu0 0.0
  %253 = vmatprep.subr.mxu0 0.0
  %254 = vmatpush1.msra.mxu0 0.0
  %255 = vmatprep.subr.mxu0 0.0
  %256 = vmatpush1.msra.mxu0 0.0
  %257 = vmatprep.subr.mxu0 0.0
  %258 = vmatpush1.msra.mxu0 0.0
  %259 = vmatprep.subr.mxu0 0.0
  %260 = vmatpush1.msra.mxu0 0.0
  %261 = vmatprep.subr.mxu0 0.0
  %262 = vmatpush1.msra.mxu0 0.0
  %263 = vmatprep.subr.mxu0 0.0
  %264 = vmatpush1.msra.mxu0 0.0
  %265 = vmatprep.subr.mxu0 0.0
  %266 = vmatpush1.msra.mxu0 0.0
  %267 = vmatprep.subr.mxu0 0.0
  %268 = vmatpush1.msra.mxu0 0.0
  %269 = vmatprep.subr.mxu0 0.0
  %270 = vmatpush1.msra.mxu0 0.0
  %271 = vmatprep.subr.mxu0 0.0
  %272 = vmatpush1.msra.mxu0 0.0
  %273 = vmatprep.subr.mxu0 0.0
  %274 = vmatpush1.msra.mxu0 0.0
  %275 = vmatprep.subr.mxu0 0.0
  %276 = vmatpush1.msra.mxu0 0.0
  %277 = vmatprep.subr.mxu0 0.0
  %278 = vmatpush1.msra.mxu0 0.0
  %279 = vmatprep.subr.mxu0 0.0
  %280 = vmatpush1.msra.mxu0 0.0
  %281 = vmatprep.subr.mxu0 0.0
  %282 = vmatpush1.msra.mxu0 0.0
  %283 = vmatprep.subr.mxu0 0.0
  %284 = vmatpush1.msra.mxu0 0.0
  %285 = vmatprep.subr.mxu0 0.0
  %286 = vmatpush1.msra.mxu0 0.0
  %287 = vmatprep.mubr.f32.mxu0 0.0
  %288 = vmatmul.mubr.f32.gmra.mrb[0].mxu0 %v200
  %v289 = vpop.f32.mrb[0].mxu0
  %v290 = vadd.f32 %v152, %v289
  %v291 = vpop.f32.mrb[0].mxu0
  %v292 = vadd.f32 %v154, %v291
  %293 = vmatprep.mubr.f32.mxu0 0.0
  %294 = vmatmul.mubr.f32.gmra.mrb[0].mxu0 %v203
  %v295 = vpop.f32.mrb[0].mxu0
  %v296 = vadd.f32 %v158, %v295
  %v297 = vpop.f32.mrb[0].mxu0
  %v298 = vadd.f32 %v160, %v297
  %299 = vmatprep.mubr.f32.mxu0 0.0
  %300 = vmatmul.mubr.f32.gmra.mrb[0].mxu0 %v206
  %v301 = vpop.f32.mrb[0].mxu0
  %v302 = vadd.f32 %v164, %v301
  %v303 = vpop.f32.mrb[0].mxu0
  %v304 = vadd.f32 %v166, %v303
  %305 = vmatprep.mubr.f32.mxu0 0.0
  %306 = vmatmul.mubr.f32.gmra.mrb[0].mxu0 %v209
  %v307 = vpop.f32.mrb[0].mxu0
  %v308 = vadd.f32 %v170, %v307
  %v309 = vpop.f32.mrb[0].mxu0
  %v310 = vadd.f32 %v172, %v309
  %311 = vmatprep.mubr.f32.mxu0 0.0
  %312 = vmatmul.mubr.f32.gmra.mrb[0].mxu0 %v212
  %v313 = vpop.f32.mrb[0].mxu0
  %v314 = vadd.f32 %v176, %v313
  %v315 = vpop.f32.mrb[0].mxu0
  %v316 = vadd.f32 %v178, %v315
  %317 = vmatprep.mubr.f32.mxu0 0.0
  %318 = vmatmul.mubr.f32.gmra.mrb[0].mxu0 %v215
  %v319 = vpop.f32.mrb[0].mxu0
  %v320 = vadd.f32 %v182, %v319
  %v321 = vpop.f32.mrb[0].mxu0
  %v322 = vadd.f32 %v184, %v321
  %323 = vmatprep.mubr.f32.mxu0 0.0
  %324 = vmatmul.mubr.f32.gmra.mrb[0].mxu0 %v218
  %v325 = vpop.f32.mrb[0].mxu0
  %v326 = vadd.f32 %v188, %v325
  %v327 = vpop.f32.mrb[0].mxu0
  %v328 = vadd.f32 %v190, %v327
  %329 = vmatprep.mubr.f32.mxu0 0.0
  %330 = vmatmul.mubr.f32.gmra.mrb[0].mxu0 %v221
  %v331 = vpop.f32.mrb[0].mxu0
  %v332 = vadd.f32 %v194, %v331
  %v333 = vpop.f32.mrb[0].mxu0
  %v334 = vadd.f32 %v196, %v333
  %335 = vdwg.mxu0
  %v336 = vld [vmem:[%s6] sm:$0x3]
  %v338 = vlaneseq
  %v339 = vshrl.u32 %v338, 7
  %v340 = vsub.s32 0, %v339
  %v341 = vrot.slane %v336, %v340
  %v342 = vlaneseq
  %v343 = vshrl.u32 %v342, 7
  %v344 = vsub.s32 1, %v343
  %v345 = vrot.slane %v336, %v344
  %v348 = vadd.f32 %v290, %v341
  %v349 = vadd.f32 %v292, %v345
  %v350 = vadd.f32 %v296, %v341
  %v351 = vadd.f32 %v298, %v345
  %v352 = vadd.f32 %v302, %v341
  %v353 = vadd.f32 %v304, %v345
  %v354 = vadd.f32 %v308, %v341
  %v355 = vadd.f32 %v310, %v345
  %v356 = vadd.f32 %v314, %v341
  %v357 = vadd.f32 %v316, %v345
  %v358 = vadd.f32 %v320, %v341
  %v359 = vadd.f32 %v322, %v345
  %v360 = vadd.f32 %v326, %v341
  %v361 = vadd.f32 %v328, %v345
  %v362 = vadd.f32 %v332, %v341
  %v363 = vadd.f32 %v334, %v345
  %v364 = vld [vmem:[%s4] sm:$0xff]
  %v365 = vld [vmem:[%s4 + $0x8] sm:$0xff]
  %v366 = vld [vmem:[%s4 + $0x10] sm:$0xff]
  %v367 = vld [vmem:[%s4 + $0x18] sm:$0xff]
  %v368 = vld [vmem:[%s5] sm:$0xff]
  %v369 = vld [vmem:[%s5 + $0x8] sm:$0xff]
  %v370 = vld [vmem:[%s5 + $0x10] sm:$0xff]
  %v371 = vld [vmem:[%s5 + $0x18] sm:$0xff]
  %vm372 = vcmask 261120
  %v374 = vsel %vm372, 0.0, 0
  %376 = vmatprep.subr.mxu0 0.0
  %377 = vmatpush1.msra.mxu0 %v364
  %378 = vmatprep.subr.mxu0 0.0
  %379 = vmatpush1.msra.mxu0 %v365
  %380 = vmatprep.subr.mxu0 0.0
  %381 = vmatpush1.msra.mxu0 %v366
  %382 = vmatprep.subr.mxu0 0.0
  %383 = vmatpush1.msra.mxu0 %v367
  %384 = vmatprep.subr.mxu0 0.0
  %385 = vmatpush1.msra.mxu0 0.0
  %386 = vmatprep.subr.mxu0 0.0
  %387 = vmatpush1.msra.mxu0 0.0
  %388 = vmatprep.subr.mxu0 0.0
  %389 = vmatpush1.msra.mxu0 0.0
  %390 = vmatprep.subr.mxu0 0.0
  %391 = vmatpush1.msra.mxu0 0.0
  %392 = vmatprep.subr.mxu0 0.0
  %393 = vmatpush1.msra.mxu0 0.0
  %394 = vmatprep.subr.mxu0 0.0
  %395 = vmatpush1.msra.mxu0 0.0
  %396 = vmatprep.subr.mxu0 0.0
  %397 = vmatpush1.msra.mxu0 0.0
  %398 = vmatprep.subr.mxu0 0.0
  %399 = vmatpush1.msra.mxu0 0.0
  %400 = vmatprep.subr.mxu0 0.0
  %401 = vmatpush1.msra.mxu0 0.0
  %402 = vmatprep.subr.mxu0 0.0
  %403 = vmatpush1.msra.mxu0 0.0
  %404 = vmatprep.subr.mxu0 0.0
  %405 = vmatpush1.msra.mxu0 0.0
  %406 = vmatprep.subr.mxu0 0.0
  %407 = vmatpush1.msra.mxu0 0.0
  %408 = vmatprep.subr.mxu0 0.0
  %409 = vmatpush1.msra.mxu0 0.0
  %410 = vmatprep.subr.mxu0 0.0
  %411 = vmatpush1.msra.mxu0 0.0
  %412 = vmatprep.subr.mxu0 0.0
  %413 = vmatpush1.msra.mxu0 0.0
  %414 = vmatprep.subr.mxu0 0.0
  %415 = vmatpush1.msra.mxu0 0.0
  %416 = vmatprep.subr.mxu0 0.0
  %417 = vmatpush1.msra.mxu0 0.0
  %418 = vmatprep.subr.mxu0 0.0
  %419 = vmatpush1.msra.mxu0 0.0
  %420 = vmatprep.subr.mxu0 0.0
  %421 = vmatpush1.msra.mxu0 0.0
  %422 = vmatprep.subr.mxu0 0.0
  %423 = vmatpush1.msra.mxu0 0.0
  %424 = vmatprep.subr.mxu0 0.0
  %425 = vmatpush1.msra.mxu0 0.0
  %426 = vmatprep.subr.mxu0 0.0
  %427 = vmatpush1.msra.mxu0 0.0
  %428 = vmatprep.subr.mxu0 0.0
  %429 = vmatpush1.msra.mxu0 0.0
  %430 = vmatprep.subr.mxu0 0.0
  %431 = vmatpush1.msra.mxu0 0.0
  %432 = vmatprep.subr.mxu0 0.0
  %433 = vmatpush1.msra.mxu0 0.0
  %434 = vmatprep.subr.mxu0 0.0
  %435 = vmatpush1.msra.mxu0 0.0
  %436 = vmatprep.subr.mxu0 0.0
  %437 = vmatpush1.msra.mxu0 0.0
  %438 = vmatprep.subr.mxu0 0.0
  %439 = vmatpush1.msra.mxu0 0.0
  %440 = vmatprep.mubr.f32.mxu0 0.0
  %441 = vmatmul.mubr.f32.gmra.mrb[0].mxu0 %v374
  %v442 = vpop.f32.mrb[0].mxu0
  %v443 = vadd.f32 0.0, %v442
  %v444 = vpop.f32.mrb[0].mxu0
  %445 = vdwg.mxu0
  %v446 = vadd.f32 %v348, %v443
  %447 = vmatprep.subr.mxu0 0.0
  %448 = vmatpush1.msra.mxu0 %v368
  %449 = vmatprep.subr.mxu0 0.0
  %450 = vmatpush1.msra.mxu0 %v369
  %451 = vmatprep.subr.mxu0 0.0
  %452 = vmatpush1.msra.mxu0 %v370
  %453 = vmatprep.subr.mxu0 0.0
  %454 = vmatpush1.msra.mxu0 %v371
  %455 = vmatprep.subr.mxu0 0.0
  %456 = vmatpush1.msra.mxu0 0.0
  %457 = vmatprep.subr.mxu0 0.0
  %458 = vmatpush1.msra.mxu0 0.0
  %459 = vmatprep.subr.mxu0 0.0
  %460 = vmatpush1.msra.mxu0 0.0
  %461 = vmatprep.subr.mxu0 0.0
  %462 = vmatpush1.msra.mxu0 0.0
  %463 = vmatprep.subr.mxu0 0.0
  %464 = vmatpush1.msra.mxu0 0.0
  %465 = vmatprep.subr.mxu0 0.0
  %466 = vmatpush1.msra.mxu0 0.0
  %467 = vmatprep.subr.mxu0 0.0
  %468 = vmatpush1.msra.mxu0 0.0
  %469 = vmatprep.subr.mxu0 0.0
  %470 = vmatpush1.msra.mxu0 0.0
  %471 = vmatprep.subr.mxu0 0.0
  %472 = vmatpush1.msra.mxu0 0.0
  %473 = vmatprep.subr.mxu0 0.0
  %474 = vmatpush1.msra.mxu0 0.0
  %475 = vmatprep.subr.mxu0 0.0
  %476 = vmatpush1.msra.mxu0 0.0
  %477 = vmatprep.subr.mxu0 0.0
  %478 = vmatpush1.msra.mxu0 0.0
  %479 = vmatprep.subr.mxu0 0.0
  %480 = vmatpush1.msra.mxu0 0.0
  %481 = vmatprep.subr.mxu0 0.0
  %482 = vmatpush1.msra.mxu0 0.0
  %483 = vmatprep.subr.mxu0 0.0
  %484 = vmatpush1.msra.mxu0 0.0
  %485 = vmatprep.subr.mxu0 0.0
  %486 = vmatpush1.msra.mxu0 0.0
  %487 = vmatprep.subr.mxu0 0.0
  %488 = vmatpush1.msra.mxu0 0.0
  %489 = vmatprep.subr.mxu0 0.0
  %490 = vmatpush1.msra.mxu0 0.0
  %491 = vmatprep.subr.mxu0 0.0
  %492 = vmatpush1.msra.mxu0 0.0
  %493 = vmatprep.subr.mxu0 0.0
  %494 = vmatpush1.msra.mxu0 0.0
  %495 = vmatprep.subr.mxu0 0.0
  %496 = vmatpush1.msra.mxu0 0.0
  %497 = vmatprep.subr.mxu0 0.0
  %498 = vmatpush1.msra.mxu0 0.0
  %499 = vmatprep.subr.mxu0 0.0
  %500 = vmatpush1.msra.mxu0 0.0
  %501 = vmatprep.subr.mxu0 0.0
  %502 = vmatpush1.msra.mxu0 0.0
  %503 = vmatprep.subr.mxu0 0.0
  %504 = vmatpush1.msra.mxu0 0.0
  %505 = vmatprep.subr.mxu0 0.0
  %506 = vmatpush1.msra.mxu0 0.0
  %507 = vmatprep.subr.mxu0 0.0
  %508 = vmatpush1.msra.mxu0 0.0
  %509 = vmatprep.subr.mxu0 0.0
  %510 = vmatpush1.msra.mxu0 0.0
  %511 = vmatprep.mubr.f32.mxu0 0.0
  %512 = vmatmul.mubr.f32.gmra.mrb[0].mxu0 %v374
  %v513 = vpop.f32.mrb[0].mxu0
  %v514 = vadd.f32 0.0, %v513
  %v515 = vpop.f32.mrb[0].mxu0
  %516 = vdwg.mxu0
  %v517 = vadd.f32 %v363, %v514
  %v518 = vxor.u32 %v446, 2147483648
  %v519 = vmul.f32 %v518, 1.442695
  %v520 = vpow.pop %v519
  %v521 = vadd.f32 %v520, 1.0
  %v522 = vrcp.pop %v521
  %v523 = vmul.f32 1.0, %v522
  %v524 = vtanh.pop %v446
  %v525 = vmul.f32 %v523, 0.0
  %527 = vrot.lane.b32.xlu0 %v524, 64
  %v528 = vpop.permute.xlu0 %527
  %v530 = vmul.f32 %v523, %v528
  %532 = vrot.lane.b32.xlu0 %v530, 32
  %v533 = vpop.permute.xlu0 %532
  %v535 = vadd.f32 %v525, %v533
  %v536 = vtanh.pop %v535
  %538 = vrot.lane.b32.xlu0 %v536, 64
  %v539 = vpop.permute.xlu0 %538
  %v541 = vmul.f32 %v523, %v539
  %v542 = vxor.u32 %v517, 2147483648
  %v543 = vmul.f32 %v542, 1.442695
  %v544 = vpow.pop %v543
  %v545 = vadd.f32 %v544, 1.0
  %v546 = vrcp.pop %v545
  %v547 = vmul.f32 1.0, %v546
  %v548 = vtanh.pop %v517
  %v549 = vmul.f32 %v547, 0.0
  %551 = vrot.lane.b32.xlu0 %v548, 64
  %v552 = vpop.permute.xlu0 %551
  %v554 = vmul.f32 %v547, %v552
  %556 = vrot.lane.b32.xlu0 %v554, 32
  %v557 = vpop.permute.xlu0 %556
  %v559 = vadd.f32 %v549, %v557
  %v560 = vtanh.pop %v559
  %562 = vrot.lane.b32.xlu0 %v560, 64
  %v563 = vpop.permute.xlu0 %562
  %v565 = vmul.f32 %v547, %v563
  %567 = vrot.lane.b32.xlu0 %v541, 32
  %v568 = vpop.permute.xlu0 %567
  %570 = vst.msk [vmem:[%s7] sm:$0xff] %vm372, %v568
  %572 = vrot.lane.b32.xlu0 %v565, 64
  %v573 = vpop.permute.xlu0 %572
  %vm575 = vcmask 523520
  %576 = vst.msk [vmem:[%s7 + $0x38] sm:$0xff] %vm575, %v573
  %v577 = vsel %vm372, %v568, 0
  %579 = vmatprep.subr.mxu0 0.0
  %580 = vmatpush1.msra.mxu0 %v364
  %581 = vmatprep.subr.mxu0 0.0
  %582 = vmatpush1.msra.mxu0 %v365
  %583 = vmatprep.subr.mxu0 0.0
  %584 = vmatpush1.msra.mxu0 %v366
  %585 = vmatprep.subr.mxu0 0.0
  %586 = vmatpush1.msra.mxu0 %v367
  %587 = vmatprep.subr.mxu0 0.0
  %588 = vmatpush1.msra.mxu0 0.0
  %589 = vmatprep.subr.mxu0 0.0
  %590 = vmatpush1.msra.mxu0 0.0
  %591 = vmatprep.subr.mxu0 0.0
  %592 = vmatpush1.msra.mxu0 0.0
  %593 = vmatprep.subr.mxu0 0.0
  %594 = vmatpush1.msra.mxu0 0.0
  %595 = vmatprep.subr.mxu0 0.0
  %596 = vmatpush1.msra.mxu0 0.0
  %597 = vmatprep.subr.mxu0 0.0
  %598 = vmatpush1.msra.mxu0 0.0
  %599 = vmatprep.subr.mxu0 0.0
  %600 = vmatpush1.msra.mxu0 0.0
  %601 = vmatprep.subr.mxu0 0.0
  %602 = vmatpush1.msra.mxu0 0.0
  %603 = vmatprep.subr.mxu0 0.0
  %604 = vmatpush1.msra.mxu0 0.0
  %605 = vmatprep.subr.mxu0 0.0
  %606 = vmatpush1.msra.mxu0 0.0
  %607 = vmatprep.subr.mxu0 0.0
  %608 = vmatpush1.msra.mxu0 0.0
  %609 = vmatprep.subr.mxu0 0.0
  %610 = vmatpush1.msra.mxu0 0.0
  %611 = vmatprep.subr.mxu0 0.0
  %612 = vmatpush1.msra.mxu0 0.0
  %613 = vmatprep.subr.mxu0 0.0
  %614 = vmatpush1.msra.mxu0 0.0
  %615 = vmatprep.subr.mxu0 0.0
  %616 = vmatpush1.msra.mxu0 0.0
  %617 = vmatprep.subr.mxu0 0.0
  %618 = vmatpush1.msra.mxu0 0.0
  %619 = vmatprep.subr.mxu0 0.0
  %620 = vmatpush1.msra.mxu0 0.0
  %621 = vmatprep.subr.mxu0 0.0
  %622 = vmatpush1.msra.mxu0 0.0
  %623 = vmatprep.subr.mxu0 0.0
  %624 = vmatpush1.msra.mxu0 0.0
  %625 = vmatprep.subr.mxu0 0.0
  %626 = vmatpush1.msra.mxu0 0.0
  %627 = vmatprep.subr.mxu0 0.0
  %628 = vmatpush1.msra.mxu0 0.0
  %629 = vmatprep.subr.mxu0 0.0
  %630 = vmatpush1.msra.mxu0 0.0
  %631 = vmatprep.subr.mxu0 0.0
  %632 = vmatpush1.msra.mxu0 0.0
  %633 = vmatprep.subr.mxu0 0.0
  %634 = vmatpush1.msra.mxu0 0.0
  %635 = vmatprep.subr.mxu0 0.0
  %636 = vmatpush1.msra.mxu0 0.0
  %637 = vmatprep.subr.mxu0 0.0
  %638 = vmatpush1.msra.mxu0 0.0
  %639 = vmatprep.subr.mxu0 0.0
  %640 = vmatpush1.msra.mxu0 0.0
  %641 = vmatprep.subr.mxu0 0.0
  %642 = vmatpush1.msra.mxu0 0.0
  %643 = vmatprep.mubr.f32.mxu0 0.0
  %644 = vmatmul.mubr.f32.gmra.mrb[0].mxu0 %v577
  %v645 = vpop.f32.mrb[0].mxu0
  %v646 = vadd.f32 0.0, %v645
  %v647 = vpop.f32.mrb[0].mxu0
  %648 = vdwg.mxu0
  %v649 = vadd.f32 %v350, %v646
  %650 = vrot.lane.b32.xlu0 %v565, 32
  %v651 = vpop.permute.xlu0 %650
  %v652 = vsel %vm372, %v651, 0
  %654 = vmatprep.subr.mxu0 0.0
  %655 = vmatpush1.msra.mxu0 %v368
  %656 = vmatprep.subr.mxu0 0.0
  %657 = vmatpush1.msra.mxu0 %v369
  %658 = vmatprep.subr.mxu0 0.0
  %659 = vmatpush1.msra.mxu0 %v370
  %660 = vmatprep.subr.mxu0 0.0
  %661 = vmatpush1.msra.mxu0 %v371
  %662 = vmatprep.subr.mxu0 0.0
  %663 = vmatpush1.msra.mxu0 0.0
  %664 = vmatprep.subr.mxu0 0.0
  %665 = vmatpush1.msra.mxu0 0.0
  %666 = vmatprep.subr.mxu0 0.0
  %667 = vmatpush1.msra.mxu0 0.0
  %668 = vmatprep.subr.mxu0 0.0
  %669 = vmatpush1.msra.mxu0 0.0
  %670 = vmatprep.subr.mxu0 0.0
  %671 = vmatpush1.msra.mxu0 0.0
  %672 = vmatprep.subr.mxu0 0.0
  %673 = vmatpush1.msra.mxu0 0.0
  %674 = vmatprep.subr.mxu0 0.0
  %675 = vmatpush1.msra.mxu0 0.0
  %676 = vmatprep.subr.mxu0 0.0
  %677 = vmatpush1.msra.mxu0 0.0
  %678 = vmatprep.subr.mxu0 0.0
  %679 = vmatpush1.msra.mxu0 0.0
  %680 = vmatprep.subr.mxu0 0.0
  %681 = vmatpush1.msra.mxu0 0.0
  %682 = vmatprep.subr.mxu0 0.0
  %683 = vmatpush1.msra.mxu0 0.0
  %684 = vmatprep.subr.mxu0 0.0
  %685 = vmatpush1.msra.mxu0 0.0
  %686 = vmatprep.subr.mxu0 0.0
  %687 = vmatpush1.msra.mxu0 0.0
  %688 = vmatprep.subr.mxu0 0.0
  %689 = vmatpush1.msra.mxu0 0.0
  %690 = vmatprep.subr.mxu0 0.0
  %691 = vmatpush1.msra.mxu0 0.0
  %692 = vmatprep.subr.mxu0 0.0
  %693 = vmatpush1.msra.mxu0 0.0
  %694 = vmatprep.subr.mxu0 0.0
  %695 = vmatpush1.msra.mxu0 0.0
  %696 = vmatprep.subr.mxu0 0.0
  %697 = vmatpush1.msra.mxu0 0.0
  %698 = vmatprep.subr.mxu0 0.0
  %699 = vmatpush1.msra.mxu0 0.0
  %700 = vmatprep.subr.mxu0 0.0
  %701 = vmatpush1.msra.mxu0 0.0
  %702 = vmatprep.subr.mxu0 0.0
  %703 = vmatpush1.msra.mxu0 0.0
  %704 = vmatprep.subr.mxu0 0.0
  %705 = vmatpush1.msra.mxu0 0.0
  %706 = vmatprep.subr.mxu0 0.0
  %707 = vmatpush1.msra.mxu0 0.0
  %708 = vmatprep.subr.mxu0 0.0
  %709 = vmatpush1.msra.mxu0 0.0
  %710 = vmatprep.subr.mxu0 0.0
  %711 = vmatpush1.msra.mxu0 0.0
  %712 = vmatprep.subr.mxu0 0.0
  %713 = vmatpush1.msra.mxu0 0.0
  %714 = vmatprep.subr.mxu0 0.0
  %715 = vmatpush1.msra.mxu0 0.0
  %716 = vmatprep.subr.mxu0 0.0
  %717 = vmatpush1.msra.mxu0 0.0
  %718 = vmatprep.mubr.f32.mxu0 0.0
  %719 = vmatmul.mubr.f32.gmra.mrb[0].mxu0 %v652
  %v720 = vpop.f32.mrb[0].mxu0
  %v721 = vadd.f32 0.0, %v720
  %v722 = vpop.f32.mrb[0].mxu0
  %723 = vdwg.mxu0
  %v724 = vadd.f32 %v361, %v721
  %v725 = vxor.u32 %v649, 2147483648
  %v726 = vmul.f32 %v725, 1.442695
  %v727 = vpow.pop %v726
  %v728 = vadd.f32 %v727, 1.0
  %v729 = vrcp.pop %v728
  %v730 = vmul.f32 1.0, %v729
  %v731 = vtanh.pop %v649
  %v732 = vmul.f32 %v730, %v535
  %734 = vrot.lane.b32.xlu0 %v731, 64
  %v735 = vpop.permute.xlu0 %734
  %v737 = vmul.f32 %v730, %v735
  %739 = vrot.lane.b32.xlu0 %v737, 32
  %v740 = vpop.permute.xlu0 %739
  %v742 = vadd.f32 %v732, %v740
  %v743 = vtanh.pop %v742
  %745 = vrot.lane.b32.xlu0 %v743, 64
  %v746 = vpop.permute.xlu0 %745
  %v748 = vmul.f32 %v730, %v746
  %v749 = vxor.u32 %v724, 2147483648
  %v750 = vmul.f32 %v749, 1.442695
  %v751 = vpow.pop %v750
  %v752 = vadd.f32 %v751, 1.0
  %v753 = vrcp.pop %v752
  %v754 = vmul.f32 1.0, %v753
  %v755 = vtanh.pop %v724
  %v756 = vmul.f32 %v754, %v559
  %758 = vrot.lane.b32.xlu0 %v755, 64
  %v759 = vpop.permute.xlu0 %758
  %v761 = vmul.f32 %v754, %v759
  %763 = vrot.lane.b32.xlu0 %v761, 32
  %v764 = vpop.permute.xlu0 %763
  %v766 = vadd.f32 %v756, %v764
  %v767 = vtanh.pop %v766
  %769 = vrot.lane.b32.xlu0 %v767, 64
  %v770 = vpop.permute.xlu0 %769
  %v772 = vmul.f32 %v754, %v770
  %774 = vrot.lane.b32.xlu0 %v748, 32
  %v775 = vpop.permute.xlu0 %774
  %777 = vst.msk [vmem:[%s7 + $0x8] sm:$0xff] %vm372, %v775
  %779 = vrot.lane.b32.xlu0 %v772, 64
  %v780 = vpop.permute.xlu0 %779
  %782 = vst.msk [vmem:[%s7 + $0x30] sm:$0xff] %vm575, %v780
  %v783 = vsel %vm372, %v775, 0
  %785 = vmatprep.subr.mxu0 0.0
  %786 = vmatpush1.msra.mxu0 %v364
  %787 = vmatprep.subr.mxu0 0.0
  %788 = vmatpush1.msra.mxu0 %v365
  %789 = vmatprep.subr.mxu0 0.0
  %790 = vmatpush1.msra.mxu0 %v366
  %791 = vmatprep.subr.mxu0 0.0
  %792 = vmatpush1.msra.mxu0 %v367
  %793 = vmatprep.subr.mxu0 0.0
  %794 = vmatpush1.msra.mxu0 0.0
  %795 = vmatprep.subr.mxu0 0.0
  %796 = vmatpush1.msra.mxu0 0.0
  %797 = vmatprep.subr.mxu0 0.0
  %798 = vmatpush1.msra.mxu0 0.0
  %799 = vmatprep.subr.mxu0 0.0
  %800 = vmatpush1.msra.mxu0 0.0
  %801 = vmatprep.subr.mxu0 0.0
  %802 = vmatpush1.msra.mxu0 0.0
  %803 = vmatprep.subr.mxu0 0.0
  %804 = vmatpush1.msra.mxu0 0.0
  %805 = vmatprep.subr.mxu0 0.0
  %806 = vmatpush1.msra.mxu0 0.0
  %807 = vmatprep.subr.mxu0 0.0
  %808 = vmatpush1.msra.mxu0 0.0
  %809 = vmatprep.subr.mxu0 0.0
  %810 = vmatpush1.msra.mxu0 0.0
  %811 = vmatprep.subr.mxu0 0.0
  %812 = vmatpush1.msra.mxu0 0.0
  %813 = vmatprep.subr.mxu0 0.0
  %814 = vmatpush1.msra.mxu0 0.0
  %815 = vmatprep.subr.mxu0 0.0
  %816 = vmatpush1.msra.mxu0 0.0
  %817 = vmatprep.subr.mxu0 0.0
  %818 = vmatpush1.msra.mxu0 0.0
  %819 = vmatprep.subr.mxu0 0.0
  %820 = vmatpush1.msra.mxu0 0.0
  %821 = vmatprep.subr.mxu0 0.0
  %822 = vmatpush1.msra.mxu0 0.0
  %823 = vmatprep.subr.mxu0 0.0
  %824 = vmatpush1.msra.mxu0 0.0
  %825 = vmatprep.subr.mxu0 0.0
  %826 = vmatpush1.msra.mxu0 0.0
  %827 = vmatprep.subr.mxu0 0.0
  %828 = vmatpush1.msra.mxu0 0.0
  %829 = vmatprep.subr.mxu0 0.0
  %830 = vmatpush1.msra.mxu0 0.0
  %831 = vmatprep.subr.mxu0 0.0
  %832 = vmatpush1.msra.mxu0 0.0
  %833 = vmatprep.subr.mxu0 0.0
  %834 = vmatpush1.msra.mxu0 0.0
  %835 = vmatprep.subr.mxu0 0.0
  %836 = vmatpush1.msra.mxu0 0.0
  %837 = vmatprep.subr.mxu0 0.0
  %838 = vmatpush1.msra.mxu0 0.0
  %839 = vmatprep.subr.mxu0 0.0
  %840 = vmatpush1.msra.mxu0 0.0
  %841 = vmatprep.subr.mxu0 0.0
  %842 = vmatpush1.msra.mxu0 0.0
  %843 = vmatprep.subr.mxu0 0.0
  %844 = vmatpush1.msra.mxu0 0.0
  %845 = vmatprep.subr.mxu0 0.0
  %846 = vmatpush1.msra.mxu0 0.0
  %847 = vmatprep.subr.mxu0 0.0
  %848 = vmatpush1.msra.mxu0 0.0
  %849 = vmatprep.mubr.f32.mxu0 0.0
  %850 = vmatmul.mubr.f32.gmra.mrb[0].mxu0 %v783
  %v851 = vpop.f32.mrb[0].mxu0
  %v852 = vadd.f32 0.0, %v851
  %v853 = vpop.f32.mrb[0].mxu0
  %854 = vdwg.mxu0
  %v855 = vadd.f32 %v352, %v852
  %856 = vrot.lane.b32.xlu0 %v772, 32
  %v857 = vpop.permute.xlu0 %856
  %v858 = vsel %vm372, %v857, 0
  %860 = vmatprep.subr.mxu0 0.0
  %861 = vmatpush1.msra.mxu0 %v368
  %862 = vmatprep.subr.mxu0 0.0
  %863 = vmatpush1.msra.mxu0 %v369
  %864 = vmatprep.subr.mxu0 0.0
  %865 = vmatpush1.msra.mxu0 %v370
  %866 = vmatprep.subr.mxu0 0.0
  %867 = vmatpush1.msra.mxu0 %v371
  %868 = vmatprep.subr.mxu0 0.0
  %869 = vmatpush1.msra.mxu0 0.0
  %870 = vmatprep.subr.mxu0 0.0
  %871 = vmatpush1.msra.mxu0 0.0
  %872 = vmatprep.subr.mxu0 0.0
  %873 = vmatpush1.msra.mxu0 0.0
  %874 = vmatprep.subr.mxu0 0.0
  %875 = vmatpush1.msra.mxu0 0.0
  %876 = vmatprep.subr.mxu0 0.0
  %877 = vmatpush1.msra.mxu0 0.0
  %878 = vmatprep.subr.mxu0 0.0
  %879 = vmatpush1.msra.mxu0 0.0
  %880 = vmatprep.subr.mxu0 0.0
  %881 = vmatpush1.msra.mxu0 0.0
  %882 = vmatprep.subr.mxu0 0.0
  %883 = vmatpush1.msra.mxu0 0.0
  %884 = vmatprep.subr.mxu0 0.0
  %885 = vmatpush1.msra.mxu0 0.0
  %886 = vmatprep.subr.mxu0 0.0
  %887 = vmatpush1.msra.mxu0 0.0
  %888 = vmatprep.subr.mxu0 0.0
  %889 = vmatpush1.msra.mxu0 0.0
  %890 = vmatprep.subr.mxu0 0.0
  %891 = vmatpush1.msra.mxu0 0.0
  %892 = vmatprep.subr.mxu0 0.0
  %893 = vmatpush1.msra.mxu0 0.0
  %894 = vmatprep.subr.mxu0 0.0
  %895 = vmatpush1.msra.mxu0 0.0
  %896 = vmatprep.subr.mxu0 0.0
  %897 = vmatpush1.msra.mxu0 0.0
  %898 = vmatprep.subr.mxu0 0.0
  %899 = vmatpush1.msra.mxu0 0.0
  %900 = vmatprep.subr.mxu0 0.0
  %901 = vmatpush1.msra.mxu0 0.0
  %902 = vmatprep.subr.mxu0 0.0
  %903 = vmatpush1.msra.mxu0 0.0
  %904 = vmatprep.subr.mxu0 0.0
  %905 = vmatpush1.msra.mxu0 0.0
  %906 = vmatprep.subr.mxu0 0.0
  %907 = vmatpush1.msra.mxu0 0.0
  %908 = vmatprep.subr.mxu0 0.0
  %909 = vmatpush1.msra.mxu0 0.0
  %910 = vmatprep.subr.mxu0 0.0
  %911 = vmatpush1.msra.mxu0 0.0
  %912 = vmatprep.subr.mxu0 0.0
  %913 = vmatpush1.msra.mxu0 0.0
  %914 = vmatprep.subr.mxu0 0.0
  %915 = vmatpush1.msra.mxu0 0.0
  %916 = vmatprep.subr.mxu0 0.0
  %917 = vmatpush1.msra.mxu0 0.0
  %918 = vmatprep.subr.mxu0 0.0
  %919 = vmatpush1.msra.mxu0 0.0
  %920 = vmatprep.subr.mxu0 0.0
  %921 = vmatpush1.msra.mxu0 0.0
  %922 = vmatprep.subr.mxu0 0.0
  %923 = vmatpush1.msra.mxu0 0.0
  %924 = vmatprep.mubr.f32.mxu0 0.0
  %925 = vmatmul.mubr.f32.gmra.mrb[0].mxu0 %v858
  %v926 = vpop.f32.mrb[0].mxu0
  %v927 = vadd.f32 0.0, %v926
  %v928 = vpop.f32.mrb[0].mxu0
  %929 = vdwg.mxu0
  %v930 = vadd.f32 %v359, %v927
  %v931 = vxor.u32 %v855, 2147483648
  %v932 = vmul.f32 %v931, 1.442695
  %v933 = vpow.pop %v932
  %v934 = vadd.f32 %v933, 1.0
  %v935 = vrcp.pop %v934
  %v936 = vmul.f32 1.0, %v935
  %v937 = vtanh.pop %v855
  %v938 = vmul.f32 %v936, %v742
  %940 = vrot.lane.b32.xlu0 %v937, 64
  %v941 = vpop.permute.xlu0 %940
  %v943 = vmul.f32 %v936, %v941
  %945 = vrot.lane.b32.xlu0 %v943, 32
  %v946 = vpop.permute.xlu0 %945
  %v948 = vadd.f32 %v938, %v946
  %v949 = vtanh.pop %v948
  %951 = vrot.lane.b32.xlu0 %v949, 64
  %v952 = vpop.permute.xlu0 %951
  %v954 = vmul.f32 %v936, %v952
  %v955 = vxor.u32 %v930, 2147483648
  %v956 = vmul.f32 %v955, 1.442695
  %v957 = vpow.pop %v956
  %v958 = vadd.f32 %v957, 1.0
  %v959 = vrcp.pop %v958
  %v960 = vmul.f32 1.0, %v959
  %v961 = vtanh.pop %v930
  %v962 = vmul.f32 %v960, %v766
  %964 = vrot.lane.b32.xlu0 %v961, 64
  %v965 = vpop.permute.xlu0 %964
  %v967 = vmul.f32 %v960, %v965
  %969 = vrot.lane.b32.xlu0 %v967, 32
  %v970 = vpop.permute.xlu0 %969
  %v972 = vadd.f32 %v962, %v970
  %v973 = vtanh.pop %v972
  %975 = vrot.lane.b32.xlu0 %v973, 64
  %v976 = vpop.permute.xlu0 %975
  %v978 = vmul.f32 %v960, %v976
  %980 = vrot.lane.b32.xlu0 %v954, 32
  %v981 = vpop.permute.xlu0 %980
  %983 = vst.msk [vmem:[%s7 + $0x10] sm:$0xff] %vm372, %v981
  %985 = vrot.lane.b32.xlu0 %v978, 64
  %v986 = vpop.permute.xlu0 %985
  %988 = vst.msk [vmem:[%s7 + $0x28] sm:$0xff] %vm575, %v986
  %v989 = vsel %vm372, %v981, 0
  %991 = vmatprep.subr.mxu0 0.0
  %992 = vmatpush1.msra.mxu0 %v364
  %993 = vmatprep.subr.mxu0 0.0
  %994 = vmatpush1.msra.mxu0 %v365
  %995 = vmatprep.subr.mxu0 0.0
  %996 = vmatpush1.msra.mxu0 %v366
  %997 = vmatprep.subr.mxu0 0.0
  %998 = vmatpush1.msra.mxu0 %v367
  %999 = vmatprep.subr.mxu0 0.0
  %1000 = vmatpush1.msra.mxu0 0.0
  %1001 = vmatprep.subr.mxu0 0.0
  %1002 = vmatpush1.msra.mxu0 0.0
  %1003 = vmatprep.subr.mxu0 0.0
  %1004 = vmatpush1.msra.mxu0 0.0
  %1005 = vmatprep.subr.mxu0 0.0
  %1006 = vmatpush1.msra.mxu0 0.0
  %1007 = vmatprep.subr.mxu0 0.0
  %1008 = vmatpush1.msra.mxu0 0.0
  %1009 = vmatprep.subr.mxu0 0.0
  %1010 = vmatpush1.msra.mxu0 0.0
  %1011 = vmatprep.subr.mxu0 0.0
  %1012 = vmatpush1.msra.mxu0 0.0
  %1013 = vmatprep.subr.mxu0 0.0
  %1014 = vmatpush1.msra.mxu0 0.0
  %1015 = vmatprep.subr.mxu0 0.0
  %1016 = vmatpush1.msra.mxu0 0.0
  %1017 = vmatprep.subr.mxu0 0.0
  %1018 = vmatpush1.msra.mxu0 0.0
  %1019 = vmatprep.subr.mxu0 0.0
  %1020 = vmatpush1.msra.mxu0 0.0
  %1021 = vmatprep.subr.mxu0 0.0
  %1022 = vmatpush1.msra.mxu0 0.0
  %1023 = vmatprep.subr.mxu0 0.0
  %1024 = vmatpush1.msra.mxu0 0.0
  %1025 = vmatprep.subr.mxu0 0.0
  %1026 = vmatpush1.msra.mxu0 0.0
  %1027 = vmatprep.subr.mxu0 0.0
  %1028 = vmatpush1.msra.mxu0 0.0
  %1029 = vmatprep.subr.mxu0 0.0
  %1030 = vmatpush1.msra.mxu0 0.0
  %1031 = vmatprep.subr.mxu0 0.0
  %1032 = vmatpush1.msra.mxu0 0.0
  %1033 = vmatprep.subr.mxu0 0.0
  %1034 = vmatpush1.msra.mxu0 0.0
  %1035 = vmatprep.subr.mxu0 0.0
  %1036 = vmatpush1.msra.mxu0 0.0
  %1037 = vmatprep.subr.mxu0 0.0
  %1038 = vmatpush1.msra.mxu0 0.0
  %1039 = vmatprep.subr.mxu0 0.0
  %1040 = vmatpush1.msra.mxu0 0.0
  %1041 = vmatprep.subr.mxu0 0.0
  %1042 = vmatpush1.msra.mxu0 0.0
  %1043 = vmatprep.subr.mxu0 0.0
  %1044 = vmatpush1.msra.mxu0 0.0
  %1045 = vmatprep.subr.mxu0 0.0
  %1046 = vmatpush1.msra.mxu0 0.0
  %1047 = vmatprep.subr.mxu0 0.0
  %1048 = vmatpush1.msra.mxu0 0.0
  %1049 = vmatprep.subr.mxu0 0.0
  %1050 = vmatpush1.msra.mxu0 0.0
  %1051 = vmatprep.subr.mxu0 0.0
  %1052 = vmatpush1.msra.mxu0 0.0
  %1053 = vmatprep.subr.mxu0 0.0
  %1054 = vmatpush1.msra.mxu0 0.0
  %1055 = vmatprep.mubr.f32.mxu0 0.0
  %1056 = vmatmul.mubr.f32.gmra.mrb[0].mxu0 %v989
  %v1057 = vpop.f32.mrb[0].mxu0
  %v1058 = vadd.f32 0.0, %v1057
  %v1059 = vpop.f32.mrb[0].mxu0
  %1060 = vdwg.mxu0
  %v1061 = vadd.f32 %v354, %v1058
  %1062 = vrot.lane.b32.xlu0 %v978, 32
  %v1063 = vpop.permute.xlu0 %1062
  %v1064 = vsel %vm372, %v1063, 0
  %1066 = vmatprep.subr.mxu0 0.0
  %1067 = vmatpush1.msra.mxu0 %v368
  %1068 = vmatprep.subr.mxu0 0.0
  %1069 = vmatpush1.msra.mxu0 %v369
  %1070 = vmatprep.subr.mxu0 0.0
  %1071 = vmatpush1.msra.mxu0 %v370
  %1072 = vmatprep.subr.mxu0 0.0
  %1073 = vmatpush1.msra.mxu0 %v371
  %1074 = vmatprep.subr.mxu0 0.0
  %1075 = vmatpush1.msra.mxu0 0.0
  %1076 = vmatprep.subr.mxu0 0.0
  %1077 = vmatpush1.msra.mxu0 0.0
  %1078 = vmatprep.subr.mxu0 0.0
  %1079 = vmatpush1.msra.mxu0 0.0
  %1080 = vmatprep.subr.mxu0 0.0
  %1081 = vmatpush1.msra.mxu0 0.0
  %1082 = vmatprep.subr.mxu0 0.0
  %1083 = vmatpush1.msra.mxu0 0.0
  %1084 = vmatprep.subr.mxu0 0.0
  %1085 = vmatpush1.msra.mxu0 0.0
  %1086 = vmatprep.subr.mxu0 0.0
  %1087 = vmatpush1.msra.mxu0 0.0
  %1088 = vmatprep.subr.mxu0 0.0
  %1089 = vmatpush1.msra.mxu0 0.0
  %1090 = vmatprep.subr.mxu0 0.0
  %1091 = vmatpush1.msra.mxu0 0.0
  %1092 = vmatprep.subr.mxu0 0.0
  %1093 = vmatpush1.msra.mxu0 0.0
  %1094 = vmatprep.subr.mxu0 0.0
  %1095 = vmatpush1.msra.mxu0 0.0
  %1096 = vmatprep.subr.mxu0 0.0
  %1097 = vmatpush1.msra.mxu0 0.0
  %1098 = vmatprep.subr.mxu0 0.0
  %1099 = vmatpush1.msra.mxu0 0.0
  %1100 = vmatprep.subr.mxu0 0.0
  %1101 = vmatpush1.msra.mxu0 0.0
  %1102 = vmatprep.subr.mxu0 0.0
  %1103 = vmatpush1.msra.mxu0 0.0
  %1104 = vmatprep.subr.mxu0 0.0
  %1105 = vmatpush1.msra.mxu0 0.0
  %1106 = vmatprep.subr.mxu0 0.0
  %1107 = vmatpush1.msra.mxu0 0.0
  %1108 = vmatprep.subr.mxu0 0.0
  %1109 = vmatpush1.msra.mxu0 0.0
  %1110 = vmatprep.subr.mxu0 0.0
  %1111 = vmatpush1.msra.mxu0 0.0
  %1112 = vmatprep.subr.mxu0 0.0
  %1113 = vmatpush1.msra.mxu0 0.0
  %1114 = vmatprep.subr.mxu0 0.0
  %1115 = vmatpush1.msra.mxu0 0.0
  %1116 = vmatprep.subr.mxu0 0.0
  %1117 = vmatpush1.msra.mxu0 0.0
  %1118 = vmatprep.subr.mxu0 0.0
  %1119 = vmatpush1.msra.mxu0 0.0
  %1120 = vmatprep.subr.mxu0 0.0
  %1121 = vmatpush1.msra.mxu0 0.0
  %1122 = vmatprep.subr.mxu0 0.0
  %1123 = vmatpush1.msra.mxu0 0.0
  %1124 = vmatprep.subr.mxu0 0.0
  %1125 = vmatpush1.msra.mxu0 0.0
  %1126 = vmatprep.subr.mxu0 0.0
  %1127 = vmatpush1.msra.mxu0 0.0
  %1128 = vmatprep.subr.mxu0 0.0
  %1129 = vmatpush1.msra.mxu0 0.0
  %1130 = vmatprep.mubr.f32.mxu0 0.0
  %1131 = vmatmul.mubr.f32.gmra.mrb[0].mxu0 %v1064
  %v1132 = vpop.f32.mrb[0].mxu0
  %v1133 = vadd.f32 0.0, %v1132
  %v1134 = vpop.f32.mrb[0].mxu0
  %1135 = vdwg.mxu0
  %v1136 = vadd.f32 %v357, %v1133
  %v1137 = vxor.u32 %v1061, 2147483648
  %v1138 = vmul.f32 %v1137, 1.442695
  %v1139 = vpow.pop %v1138
  %v1140 = vadd.f32 %v1139, 1.0
  %v1141 = vrcp.pop %v1140
  %v1142 = vmul.f32 1.0, %v1141
  %v1143 = vtanh.pop %v1061
  %v1144 = vmul.f32 %v1142, %v948
  %1146 = vrot.lane.b32.xlu0 %v1143, 64
  %v1147 = vpop.permute.xlu0 %1146
  %v1149 = vmul.f32 %v1142, %v1147
  %1151 = vrot.lane.b32.xlu0 %v1149, 32
  %v1152 = vpop.permute.xlu0 %1151
  %v1154 = vadd.f32 %v1144, %v1152
  %v1155 = vtanh.pop %v1154
  %1157 = vrot.lane.b32.xlu0 %v1155, 64
  %v1158 = vpop.permute.xlu0 %1157
  %v1160 = vmul.f32 %v1142, %v1158
  %v1161 = vxor.u32 %v1136, 2147483648
  %v1162 = vmul.f32 %v1161, 1.442695
  %v1163 = vpow.pop %v1162
  %v1164 = vadd.f32 %v1163, 1.0
  %v1165 = vrcp.pop %v1164
  %v1166 = vmul.f32 1.0, %v1165
  %v1167 = vtanh.pop %v1136
  %v1168 = vmul.f32 %v1166, %v972
  %1170 = vrot.lane.b32.xlu0 %v1167, 64
  %v1171 = vpop.permute.xlu0 %1170
  %v1173 = vmul.f32 %v1166, %v1171
  %1175 = vrot.lane.b32.xlu0 %v1173, 32
  %v1176 = vpop.permute.xlu0 %1175
  %v1178 = vadd.f32 %v1168, %v1176
  %v1179 = vtanh.pop %v1178
  %1181 = vrot.lane.b32.xlu0 %v1179, 64
  %v1182 = vpop.permute.xlu0 %1181
  %v1184 = vmul.f32 %v1166, %v1182
  %1186 = vrot.lane.b32.xlu0 %v1160, 32
  %v1187 = vpop.permute.xlu0 %1186
  %1189 = vst.msk [vmem:[%s7 + $0x18] sm:$0xff] %vm372, %v1187
  %1191 = vrot.lane.b32.xlu0 %v1184, 64
  %v1192 = vpop.permute.xlu0 %1191
  %1194 = vst.msk [vmem:[%s7 + $0x20] sm:$0xff] %vm575, %v1192
  %v1195 = vsel %vm372, %v1187, 0
  %1197 = vmatprep.subr.mxu0 0.0
  %1198 = vmatpush1.msra.mxu0 %v364
  %1199 = vmatprep.subr.mxu0 0.0
  %1200 = vmatpush1.msra.mxu0 %v365
  %1201 = vmatprep.subr.mxu0 0.0
  %1202 = vmatpush1.msra.mxu0 %v366
  %1203 = vmatprep.subr.mxu0 0.0
  %1204 = vmatpush1.msra.mxu0 %v367
  %1205 = vmatprep.subr.mxu0 0.0
  %1206 = vmatpush1.msra.mxu0 0.0
  %1207 = vmatprep.subr.mxu0 0.0
  %1208 = vmatpush1.msra.mxu0 0.0
  %1209 = vmatprep.subr.mxu0 0.0
  %1210 = vmatpush1.msra.mxu0 0.0
  %1211 = vmatprep.subr.mxu0 0.0
  %1212 = vmatpush1.msra.mxu0 0.0
  %1213 = vmatprep.subr.mxu0 0.0
  %1214 = vmatpush1.msra.mxu0 0.0
  %1215 = vmatprep.subr.mxu0 0.0
  %1216 = vmatpush1.msra.mxu0 0.0
  %1217 = vmatprep.subr.mxu0 0.0
  %1218 = vmatpush1.msra.mxu0 0.0
  %1219 = vmatprep.subr.mxu0 0.0
  %1220 = vmatpush1.msra.mxu0 0.0
  %1221 = vmatprep.subr.mxu0 0.0
  %1222 = vmatpush1.msra.mxu0 0.0
  %1223 = vmatprep.subr.mxu0 0.0
  %1224 = vmatpush1.msra.mxu0 0.0
  %1225 = vmatprep.subr.mxu0 0.0
  %1226 = vmatpush1.msra.mxu0 0.0
  %1227 = vmatprep.subr.mxu0 0.0
  %1228 = vmatpush1.msra.mxu0 0.0
  %1229 = vmatprep.subr.mxu0 0.0
  %1230 = vmatpush1.msra.mxu0 0.0
  %1231 = vmatprep.subr.mxu0 0.0
  %1232 = vmatpush1.msra.mxu0 0.0
  %1233 = vmatprep.subr.mxu0 0.0
  %1234 = vmatpush1.msra.mxu0 0.0
  %1235 = vmatprep.subr.mxu0 0.0
  %1236 = vmatpush1.msra.mxu0 0.0
  %1237 = vmatprep.subr.mxu0 0.0
  %1238 = vmatpush1.msra.mxu0 0.0
  %1239 = vmatprep.subr.mxu0 0.0
  %1240 = vmatpush1.msra.mxu0 0.0
  %1241 = vmatprep.subr.mxu0 0.0
  %1242 = vmatpush1.msra.mxu0 0.0
  %1243 = vmatprep.subr.mxu0 0.0
  %1244 = vmatpush1.msra.mxu0 0.0
  %1245 = vmatprep.subr.mxu0 0.0
  %1246 = vmatpush1.msra.mxu0 0.0
  %1247 = vmatprep.subr.mxu0 0.0
  %1248 = vmatpush1.msra.mxu0 0.0
  %1249 = vmatprep.subr.mxu0 0.0
  %1250 = vmatpush1.msra.mxu0 0.0
  %1251 = vmatprep.subr.mxu0 0.0
  %1252 = vmatpush1.msra.mxu0 0.0
  %1253 = vmatprep.subr.mxu0 0.0
  %1254 = vmatpush1.msra.mxu0 0.0
  %1255 = vmatprep.subr.mxu0 0.0
  %1256 = vmatpush1.msra.mxu0 0.0
  %1257 = vmatprep.subr.mxu0 0.0
  %1258 = vmatpush1.msra.mxu0 0.0
  %1259 = vmatprep.subr.mxu0 0.0
  %1260 = vmatpush1.msra.mxu0 0.0
  %1261 = vmatprep.mubr.f32.mxu0 0.0
  %1262 = vmatmul.mubr.f32.gmra.mrb[0].mxu0 %v1195
  %v1263 = vpop.f32.mrb[0].mxu0
  %v1264 = vadd.f32 0.0, %v1263
  %v1265 = vpop.f32.mrb[0].mxu0
  %1266 = vdwg.mxu0
  %v1267 = vadd.f32 %v356, %v1264
  %1268 = vrot.lane.b32.xlu0 %v1184, 32
  %v1269 = vpop.permute.xlu0 %1268
  %v1270 = vsel %vm372, %v1269, 0
  %1272 = vmatprep.subr.mxu0 0.0
  %1273 = vmatpush1.msra.mxu0 %v368
  %1274 = vmatprep.subr.mxu0 0.0
  %1275 = vmatpush1.msra.mxu0 %v369
  %1276 = vmatprep.subr.mxu0 0.0
  %1277 = vmatpush1.msra.mxu0 %v370
  %1278 = vmatprep.subr.mxu0 0.0
  %1279 = vmatpush1.msra.mxu0 %v371
  %1280 = vmatprep.subr.mxu0 0.0
  %1281 = vmatpush1.msra.mxu0 0.0
  %1282 = vmatprep.subr.mxu0 0.0
  %1283 = vmatpush1.msra.mxu0 0.0
  %1284 = vmatprep.subr.mxu0 0.0
  %1285 = vmatpush1.msra.mxu0 0.0
  %1286 = vmatprep.subr.mxu0 0.0
  %1287 = vmatpush1.msra.mxu0 0.0
  %1288 = vmatprep.subr.mxu0 0.0
  %1289 = vmatpush1.msra.mxu0 0.0
  %1290 = vmatprep.subr.mxu0 0.0
  %1291 = vmatpush1.msra.mxu0 0.0
  %1292 = vmatprep.subr.mxu0 0.0
  %1293 = vmatpush1.msra.mxu0 0.0
  %1294 = vmatprep.subr.mxu0 0.0
  %1295 = vmatpush1.msra.mxu0 0.0
  %1296 = vmatprep.subr.mxu0 0.0
  %1297 = vmatpush1.msra.mxu0 0.0
  %1298 = vmatprep.subr.mxu0 0.0
  %1299 = vmatpush1.msra.mxu0 0.0
  %1300 = vmatprep.subr.mxu0 0.0
  %1301 = vmatpush1.msra.mxu0 0.0
  %1302 = vmatprep.subr.mxu0 0.0
  %1303 = vmatpush1.msra.mxu0 0.0
  %1304 = vmatprep.subr.mxu0 0.0
  %1305 = vmatpush1.msra.mxu0 0.0
  %1306 = vmatprep.subr.mxu0 0.0
  %1307 = vmatpush1.msra.mxu0 0.0
  %1308 = vmatprep.subr.mxu0 0.0
  %1309 = vmatpush1.msra.mxu0 0.0
  %1310 = vmatprep.subr.mxu0 0.0
  %1311 = vmatpush1.msra.mxu0 0.0
  %1312 = vmatprep.subr.mxu0 0.0
  %1313 = vmatpush1.msra.mxu0 0.0
  %1314 = vmatprep.subr.mxu0 0.0
  %1315 = vmatpush1.msra.mxu0 0.0
  %1316 = vmatprep.subr.mxu0 0.0
  %1317 = vmatpush1.msra.mxu0 0.0
  %1318 = vmatprep.subr.mxu0 0.0
  %1319 = vmatpush1.msra.mxu0 0.0
  %1320 = vmatprep.subr.mxu0 0.0
  %1321 = vmatpush1.msra.mxu0 0.0
  %1322 = vmatprep.subr.mxu0 0.0
  %1323 = vmatpush1.msra.mxu0 0.0
  %1324 = vmatprep.subr.mxu0 0.0
  %1325 = vmatpush1.msra.mxu0 0.0
  %1326 = vmatprep.subr.mxu0 0.0
  %1327 = vmatpush1.msra.mxu0 0.0
  %1328 = vmatprep.subr.mxu0 0.0
  %1329 = vmatpush1.msra.mxu0 0.0
  %1330 = vmatprep.subr.mxu0 0.0
  %1331 = vmatpush1.msra.mxu0 0.0
  %1332 = vmatprep.subr.mxu0 0.0
  %1333 = vmatpush1.msra.mxu0 0.0
  %1334 = vmatprep.subr.mxu0 0.0
  %1335 = vmatpush1.msra.mxu0 0.0
  %1336 = vmatprep.mubr.f32.mxu0 0.0
  %1337 = vmatmul.mubr.f32.gmra.mrb[0].mxu0 %v1270
  %v1338 = vpop.f32.mrb[0].mxu0
  %v1339 = vadd.f32 0.0, %v1338
  %v1340 = vpop.f32.mrb[0].mxu0
  %1341 = vdwg.mxu0
  %v1342 = vadd.f32 %v355, %v1339
  %v1343 = vxor.u32 %v1267, 2147483648
  %v1344 = vmul.f32 %v1343, 1.442695
  %v1345 = vpow.pop %v1344
  %v1346 = vadd.f32 %v1345, 1.0
  %v1347 = vrcp.pop %v1346
  %v1348 = vmul.f32 1.0, %v1347
  %v1349 = vtanh.pop %v1267
  %v1350 = vmul.f32 %v1348, %v1154
  %1352 = vrot.lane.b32.xlu0 %v1349, 64
  %v1353 = vpop.permute.xlu0 %1352
  %v1355 = vmul.f32 %v1348, %v1353
  %1357 = vrot.lane.b32.xlu0 %v1355, 32
  %v1358 = vpop.permute.xlu0 %1357
  %v1360 = vadd.f32 %v1350, %v1358
  %v1361 = vtanh.pop %v1360
  %1363 = vrot.lane.b32.xlu0 %v1361, 64
  %v1364 = vpop.permute.xlu0 %1363
  %v1366 = vmul.f32 %v1348, %v1364
  %v1367 = vxor.u32 %v1342, 2147483648
  %v1368 = vmul.f32 %v1367, 1.442695
  %v1369 = vpow.pop %v1368
  %v1370 = vadd.f32 %v1369, 1.0
  %v1371 = vrcp.pop %v1370
  %v1372 = vmul.f32 1.0, %v1371
  %v1373 = vtanh.pop %v1342
  %v1374 = vmul.f32 %v1372, %v1178
  %1376 = vrot.lane.b32.xlu0 %v1373, 64
  %v1377 = vpop.permute.xlu0 %1376
  %v1379 = vmul.f32 %v1372, %v1377
  %1381 = vrot.lane.b32.xlu0 %v1379, 32
  %v1382 = vpop.permute.xlu0 %1381
  %v1384 = vadd.f32 %v1374, %v1382
  %v1385 = vtanh.pop %v1384
  %1387 = vrot.lane.b32.xlu0 %v1385, 64
  %v1388 = vpop.permute.xlu0 %1387
  %v1390 = vmul.f32 %v1372, %v1388
  %1392 = vrot.lane.b32.xlu0 %v1366, 32
  %v1393 = vpop.permute.xlu0 %1392
  %1395 = vst.msk [vmem:[%s7 + $0x20] sm:$0xff] %vm372, %v1393
  %1397 = vrot.lane.b32.xlu0 %v1390, 64
  %v1398 = vpop.permute.xlu0 %1397
  %1400 = vst.msk [vmem:[%s7 + $0x18] sm:$0xff] %vm575, %v1398
  %v1401 = vsel %vm372, %v1393, 0
  %1403 = vmatprep.subr.mxu0 0.0
  %1404 = vmatpush1.msra.mxu0 %v364
  %1405 = vmatprep.subr.mxu0 0.0
  %1406 = vmatpush1.msra.mxu0 %v365
  %1407 = vmatprep.subr.mxu0 0.0
  %1408 = vmatpush1.msra.mxu0 %v366
  %1409 = vmatprep.subr.mxu0 0.0
  %1410 = vmatpush1.msra.mxu0 %v367
  %1411 = vmatprep.subr.mxu0 0.0
  %1412 = vmatpush1.msra.mxu0 0.0
  %1413 = vmatprep.subr.mxu0 0.0
  %1414 = vmatpush1.msra.mxu0 0.0
  %1415 = vmatprep.subr.mxu0 0.0
  %1416 = vmatpush1.msra.mxu0 0.0
  %1417 = vmatprep.subr.mxu0 0.0
  %1418 = vmatpush1.msra.mxu0 0.0
  %1419 = vmatprep.subr.mxu0 0.0
  %1420 = vmatpush1.msra.mxu0 0.0
  %1421 = vmatprep.subr.mxu0 0.0
  %1422 = vmatpush1.msra.mxu0 0.0
  %1423 = vmatprep.subr.mxu0 0.0
  %1424 = vmatpush1.msra.mxu0 0.0
  %1425 = vmatprep.subr.mxu0 0.0
  %1426 = vmatpush1.msra.mxu0 0.0
  %1427 = vmatprep.subr.mxu0 0.0
  %1428 = vmatpush1.msra.mxu0 0.0
  %1429 = vmatprep.subr.mxu0 0.0
  %1430 = vmatpush1.msra.mxu0 0.0
  %1431 = vmatprep.subr.mxu0 0.0
  %1432 = vmatpush1.msra.mxu0 0.0
  %1433 = vmatprep.subr.mxu0 0.0
  %1434 = vmatpush1.msra.mxu0 0.0
  %1435 = vmatprep.subr.mxu0 0.0
  %1436 = vmatpush1.msra.mxu0 0.0
  %1437 = vmatprep.subr.mxu0 0.0
  %1438 = vmatpush1.msra.mxu0 0.0
  %1439 = vmatprep.subr.mxu0 0.0
  %1440 = vmatpush1.msra.mxu0 0.0
  %1441 = vmatprep.subr.mxu0 0.0
  %1442 = vmatpush1.msra.mxu0 0.0
  %1443 = vmatprep.subr.mxu0 0.0
  %1444 = vmatpush1.msra.mxu0 0.0
  %1445 = vmatprep.subr.mxu0 0.0
  %1446 = vmatpush1.msra.mxu0 0.0
  %1447 = vmatprep.subr.mxu0 0.0
  %1448 = vmatpush1.msra.mxu0 0.0
  %1449 = vmatprep.subr.mxu0 0.0
  %1450 = vmatpush1.msra.mxu0 0.0
  %1451 = vmatprep.subr.mxu0 0.0
  %1452 = vmatpush1.msra.mxu0 0.0
  %1453 = vmatprep.subr.mxu0 0.0
  %1454 = vmatpush1.msra.mxu0 0.0
  %1455 = vmatprep.subr.mxu0 0.0
  %1456 = vmatpush1.msra.mxu0 0.0
  %1457 = vmatprep.subr.mxu0 0.0
  %1458 = vmatpush1.msra.mxu0 0.0
  %1459 = vmatprep.subr.mxu0 0.0
  %1460 = vmatpush1.msra.mxu0 0.0
  %1461 = vmatprep.subr.mxu0 0.0
  %1462 = vmatpush1.msra.mxu0 0.0
  %1463 = vmatprep.subr.mxu0 0.0
  %1464 = vmatpush1.msra.mxu0 0.0
  %1465 = vmatprep.subr.mxu0 0.0
  %1466 = vmatpush1.msra.mxu0 0.0
  %1467 = vmatprep.mubr.f32.mxu0 0.0
  %1468 = vmatmul.mubr.f32.gmra.mrb[0].mxu0 %v1401
  %v1469 = vpop.f32.mrb[0].mxu0
  %v1470 = vadd.f32 0.0, %v1469
  %v1471 = vpop.f32.mrb[0].mxu0
  %1472 = vdwg.mxu0
  %v1473 = vadd.f32 %v358, %v1470
  %1474 = vrot.lane.b32.xlu0 %v1390, 32
  %v1475 = vpop.permute.xlu0 %1474
  %v1476 = vsel %vm372, %v1475, 0
  %1478 = vmatprep.subr.mxu0 0.0
  %1479 = vmatpush1.msra.mxu0 %v368
  %1480 = vmatprep.subr.mxu0 0.0
  %1481 = vmatpush1.msra.mxu0 %v369
  %1482 = vmatprep.subr.mxu0 0.0
  %1483 = vmatpush1.msra.mxu0 %v370
  %1484 = vmatprep.subr.mxu0 0.0
  %1485 = vmatpush1.msra.mxu0 %v371
  %1486 = vmatprep.subr.mxu0 0.0
  %1487 = vmatpush1.msra.mxu0 0.0
  %1488 = vmatprep.subr.mxu0 0.0
  %1489 = vmatpush1.msra.mxu0 0.0
  %1490 = vmatprep.subr.mxu0 0.0
  %1491 = vmatpush1.msra.mxu0 0.0
  %1492 = vmatprep.subr.mxu0 0.0
  %1493 = vmatpush1.msra.mxu0 0.0
  %1494 = vmatprep.subr.mxu0 0.0
  %1495 = vmatpush1.msra.mxu0 0.0
  %1496 = vmatprep.subr.mxu0 0.0
  %1497 = vmatpush1.msra.mxu0 0.0
  %1498 = vmatprep.subr.mxu0 0.0
  %1499 = vmatpush1.msra.mxu0 0.0
  %1500 = vmatprep.subr.mxu0 0.0
  %1501 = vmatpush1.msra.mxu0 0.0
  %1502 = vmatprep.subr.mxu0 0.0
  %1503 = vmatpush1.msra.mxu0 0.0
  %1504 = vmatprep.subr.mxu0 0.0
  %1505 = vmatpush1.msra.mxu0 0.0
  %1506 = vmatprep.subr.mxu0 0.0
  %1507 = vmatpush1.msra.mxu0 0.0
  %1508 = vmatprep.subr.mxu0 0.0
  %1509 = vmatpush1.msra.mxu0 0.0
  %1510 = vmatprep.subr.mxu0 0.0
  %1511 = vmatpush1.msra.mxu0 0.0
  %1512 = vmatprep.subr.mxu0 0.0
  %1513 = vmatpush1.msra.mxu0 0.0
  %1514 = vmatprep.subr.mxu0 0.0
  %1515 = vmatpush1.msra.mxu0 0.0
  %1516 = vmatprep.subr.mxu0 0.0
  %1517 = vmatpush1.msra.mxu0 0.0
  %1518 = vmatprep.subr.mxu0 0.0
  %1519 = vmatpush1.msra.mxu0 0.0
  %1520 = vmatprep.subr.mxu0 0.0
  %1521 = vmatpush1.msra.mxu0 0.0
  %1522 = vmatprep.subr.mxu0 0.0
  %1523 = vmatpush1.msra.mxu0 0.0
  %1524 = vmatprep.subr.mxu0 0.0
  %1525 = vmatpush1.msra.mxu0 0.0
  %1526 = vmatprep.subr.mxu0 0.0
  %1527 = vmatpush1.msra.mxu0 0.0
  %1528 = vmatprep.subr.mxu0 0.0
  %1529 = vmatpush1.msra.mxu0 0.0
  %1530 = vmatprep.subr.mxu0 0.0
  %1531 = vmatpush1.msra.mxu0 0.0
  %1532 = vmatprep.subr.mxu0 0.0
  %1533 = vmatpush1.msra.mxu0 0.0
  %1534 = vmatprep.subr.mxu0 0.0
  %1535 = vmatpush1.msra.mxu0 0.0
  %1536 = vmatprep.subr.mxu0 0.0
  %1537 = vmatpush1.msra.mxu0 0.0
  %1538 = vmatprep.subr.mxu0 0.0
  %1539 = vmatpush1.msra.mxu0 0.0
  %1540 = vmatprep.subr.mxu0 0.0
  %1541 = vmatpush1.msra.mxu0 0.0
  %1542 = vmatprep.mubr.f32.mxu0 0.0
  %1543 = vmatmul.mubr.f32.gmra.mrb[0].mxu0 %v1476
  %v1544 = vpop.f32.mrb[0].mxu0
  %v1545 = vadd.f32 0.0, %v1544
  %v1546 = vpop.f32.mrb[0].mxu0
  %1547 = vdwg.mxu0
  %v1548 = vadd.f32 %v353, %v1545
  %v1549 = vxor.u32 %v1473, 2147483648
  %v1550 = vmul.f32 %v1549, 1.442695
  %v1551 = vpow.pop %v1550
  %v1552 = vadd.f32 %v1551, 1.0
  %v1553 = vrcp.pop %v1552
  %v1554 = vmul.f32 1.0, %v1553
  %v1555 = vtanh.pop %v1473
  %v1556 = vmul.f32 %v1554, %v1360
  %1558 = vrot.lane.b32.xlu0 %v1555, 64
  %v1559 = vpop.permute.xlu0 %1558
  %v1561 = vmul.f32 %v1554, %v1559
  %1563 = vrot.lane.b32.xlu0 %v1561, 32
  %v1564 = vpop.permute.xlu0 %1563
  %v1566 = vadd.f32 %v1556, %v1564
  %v1567 = vtanh.pop %v1566
  %1569 = vrot.lane.b32.xlu0 %v1567, 64
  %v1570 = vpop.permute.xlu0 %1569
  %v1572 = vmul.f32 %v1554, %v1570
  %v1573 = vxor.u32 %v1548, 2147483648
  %v1574 = vmul.f32 %v1573, 1.442695
  %v1575 = vpow.pop %v1574
  %v1576 = vadd.f32 %v1575, 1.0
  %v1577 = vrcp.pop %v1576
  %v1578 = vmul.f32 1.0, %v1577
  %v1579 = vtanh.pop %v1548
  %v1580 = vmul.f32 %v1578, %v1384
  %1582 = vrot.lane.b32.xlu0 %v1579, 64
  %v1583 = vpop.permute.xlu0 %1582
  %v1585 = vmul.f32 %v1578, %v1583
  %1587 = vrot.lane.b32.xlu0 %v1585, 32
  %v1588 = vpop.permute.xlu0 %1587
  %v1590 = vadd.f32 %v1580, %v1588
  %v1591 = vtanh.pop %v1590
  %1593 = vrot.lane.b32.xlu0 %v1591, 64
  %v1594 = vpop.permute.xlu0 %1593
  %v1596 = vmul.f32 %v1578, %v1594
  %1598 = vrot.lane.b32.xlu0 %v1572, 32
  %v1599 = vpop.permute.xlu0 %1598
  %1601 = vst.msk [vmem:[%s7 + $0x28] sm:$0xff] %vm372, %v1599
  %1603 = vrot.lane.b32.xlu0 %v1596, 64
  %v1604 = vpop.permute.xlu0 %1603
  %1606 = vst.msk [vmem:[%s7 + $0x10] sm:$0xff] %vm575, %v1604
  %v1607 = vsel %vm372, %v1599, 0
  %1609 = vmatprep.subr.mxu0 0.0
  %1610 = vmatpush1.msra.mxu0 %v364
  %1611 = vmatprep.subr.mxu0 0.0
  %1612 = vmatpush1.msra.mxu0 %v365
  %1613 = vmatprep.subr.mxu0 0.0
  %1614 = vmatpush1.msra.mxu0 %v366
  %1615 = vmatprep.subr.mxu0 0.0
  %1616 = vmatpush1.msra.mxu0 %v367
  %1617 = vmatprep.subr.mxu0 0.0
  %1618 = vmatpush1.msra.mxu0 0.0
  %1619 = vmatprep.subr.mxu0 0.0
  %1620 = vmatpush1.msra.mxu0 0.0
  %1621 = vmatprep.subr.mxu0 0.0
  %1622 = vmatpush1.msra.mxu0 0.0
  %1623 = vmatprep.subr.mxu0 0.0
  %1624 = vmatpush1.msra.mxu0 0.0
  %1625 = vmatprep.subr.mxu0 0.0
  %1626 = vmatpush1.msra.mxu0 0.0
  %1627 = vmatprep.subr.mxu0 0.0
  %1628 = vmatpush1.msra.mxu0 0.0
  %1629 = vmatprep.subr.mxu0 0.0
  %1630 = vmatpush1.msra.mxu0 0.0
  %1631 = vmatprep.subr.mxu0 0.0
  %1632 = vmatpush1.msra.mxu0 0.0
  %1633 = vmatprep.subr.mxu0 0.0
  %1634 = vmatpush1.msra.mxu0 0.0
  %1635 = vmatprep.subr.mxu0 0.0
  %1636 = vmatpush1.msra.mxu0 0.0
  %1637 = vmatprep.subr.mxu0 0.0
  %1638 = vmatpush1.msra.mxu0 0.0
  %1639 = vmatprep.subr.mxu0 0.0
  %1640 = vmatpush1.msra.mxu0 0.0
  %1641 = vmatprep.subr.mxu0 0.0
  %1642 = vmatpush1.msra.mxu0 0.0
  %1643 = vmatprep.subr.mxu0 0.0
  %1644 = vmatpush1.msra.mxu0 0.0
  %1645 = vmatprep.subr.mxu0 0.0
  %1646 = vmatpush1.msra.mxu0 0.0
  %1647 = vmatprep.subr.mxu0 0.0
  %1648 = vmatpush1.msra.mxu0 0.0
  %1649 = vmatprep.subr.mxu0 0.0
  %1650 = vmatpush1.msra.mxu0 0.0
  %1651 = vmatprep.subr.mxu0 0.0
  %1652 = vmatpush1.msra.mxu0 0.0
  %1653 = vmatprep.subr.mxu0 0.0
  %1654 = vmatpush1.msra.mxu0 0.0
  %1655 = vmatprep.subr.mxu0 0.0
  %1656 = vmatpush1.msra.mxu0 0.0
  %1657 = vmatprep.subr.mxu0 0.0
  %1658 = vmatpush1.msra.mxu0 0.0
  %1659 = vmatprep.subr.mxu0 0.0
  %1660 = vmatpush1.msra.mxu0 0.0
  %1661 = vmatprep.subr.mxu0 0.0
  %1662 = vmatpush1.msra.mxu0 0.0
  %1663 = vmatprep.subr.mxu0 0.0
  %1664 = vmatpush1.msra.mxu0 0.0
  %1665 = vmatprep.subr.mxu0 0.0
  %1666 = vmatpush1.msra.mxu0 0.0
  %1667 = vmatprep.subr.mxu0 0.0
  %1668 = vmatpush1.msra.mxu0 0.0
  %1669 = vmatprep.subr.mxu0 0.0
  %1670 = vmatpush1.msra.mxu0 0.0
  %1671 = vmatprep.subr.mxu0 0.0
  %1672 = vmatpush1.msra.mxu0 0.0
  %1673 = vmatprep.mubr.f32.mxu0 0.0
  %1674 = vmatmul.mubr.f32.gmra.mrb[0].mxu0 %v1607
  %v1675 = vpop.f32.mrb[0].mxu0
  %v1676 = vadd.f32 0.0, %v1675
  %v1677 = vpop.f32.mrb[0].mxu0
  %1678 = vdwg.mxu0
  %v1679 = vadd.f32 %v360, %v1676
  %1680 = vrot.lane.b32.xlu0 %v1596, 32
  %v1681 = vpop.permute.xlu0 %1680
  %v1682 = vsel %vm372, %v1681, 0
  %1684 = vmatprep.subr.mxu0 0.0
  %1685 = vmatpush1.msra.mxu0 %v368
  %1686 = vmatprep.subr.mxu0 0.0
  %1687 = vmatpush1.msra.mxu0 %v369
  %1688 = vmatprep.subr.mxu0 0.0
  %1689 = vmatpush1.msra.mxu0 %v370
  %1690 = vmatprep.subr.mxu0 0.0
  %1691 = vmatpush1.msra.mxu0 %v371
  %1692 = vmatprep.subr.mxu0 0.0
  %1693 = vmatpush1.msra.mxu0 0.0
  %1694 = vmatprep.subr.mxu0 0.0
  %1695 = vmatpush1.msra.mxu0 0.0
  %1696 = vmatprep.subr.mxu0 0.0
  %1697 = vmatpush1.msra.mxu0 0.0
  %1698 = vmatprep.subr.mxu0 0.0
  %1699 = vmatpush1.msra.mxu0 0.0
  %1700 = vmatprep.subr.mxu0 0.0
  %1701 = vmatpush1.msra.mxu0 0.0
  %1702 = vmatprep.subr.mxu0 0.0
  %1703 = vmatpush1.msra.mxu0 0.0
  %1704 = vmatprep.subr.mxu0 0.0
  %1705 = vmatpush1.msra.mxu0 0.0
  %1706 = vmatprep.subr.mxu0 0.0
  %1707 = vmatpush1.msra.mxu0 0.0
  %1708 = vmatprep.subr.mxu0 0.0
  %1709 = vmatpush1.msra.mxu0 0.0
  %1710 = vmatprep.subr.mxu0 0.0
  %1711 = vmatpush1.msra.mxu0 0.0
  %1712 = vmatprep.subr.mxu0 0.0
  %1713 = vmatpush1.msra.mxu0 0.0
  %1714 = vmatprep.subr.mxu0 0.0
  %1715 = vmatpush1.msra.mxu0 0.0
  %1716 = vmatprep.subr.mxu0 0.0
  %1717 = vmatpush1.msra.mxu0 0.0
  %1718 = vmatprep.subr.mxu0 0.0
  %1719 = vmatpush1.msra.mxu0 0.0
  %1720 = vmatprep.subr.mxu0 0.0
  %1721 = vmatpush1.msra.mxu0 0.0
  %1722 = vmatprep.subr.mxu0 0.0
  %1723 = vmatpush1.msra.mxu0 0.0
  %1724 = vmatprep.subr.mxu0 0.0
  %1725 = vmatpush1.msra.mxu0 0.0
  %1726 = vmatprep.subr.mxu0 0.0
  %1727 = vmatpush1.msra.mxu0 0.0
  %1728 = vmatprep.subr.mxu0 0.0
  %1729 = vmatpush1.msra.mxu0 0.0
  %1730 = vmatprep.subr.mxu0 0.0
  %1731 = vmatpush1.msra.mxu0 0.0
  %1732 = vmatprep.subr.mxu0 0.0
  %1733 = vmatpush1.msra.mxu0 0.0
  %1734 = vmatprep.subr.mxu0 0.0
  %1735 = vmatpush1.msra.mxu0 0.0
  %1736 = vmatprep.subr.mxu0 0.0
  %1737 = vmatpush1.msra.mxu0 0.0
  %1738 = vmatprep.subr.mxu0 0.0
  %1739 = vmatpush1.msra.mxu0 0.0
  %1740 = vmatprep.subr.mxu0 0.0
  %1741 = vmatpush1.msra.mxu0 0.0
  %1742 = vmatprep.subr.mxu0 0.0
  %1743 = vmatpush1.msra.mxu0 0.0
  %1744 = vmatprep.subr.mxu0 0.0
  %1745 = vmatpush1.msra.mxu0 0.0
  %1746 = vmatprep.subr.mxu0 0.0
  %1747 = vmatpush1.msra.mxu0 0.0
  %1748 = vmatprep.mubr.f32.mxu0 0.0
  %1749 = vmatmul.mubr.f32.gmra.mrb[0].mxu0 %v1682
  %v1750 = vpop.f32.mrb[0].mxu0
  %v1751 = vadd.f32 0.0, %v1750
  %v1752 = vpop.f32.mrb[0].mxu0
  %1753 = vdwg.mxu0
  %v1754 = vadd.f32 %v351, %v1751
  %v1755 = vxor.u32 %v1679, 2147483648
  %v1756 = vmul.f32 %v1755, 1.442695
  %v1757 = vpow.pop %v1756
  %v1758 = vadd.f32 %v1757, 1.0
  %v1759 = vrcp.pop %v1758
  %v1760 = vmul.f32 1.0, %v1759
  %v1761 = vtanh.pop %v1679
  %v1762 = vmul.f32 %v1760, %v1566
  %1764 = vrot.lane.b32.xlu0 %v1761, 64
  %v1765 = vpop.permute.xlu0 %1764
  %v1767 = vmul.f32 %v1760, %v1765
  %1769 = vrot.lane.b32.xlu0 %v1767, 32
  %v1770 = vpop.permute.xlu0 %1769
  %v1772 = vadd.f32 %v1762, %v1770
  %v1773 = vtanh.pop %v1772
  %1775 = vrot.lane.b32.xlu0 %v1773, 64
  %v1776 = vpop.permute.xlu0 %1775
  %v1778 = vmul.f32 %v1760, %v1776
  %v1779 = vxor.u32 %v1754, 2147483648
  %v1780 = vmul.f32 %v1779, 1.442695
  %v1781 = vpow.pop %v1780
  %v1782 = vadd.f32 %v1781, 1.0
  %v1783 = vrcp.pop %v1782
  %v1784 = vmul.f32 1.0, %v1783
  %v1785 = vtanh.pop %v1754
  %v1786 = vmul.f32 %v1784, %v1590
  %1788 = vrot.lane.b32.xlu0 %v1785, 64
  %v1789 = vpop.permute.xlu0 %1788
  %v1791 = vmul.f32 %v1784, %v1789
  %1793 = vrot.lane.b32.xlu0 %v1791, 32
  %v1794 = vpop.permute.xlu0 %1793
  %v1796 = vadd.f32 %v1786, %v1794
  %v1797 = vtanh.pop %v1796
  %1799 = vrot.lane.b32.xlu0 %v1797, 64
  %v1800 = vpop.permute.xlu0 %1799
  %v1802 = vmul.f32 %v1784, %v1800
  %1804 = vrot.lane.b32.xlu0 %v1778, 32
  %v1805 = vpop.permute.xlu0 %1804
  %1807 = vst.msk [vmem:[%s7 + $0x30] sm:$0xff] %vm372, %v1805
  %1809 = vrot.lane.b32.xlu0 %v1802, 64
  %v1810 = vpop.permute.xlu0 %1809
  %1812 = vst.msk [vmem:[%s7 + $0x8] sm:$0xff] %vm575, %v1810
  %v1813 = vsel %vm372, %v1805, 0
  %1815 = vmatprep.subr.mxu0 0.0
  %1816 = vmatpush1.msra.mxu0 %v364
  %1817 = vmatprep.subr.mxu0 0.0
  %1818 = vmatpush1.msra.mxu0 %v365
  %1819 = vmatprep.subr.mxu0 0.0
  %1820 = vmatpush1.msra.mxu0 %v366
  %1821 = vmatprep.subr.mxu0 0.0
  %1822 = vmatpush1.msra.mxu0 %v367
  %1823 = vmatprep.subr.mxu0 0.0
  %1824 = vmatpush1.msra.mxu0 0.0
  %1825 = vmatprep.subr.mxu0 0.0
  %1826 = vmatpush1.msra.mxu0 0.0
  %1827 = vmatprep.subr.mxu0 0.0
  %1828 = vmatpush1.msra.mxu0 0.0
  %1829 = vmatprep.subr.mxu0 0.0
  %1830 = vmatpush1.msra.mxu0 0.0
  %1831 = vmatprep.subr.mxu0 0.0
  %1832 = vmatpush1.msra.mxu0 0.0
  %1833 = vmatprep.subr.mxu0 0.0
  %1834 = vmatpush1.msra.mxu0 0.0
  %1835 = vmatprep.subr.mxu0 0.0
  %1836 = vmatpush1.msra.mxu0 0.0
  %1837 = vmatprep.subr.mxu0 0.0
  %1838 = vmatpush1.msra.mxu0 0.0
  %1839 = vmatprep.subr.mxu0 0.0
  %1840 = vmatpush1.msra.mxu0 0.0
  %1841 = vmatprep.subr.mxu0 0.0
  %1842 = vmatpush1.msra.mxu0 0.0
  %1843 = vmatprep.subr.mxu0 0.0
  %1844 = vmatpush1.msra.mxu0 0.0
  %1845 = vmatprep.subr.mxu0 0.0
  %1846 = vmatpush1.msra.mxu0 0.0
  %1847 = vmatprep.subr.mxu0 0.0
  %1848 = vmatpush1.msra.mxu0 0.0
  %1849 = vmatprep.subr.mxu0 0.0
  %1850 = vmatpush1.msra.mxu0 0.0
  %1851 = vmatprep.subr.mxu0 0.0
  %1852 = vmatpush1.msra.mxu0 0.0
  %1853 = vmatprep.subr.mxu0 0.0
  %1854 = vmatpush1.msra.mxu0 0.0
  %1855 = vmatprep.subr.mxu0 0.0
  %1856 = vmatpush1.msra.mxu0 0.0
  %1857 = vmatprep.subr.mxu0 0.0
  %1858 = vmatpush1.msra.mxu0 0.0
  %1859 = vmatprep.subr.mxu0 0.0
  %1860 = vmatpush1.msra.mxu0 0.0
  %1861 = vmatprep.subr.mxu0 0.0
  %1862 = vmatpush1.msra.mxu0 0.0
  %1863 = vmatprep.subr.mxu0 0.0
  %1864 = vmatpush1.msra.mxu0 0.0
  %1865 = vmatprep.subr.mxu0 0.0
  %1866 = vmatpush1.msra.mxu0 0.0
  %1867 = vmatprep.subr.mxu0 0.0
  %1868 = vmatpush1.msra.mxu0 0.0
  %1869 = vmatprep.subr.mxu0 0.0
  %1870 = vmatpush1.msra.mxu0 0.0
  %1871 = vmatprep.subr.mxu0 0.0
  %1872 = vmatpush1.msra.mxu0 0.0
  %1873 = vmatprep.subr.mxu0 0.0
  %1874 = vmatpush1.msra.mxu0 0.0
  %1875 = vmatprep.subr.mxu0 0.0
  %1876 = vmatpush1.msra.mxu0 0.0
  %1877 = vmatprep.subr.mxu0 0.0
  %1878 = vmatpush1.msra.mxu0 0.0
  %1879 = vmatprep.mubr.f32.mxu0 0.0
  %1880 = vmatmul.mubr.f32.gmra.mrb[0].mxu0 %v1813
  %v1881 = vpop.f32.mrb[0].mxu0
  %v1882 = vadd.f32 0.0, %v1881
  %v1883 = vpop.f32.mrb[0].mxu0
  %1884 = vdwg.mxu0
  %v1885 = vadd.f32 %v362, %v1882
  %1886 = vrot.lane.b32.xlu0 %v1802, 32
  %v1887 = vpop.permute.xlu0 %1886
  %v1888 = vsel %vm372, %v1887, 0
  %1890 = vmatprep.subr.mxu0 0.0
  %1891 = vmatpush1.msra.mxu0 %v368
  %1892 = vmatprep.subr.mxu0 0.0
  %1893 = vmatpush1.msra.mxu0 %v369
  %1894 = vmatprep.subr.mxu0 0.0
  %1895 = vmatpush1.msra.mxu0 %v370
  %1896 = vmatprep.subr.mxu0 0.0
  %1897 = vmatpush1.msra.mxu0 %v371
  %1898 = vmatprep.subr.mxu0 0.0
  %1899 = vmatpush1.msra.mxu0 0.0
  %1900 = vmatprep.subr.mxu0 0.0
  %1901 = vmatpush1.msra.mxu0 0.0
  %1902 = vmatprep.subr.mxu0 0.0
  %1903 = vmatpush1.msra.mxu0 0.0
  %1904 = vmatprep.subr.mxu0 0.0
  %1905 = vmatpush1.msra.mxu0 0.0
  %1906 = vmatprep.subr.mxu0 0.0
  %1907 = vmatpush1.msra.mxu0 0.0
  %1908 = vmatprep.subr.mxu0 0.0
  %1909 = vmatpush1.msra.mxu0 0.0
  %1910 = vmatprep.subr.mxu0 0.0
  %1911 = vmatpush1.msra.mxu0 0.0
  %1912 = vmatprep.subr.mxu0 0.0
  %1913 = vmatpush1.msra.mxu0 0.0
  %1914 = vmatprep.subr.mxu0 0.0
  %1915 = vmatpush1.msra.mxu0 0.0
  %1916 = vmatprep.subr.mxu0 0.0
  %1917 = vmatpush1.msra.mxu0 0.0
  %1918 = vmatprep.subr.mxu0 0.0
  %1919 = vmatpush1.msra.mxu0 0.0
  %1920 = vmatprep.subr.mxu0 0.0
  %1921 = vmatpush1.msra.mxu0 0.0
  %1922 = vmatprep.subr.mxu0 0.0
  %1923 = vmatpush1.msra.mxu0 0.0
  %1924 = vmatprep.subr.mxu0 0.0
  %1925 = vmatpush1.msra.mxu0 0.0
  %1926 = vmatprep.subr.mxu0 0.0
  %1927 = vmatpush1.msra.mxu0 0.0
  %1928 = vmatprep.subr.mxu0 0.0
  %1929 = vmatpush1.msra.mxu0 0.0
  %1930 = vmatprep.subr.mxu0 0.0
  %1931 = vmatpush1.msra.mxu0 0.0
  %1932 = vmatprep.subr.mxu0 0.0
  %1933 = vmatpush1.msra.mxu0 0.0
  %1934 = vmatprep.subr.mxu0 0.0
  %1935 = vmatpush1.msra.mxu0 0.0
  %1936 = vmatprep.subr.mxu0 0.0
  %1937 = vmatpush1.msra.mxu0 0.0
  %1938 = vmatprep.subr.mxu0 0.0
  %1939 = vmatpush1.msra.mxu0 0.0
  %1940 = vmatprep.subr.mxu0 0.0
  %1941 = vmatpush1.msra.mxu0 0.0
  %1942 = vmatprep.subr.mxu0 0.0
  %1943 = vmatpush1.msra.mxu0 0.0
  %1944 = vmatprep.subr.mxu0 0.0
  %1945 = vmatpush1.msra.mxu0 0.0
  %1946 = vmatprep.subr.mxu0 0.0
  %1947 = vmatpush1.msra.mxu0 0.0
  %1948 = vmatprep.subr.mxu0 0.0
  %1949 = vmatpush1.msra.mxu0 0.0
  %1950 = vmatprep.subr.mxu0 0.0
  %1951 = vmatpush1.msra.mxu0 0.0
  %1952 = vmatprep.subr.mxu0 0.0
  %1953 = vmatpush1.msra.mxu0 0.0
  %1954 = vmatprep.mubr.f32.mxu0 0.0
  %1955 = vmatmul.mubr.f32.gmra.mrb[0].mxu0 %v1888
  %v1956 = vpop.f32.mrb[0].mxu0
  %v1957 = vadd.f32 0.0, %v1956
  %v1958 = vpop.f32.mrb[0].mxu0
  %1959 = vdwg.mxu0
  %v1960 = vadd.f32 %v349, %v1957
  %v1961 = vxor.u32 %v1885, 2147483648
  %v1962 = vmul.f32 %v1961, 1.442695
  %v1963 = vpow.pop %v1962
  %v1964 = vadd.f32 %v1963, 1.0
  %v1965 = vrcp.pop %v1964
  %v1966 = vmul.f32 1.0, %v1965
  %v1967 = vtanh.pop %v1885
  %v1968 = vmul.f32 %v1966, %v1772
  %1970 = vrot.lane.b32.xlu0 %v1967, 64
  %v1971 = vpop.permute.xlu0 %1970
  %v1973 = vmul.f32 %v1966, %v1971
  %1975 = vrot.lane.b32.xlu0 %v1973, 32
  %v1976 = vpop.permute.xlu0 %1975
  %v1978 = vadd.f32 %v1968, %v1976
  %v1979 = vtanh.pop %v1978
  %1981 = vrot.lane.b32.xlu0 %v1979, 64
  %v1982 = vpop.permute.xlu0 %1981
  %v1984 = vmul.f32 %v1966, %v1982
  %v1985 = vxor.u32 %v1960, 2147483648
  %v1986 = vmul.f32 %v1985, 1.442695
  %v1987 = vpow.pop %v1986
  %v1988 = vadd.f32 %v1987, 1.0
  %v1989 = vrcp.pop %v1988
  %v1990 = vmul.f32 1.0, %v1989
  %v1991 = vtanh.pop %v1960
  %v1992 = vmul.f32 %v1990, %v1796
  %1994 = vrot.lane.b32.xlu0 %v1991, 64
  %v1995 = vpop.permute.xlu0 %1994
  %v1997 = vmul.f32 %v1990, %v1995
  %1999 = vrot.lane.b32.xlu0 %v1997, 32
  %v2000 = vpop.permute.xlu0 %1999
  %v2002 = vadd.f32 %v1992, %v2000
  %v2003 = vtanh.pop %v2002
  %2005 = vrot.lane.b32.xlu0 %v2003, 64
  %v2006 = vpop.permute.xlu0 %2005
  %v2008 = vmul.f32 %v1990, %v2006
  %2010 = vrot.lane.b32.xlu0 %v1984, 32
  %v2011 = vpop.permute.xlu0 %2010
  %2013 = vst.msk [vmem:[%s7 + $0x38] sm:$0xff] %vm372, %v2011
  %2015 = vrot.lane.b32.xlu0 %v2008, 64
  %v2016 = vpop.permute.xlu0 %2015
  %2018 = vst.msk [vmem:[%s7] sm:$0xff] %vm575, %v2016
  // Predicated region
  $region30: #{hedln_forward_pallas.6} parent=0 // pred_check
    _
  $region31: #{hedln_forward_pallas.6} parent=0 // pred_check_branch
    %2020 = sbr.rel (0) target = $region33
  $region32: #{hedln_forward_pallas.6} parent=0 // pred_region
    _
  $region33: #{hedln_forward_pallas.6} parent=0 // pred_fallthru
    _
  // Predicated region
  $region34: #{hedln_forward_pallas.6} parent=0 // pred_check
    _
  $region35: #{hedln_forward_pallas.6} parent=0 // pred_check_branch
    %2022 = sbr.rel (0) target = $region37
  $region36: #{hedln_forward_pallas.6} parent=0 // pred_region
    _
  $region37: #{hedln_forward_pallas.6} parent=0 // pred_fallthru
    _

// kernel: hedln_forward_pallas.7
$region0: #{hedln_forward_pallas.7}
  #allocation0 [shape = 'u32[]', space=smem, size = 0x4, offset = 0x4, fixed_abs, tag = 'smem constant byte address 0x4 - core index']
  #allocation1 [shape = 'u32[144,128]{1,0:T(1,128)}', space=vmem, size = 0x12000, scoped, tag = 'internal scratch']
  %s0 = inlined_call_operand.vmem [shape: f32[64,64], index: 0, kind: input, shape index: {}]
  %s1 = inlined_call_operand.vmem [shape: f32[64,256], index: 1, kind: input, shape index: {}]
  %s2 = inlined_call_operand.vmem [shape: f32[32,128], index: 2, kind: input, shape index: {}]
  %s3 = inlined_call_operand.vmem [shape: f32[32,128], index: 3, kind: input, shape index: {}]
  %s4 = inlined_call_operand.vmem [shape: f32[1,256], index: 4, kind: input, shape index: {}]
  %s5 = inlined_call_operand.vmem [shape: f32[64,3], index: 5, kind: input, shape index: {}]
  %s6 = inlined_call_operand.vmem [shape: f32[1,3], index: 6, kind: input, shape index: {}]
  %s7 = inlined_call_operand.hbm [shape: f32[64,64], index: 7, kind: output, shape index: {0}]
  %s8 = inlined_call_operand.vmem [shape: f32[64,3], index: 8, kind: output, shape index: {1}]
  %9 = xla_tuple %s7, %s8
  %s10 = sld [smem:[#allocation0]]
  $region46: #{hedln_forward_pallas.7} parent=0
    _
  %s12 = ssub.s32 1, %s10
  %s13 = scalar_select 0, %s12, %s10
  $region1: #{hedln_forward_pallas.7} parent=0
    #allocation2 [shape = 'u8[32768]{0}', space=vmem, size = 0x8000, scoped, tag = 'output window, operand 0, single buffered']
    #allocation3 [shape = 's32[1]{0}', space=sflag, size = 0x4, scoped, tag = 'scoped memory for hedln_forward_pallas.7']
    %14 = vsyncpa [#allocation3], 0
    // Predicated region
    $region2: #{hedln_forward_pallas.7} parent=1 // pred_check
      _
    $region3: #{hedln_forward_pallas.7} parent=1 // pred_check_branch
      %16 = sbr.rel (0) target = $region5
    $region4: #{hedln_forward_pallas.7} parent=1 // pred_region
      _
    $region5: #{hedln_forward_pallas.7} parent=1 // pred_fallthru
      _
    // Predicated region
    $region6: #{hedln_forward_pallas.7} parent=1 // pred_check
      _
    $region7: #{hedln_forward_pallas.7} parent=1 // pred_check_branch
      %18 = sbr.rel (0) target = $region9
    $region8: #{hedln_forward_pallas.7} parent=1 // pred_region
      _
    $region9: #{hedln_forward_pallas.7} parent=1 // pred_fallthru
      _
    // Predicated region
    $region10: #{hedln_forward_pallas.7} parent=1 // pred_check
      _
    $region11: #{hedln_forward_pallas.7} parent=1 // pred_check_branch
      %20 = sbr.rel (0) target = $region13
    $region12: #{hedln_forward_pallas.7} parent=1 // pred_region
      _
    $region13: #{hedln_forward_pallas.7} parent=1 // pred_fallthru
      _
    // Predicated region
    $region14: #{hedln_forward_pallas.7} parent=1 // pred_check
      _
    $region15: #{hedln_forward_pallas.7} parent=1 // pred_check_branch
      %22 = sbr.rel (0) target = $region17
    $region16: #{hedln_forward_pallas.7} parent=1 // pred_region
      _
    $region17: #{hedln_forward_pallas.7} parent=1 // pred_fallthru
      _
    // Predicated region
    $region18: #{hedln_forward_pallas.7} parent=1 // pred_check
      _
    $region19: #{hedln_forward_pallas.7} parent=1 // pred_check_branch
      %24 = sbr.rel (0) target = $region21
    $region20: #{hedln_forward_pallas.7} parent=1 // pred_region
      _
    $region21: #{hedln_forward_pallas.7} parent=1 // pred_fallthru
      _
    // Predicated region
    $region22: #{hedln_forward_pallas.7} parent=1 // pred_check
      _
    $region23: #{hedln_forward_pallas.7} parent=1 // pred_check_branch
      %26 = sbr.rel (0) target = $region25
    $region24: #{hedln_forward_pallas.7} parent=1 // pred_region
      _
    $region25: #{hedln_forward_pallas.7} parent=1 // pred_fallthru
      _
    // Predicated region
    $region26: #{hedln_forward_pallas.7} parent=1 // pred_check
      _
    $region27: #{hedln_forward_pallas.7} parent=1 // pred_check_branch
      %28 = sbr.rel (0) target = $region29
    $region28: #{hedln_forward_pallas.7} parent=1 // pred_region
      _
    $region29: #{hedln_forward_pallas.7} parent=1 // pred_fallthru
      _
    %v29 = vld [vmem:[%s0] sm:$0xff]
    %v30 = vld [vmem:[%s0 + $0x8] sm:$0xff]
    %v31 = vld [vmem:[%s0 + $0x10] sm:$0xff]
    %v32 = vld [vmem:[%s0 + $0x18] sm:$0xff]
    %v33 = vld [vmem:[%s0 + $0x20] sm:$0xff]
    %v34 = vld [vmem:[%s0 + $0x28] sm:$0xff]
    %v35 = vld [vmem:[%s0 + $0x30] sm:$0xff]
    %v36 = vld [vmem:[%s0 + $0x38] sm:$0xff]
    %v37 = vld [vmem:[%s1] sm:$0xff]
    %v38 = vld [vmem:[%s1 + $0x8] sm:$0xff]
    %v39 = vld [vmem:[%s1 + $0x10] sm:$0xff]
    %v40 = vld [vmem:[%s1 + $0x18] sm:$0xff]
    %v41 = vld [vmem:[%s1 + $0x20] sm:$0xff]
    %v42 = vld [vmem:[%s1 + $0x28] sm:$0xff]
    %v43 = vld [vmem:[%s1 + $0x30] sm:$0xff]
    %v44 = vld [vmem:[%s1 + $0x38] sm:$0xff]
    %v45 = vld [vmem:[%s1 + $0x40] sm:$0xff]
    %v46 = vld [vmem:[%s1 + $0x48] sm:$0xff]
    %v47 = vld [vmem:[%s1 + $0x50] sm:$0xff]
    %v48 = vld [vmem:[%s1 + $0x58] sm:$0xff]
    %v49 = vld [vmem:[%s1 + $0x60] sm:$0xff]
    %v50 = vld [vmem:[%s1 + $0x68] sm:$0xff]
    %v51 = vld [vmem:[%s1 + $0x70] sm:$0xff]
    %v52 = vld [vmem:[%s1 + $0x78] sm:$0xff]
    %v53 = vld [vmem:[%s4] sm:$0x3]
    %v55 = vlaneseq
    %v56 = vshrl.u32 %v55, 7
    %v57 = vsub.s32 0, %v56
    %v58 = vrot.slane %v53, %v57
    %v59 = vlaneseq
    %v60 = vshrl.u32 %v59, 7
    %v61 = vsub.s32 1, %v60
    %v62 = vrot.slane %v53, %v61
    %vm65 = vcmask 523264
    %v67 = vsel %vm65, %v29, 0
    %v70 = vsel %vm65, %v30, 0
    %v73 = vsel %vm65, %v31, 0
    %v76 = vsel %vm65, %v32, 0
    %v79 = vsel %vm65, %v33, 0
    %v82 = vsel %vm65, %v34, 0
    %v85 = vsel %vm65, %v35, 0
    %v88 = vsel %vm65, %v36, 0
    %90 = vmatprep.subr.mxu0 %v38
    %91 = vmatpush1.msra.mxu0 %v37
    %92 = vmatprep.subr.mxu0 %v40
    %93 = vmatpush1.msra.mxu0 %v39
    %94 = vmatprep.subr.mxu0 %v42
    %95 = vmatpush1.msra.mxu0 %v41
    %96 = vmatprep.subr.mxu0 %v44
    %97 = vmatpush1.msra.mxu0 %v43
    %98 = vmatprep.subr.mxu0 %v46
    %99 = vmatpush1.msra.mxu0 %v45
    %100 = vmatprep.subr.mxu0 %v48
    %101 = vmatpush1.msra.mxu0 %v47
    %102 = vmatprep.subr.mxu0 %v50
    %103 = vmatpush1.msra.mxu0 %v49
    %104 = vmatprep.subr.mxu0 %v52
    %105 = vmatpush1.msra.mxu0 %v51
    %106 = vmatprep.subr.mxu0 0.0
    %107 = vmatpush1.msra.mxu0 0.0
    %108 = vmatprep.subr.mxu0 0.0
    %109 = vmatpush1.msra.mxu0 0.0
    %110 = vmatprep.subr.mxu0 0.0
    %111 = vmatpush1.msra.mxu0 0.0
    %112 = vmatprep.subr.mxu0 0.0
    %113 = vmatpush1.msra.mxu0 0.0
    %114 = vmatprep.subr.mxu0 0.0
    %115 = vmatpush1.msra.mxu0 0.0
    %116 = vmatprep.subr.mxu0 0.0
    %117 = vmatpush1.msra.mxu0 0.0
    %118 = vmatprep.subr.mxu0 0.0
    %119 = vmatpush1.msra.mxu0 0.0
    %120 = vmatprep.subr.mxu0 0.0
    %121 = vmatpush1.msra.mxu0 0.0
    %122 = vmatprep.subr.mxu0 0.0
    %123 = vmatpush1.msra.mxu0 0.0
    %124 = vmatprep.subr.mxu0 0.0
    %125 = vmatpush1.msra.mxu0 0.0
    %126 = vmatprep.subr.mxu0 0.0
    %127 = vmatpush1.msra.mxu0 0.0
    %128 = vmatprep.subr.mxu0 0.0
    %129 = vmatpush1.msra.mxu0 0.0
    %130 = vmatprep.subr.mxu0 0.0
    %131 = vmatpush1.msra.mxu0 0.0
    %132 = vmatprep.subr.mxu0 0.0
    %133 = vmatpush1.msra.mxu0 0.0
    %134 = vmatprep.subr.mxu0 0.0
    %135 = vmatpush1.msra.mxu0 0.0
    %136 = vmatprep.subr.mxu0 0.0
    %137 = vmatpush1.msra.mxu0 0.0
    %138 = vmatprep.subr.mxu0 0.0
    %139 = vmatpush1.msra.mxu0 0.0
    %140 = vmatprep.subr.mxu0 0.0
    %141 = vmatpush1.msra.mxu0 0.0
    %142 = vmatprep.subr.mxu0 0.0
    %143 = vmatpush1.msra.mxu0 0.0
    %144 = vmatprep.subr.mxu0 0.0
    %145 = vmatpush1.msra.mxu0 0.0
    %146 = vmatprep.subr.mxu0 0.0
    %147 = vmatpush1.msra.mxu0 0.0
    %148 = vmatprep.subr.mxu0 0.0
    %149 = vmatpush1.msra.mxu0 0.0
    %150 = vmatprep.subr.mxu0 0.0
    %151 = vmatpush1.msra.mxu0 0.0
    %152 = vmatprep.subr.mxu0 0.0
    %153 = vmatpush1.msra.mxu0 0.0
    %154 = vmatprep.mubr.f32.mxu0 0.0
    %155 = vmatmul.mubr.f32.gmra.mrb[0].mxu0 %v67
    %v156 = vpop.f32.mrb[0].mxu0
    %v157 = vadd.f32 %v58, %v156
    %v158 = vpop.f32.mrb[0].mxu0
    %v159 = vadd.f32 %v62, %v158
    %160 = vmatprep.mubr.f32.mxu0 0.0
    %161 = vmatmul.mubr.f32.gmra.mrb[0].mxu0 %v70
    %v162 = vpop.f32.mrb[0].mxu0
    %v163 = vadd.f32 %v58, %v162
    %v164 = vpop.f32.mrb[0].mxu0
    %v165 = vadd.f32 %v62, %v164
    %166 = vmatprep.mubr.f32.mxu0 0.0
    %167 = vmatmul.mubr.f32.gmra.mrb[0].mxu0 %v73
    %v168 = vpop.f32.mrb[0].mxu0
    %v169 = vadd.f32 %v58, %v168
    %v170 = vpop.f32.mrb[0].mxu0
    %v171 = vadd.f32 %v62, %v170
    %172 = vmatprep.mubr.f32.mxu0 0.0
    %173 = vmatmul.mubr.f32.gmra.mrb[0].mxu0 %v76
    %v174 = vpop.f32.mrb[0].mxu0
    %v175 = vadd.f32 %v58, %v174
    %v176 = vpop.f32.mrb[0].mxu0
    %v177 = vadd.f32 %v62, %v176
    %178 = vmatprep.mubr.f32.mxu0 0.0
    %179 = vmatmul.mubr.f32.gmra.mrb[0].mxu0 %v79
    %v180 = vpop.f32.mrb[0].mxu0
    %v181 = vadd.f32 %v58, %v180
    %v182 = vpop.f32.mrb[0].mxu0
    %v183 = vadd.f32 %v62, %v182
    %184 = vmatprep.mubr.f32.mxu0 0.0
    %185 = vmatmul.mubr.f32.gmra.mrb[0].mxu0 %v82
    %v186 = vpop.f32.mrb[0].mxu0
    %v187 = vadd.f32 %v58, %v186
    %v188 = vpop.f32.mrb[0].mxu0
    %v189 = vadd.f32 %v62, %v188
    %190 = vmatprep.mubr.f32.mxu0 0.0
    %191 = vmatmul.mubr.f32.gmra.mrb[0].mxu0 %v85
    %v192 = vpop.f32.mrb[0].mxu0
    %v193 = vadd.f32 %v58, %v192
    %v194 = vpop.f32.mrb[0].mxu0
    %v195 = vadd.f32 %v62, %v194
    %196 = vmatprep.mubr.f32.mxu0 0.0
    %197 = vmatmul.mubr.f32.gmra.mrb[0].mxu0 %v88
    %v198 = vpop.f32.mrb[0].mxu0
    %v199 = vadd.f32 %v58, %v198
    %v200 = vpop.f32.mrb[0].mxu0
    %v201 = vadd.f32 %v62, %v200
    %202 = vdwg.mxu0
    %v203 = vld [vmem:[%s2] sm:$0xff]
    %v204 = vld [vmem:[%s2 + $0x8] sm:$0xff]
    %v205 = vld [vmem:[%s2 + $0x10] sm:$0xff]
    %v206 = vld [vmem:[%s2 + $0x18] sm:$0xff]
    %v207 = vld [vmem:[%s3] sm:$0xff]
    %v208 = vld [vmem:[%s3 + $0x8] sm:$0xff]
    %v209 = vld [vmem:[%s3 + $0x10] sm:$0xff]
    %v210 = vld [vmem:[%s3 + $0x18] sm:$0xff]
    %vm211 = vcmask 261120
    %v213 = vsel %vm211, 0.0, 0
    %215 = vmatprep.subr.mxu0 0.0
    %216 = vmatpush1.msra.mxu0 %v203
    %217 = vmatprep.subr.mxu0 0.0
    %218 = vmatpush1.msra.mxu0 %v204
    %219 = vmatprep.subr.mxu0 0.0
    %220 = vmatpush1.msra.mxu0 %v205
    %221 = vmatprep.subr.mxu0 0.0
    %222 = vmatpush1.msra.mxu0 %v206
    %223 = vmatprep.subr.mxu0 0.0
    %224 = vmatpush1.msra.mxu0 0.0
    %225 = vmatprep.subr.mxu0 0.0
    %226 = vmatpush1.msra.mxu0 0.0
    %227 = vmatprep.subr.mxu0 0.0
    %228 = vmatpush1.msra.mxu0 0.0
    %229 = vmatprep.subr.mxu0 0.0
    %230 = vmatpush1.msra.mxu0 0.0
    %231 = vmatprep.subr.mxu0 0.0
    %232 = vmatpush1.msra.mxu0 0.0
    %233 = vmatprep.subr.mxu0 0.0
    %234 = vmatpush1.msra.mxu0 0.0
    %235 = vmatprep.subr.mxu0 0.0
    %236 = vmatpush1.msra.mxu0 0.0
    %237 = vmatprep.subr.mxu0 0.0
    %238 = vmatpush1.msra.mxu0 0.0
    %239 = vmatprep.subr.mxu0 0.0
    %240 = vmatpush1.msra.mxu0 0.0
    %241 = vmatprep.subr.mxu0 0.0
    %242 = vmatpush1.msra.mxu0 0.0
    %243 = vmatprep.subr.mxu0 0.0
    %244 = vmatpush1.msra.mxu0 0.0
    %245 = vmatprep.subr.mxu0 0.0
    %246 = vmatpush1.msra.mxu0 0.0
    %247 = vmatprep.subr.mxu0 0.0
    %248 = vmatpush1.msra.mxu0 0.0
    %249 = vmatprep.subr.mxu0 0.0
    %250 = vmatpush1.msra.mxu0 0.0
    %251 = vmatprep.subr.mxu0 0.0
    %252 = vmatpush1.msra.mxu0 0.0
    %253 = vmatprep.subr.mxu0 0.0
    %254 = vmatpush1.msra.mxu0 0.0
    %255 = vmatprep.subr.mxu0 0.0
    %256 = vmatpush1.msra.mxu0 0.0
    %257 = vmatprep.subr.mxu0 0.0
    %258 = vmatpush1.msra.mxu0 0.0
    %259 = vmatprep.subr.mxu0 0.0
    %260 = vmatpush1.msra.mxu0 0.0
    %261 = vmatprep.subr.mxu0 0.0
    %262 = vmatpush1.msra.mxu0 0.0
    %263 = vmatprep.subr.mxu0 0.0
    %264 = vmatpush1.msra.mxu0 0.0
    %265 = vmatprep.subr.mxu0 0.0
    %266 = vmatpush1.msra.mxu0 0.0
    %267 = vmatprep.subr.mxu0 0.0
    %268 = vmatpush1.msra.mxu0 0.0
    %269 = vmatprep.subr.mxu0 0.0
    %270 = vmatpush1.msra.mxu0 0.0
    %271 = vmatprep.subr.mxu0 0.0
    %272 = vmatpush1.msra.mxu0 0.0
    %273 = vmatprep.subr.mxu0 0.0
    %274 = vmatpush1.msra.mxu0 0.0
    %275 = vmatprep.subr.mxu0 0.0
    %276 = vmatpush1.msra.mxu0 0.0
    %277 = vmatprep.subr.mxu0 0.0
    %278 = vmatpush1.msra.mxu0 0.0
    %279 = vmatprep.mubr.f32.mxu0 0.0
    %280 = vmatmul.mubr.f32.gmra.mrb[0].mxu0 %v213
    %v281 = vpop.f32.mrb[0].mxu0
    %v282 = vadd.f32 0.0, %v281
    %v283 = vpop.f32.mrb[0].mxu0
    %284 = vdwg.mxu0
    %v285 = vadd.f32 %v157, %v282
    %286 = vmatprep.subr.mxu0 0.0
    %287 = vmatpush1.msra.mxu0 %v207
    %288 = vmatprep.subr.mxu0 0.0
    %289 = vmatpush1.msra.mxu0 %v208
    %290 = vmatprep.subr.mxu0 0.0
    %291 = vmatpush1.msra.mxu0 %v209
    %292 = vmatprep.subr.mxu0 0.0
    %293 = vmatpush1.msra.mxu0 %v210
    %294 = vmatprep.subr.mxu0 0.0
    %295 = vmatpush1.msra.mxu0 0.0
    %296 = vmatprep.subr.mxu0 0.0
    %297 = vmatpush1.msra.mxu0 0.0
    %298 = vmatprep.subr.mxu0 0.0
    %299 = vmatpush1.msra.mxu0 0.0
    %300 = vmatprep.subr.mxu0 0.0
    %301 = vmatpush1.msra.mxu0 0.0
    %302 = vmatprep.subr.mxu0 0.0
    %303 = vmatpush1.msra.mxu0 0.0
    %304 = vmatprep.subr.mxu0 0.0
    %305 = vmatpush1.msra.mxu0 0.0
    %306 = vmatprep.subr.mxu0 0.0
    %307 = vmatpush1.msra.mxu0 0.0
    %308 = vmatprep.subr.mxu0 0.0
    %309 = vmatpush1.msra.mxu0 0.0
    %310 = vmatprep.subr.mxu0 0.0
    %311 = vmatpush1.msra.mxu0 0.0
    %312 = vmatprep.subr.mxu0 0.0
    %313 = vmatpush1.msra.mxu0 0.0
    %314 = vmatprep.subr.mxu0 0.0
    %315 = vmatpush1.msra.mxu0 0.0
    %316 = vmatprep.subr.mxu0 0.0
    %317 = vmatpush1.msra.mxu0 0.0
    %318 = vmatprep.subr.mxu0 0.0
    %319 = vmatpush1.msra.mxu0 0.0
    %320 = vmatprep.subr.mxu0 0.0
    %321 = vmatpush1.msra.mxu0 0.0
    %322 = vmatprep.subr.mxu0 0.0
    %323 = vmatpush1.msra.mxu0 0.0
    %324 = vmatprep.subr.mxu0 0.0
    %325 = vmatpush1.msra.mxu0 0.0
    %326 = vmatprep.subr.mxu0 0.0
    %327 = vmatpush1.msra.mxu0 0.0
    %328 = vmatprep.subr.mxu0 0.0
    %329 = vmatpush1.msra.mxu0 0.0
    %330 = vmatprep.subr.mxu0 0.0
    %331 = vmatpush1.msra.mxu0 0.0
    %332 = vmatprep.subr.mxu0 0.0
    %333 = vmatpush1.msra.mxu0 0.0
    %334 = vmatprep.subr.mxu0 0.0
    %335 = vmatpush1.msra.mxu0 0.0
    %336 = vmatprep.subr.mxu0 0.0
    %337 = vmatpush1.msra.mxu0 0.0
    %338 = vmatprep.subr.mxu0 0.0
    %339 = vmatpush1.msra.mxu0 0.0
    %340 = vmatprep.subr.mxu0 0.0
    %341 = vmatpush1.msra.mxu0 0.0
    %342 = vmatprep.subr.mxu0 0.0
    %343 = vmatpush1.msra.mxu0 0.0
    %344 = vmatprep.subr.mxu0 0.0
    %345 = vmatpush1.msra.mxu0 0.0
    %346 = vmatprep.subr.mxu0 0.0
    %347 = vmatpush1.msra.mxu0 0.0
    %348 = vmatprep.subr.mxu0 0.0
    %349 = vmatpush1.msra.mxu0 0.0
    %350 = vmatprep.mubr.f32.mxu0 0.0
    %351 = vmatmul.mubr.f32.gmra.mrb[0].mxu0 %v213
    %v352 = vpop.f32.mrb[0].mxu0
    %v353 = vadd.f32 0.0, %v352
    %v354 = vpop.f32.mrb[0].mxu0
    %355 = vdwg.mxu0
    %v356 = vadd.f32 %v201, %v353
    %v357 = vxor.u32 %v285, 2147483648
    %v358 = vmul.f32 %v357, 1.442695
    %v359 = vpow.pop %v358
    %v360 = vadd.f32 %v359, 1.0
    %v361 = vrcp.pop %v360
    %v362 = vmul.f32 1.0, %v361
    %v363 = vtanh.pop %v285
    %v364 = vmul.f32 %v362, 0.0
    %366 = vrot.lane.b32.xlu0 %v363, 64
    %v367 = vpop.permute.xlu0 %366
    %v369 = vmul.f32 %v362, %v367
    %371 = vrot.lane.b32.xlu0 %v369, 32
    %v372 = vpop.permute.xlu0 %371
    %v374 = vadd.f32 %v364, %v372
    %v375 = vtanh.pop %v374
    %377 = vrot.lane.b32.xlu0 %v375, 64
    %v378 = vpop.permute.xlu0 %377
    %v380 = vmul.f32 %v362, %v378
    %v381 = vxor.u32 %v356, 2147483648
    %v382 = vmul.f32 %v381, 1.442695
    %v383 = vpow.pop %v382
    %v384 = vadd.f32 %v383, 1.0
    %v385 = vrcp.pop %v384
    %v386 = vmul.f32 1.0, %v385
    %v387 = vtanh.pop %v356
    %v388 = vmul.f32 %v386, 0.0
    %390 = vrot.lane.b32.xlu0 %v387, 64
    %v391 = vpop.permute.xlu0 %390
    %v393 = vmul.f32 %v386, %v391
    %395 = vrot.lane.b32.xlu0 %v393, 32
    %v396 = vpop.permute.xlu0 %395
    %v398 = vadd.f32 %v388, %v396
    %v399 = vtanh.pop %v398
    %401 = vrot.lane.b32.xlu0 %v399, 64
    %v402 = vpop.permute.xlu0 %401
    %v404 = vmul.f32 %v386, %v402
    %406 = vrot.lane.b32.xlu0 %v380, 32
    %v407 = vpop.permute.xlu0 %406
    %409 = vst.msk [vmem:[#allocation2] sm:$0xff] %vm211, %v407
    %411 = vrot.lane.b32.xlu0 %v404, 64
    %v412 = vpop.permute.xlu0 %411
    %vm414 = vcmask 523520
    %415 = vst.msk [vmem:[#allocation2 + $0x38] sm:$0xff] %vm414, %v412
    %v416 = vsel %vm211, %v407, 0
    %418 = vmatprep.subr.mxu0 0.0
    %419 = vmatpush1.msra.mxu0 %v203
    %420 = vmatprep.subr.mxu0 0.0
    %421 = vmatpush1.msra.mxu0 %v204
    %422 = vmatprep.subr.mxu0 0.0
    %423 = vmatpush1.msra.mxu0 %v205
    %424 = vmatprep.subr.mxu0 0.0
    %425 = vmatpush1.msra.mxu0 %v206
    %426 = vmatprep.subr.mxu0 0.0
    %427 = vmatpush1.msra.mxu0 0.0
    %428 = vmatprep.subr.mxu0 0.0
    %429 = vmatpush1.msra.mxu0 0.0
    %430 = vmatprep.subr.mxu0 0.0
    %431 = vmatpush1.msra.mxu0 0.0
    %432 = vmatprep.subr.mxu0 0.0
    %433 = vmatpush1.msra.mxu0 0.0
    %434 = vmatprep.subr.mxu0 0.0
    %435 = vmatpush1.msra.mxu0 0.0
    %436 = vmatprep.subr.mxu0 0.0
    %437 = vmatpush1.msra.mxu0 0.0
    %438 = vmatprep.subr.mxu0 0.0
    %439 = vmatpush1.msra.mxu0 0.0
    %440 = vmatprep.subr.mxu0 0.0
    %441 = vmatpush1.msra.mxu0 0.0
    %442 = vmatprep.subr.mxu0 0.0
    %443 = vmatpush1.msra.mxu0 0.0
    %444 = vmatprep.subr.mxu0 0.0
    %445 = vmatpush1.msra.mxu0 0.0
    %446 = vmatprep.subr.mxu0 0.0
    %447 = vmatpush1.msra.mxu0 0.0
    %448 = vmatprep.subr.mxu0 0.0
    %449 = vmatpush1.msra.mxu0 0.0
    %450 = vmatprep.subr.mxu0 0.0
    %451 = vmatpush1.msra.mxu0 0.0
    %452 = vmatprep.subr.mxu0 0.0
    %453 = vmatpush1.msra.mxu0 0.0
    %454 = vmatprep.subr.mxu0 0.0
    %455 = vmatpush1.msra.mxu0 0.0
    %456 = vmatprep.subr.mxu0 0.0
    %457 = vmatpush1.msra.mxu0 0.0
    %458 = vmatprep.subr.mxu0 0.0
    %459 = vmatpush1.msra.mxu0 0.0
    %460 = vmatprep.subr.mxu0 0.0
    %461 = vmatpush1.msra.mxu0 0.0
    %462 = vmatprep.subr.mxu0 0.0
    %463 = vmatpush1.msra.mxu0 0.0
    %464 = vmatprep.subr.mxu0 0.0
    %465 = vmatpush1.msra.mxu0 0.0
    %466 = vmatprep.subr.mxu0 0.0
    %467 = vmatpush1.msra.mxu0 0.0
    %468 = vmatprep.subr.mxu0 0.0
    %469 = vmatpush1.msra.mxu0 0.0
    %470 = vmatprep.subr.mxu0 0.0
    %471 = vmatpush1.msra.mxu0 0.0
    %472 = vmatprep.subr.mxu0 0.0
    %473 = vmatpush1.msra.mxu0 0.0
    %474 = vmatprep.subr.mxu0 0.0
    %475 = vmatpush1.msra.mxu0 0.0
    %476 = vmatprep.subr.mxu0 0.0
    %477 = vmatpush1.msra.mxu0 0.0
    %478 = vmatprep.subr.mxu0 0.0
    %479 = vmatpush1.msra.mxu0 0.0
    %480 = vmatprep.subr.mxu0 0.0
    %481 = vmatpush1.msra.mxu0 0.0
    %482 = vmatprep.mubr.f32.mxu0 0.0
    %483 = vmatmul.mubr.f32.gmra.mrb[0].mxu0 %v416
    %v484 = vpop.f32.mrb[0].mxu0
    %v485 = vadd.f32 0.0, %v484
    %v486 = vpop.f32.mrb[0].mxu0
    %487 = vdwg.mxu0
    %v488 = vadd.f32 %v163, %v485
    %489 = vrot.lane.b32.xlu0 %v404, 32
    %v490 = vpop.permute.xlu0 %489
    %v491 = vsel %vm211, %v490, 0
    %493 = vmatprep.subr.mxu0 0.0
    %494 = vmatpush1.msra.mxu0 %v207
    %495 = vmatprep.subr.mxu0 0.0
    %496 = vmatpush1.msra.mxu0 %v208
    %497 = vmatprep.subr.mxu0 0.0
    %498 = vmatpush1.msra.mxu0 %v209
    %499 = vmatprep.subr.mxu0 0.0
    %500 = vmatpush1.msra.mxu0 %v210
    %501 = vmatprep.subr.mxu0 0.0
    %502 = vmatpush1.msra.mxu0 0.0
    %503 = vmatprep.subr.mxu0 0.0
    %504 = vmatpush1.msra.mxu0 0.0
    %505 = vmatprep.subr.mxu0 0.0
    %506 = vmatpush1.msra.mxu0 0.0
    %507 = vmatprep.subr.mxu0 0.0
    %508 = vmatpush1.msra.mxu0 0.0
    %509 = vmatprep.subr.mxu0 0.0
    %510 = vmatpush1.msra.mxu0 0.0
    %511 = vmatprep.subr.mxu0 0.0
    %512 = vmatpush1.msra.mxu0 0.0
    %513 = vmatprep.subr.mxu0 0.0
    %514 = vmatpush1.msra.mxu0 0.0
    %515 = vmatprep.subr.mxu0 0.0
    %516 = vmatpush1.msra.mxu0 0.0
    %517 = vmatprep.subr.mxu0 0.0
    %518 = vmatpush1.msra.mxu0 0.0
    %519 = vmatprep.subr.mxu0 0.0
    %520 = vmatpush1.msra.mxu0 0.0
    %521 = vmatprep.subr.mxu0 0.0
    %522 = vmatpush1.msra.mxu0 0.0
    %523 = vmatprep.subr.mxu0 0.0
    %524 = vmatpush1.msra.mxu0 0.0
    %525 = vmatprep.subr.mxu0 0.0
    %526 = vmatpush1.msra.mxu0 0.0
    %527 = vmatprep.subr.mxu0 0.0
    %528 = vmatpush1.msra.mxu0 0.0
    %529 = vmatprep.subr.mxu0 0.0
    %530 = vmatpush1.msra.mxu0 0.0
    %531 = vmatprep.subr.mxu0 0.0
    %532 = vmatpush1.msra.mxu0 0.0
    %533 = vmatprep.subr.mxu0 0.0
    %534 = vmatpush1.msra.mxu0 0.0
    %535 = vmatprep.subr.mxu0 0.0
    %536 = vmatpush1.msra.mxu0 0.0
    %537 = vmatprep.subr.mxu0 0.0
    %538 = vmatpush1.msra.mxu0 0.0
    %539 = vmatprep.subr.mxu0 0.0
    %540 = vmatpush1.msra.mxu0 0.0
    %541 = vmatprep.subr.mxu0 0.0
    %542 = vmatpush1.msra.mxu0 0.0
    %543 = vmatprep.subr.mxu0 0.0
    %544 = vmatpush1.msra.mxu0 0.0
    %545 = vmatprep.subr.mxu0 0.0
    %546 = vmatpush1.msra.mxu0 0.0
    %547 = vmatprep.subr.mxu0 0.0
    %548 = vmatpush1.msra.mxu0 0.0
    %549 = vmatprep.subr.mxu0 0.0
    %550 = vmatpush1.msra.mxu0 0.0
    %551 = vmatprep.subr.mxu0 0.0
    %552 = vmatpush1.msra.mxu0 0.0
    %553 = vmatprep.subr.mxu0 0.0
    %554 = vmatpush1.msra.mxu0 0.0
    %555 = vmatprep.subr.mxu0 0.0
    %556 = vmatpush1.msra.mxu0 0.0
    %557 = vmatprep.mubr.f32.mxu0 0.0
    %558 = vmatmul.mubr.f32.gmra.mrb[0].mxu0 %v491
    %v559 = vpop.f32.mrb[0].mxu0
    %v560 = vadd.f32 0.0, %v559
    %v561 = vpop.f32.mrb[0].mxu0
    %562 = vdwg.mxu0
    %v563 = vadd.f32 %v195, %v560
    %v564 = vxor.u32 %v488, 2147483648
    %v565 = vmul.f32 %v564, 1.442695
    %v566 = vpow.pop %v565
    %v567 = vadd.f32 %v566, 1.0
    %v568 = vrcp.pop %v567
    %v569 = vmul.f32 1.0, %v568
    %v570 = vtanh.pop %v488
    %v571 = vmul.f32 %v569, %v374
    %573 = vrot.lane.b32.xlu0 %v570, 64
    %v574 = vpop.permute.xlu0 %573
    %v576 = vmul.f32 %v569, %v574
    %578 = vrot.lane.b32.xlu0 %v576, 32
    %v579 = vpop.permute.xlu0 %578
    %v581 = vadd.f32 %v571, %v579
    %v582 = vtanh.pop %v581
    %584 = vrot.lane.b32.xlu0 %v582, 64
    %v585 = vpop.permute.xlu0 %584
    %v587 = vmul.f32 %v569, %v585
    %v588 = vxor.u32 %v563, 2147483648
    %v589 = vmul.f32 %v588, 1.442695
    %v590 = vpow.pop %v589
    %v591 = vadd.f32 %v590, 1.0
    %v592 = vrcp.pop %v591
    %v593 = vmul.f32 1.0, %v592
    %v594 = vtanh.pop %v563
    %v595 = vmul.f32 %v593, %v398
    %597 = vrot.lane.b32.xlu0 %v594, 64
    %v598 = vpop.permute.xlu0 %597
    %v600 = vmul.f32 %v593, %v598
    %602 = vrot.lane.b32.xlu0 %v600, 32
    %v603 = vpop.permute.xlu0 %602
    %v605 = vadd.f32 %v595, %v603
    %v606 = vtanh.pop %v605
    %608 = vrot.lane.b32.xlu0 %v606, 64
    %v609 = vpop.permute.xlu0 %608
    %v611 = vmul.f32 %v593, %v609
    %613 = vrot.lane.b32.xlu0 %v587, 32
    %v614 = vpop.permute.xlu0 %613
    %616 = vst.msk [vmem:[#allocation2 + $0x8] sm:$0xff] %vm211, %v614
    %618 = vrot.lane.b32.xlu0 %v611, 64
    %v619 = vpop.permute.xlu0 %618
    %621 = vst.msk [vmem:[#allocation2 + $0x30] sm:$0xff] %vm414, %v619
    %v622 = vsel %vm211, %v614, 0
    %624 = vmatprep.subr.mxu0 0.0
    %625 = vmatpush1.msra.mxu0 %v203
    %626 = vmatprep.subr.mxu0 0.0
    %627 = vmatpush1.msra.mxu0 %v204
    %628 = vmatprep.subr.mxu0 0.0
    %629 = vmatpush1.msra.mxu0 %v205
    %630 = vmatprep.subr.mxu0 0.0
    %631 = vmatpush1.msra.mxu0 %v206
    %632 = vmatprep.subr.mxu0 0.0
    %633 = vmatpush1.msra.mxu0 0.0
    %634 = vmatprep.subr.mxu0 0.0
    %635 = vmatpush1.msra.mxu0 0.0
    %636 = vmatprep.subr.mxu0 0.0
    %637 = vmatpush1.msra.mxu0 0.0
    %638 = vmatprep.subr.mxu0 0.0
    %639 = vmatpush1.msra.mxu0 0.0
    %640 = vmatprep.subr.mxu0 0.0
    %641 = vmatpush1.msra.mxu0 0.0
    %642 = vmatprep.subr.mxu0 0.0
    %643 = vmatpush1.msra.mxu0 0.0
    %644 = vmatprep.subr.mxu0 0.0
    %645 = vmatpush1.msra.mxu0 0.0
    %646 = vmatprep.subr.mxu0 0.0
    %647 = vmatpush1.msra.mxu0 0.0
    %648 = vmatprep.subr.mxu0 0.0
    %649 = vmatpush1.msra.mxu0 0.0
    %650 = vmatprep.subr.mxu0 0.0
    %651 = vmatpush1.msra.mxu0 0.0
    %652 = vmatprep.subr.mxu0 0.0
    %653 = vmatpush1.msra.mxu0 0.0
    %654 = vmatprep.subr.mxu0 0.0
    %655 = vmatpush1.msra.mxu0 0.0
    %656 = vmatprep.subr.mxu0 0.0
    %657 = vmatpush1.msra.mxu0 0.0
    %658 = vmatprep.subr.mxu0 0.0
    %659 = vmatpush1.msra.mxu0 0.0
    %660 = vmatprep.subr.mxu0 0.0
    %661 = vmatpush1.msra.mxu0 0.0
    %662 = vmatprep.subr.mxu0 0.0
    %663 = vmatpush1.msra.mxu0 0.0
    %664 = vmatprep.subr.mxu0 0.0
    %665 = vmatpush1.msra.mxu0 0.0
    %666 = vmatprep.subr.mxu0 0.0
    %667 = vmatpush1.msra.mxu0 0.0
    %668 = vmatprep.subr.mxu0 0.0
    %669 = vmatpush1.msra.mxu0 0.0
    %670 = vmatprep.subr.mxu0 0.0
    %671 = vmatpush1.msra.mxu0 0.0
    %672 = vmatprep.subr.mxu0 0.0
    %673 = vmatpush1.msra.mxu0 0.0
    %674 = vmatprep.subr.mxu0 0.0
    %675 = vmatpush1.msra.mxu0 0.0
    %676 = vmatprep.subr.mxu0 0.0
    %677 = vmatpush1.msra.mxu0 0.0
    %678 = vmatprep.subr.mxu0 0.0
    %679 = vmatpush1.msra.mxu0 0.0
    %680 = vmatprep.subr.mxu0 0.0
    %681 = vmatpush1.msra.mxu0 0.0
    %682 = vmatprep.subr.mxu0 0.0
    %683 = vmatpush1.msra.mxu0 0.0
    %684 = vmatprep.subr.mxu0 0.0
    %685 = vmatpush1.msra.mxu0 0.0
    %686 = vmatprep.subr.mxu0 0.0
    %687 = vmatpush1.msra.mxu0 0.0
    %688 = vmatprep.mubr.f32.mxu0 0.0
    %689 = vmatmul.mubr.f32.gmra.mrb[0].mxu0 %v622
    %v690 = vpop.f32.mrb[0].mxu0
    %v691 = vadd.f32 0.0, %v690
    %v692 = vpop.f32.mrb[0].mxu0
    %693 = vdwg.mxu0
    %v694 = vadd.f32 %v169, %v691
    %695 = vrot.lane.b32.xlu0 %v611, 32
    %v696 = vpop.permute.xlu0 %695
    %v697 = vsel %vm211, %v696, 0
    %699 = vmatprep.subr.mxu0 0.0
    %700 = vmatpush1.msra.mxu0 %v207
    %701 = vmatprep.subr.mxu0 0.0
    %702 = vmatpush1.msra.mxu0 %v208
    %703 = vmatprep.subr.mxu0 0.0
    %704 = vmatpush1.msra.mxu0 %v209
    %705 = vmatprep.subr.mxu0 0.0
    %706 = vmatpush1.msra.mxu0 %v210
    %707 = vmatprep.subr.mxu0 0.0
    %708 = vmatpush1.msra.mxu0 0.0
    %709 = vmatprep.subr.mxu0 0.0
    %710 = vmatpush1.msra.mxu0 0.0
    %711 = vmatprep.subr.mxu0 0.0
    %712 = vmatpush1.msra.mxu0 0.0
    %713 = vmatprep.subr.mxu0 0.0
    %714 = vmatpush1.msra.mxu0 0.0
    %715 = vmatprep.subr.mxu0 0.0
    %716 = vmatpush1.msra.mxu0 0.0
    %717 = vmatprep.subr.mxu0 0.0
    %718 = vmatpush1.msra.mxu0 0.0
    %719 = vmatprep.subr.mxu0 0.0
    %720 = vmatpush1.msra.mxu0 0.0
    %721 = vmatprep.subr.mxu0 0.0
    %722 = vmatpush1.msra.mxu0 0.0
    %723 = vmatprep.subr.mxu0 0.0
    %724 = vmatpush1.msra.mxu0 0.0
    %725 = vmatprep.subr.mxu0 0.0
    %726 = vmatpush1.msra.mxu0 0.0
    %727 = vmatprep.subr.mxu0 0.0
    %728 = vmatpush1.msra.mxu0 0.0
    %729 = vmatprep.subr.mxu0 0.0
    %730 = vmatpush1.msra.mxu0 0.0
    %731 = vmatprep.subr.mxu0 0.0
    %732 = vmatpush1.msra.mxu0 0.0
    %733 = vmatprep.subr.mxu0 0.0
    %734 = vmatpush1.msra.mxu0 0.0
    %735 = vmatprep.subr.mxu0 0.0
    %736 = vmatpush1.msra.mxu0 0.0
    %737 = vmatprep.subr.mxu0 0.0
    %738 = vmatpush1.msra.mxu0 0.0
    %739 = vmatprep.subr.mxu0 0.0
    %740 = vmatpush1.msra.mxu0 0.0
    %741 = vmatprep.subr.mxu0 0.0
    %742 = vmatpush1.msra.mxu0 0.0
    %743 = vmatprep.subr.mxu0 0.0
    %744 = vmatpush1.msra.mxu0 0.0
    %745 = vmatprep.subr.mxu0 0.0
    %746 = vmatpush1.msra.mxu0 0.0
    %747 = vmatprep.subr.mxu0 0.0
    %748 = vmatpush1.msra.mxu0 0.0
    %749 = vmatprep.subr.mxu0 0.0
    %750 = vmatpush1.msra.mxu0 0.0
    %751 = vmatprep.subr.mxu0 0.0
    %752 = vmatpush1.msra.mxu0 0.0
    %753 = vmatprep.subr.mxu0 0.0
    %754 = vmatpush1.msra.mxu0 0.0
    %755 = vmatprep.subr.mxu0 0.0
    %756 = vmatpush1.msra.mxu0 0.0
    %757 = vmatprep.subr.mxu0 0.0
    %758 = vmatpush1.msra.mxu0 0.0
    %759 = vmatprep.subr.mxu0 0.0
    %760 = vmatpush1.msra.mxu0 0.0
    %761 = vmatprep.subr.mxu0 0.0
    %762 = vmatpush1.msra.mxu0 0.0
    %763 = vmatprep.mubr.f32.mxu0 0.0
    %764 = vmatmul.mubr.f32.gmra.mrb[0].mxu0 %v697
    %v765 = vpop.f32.mrb[0].mxu0
    %v766 = vadd.f32 0.0, %v765
    %v767 = vpop.f32.mrb[0].mxu0
    %768 = vdwg.mxu0
    %v769 = vadd.f32 %v189, %v766
    %v770 = vxor.u32 %v694, 2147483648
    %v771 = vmul.f32 %v770, 1.442695
    %v772 = vpow.pop %v771
    %v773 = vadd.f32 %v772, 1.0
    %v774 = vrcp.pop %v773
    %v775 = vmul.f32 1.0, %v774
    %v776 = vtanh.pop %v694
    %v777 = vmul.f32 %v775, %v581
    %779 = vrot.lane.b32.xlu0 %v776, 64
    %v780 = vpop.permute.xlu0 %779
    %v782 = vmul.f32 %v775, %v780
    %784 = vrot.lane.b32.xlu0 %v782, 32
    %v785 = vpop.permute.xlu0 %784
    %v787 = vadd.f32 %v777, %v785
    %v788 = vtanh.pop %v787
    %790 = vrot.lane.b32.xlu0 %v788, 64
    %v791 = vpop.permute.xlu0 %790
    %v793 = vmul.f32 %v775, %v791
    %v794 = vxor.u32 %v769, 2147483648
    %v795 = vmul.f32 %v794, 1.442695
    %v796 = vpow.pop %v795
    %v797 = vadd.f32 %v796, 1.0
    %v798 = vrcp.pop %v797
    %v799 = vmul.f32 1.0, %v798
    %v800 = vtanh.pop %v769
    %v801 = vmul.f32 %v799, %v605
    %803 = vrot.lane.b32.xlu0 %v800, 64
    %v804 = vpop.permute.xlu0 %803
    %v806 = vmul.f32 %v799, %v804
    %808 = vrot.lane.b32.xlu0 %v806, 32
    %v809 = vpop.permute.xlu0 %808
    %v811 = vadd.f32 %v801, %v809
    %v812 = vtanh.pop %v811
    %814 = vrot.lane.b32.xlu0 %v812, 64
    %v815 = vpop.permute.xlu0 %814
    %v817 = vmul.f32 %v799, %v815
    %819 = vrot.lane.b32.xlu0 %v793, 32
    %v820 = vpop.permute.xlu0 %819
    %822 = vst.msk [vmem:[#allocation2 + $0x10] sm:$0xff] %vm211, %v820
    %824 = vrot.lane.b32.xlu0 %v817, 64
    %v825 = vpop.permute.xlu0 %824
    %827 = vst.msk [vmem:[#allocation2 + $0x28] sm:$0xff] %vm414, %v825
    %v828 = vsel %vm211, %v820, 0
    %830 = vmatprep.subr.mxu0 0.0
    %831 = vmatpush1.msra.mxu0 %v203
    %832 = vmatprep.subr.mxu0 0.0
    %833 = vmatpush1.msra.mxu0 %v204
    %834 = vmatprep.subr.mxu0 0.0
    %835 = vmatpush1.msra.mxu0 %v205
    %836 = vmatprep.subr.mxu0 0.0
    %837 = vmatpush1.msra.mxu0 %v206
    %838 = vmatprep.subr.mxu0 0.0
    %839 = vmatpush1.msra.mxu0 0.0
    %840 = vmatprep.subr.mxu0 0.0
    %841 = vmatpush1.msra.mxu0 0.0
    %842 = vmatprep.subr.mxu0 0.0
    %843 = vmatpush1.msra.mxu0 0.0
    %844 = vmatprep.subr.mxu0 0.0
    %845 = vmatpush1.msra.mxu0 0.0
    %846 = vmatprep.subr.mxu0 0.0
    %847 = vmatpush1.msra.mxu0 0.0
    %848 = vmatprep.subr.mxu0 0.0
    %849 = vmatpush1.msra.mxu0 0.0
    %850 = vmatprep.subr.mxu0 0.0
    %851 = vmatpush1.msra.mxu0 0.0
    %852 = vmatprep.subr.mxu0 0.0
    %853 = vmatpush1.msra.mxu0 0.0
    %854 = vmatprep.subr.mxu0 0.0
    %855 = vmatpush1.msra.mxu0 0.0
    %856 = vmatprep.subr.mxu0 0.0
    %857 = vmatpush1.msra.mxu0 0.0
    %858 = vmatprep.subr.mxu0 0.0
    %859 = vmatpush1.msra.mxu0 0.0
    %860 = vmatprep.subr.mxu0 0.0
    %861 = vmatpush1.msra.mxu0 0.0
    %862 = vmatprep.subr.mxu0 0.0
    %863 = vmatpush1.msra.mxu0 0.0
    %864 = vmatprep.subr.mxu0 0.0
    %865 = vmatpush1.msra.mxu0 0.0
    %866 = vmatprep.subr.mxu0 0.0
    %867 = vmatpush1.msra.mxu0 0.0
    %868 = vmatprep.subr.mxu0 0.0
    %869 = vmatpush1.msra.mxu0 0.0
    %870 = vmatprep.subr.mxu0 0.0
    %871 = vmatpush1.msra.mxu0 0.0
    %872 = vmatprep.subr.mxu0 0.0
    %873 = vmatpush1.msra.mxu0 0.0
    %874 = vmatprep.subr.mxu0 0.0
    %875 = vmatpush1.msra.mxu0 0.0
    %876 = vmatprep.subr.mxu0 0.0
    %877 = vmatpush1.msra.mxu0 0.0
    %878 = vmatprep.subr.mxu0 0.0
    %879 = vmatpush1.msra.mxu0 0.0
    %880 = vmatprep.subr.mxu0 0.0
    %881 = vmatpush1.msra.mxu0 0.0
    %882 = vmatprep.subr.mxu0 0.0
    %883 = vmatpush1.msra.mxu0 0.0
    %884 = vmatprep.subr.mxu0 0.0
    %885 = vmatpush1.msra.mxu0 0.0
    %886 = vmatprep.subr.mxu0 0.0
    %887 = vmatpush1.msra.mxu0 0.0
    %888 = vmatprep.subr.mxu0 0.0
    %889 = vmatpush1.msra.mxu0 0.0
    %890 = vmatprep.subr.mxu0 0.0
    %891 = vmatpush1.msra.mxu0 0.0
    %892 = vmatprep.subr.mxu0 0.0
    %893 = vmatpush1.msra.mxu0 0.0
    %894 = vmatprep.mubr.f32.mxu0 0.0
    %895 = vmatmul.mubr.f32.gmra.mrb[0].mxu0 %v828
    %v896 = vpop.f32.mrb[0].mxu0
    %v897 = vadd.f32 0.0, %v896
    %v898 = vpop.f32.mrb[0].mxu0
    %899 = vdwg.mxu0
    %v900 = vadd.f32 %v175, %v897
    %901 = vrot.lane.b32.xlu0 %v817, 32
    %v902 = vpop.permute.xlu0 %901
    %v903 = vsel %vm211, %v902, 0
    %905 = vmatprep.subr.mxu0 0.0
    %906 = vmatpush1.msra.mxu0 %v207
    %907 = vmatprep.subr.mxu0 0.0
    %908 = vmatpush1.msra.mxu0 %v208
    %909 = vmatprep.subr.mxu0 0.0
    %910 = vmatpush1.msra.mxu0 %v209
    %911 = vmatprep.subr.mxu0 0.0
    %912 = vmatpush1.msra.mxu0 %v210
    %913 = vmatprep.subr.mxu0 0.0
    %914 = vmatpush1.msra.mxu0 0.0
    %915 = vmatprep.subr.mxu0 0.0
    %916 = vmatpush1.msra.mxu0 0.0
    %917 = vmatprep.subr.mxu0 0.0
    %918 = vmatpush1.msra.mxu0 0.0
    %919 = vmatprep.subr.mxu0 0.0
    %920 = vmatpush1.msra.mxu0 0.0
    %921 = vmatprep.subr.mxu0 0.0
    %922 = vmatpush1.msra.mxu0 0.0
    %923 = vmatprep.subr.mxu0 0.0
    %924 = vmatpush1.msra.mxu0 0.0
    %925 = vmatprep.subr.mxu0 0.0
    %926 = vmatpush1.msra.mxu0 0.0
    %927 = vmatprep.subr.mxu0 0.0
    %928 = vmatpush1.msra.mxu0 0.0
    %929 = vmatprep.subr.mxu0 0.0
    %930 = vmatpush1.msra.mxu0 0.0
    %931 = vmatprep.subr.mxu0 0.0
    %932 = vmatpush1.msra.mxu0 0.0
    %933 = vmatprep.subr.mxu0 0.0
    %934 = vmatpush1.msra.mxu0 0.0
    %935 = vmatprep.subr.mxu0 0.0
    %936 = vmatpush1.msra.mxu0 0.0
    %937 = vmatprep.subr.mxu0 0.0
    %938 = vmatpush1.msra.mxu0 0.0
    %939 = vmatprep.subr.mxu0 0.0
    %940 = vmatpush1.msra.mxu0 0.0
    %941 = vmatprep.subr.mxu0 0.0
    %942 = vmatpush1.msra.mxu0 0.0
    %943 = vmatprep.subr.mxu0 0.0
    %944 = vmatpush1.msra.mxu0 0.0
    %945 = vmatprep.subr.mxu0 0.0
    %946 = vmatpush1.msra.mxu0 0.0
    %947 = vmatprep.subr.mxu0 0.0
    %948 = vmatpush1.msra.mxu0 0.0
    %949 = vmatprep.subr.mxu0 0.0
    %950 = vmatpush1.msra.mxu0 0.0
    %951 = vmatprep.subr.mxu0 0.0
    %952 = vmatpush1.msra.mxu0 0.0
    %953 = vmatprep.subr.mxu0 0.0
    %954 = vmatpush1.msra.mxu0 0.0
    %955 = vmatprep.subr.mxu0 0.0
    %956 = vmatpush1.msra.mxu0 0.0
    %957 = vmatprep.subr.mxu0 0.0
    %958 = vmatpush1.msra.mxu0 0.0
    %959 = vmatprep.subr.mxu0 0.0
    %960 = vmatpush1.msra.mxu0 0.0
    %961 = vmatprep.subr.mxu0 0.0
    %962 = vmatpush1.msra.mxu0 0.0
    %963 = vmatprep.subr.mxu0 0.0
    %964 = vmatpush1.msra.mxu0 0.0
    %965 = vmatprep.subr.mxu0 0.0
    %966 = vmatpush1.msra.mxu0 0.0
    %967 = vmatprep.subr.mxu0 0.0
    %968 = vmatpush1.msra.mxu0 0.0
    %969 = vmatprep.mubr.f32.mxu0 0.0
    %970 = vmatmul.mubr.f32.gmra.mrb[0].mxu0 %v903
    %v971 = vpop.f32.mrb[0].mxu0
    %v972 = vadd.f32 0.0, %v971
    %v973 = vpop.f32.mrb[0].mxu0
    %974 = vdwg.mxu0
    %v975 = vadd.f32 %v183, %v972
    %v976 = vxor.u32 %v900, 2147483648
    %v977 = vmul.f32 %v976, 1.442695
    %v978 = vpow.pop %v977
    %v979 = vadd.f32 %v978, 1.0
    %v980 = vrcp.pop %v979
    %v981 = vmul.f32 1.0, %v980
    %v982 = vtanh.pop %v900
    %v983 = vmul.f32 %v981, %v787
    %985 = vrot.lane.b32.xlu0 %v982, 64
    %v986 = vpop.permute.xlu0 %985
    %v988 = vmul.f32 %v981, %v986
    %990 = vrot.lane.b32.xlu0 %v988, 32
    %v991 = vpop.permute.xlu0 %990
    %v993 = vadd.f32 %v983, %v991
    %v994 = vtanh.pop %v993
    %996 = vrot.lane.b32.xlu0 %v994, 64
    %v997 = vpop.permute.xlu0 %996
    %v999 = vmul.f32 %v981, %v997
    %v1000 = vxor.u32 %v975, 2147483648
    %v1001 = vmul.f32 %v1000, 1.442695
    %v1002 = vpow.pop %v1001
    %v1003 = vadd.f32 %v1002, 1.0
    %v1004 = vrcp.pop %v1003
    %v1005 = vmul.f32 1.0, %v1004
    %v1006 = vtanh.pop %v975
    %v1007 = vmul.f32 %v1005, %v811
    %1009 = vrot.lane.b32.xlu0 %v1006, 64
    %v1010 = vpop.permute.xlu0 %1009
    %v1012 = vmul.f32 %v1005, %v1010
    %1014 = vrot.lane.b32.xlu0 %v1012, 32
    %v1015 = vpop.permute.xlu0 %1014
    %v1017 = vadd.f32 %v1007, %v1015
    %v1018 = vtanh.pop %v1017
    %1020 = vrot.lane.b32.xlu0 %v1018, 64
    %v1021 = vpop.permute.xlu0 %1020
    %v1023 = vmul.f32 %v1005, %v1021
    %1025 = vrot.lane.b32.xlu0 %v999, 32
    %v1026 = vpop.permute.xlu0 %1025
    %1028 = vst.msk [vmem:[#allocation2 + $0x18] sm:$0xff] %vm211, %v1026
    %1030 = vrot.lane.b32.xlu0 %v1023, 64
    %v1031 = vpop.permute.xlu0 %1030
    %1033 = vst.msk [vmem:[#allocation2 + $0x20] sm:$0xff] %vm414, %v1031
    %v1034 = vsel %vm211, %v1026, 0
    %1036 = vmatprep.subr.mxu0 0.0
    %1037 = vmatpush1.msra.mxu0 %v203
    %1038 = vmatprep.subr.mxu0 0.0
    %1039 = vmatpush1.msra.mxu0 %v204
    %1040 = vmatprep.subr.mxu0 0.0
    %1041 = vmatpush1.msra.mxu0 %v205
    %1042 = vmatprep.subr.mxu0 0.0
    %1043 = vmatpush1.msra.mxu0 %v206
    %1044 = vmatprep.subr.mxu0 0.0
    %1045 = vmatpush1.msra.mxu0 0.0
    %1046 = vmatprep.subr.mxu0 0.0
    %1047 = vmatpush1.msra.mxu0 0.0
    %1048 = vmatprep.subr.mxu0 0.0
    %1049 = vmatpush1.msra.mxu0 0.0
    %1050 = vmatprep.subr.mxu0 0.0
    %1051 = vmatpush1.msra.mxu0 0.0
    %1052 = vmatprep.subr.mxu0 0.0
    %1053 = vmatpush1.msra.mxu0 0.0
    %1054 = vmatprep.subr.mxu0 0.0
    %1055 = vmatpush1.msra.mxu0 0.0
    %1056 = vmatprep.subr.mxu0 0.0
    %1057 = vmatpush1.msra.mxu0 0.0
    %1058 = vmatprep.subr.mxu0 0.0
    %1059 = vmatpush1.msra.mxu0 0.0
    %1060 = vmatprep.subr.mxu0 0.0
    %1061 = vmatpush1.msra.mxu0 0.0
    %1062 = vmatprep.subr.mxu0 0.0
    %1063 = vmatpush1.msra.mxu0 0.0
    %1064 = vmatprep.subr.mxu0 0.0
    %1065 = vmatpush1.msra.mxu0 0.0
    %1066 = vmatprep.subr.mxu0 0.0
    %1067 = vmatpush1.msra.mxu0 0.0
    %1068 = vmatprep.subr.mxu0 0.0
    %1069 = vmatpush1.msra.mxu0 0.0
    %1070 = vmatprep.subr.mxu0 0.0
    %1071 = vmatpush1.msra.mxu0 0.0
    %1072 = vmatprep.subr.mxu0 0.0
    %1073 = vmatpush1.msra.mxu0 0.0
    %1074 = vmatprep.subr.mxu0 0.0
    %1075 = vmatpush1.msra.mxu0 0.0
    %1076 = vmatprep.subr.mxu0 0.0
    %1077 = vmatpush1.msra.mxu0 0.0
    %1078 = vmatprep.subr.mxu0 0.0
    %1079 = vmatpush1.msra.mxu0 0.0
    %1080 = vmatprep.subr.mxu0 0.0
    %1081 = vmatpush1.msra.mxu0 0.0
    %1082 = vmatprep.subr.mxu0 0.0
    %1083 = vmatpush1.msra.mxu0 0.0
    %1084 = vmatprep.subr.mxu0 0.0
    %1085 = vmatpush1.msra.mxu0 0.0
    %1086 = vmatprep.subr.mxu0 0.0
    %1087 = vmatpush1.msra.mxu0 0.0
    %1088 = vmatprep.subr.mxu0 0.0
    %1089 = vmatpush1.msra.mxu0 0.0
    %1090 = vmatprep.subr.mxu0 0.0
    %1091 = vmatpush1.msra.mxu0 0.0
    %1092 = vmatprep.subr.mxu0 0.0
    %1093 = vmatpush1.msra.mxu0 0.0
    %1094 = vmatprep.subr.mxu0 0.0
    %1095 = vmatpush1.msra.mxu0 0.0
    %1096 = vmatprep.subr.mxu0 0.0
    %1097 = vmatpush1.msra.mxu0 0.0
    %1098 = vmatprep.subr.mxu0 0.0
    %1099 = vmatpush1.msra.mxu0 0.0
    %1100 = vmatprep.mubr.f32.mxu0 0.0
    %1101 = vmatmul.mubr.f32.gmra.mrb[0].mxu0 %v1034
    %v1102 = vpop.f32.mrb[0].mxu0
    %v1103 = vadd.f32 0.0, %v1102
    %v1104 = vpop.f32.mrb[0].mxu0
    %1105 = vdwg.mxu0
    %v1106 = vadd.f32 %v181, %v1103
    %1107 = vrot.lane.b32.xlu0 %v1023, 32
    %v1108 = vpop.permute.xlu0 %1107
    %v1109 = vsel %vm211, %v1108, 0
    %1111 = vmatprep.subr.mxu0 0.0
    %1112 = vmatpush1.msra.mxu0 %v207
    %1113 = vmatprep.subr.mxu0 0.0
    %1114 = vmatpush1.msra.mxu0 %v208
    %1115 = vmatprep.subr.mxu0 0.0
    %1116 = vmatpush1.msra.mxu0 %v209
    %1117 = vmatprep.subr.mxu0 0.0
    %1118 = vmatpush1.msra.mxu0 %v210
    %1119 = vmatprep.subr.mxu0 0.0
    %1120 = vmatpush1.msra.mxu0 0.0
    %1121 = vmatprep.subr.mxu0 0.0
    %1122 = vmatpush1.msra.mxu0 0.0
    %1123 = vmatprep.subr.mxu0 0.0
    %1124 = vmatpush1.msra.mxu0 0.0
    %1125 = vmatprep.subr.mxu0 0.0
    %1126 = vmatpush1.msra.mxu0 0.0
    %1127 = vmatprep.subr.mxu0 0.0
    %1128 = vmatpush1.msra.mxu0 0.0
    %1129 = vmatprep.subr.mxu0 0.0
    %1130 = vmatpush1.msra.mxu0 0.0
    %1131 = vmatprep.subr.mxu0 0.0
    %1132 = vmatpush1.msra.mxu0 0.0
    %1133 = vmatprep.subr.mxu0 0.0
    %1134 = vmatpush1.msra.mxu0 0.0
    %1135 = vmatprep.subr.mxu0 0.0
    %1136 = vmatpush1.msra.mxu0 0.0
    %1137 = vmatprep.subr.mxu0 0.0
    %1138 = vmatpush1.msra.mxu0 0.0
    %1139 = vmatprep.subr.mxu0 0.0
    %1140 = vmatpush1.msra.mxu0 0.0
    %1141 = vmatprep.subr.mxu0 0.0
    %1142 = vmatpush1.msra.mxu0 0.0
    %1143 = vmatprep.subr.mxu0 0.0
    %1144 = vmatpush1.msra.mxu0 0.0
    %1145 = vmatprep.subr.mxu0 0.0
    %1146 = vmatpush1.msra.mxu0 0.0
    %1147 = vmatprep.subr.mxu0 0.0
    %1148 = vmatpush1.msra.mxu0 0.0
    %1149 = vmatprep.subr.mxu0 0.0
    %1150 = vmatpush1.msra.mxu0 0.0
    %1151 = vmatprep.subr.mxu0 0.0
    %1152 = vmatpush1.msra.mxu0 0.0
    %1153 = vmatprep.subr.mxu0 0.0
    %1154 = vmatpush1.msra.mxu0 0.0
    %1155 = vmatprep.subr.mxu0 0.0
    %1156 = vmatpush1.msra.mxu0 0.0
    %1157 = vmatprep.subr.mxu0 0.0
    %1158 = vmatpush1.msra.mxu0 0.0
    %1159 = vmatprep.subr.mxu0 0.0
    %1160 = vmatpush1.msra.mxu0 0.0
    %1161 = vmatprep.subr.mxu0 0.0
    %1162 = vmatpush1.msra.mxu0 0.0
    %1163 = vmatprep.subr.mxu0 0.0
    %1164 = vmatpush1.msra.mxu0 0.0
    %1165 = vmatprep.subr.mxu0 0.0
    %1166 = vmatpush1.msra.mxu0 0.0
    %1167 = vmatprep.subr.mxu0 0.0
    %1168 = vmatpush1.msra.mxu0 0.0
    %1169 = vmatprep.subr.mxu0 0.0
    %1170 = vmatpush1.msra.mxu0 0.0
    %1171 = vmatprep.subr.mxu0 0.0
    %1172 = vmatpush1.msra.mxu0 0.0
    %1173 = vmatprep.subr.mxu0 0.0
    %1174 = vmatpush1.msra.mxu0 0.0
    %1175 = vmatprep.mubr.f32.mxu0 0.0
    %1176 = vmatmul.mubr.f32.gmra.mrb[0].mxu0 %v1109
    %v1177 = vpop.f32.mrb[0].mxu0
    %v1178 = vadd.f32 0.0, %v1177
    %v1179 = vpop.f32.mrb[0].mxu0
    %1180 = vdwg.mxu0
    %v1181 = vadd.f32 %v177, %v1178
    %v1182 = vxor.u32 %v1106, 2147483648
    %v1183 = vmul.f32 %v1182, 1.442695
    %v1184 = vpow.pop %v1183
    %v1185 = vadd.f32 %v1184, 1.0
    %v1186 = vrcp.pop %v1185
    %v1187 = vmul.f32 1.0, %v1186
    %v1188 = vtanh.pop %v1106
    %v1189 = vmul.f32 %v1187, %v993
    %1191 = vrot.lane.b32.xlu0 %v1188, 64
    %v1192 = vpop.permute.xlu0 %1191
    %v1194 = vmul.f32 %v1187, %v1192
    %1196 = vrot.lane.b32.xlu0 %v1194, 32
    %v1197 = vpop.permute.xlu0 %1196
    %v1199 = vadd.f32 %v1189, %v1197
    %v1200 = vtanh.pop %v1199
    %1202 = vrot.lane.b32.xlu0 %v1200, 64
    %v1203 = vpop.permute.xlu0 %1202
    %v1205 = vmul.f32 %v1187, %v1203
    %v1206 = vxor.u32 %v1181, 2147483648
    %v1207 = vmul.f32 %v1206, 1.442695
    %v1208 = vpow.pop %v1207
    %v1209 = vadd.f32 %v1208, 1.0
    %v1210 = vrcp.pop %v1209
    %v1211 = vmul.f32 1.0, %v1210
    %v1212 = vtanh.pop %v1181
    %v1213 = vmul.f32 %v1211, %v1017
    %1215 = vrot.lane.b32.xlu0 %v1212, 64
    %v1216 = vpop.permute.xlu0 %1215
    %v1218 = vmul.f32 %v1211, %v1216
    %1220 = vrot.lane.b32.xlu0 %v1218, 32
    %v1221 = vpop.permute.xlu0 %1220
    %v1223 = vadd.f32 %v1213, %v1221
    %v1224 = vtanh.pop %v1223
    %1226 = vrot.lane.b32.xlu0 %v1224, 64
    %v1227 = vpop.permute.xlu0 %1226
    %v1229 = vmul.f32 %v1211, %v1227
    %1231 = vrot.lane.b32.xlu0 %v1205, 32
    %v1232 = vpop.permute.xlu0 %1231
    %1234 = vst.msk [vmem:[#allocation2 + $0x20] sm:$0xff] %vm211, %v1232
    %1236 = vrot.lane.b32.xlu0 %v1229, 64
    %v1237 = vpop.permute.xlu0 %1236
    %1239 = vst.msk [vmem:[#allocation2 + $0x18] sm:$0xff] %vm414, %v1237
    %v1240 = vsel %vm211, %v1232, 0
    %1242 = vmatprep.subr.mxu0 0.0
    %1243 = vmatpush1.msra.mxu0 %v203
    %1244 = vmatprep.subr.mxu0 0.0
    %1245 = vmatpush1.msra.mxu0 %v204
    %1246 = vmatprep.subr.mxu0 0.0
    %1247 = vmatpush1.msra.mxu0 %v205
    %1248 = vmatprep.subr.mxu0 0.0
    %1249 = vmatpush1.msra.mxu0 %v206
    %1250 = vmatprep.subr.mxu0 0.0
    %1251 = vmatpush1.msra.mxu0 0.0
    %1252 = vmatprep.subr.mxu0 0.0
    %1253 = vmatpush1.msra.mxu0 0.0
    %1254 = vmatprep.subr.mxu0 0.0
    %1255 = vmatpush1.msra.mxu0 0.0
    %1256 = vmatprep.subr.mxu0 0.0
    %1257 = vmatpush1.msra.mxu0 0.0
    %1258 = vmatprep.subr.mxu0 0.0
    %1259 = vmatpush1.msra.mxu0 0.0
    %1260 = vmatprep.subr.mxu0 0.0
    %1261 = vmatpush1.msra.mxu0 0.0
    %1262 = vmatprep.subr.mxu0 0.0
    %1263 = vmatpush1.msra.mxu0 0.0
    %1264 = vmatprep.subr.mxu0 0.0
    %1265 = vmatpush1.msra.mxu0 0.0
    %1266 = vmatprep.subr.mxu0 0.0
    %1267 = vmatpush1.msra.mxu0 0.0
    %1268 = vmatprep.subr.mxu0 0.0
    %1269 = vmatpush1.msra.mxu0 0.0
    %1270 = vmatprep.subr.mxu0 0.0
    %1271 = vmatpush1.msra.mxu0 0.0
    %1272 = vmatprep.subr.mxu0 0.0
    %1273 = vmatpush1.msra.mxu0 0.0
    %1274 = vmatprep.subr.mxu0 0.0
    %1275 = vmatpush1.msra.mxu0 0.0
    %1276 = vmatprep.subr.mxu0 0.0
    %1277 = vmatpush1.msra.mxu0 0.0
    %1278 = vmatprep.subr.mxu0 0.0
    %1279 = vmatpush1.msra.mxu0 0.0
    %1280 = vmatprep.subr.mxu0 0.0
    %1281 = vmatpush1.msra.mxu0 0.0
    %1282 = vmatprep.subr.mxu0 0.0
    %1283 = vmatpush1.msra.mxu0 0.0
    %1284 = vmatprep.subr.mxu0 0.0
    %1285 = vmatpush1.msra.mxu0 0.0
    %1286 = vmatprep.subr.mxu0 0.0
    %1287 = vmatpush1.msra.mxu0 0.0
    %1288 = vmatprep.subr.mxu0 0.0
    %1289 = vmatpush1.msra.mxu0 0.0
    %1290 = vmatprep.subr.mxu0 0.0
    %1291 = vmatpush1.msra.mxu0 0.0
    %1292 = vmatprep.subr.mxu0 0.0
    %1293 = vmatpush1.msra.mxu0 0.0
    %1294 = vmatprep.subr.mxu0 0.0
    %1295 = vmatpush1.msra.mxu0 0.0
    %1296 = vmatprep.subr.mxu0 0.0
    %1297 = vmatpush1.msra.mxu0 0.0
    %1298 = vmatprep.subr.mxu0 0.0
    %1299 = vmatpush1.msra.mxu0 0.0
    %1300 = vmatprep.subr.mxu0 0.0
    %1301 = vmatpush1.msra.mxu0 0.0
    %1302 = vmatprep.subr.mxu0 0.0
    %1303 = vmatpush1.msra.mxu0 0.0
    %1304 = vmatprep.subr.mxu0 0.0
    %1305 = vmatpush1.msra.mxu0 0.0
    %1306 = vmatprep.mubr.f32.mxu0 0.0
    %1307 = vmatmul.mubr.f32.gmra.mrb[0].mxu0 %v1240
    %v1308 = vpop.f32.mrb[0].mxu0
    %v1309 = vadd.f32 0.0, %v1308
    %v1310 = vpop.f32.mrb[0].mxu0
    %1311 = vdwg.mxu0
    %v1312 = vadd.f32 %v187, %v1309
    %1313 = vrot.lane.b32.xlu0 %v1229, 32
    %v1314 = vpop.permute.xlu0 %1313
    %v1315 = vsel %vm211, %v1314, 0
    %1317 = vmatprep.subr.mxu0 0.0
    %1318 = vmatpush1.msra.mxu0 %v207
    %1319 = vmatprep.subr.mxu0 0.0
    %1320 = vmatpush1.msra.mxu0 %v208
    %1321 = vmatprep.subr.mxu0 0.0
    %1322 = vmatpush1.msra.mxu0 %v209
    %1323 = vmatprep.subr.mxu0 0.0
    %1324 = vmatpush1.msra.mxu0 %v210
    %1325 = vmatprep.subr.mxu0 0.0
    %1326 = vmatpush1.msra.mxu0 0.0
    %1327 = vmatprep.subr.mxu0 0.0
    %1328 = vmatpush1.msra.mxu0 0.0
    %1329 = vmatprep.subr.mxu0 0.0
    %1330 = vmatpush1.msra.mxu0 0.0
    %1331 = vmatprep.subr.mxu0 0.0
    %1332 = vmatpush1.msra.mxu0 0.0
    %1333 = vmatprep.subr.mxu0 0.0
    %1334 = vmatpush1.msra.mxu0 0.0
    %1335 = vmatprep.subr.mxu0 0.0
    %1336 = vmatpush1.msra.mxu0 0.0
    %1337 = vmatprep.subr.mxu0 0.0
    %1338 = vmatpush1.msra.mxu0 0.0
    %1339 = vmatprep.subr.mxu0 0.0
    %1340 = vmatpush1.msra.mxu0 0.0
    %1341 = vmatprep.subr.mxu0 0.0
    %1342 = vmatpush1.msra.mxu0 0.0
    %1343 = vmatprep.subr.mxu0 0.0
    %1344 = vmatpush1.msra.mxu0 0.0
    %1345 = vmatprep.subr.mxu0 0.0
    %1346 = vmatpush1.msra.mxu0 0.0
    %1347 = vmatprep.subr.mxu0 0.0
    %1348 = vmatpush1.msra.mxu0 0.0
    %1349 = vmatprep.subr.mxu0 0.0
    %1350 = vmatpush1.msra.mxu0 0.0
    %1351 = vmatprep.subr.mxu0 0.0
    %1352 = vmatpush1.msra.mxu0 0.0
    %1353 = vmatprep.subr.mxu0 0.0
    %1354 = vmatpush1.msra.mxu0 0.0
    %1355 = vmatprep.subr.mxu0 0.0
    %1356 = vmatpush1.msra.mxu0 0.0
    %1357 = vmatprep.subr.mxu0 0.0
    %1358 = vmatpush1.msra.mxu0 0.0
    %1359 = vmatprep.subr.mxu0 0.0
    %1360 = vmatpush1.msra.mxu0 0.0
    %1361 = vmatprep.subr.mxu0 0.0
    %1362 = vmatpush1.msra.mxu0 0.0
    %1363 = vmatprep.subr.mxu0 0.0
    %1364 = vmatpush1.msra.mxu0 0.0
    %1365 = vmatprep.subr.mxu0 0.0
    %1366 = vmatpush1.msra.mxu0 0.0
    %1367 = vmatprep.subr.mxu0 0.0
    %1368 = vmatpush1.msra.mxu0 0.0
    %1369 = vmatprep.subr.mxu0 0.0
    %1370 = vmatpush1.msra.mxu0 0.0
    %1371 = vmatprep.subr.mxu0 0.0
    %1372 = vmatpush1.msra.mxu0 0.0
    %1373 = vmatprep.subr.mxu0 0.0
    %1374 = vmatpush1.msra.mxu0 0.0
    %1375 = vmatprep.subr.mxu0 0.0
    %1376 = vmatpush1.msra.mxu0 0.0
    %1377 = vmatprep.subr.mxu0 0.0
    %1378 = vmatpush1.msra.mxu0 0.0
    %1379 = vmatprep.subr.mxu0 0.0
    %1380 = vmatpush1.msra.mxu0 0.0
    %1381 = vmatprep.mubr.f32.mxu0 0.0
    %1382 = vmatmul.mubr.f32.gmra.mrb[0].mxu0 %v1315
    %v1383 = vpop.f32.mrb[0].mxu0
    %v1384 = vadd.f32 0.0, %v1383
    %v1385 = vpop.f32.mrb[0].mxu0
    %1386 = vdwg.mxu0
    %v1387 = vadd.f32 %v171, %v1384
    %v1388 = vxor.u32 %v1312, 2147483648
    %v1389 = vmul.f32 %v1388, 1.442695
    %v1390 = vpow.pop %v1389
    %v1391 = vadd.f32 %v1390, 1.0
    %v1392 = vrcp.pop %v1391
    %v1393 = vmul.f32 1.0, %v1392
    %v1394 = vtanh.pop %v1312
    %v1395 = vmul.f32 %v1393, %v1199
    %1397 = vrot.lane.b32.xlu0 %v1394, 64
    %v1398 = vpop.permute.xlu0 %1397
    %v1400 = vmul.f32 %v1393, %v1398
    %1402 = vrot.lane.b32.xlu0 %v1400, 32
    %v1403 = vpop.permute.xlu0 %1402
    %v1405 = vadd.f32 %v1395, %v1403
    %v1406 = vtanh.pop %v1405
    %1408 = vrot.lane.b32.xlu0 %v1406, 64
    %v1409 = vpop.permute.xlu0 %1408
    %v1411 = vmul.f32 %v1393, %v1409
    %v1412 = vxor.u32 %v1387, 2147483648
    %v1413 = vmul.f32 %v1412, 1.442695
    %v1414 = vpow.pop %v1413
    %v1415 = vadd.f32 %v1414, 1.0
    %v1416 = vrcp.pop %v1415
    %v1417 = vmul.f32 1.0, %v1416
    %v1418 = vtanh.pop %v1387
    %v1419 = vmul.f32 %v1417, %v1223
    %1421 = vrot.lane.b32.xlu0 %v1418, 64
    %v1422 = vpop.permute.xlu0 %1421
    %v1424 = vmul.f32 %v1417, %v1422
    %1426 = vrot.lane.b32.xlu0 %v1424, 32
    %v1427 = vpop.permute.xlu0 %1426
    %v1429 = vadd.f32 %v1419, %v1427
    %v1430 = vtanh.pop %v1429
    %1432 = vrot.lane.b32.xlu0 %v1430, 64
    %v1433 = vpop.permute.xlu0 %1432
    %v1435 = vmul.f32 %v1417, %v1433
    %1437 = vrot.lane.b32.xlu0 %v1411, 32
    %v1438 = vpop.permute.xlu0 %1437
    %1440 = vst.msk [vmem:[#allocation2 + $0x28] sm:$0xff] %vm211, %v1438
    %1442 = vrot.lane.b32.xlu0 %v1435, 64
    %v1443 = vpop.permute.xlu0 %1442
    %1445 = vst.msk [vmem:[#allocation2 + $0x10] sm:$0xff] %vm414, %v1443
    %v1446 = vsel %vm211, %v1438, 0
    %1448 = vmatprep.subr.mxu0 0.0
    %1449 = vmatpush1.msra.mxu0 %v203
    %1450 = vmatprep.subr.mxu0 0.0
    %1451 = vmatpush1.msra.mxu0 %v204
    %1452 = vmatprep.subr.mxu0 0.0
    %1453 = vmatpush1.msra.mxu0 %v205
    %1454 = vmatprep.subr.mxu0 0.0
    %1455 = vmatpush1.msra.mxu0 %v206
    %1456 = vmatprep.subr.mxu0 0.0
    %1457 = vmatpush1.msra.mxu0 0.0
    %1458 = vmatprep.subr.mxu0 0.0
    %1459 = vmatpush1.msra.mxu0 0.0
    %1460 = vmatprep.subr.mxu0 0.0
    %1461 = vmatpush1.msra.mxu0 0.0
    %1462 = vmatprep.subr.mxu0 0.0
    %1463 = vmatpush1.msra.mxu0 0.0
    %1464 = vmatprep.subr.mxu0 0.0
    %1465 = vmatpush1.msra.mxu0 0.0
    %1466 = vmatprep.subr.mxu0 0.0
    %1467 = vmatpush1.msra.mxu0 0.0
    %1468 = vmatprep.subr.mxu0 0.0
    %1469 = vmatpush1.msra.mxu0 0.0
    %1470 = vmatprep.subr.mxu0 0.0
    %1471 = vmatpush1.msra.mxu0 0.0
    %1472 = vmatprep.subr.mxu0 0.0
    %1473 = vmatpush1.msra.mxu0 0.0
    %1474 = vmatprep.subr.mxu0 0.0
    %1475 = vmatpush1.msra.mxu0 0.0
    %1476 = vmatprep.subr.mxu0 0.0
    %1477 = vmatpush1.msra.mxu0 0.0
    %1478 = vmatprep.subr.mxu0 0.0
    %1479 = vmatpush1.msra.mxu0 0.0
    %1480 = vmatprep.subr.mxu0 0.0
    %1481 = vmatpush1.msra.mxu0 0.0
    %1482 = vmatprep.subr.mxu0 0.0
    %1483 = vmatpush1.msra.mxu0 0.0
    %1484 = vmatprep.subr.mxu0 0.0
    %1485 = vmatpush1.msra.mxu0 0.0
    %1486 = vmatprep.subr.mxu0 0.0
    %1487 = vmatpush1.msra.mxu0 0.0
    %1488 = vmatprep.subr.mxu0 0.0
    %1489 = vmatpush1.msra.mxu0 0.0
    %1490 = vmatprep.subr.mxu0 0.0
    %1491 = vmatpush1.msra.mxu0 0.0
    %1492 = vmatprep.subr.mxu0 0.0
    %1493 = vmatpush1.msra.mxu0 0.0
    %1494 = vmatprep.subr.mxu0 0.0
    %1495 = vmatpush1.msra.mxu0 0.0
    %1496 = vmatprep.subr.mxu0 0.0
    %1497 = vmatpush1.msra.mxu0 0.0
    %1498 = vmatprep.subr.mxu0 0.0
    %1499 = vmatpush1.msra.mxu0 0.0
    %1500 = vmatprep.subr.mxu0 0.0
    %1501 = vmatpush1.msra.mxu0 0.0
    %1502 = vmatprep.subr.mxu0 0.0
    %1503 = vmatpush1.msra.mxu0 0.0
    %1504 = vmatprep.subr.mxu0 0.0
    %1505 = vmatpush1.msra.mxu0 0.0
    %1506 = vmatprep.subr.mxu0 0.0
    %1507 = vmatpush1.msra.mxu0 0.0
    %1508 = vmatprep.subr.mxu0 0.0
    %1509 = vmatpush1.msra.mxu0 0.0
    %1510 = vmatprep.subr.mxu0 0.0
    %1511 = vmatpush1.msra.mxu0 0.0
    %1512 = vmatprep.mubr.f32.mxu0 0.0
    %1513 = vmatmul.mubr.f32.gmra.mrb[0].mxu0 %v1446
    %v1514 = vpop.f32.mrb[0].mxu0
    %v1515 = vadd.f32 0.0, %v1514
    %v1516 = vpop.f32.mrb[0].mxu0
    %1517 = vdwg.mxu0
    %v1518 = vadd.f32 %v193, %v1515
    %1519 = vrot.lane.b32.xlu0 %v1435, 32
    %v1520 = vpop.permute.xlu0 %1519
    %v1521 = vsel %vm211, %v1520, 0
    %1523 = vmatprep.subr.mxu0 0.0
    %1524 = vmatpush1.msra.mxu0 %v207
    %1525 = vmatprep.subr.mxu0 0.0
    %1526 = vmatpush1.msra.mxu0 %v208
    %1527 = vmatprep.subr.mxu0 0.0
    %1528 = vmatpush1.msra.mxu0 %v209
    %1529 = vmatprep.subr.mxu0 0.0
    %1530 = vmatpush1.msra.mxu0 %v210
    %1531 = vmatprep.subr.mxu0 0.0
    %1532 = vmatpush1.msra.mxu0 0.0
    %1533 = vmatprep.subr.mxu0 0.0
    %1534 = vmatpush1.msra.mxu0 0.0
    %1535 = vmatprep.subr.mxu0 0.0
    %1536 = vmatpush1.msra.mxu0 0.0
    %1537 = vmatprep.subr.mxu0 0.0
    %1538 = vmatpush1.msra.mxu0 0.0
    %1539 = vmatprep.subr.mxu0 0.0
    %1540 = vmatpush1.msra.mxu0 0.0
    %1541 = vmatprep.subr.mxu0 0.0
    %1542 = vmatpush1.msra.mxu0 0.0
    %1543 = vmatprep.subr.mxu0 0.0
    %1544 = vmatpush1.msra.mxu0 0.0
    %1545 = vmatprep.subr.mxu0 0.0
    %1546 = vmatpush1.msra.mxu0 0.0
    %1547 = vmatprep.subr.mxu0 0.0
    %1548 = vmatpush1.msra.mxu0 0.0
    %1549 = vmatprep.subr.mxu0 0.0
    %1550 = vmatpush1.msra.mxu0 0.0
    %1551 = vmatprep.subr.mxu0 0.0
    %1552 = vmatpush1.msra.mxu0 0.0
    %1553 = vmatprep.subr.mxu0 0.0
    %1554 = vmatpush1.msra.mxu0 0.0
    %1555 = vmatprep.subr.mxu0 0.0
    %1556 = vmatpush1.msra.mxu0 0.0
    %1557 = vmatprep.subr.mxu0 0.0
    %1558 = vmatpush1.msra.mxu0 0.0
    %1559 = vmatprep.subr.mxu0 0.0
    %1560 = vmatpush1.msra.mxu0 0.0
    %1561 = vmatprep.subr.mxu0 0.0
    %1562 = vmatpush1.msra.mxu0 0.0
    %1563 = vmatprep.subr.mxu0 0.0
    %1564 = vmatpush1.msra.mxu0 0.0
    %1565 = vmatprep.subr.mxu0 0.0
    %1566 = vmatpush1.msra.mxu0 0.0
    %1567 = vmatprep.subr.mxu0 0.0
    %1568 = vmatpush1.msra.mxu0 0.0
    %1569 = vmatprep.subr.mxu0 0.0
    %1570 = vmatpush1.msra.mxu0 0.0
    %1571 = vmatprep.subr.mxu0 0.0
    %1572 = vmatpush1.msra.mxu0 0.0
    %1573 = vmatprep.subr.mxu0 0.0
    %1574 = vmatpush1.msra.mxu0 0.0
    %1575 = vmatprep.subr.mxu0 0.0
    %1576 = vmatpush1.msra.mxu0 0.0
    %1577 = vmatprep.subr.mxu0 0.0
    %1578 = vmatpush1.msra.mxu0 0.0
    %1579 = vmatprep.subr.mxu0 0.0
    %1580 = vmatpush1.msra.mxu0 0.0
    %1581 = vmatprep.subr.mxu0 0.0
    %1582 = vmatpush1.msra.mxu0 0.0
    %1583 = vmatprep.subr.mxu0 0.0
    %1584 = vmatpush1.msra.mxu0 0.0
    %1585 = vmatprep.subr.mxu0 0.0
    %1586 = vmatpush1.msra.mxu0 0.0
    %1587 = vmatprep.mubr.f32.mxu0 0.0
    %1588 = vmatmul.mubr.f32.gmra.mrb[0].mxu0 %v1521
    %v1589 = vpop.f32.mrb[0].mxu0
    %v1590 = vadd.f32 0.0, %v1589
    %v1591 = vpop.f32.mrb[0].mxu0
    %1592 = vdwg.mxu0
    %v1593 = vadd.f32 %v165, %v1590
    %v1594 = vxor.u32 %v1518, 2147483648
    %v1595 = vmul.f32 %v1594, 1.442695
    %v1596 = vpow.pop %v1595
    %v1597 = vadd.f32 %v1596, 1.0
    %v1598 = vrcp.pop %v1597
    %v1599 = vmul.f32 1.0, %v1598
    %v1600 = vtanh.pop %v1518
    %v1601 = vmul.f32 %v1599, %v1405
    %1603 = vrot.lane.b32.xlu0 %v1600, 64
    %v1604 = vpop.permute.xlu0 %1603
    %v1606 = vmul.f32 %v1599, %v1604
    %1608 = vrot.lane.b32.xlu0 %v1606, 32
    %v1609 = vpop.permute.xlu0 %1608
    %v1611 = vadd.f32 %v1601, %v1609
    %v1612 = vtanh.pop %v1611
    %1614 = vrot.lane.b32.xlu0 %v1612, 64
    %v1615 = vpop.permute.xlu0 %1614
    %v1617 = vmul.f32 %v1599, %v1615
    %v1618 = vxor.u32 %v1593, 2147483648
    %v1619 = vmul.f32 %v1618, 1.442695
    %v1620 = vpow.pop %v1619
    %v1621 = vadd.f32 %v1620, 1.0
    %v1622 = vrcp.pop %v1621
    %v1623 = vmul.f32 1.0, %v1622
    %v1624 = vtanh.pop %v1593
    %v1625 = vmul.f32 %v1623, %v1429
    %1627 = vrot.lane.b32.xlu0 %v1624, 64
    %v1628 = vpop.permute.xlu0 %1627
    %v1630 = vmul.f32 %v1623, %v1628
    %1632 = vrot.lane.b32.xlu0 %v1630, 32
    %v1633 = vpop.permute.xlu0 %1632
    %v1635 = vadd.f32 %v1625, %v1633
    %v1636 = vtanh.pop %v1635
    %1638 = vrot.lane.b32.xlu0 %v1636, 64
    %v1639 = vpop.permute.xlu0 %1638
    %v1641 = vmul.f32 %v1623, %v1639
    %1643 = vrot.lane.b32.xlu0 %v1617, 32
    %v1644 = vpop.permute.xlu0 %1643
    %1646 = vst.msk [vmem:[#allocation2 + $0x30] sm:$0xff] %vm211, %v1644
    %1648 = vrot.lane.b32.xlu0 %v1641, 64
    %v1649 = vpop.permute.xlu0 %1648
    %1651 = vst.msk [vmem:[#allocation2 + $0x8] sm:$0xff] %vm414, %v1649
    %v1652 = vsel %vm211, %v1644, 0
    %1654 = vmatprep.subr.mxu0 0.0
    %1655 = vmatpush1.msra.mxu0 %v203
    %1656 = vmatprep.subr.mxu0 0.0
    %1657 = vmatpush1.msra.mxu0 %v204
    %1658 = vmatprep.subr.mxu0 0.0
    %1659 = vmatpush1.msra.mxu0 %v205
    %1660 = vmatprep.subr.mxu0 0.0
    %1661 = vmatpush1.msra.mxu0 %v206
    %1662 = vmatprep.subr.mxu0 0.0
    %1663 = vmatpush1.msra.mxu0 0.0
    %1664 = vmatprep.subr.mxu0 0.0
    %1665 = vmatpush1.msra.mxu0 0.0
    %1666 = vmatprep.subr.mxu0 0.0
    %1667 = vmatpush1.msra.mxu0 0.0
    %1668 = vmatprep.subr.mxu0 0.0
    %1669 = vmatpush1.msra.mxu0 0.0
    %1670 = vmatprep.subr.mxu0 0.0
    %1671 = vmatpush1.msra.mxu0 0.0
    %1672 = vmatprep.subr.mxu0 0.0
    %1673 = vmatpush1.msra.mxu0 0.0
    %1674 = vmatprep.subr.mxu0 0.0
    %1675 = vmatpush1.msra.mxu0 0.0
    %1676 = vmatprep.subr.mxu0 0.0
    %1677 = vmatpush1.msra.mxu0 0.0
    %1678 = vmatprep.subr.mxu0 0.0
    %1679 = vmatpush1.msra.mxu0 0.0
    %1680 = vmatprep.subr.mxu0 0.0
    %1681 = vmatpush1.msra.mxu0 0.0
    %1682 = vmatprep.subr.mxu0 0.0
    %1683 = vmatpush1.msra.mxu0 0.0
    %1684 = vmatprep.subr.mxu0 0.0
    %1685 = vmatpush1.msra.mxu0 0.0
    %1686 = vmatprep.subr.mxu0 0.0
    %1687 = vmatpush1.msra.mxu0 0.0
    %1688 = vmatprep.subr.mxu0 0.0
    %1689 = vmatpush1.msra.mxu0 0.0
    %1690 = vmatprep.subr.mxu0 0.0
    %1691 = vmatpush1.msra.mxu0 0.0
    %1692 = vmatprep.subr.mxu0 0.0
    %1693 = vmatpush1.msra.mxu0 0.0
    %1694 = vmatprep.subr.mxu0 0.0
    %1695 = vmatpush1.msra.mxu0 0.0
    %1696 = vmatprep.subr.mxu0 0.0
    %1697 = vmatpush1.msra.mxu0 0.0
    %1698 = vmatprep.subr.mxu0 0.0
    %1699 = vmatpush1.msra.mxu0 0.0
    %1700 = vmatprep.subr.mxu0 0.0
    %1701 = vmatpush1.msra.mxu0 0.0
    %1702 = vmatprep.subr.mxu0 0.0
    %1703 = vmatpush1.msra.mxu0 0.0
    %1704 = vmatprep.subr.mxu0 0.0
    %1705 = vmatpush1.msra.mxu0 0.0
    %1706 = vmatprep.subr.mxu0 0.0
    %1707 = vmatpush1.msra.mxu0 0.0
    %1708 = vmatprep.subr.mxu0 0.0
    %1709 = vmatpush1.msra.mxu0 0.0
    %1710 = vmatprep.subr.mxu0 0.0
    %1711 = vmatpush1.msra.mxu0 0.0
    %1712 = vmatprep.subr.mxu0 0.0
    %1713 = vmatpush1.msra.mxu0 0.0
    %1714 = vmatprep.subr.mxu0 0.0
    %1715 = vmatpush1.msra.mxu0 0.0
    %1716 = vmatprep.subr.mxu0 0.0
    %1717 = vmatpush1.msra.mxu0 0.0
    %1718 = vmatprep.mubr.f32.mxu0 0.0
    %1719 = vmatmul.mubr.f32.gmra.mrb[0].mxu0 %v1652
    %v1720 = vpop.f32.mrb[0].mxu0
    %v1721 = vadd.f32 0.0, %v1720
    %v1722 = vpop.f32.mrb[0].mxu0
    %1723 = vdwg.mxu0
    %v1724 = vadd.f32 %v199, %v1721
    %1725 = vrot.lane.b32.xlu0 %v1641, 32
    %v1726 = vpop.permute.xlu0 %1725
    %v1727 = vsel %vm211, %v1726, 0
    %1729 = vmatprep.subr.mxu0 0.0
    %1730 = vmatpush1.msra.mxu0 %v207
    %1731 = vmatprep.subr.mxu0 0.0
    %1732 = vmatpush1.msra.mxu0 %v208
    %1733 = vmatprep.subr.mxu0 0.0
    %1734 = vmatpush1.msra.mxu0 %v209
    %1735 = vmatprep.subr.mxu0 0.0
    %1736 = vmatpush1.msra.mxu0 %v210
    %1737 = vmatprep.subr.mxu0 0.0
    %1738 = vmatpush1.msra.mxu0 0.0
    %1739 = vmatprep.subr.mxu0 0.0
    %1740 = vmatpush1.msra.mxu0 0.0
    %1741 = vmatprep.subr.mxu0 0.0
    %1742 = vmatpush1.msra.mxu0 0.0
    %1743 = vmatprep.subr.mxu0 0.0
    %1744 = vmatpush1.msra.mxu0 0.0
    %1745 = vmatprep.subr.mxu0 0.0
    %1746 = vmatpush1.msra.mxu0 0.0
    %1747 = vmatprep.subr.mxu0 0.0
    %1748 = vmatpush1.msra.mxu0 0.0
    %1749 = vmatprep.subr.mxu0 0.0
    %1750 = vmatpush1.msra.mxu0 0.0
    %1751 = vmatprep.subr.mxu0 0.0
    %1752 = vmatpush1.msra.mxu0 0.0
    %1753 = vmatprep.subr.mxu0 0.0
    %1754 = vmatpush1.msra.mxu0 0.0
    %1755 = vmatprep.subr.mxu0 0.0
    %1756 = vmatpush1.msra.mxu0 0.0
    %1757 = vmatprep.subr.mxu0 0.0
    %1758 = vmatpush1.msra.mxu0 0.0
    %1759 = vmatprep.subr.mxu0 0.0
    %1760 = vmatpush1.msra.mxu0 0.0
    %1761 = vmatprep.subr.mxu0 0.0
    %1762 = vmatpush1.msra.mxu0 0.0
    %1763 = vmatprep.subr.mxu0 0.0
    %1764 = vmatpush1.msra.mxu0 0.0
    %1765 = vmatprep.subr.mxu0 0.0
    %1766 = vmatpush1.msra.mxu0 0.0
    %1767 = vmatprep.subr.mxu0 0.0
    %1768 = vmatpush1.msra.mxu0 0.0
    %1769 = vmatprep.subr.mxu0 0.0
    %1770 = vmatpush1.msra.mxu0 0.0
    %1771 = vmatprep.subr.mxu0 0.0
    %1772 = vmatpush1.msra.mxu0 0.0
    %1773 = vmatprep.subr.mxu0 0.0
    %1774 = vmatpush1.msra.mxu0 0.0
    %1775 = vmatprep.subr.mxu0 0.0
    %1776 = vmatpush1.msra.mxu0 0.0
    %1777 = vmatprep.subr.mxu0 0.0
    %1778 = vmatpush1.msra.mxu0 0.0
    %1779 = vmatprep.subr.mxu0 0.0
    %1780 = vmatpush1.msra.mxu0 0.0
    %1781 = vmatprep.subr.mxu0 0.0
    %1782 = vmatpush1.msra.mxu0 0.0
    %1783 = vmatprep.subr.mxu0 0.0
    %1784 = vmatpush1.msra.mxu0 0.0
    %1785 = vmatprep.subr.mxu0 0.0
    %1786 = vmatpush1.msra.mxu0 0.0
    %1787 = vmatprep.subr.mxu0 0.0
    %1788 = vmatpush1.msra.mxu0 0.0
    %1789 = vmatprep.subr.mxu0 0.0
    %1790 = vmatpush1.msra.mxu0 0.0
    %1791 = vmatprep.subr.mxu0 0.0
    %1792 = vmatpush1.msra.mxu0 0.0
    %1793 = vmatprep.mubr.f32.mxu0 0.0
    %1794 = vmatmul.mubr.f32.gmra.mrb[0].mxu0 %v1727
    %v1795 = vpop.f32.mrb[0].mxu0
    %v1796 = vadd.f32 0.0, %v1795
    %v1797 = vpop.f32.mrb[0].mxu0
    %1798 = vdwg.mxu0
    %v1799 = vadd.f32 %v159, %v1796
    %v1800 = vxor.u32 %v1724, 2147483648
    %v1801 = vmul.f32 %v1800, 1.442695
    %v1802 = vpow.pop %v1801
    %v1803 = vadd.f32 %v1802, 1.0
    %v1804 = vrcp.pop %v1803
    %v1805 = vmul.f32 1.0, %v1804
    %v1806 = vtanh.pop %v1724
    %v1807 = vmul.f32 %v1805, %v1611
    %1809 = vrot.lane.b32.xlu0 %v1806, 64
    %v1810 = vpop.permute.xlu0 %1809
    %v1812 = vmul.f32 %v1805, %v1810
    %1814 = vrot.lane.b32.xlu0 %v1812, 32
    %v1815 = vpop.permute.xlu0 %1814
    %v1817 = vadd.f32 %v1807, %v1815
    %v1818 = vtanh.pop %v1817
    %1820 = vrot.lane.b32.xlu0 %v1818, 64
    %v1821 = vpop.permute.xlu0 %1820
    %v1823 = vmul.f32 %v1805, %v1821
    %v1824 = vxor.u32 %v1799, 2147483648
    %v1825 = vmul.f32 %v1824, 1.442695
    %v1826 = vpow.pop %v1825
    %v1827 = vadd.f32 %v1826, 1.0
    %v1828 = vrcp.pop %v1827
    %v1829 = vmul.f32 1.0, %v1828
    %v1830 = vtanh.pop %v1799
    %v1831 = vmul.f32 %v1829, %v1635
    %1833 = vrot.lane.b32.xlu0 %v1830, 64
    %v1834 = vpop.permute.xlu0 %1833
    %v1836 = vmul.f32 %v1829, %v1834
    %1838 = vrot.lane.b32.xlu0 %v1836, 32
    %v1839 = vpop.permute.xlu0 %1838
    %v1841 = vadd.f32 %v1831, %v1839
    %v1842 = vtanh.pop %v1841
    %1844 = vrot.lane.b32.xlu0 %v1842, 64
    %v1845 = vpop.permute.xlu0 %1844
    %v1847 = vmul.f32 %v1829, %v1845
    %1849 = vrot.lane.b32.xlu0 %v1823, 32
    %v1850 = vpop.permute.xlu0 %1849
    %1852 = vst.msk [vmem:[#allocation2 + $0x38] sm:$0xff] %vm211, %v1850
    %1854 = vrot.lane.b32.xlu0 %v1847, 64
    %v1855 = vpop.permute.xlu0 %1854
    %1857 = vst.msk [vmem:[#allocation2] sm:$0xff] %vm414, %v1855
    %v1858 = vld [vmem:[#allocation2] sm:$0xff]
    %v1859 = vld [vmem:[#allocation2 + $0x8] sm:$0xff]
    %v1860 = vld [vmem:[#allocation2 + $0x10] sm:$0xff]
    %v1861 = vld [vmem:[#allocation2 + $0x18] sm:$0xff]
    %v1862 = vld [vmem:[#allocation2 + $0x20] sm:$0xff]
    %v1863 = vld [vmem:[#allocation2 + $0x28] sm:$0xff]
    %v1864 = vld [vmem:[#allocation2 + $0x30] sm:$0xff]
    %v1865 = vld [vmem:[#allocation2 + $0x38] sm:$0xff]
    %v1866 = vld [vmem:[%s5] sm:$0xff]
    %v1867 = vld [vmem:[%s5 + $0x8] sm:$0xff]
    %v1868 = vld [vmem:[%s5 + $0x10] sm:$0xff]
    %v1869 = vld [vmem:[%s5 + $0x18] sm:$0xff]
    %v1870 = vld [vmem:[%s5 + $0x20] sm:$0xff]
    %v1871 = vld [vmem:[%s5 + $0x28] sm:$0xff]
    %v1872 = vld [vmem:[%s5 + $0x30] sm:$0xff]
    %v1873 = vld [vmem:[%s5 + $0x38] sm:$0xff]
    %v1874 = vld [vmem:[%s6] sm:$0x1]
    %v1876 = vlaneseq
    %v1877 = vshrl.u32 %v1876, 7
    %v1878 = vsub.s32 0, %v1877
    %v1879 = vrot.slane %v1874, %v1878
    %v1882 = vsel %vm65, %v1858, 0
    %v1885 = vsel %vm65, %v1859, 0
    %v1888 = vsel %vm65, %v1860, 0
    %v1891 = vsel %vm65, %v1861, 0
    %v1894 = vsel %vm65, %v1862, 0
    %v1897 = vsel %vm65, %v1863, 0
    %v1900 = vsel %vm65, %v1864, 0
    %v1903 = vsel %vm65, %v1865, 0
    %1905 = vmatprep.subr.mxu0 0.0
    %1906 = vmatpush1.msra.mxu0 %v1866
    %1907 = vmatprep.subr.mxu0 0.0
    %1908 = vmatpush1.msra.mxu0 %v1867
    %1909 = vmatprep.subr.mxu0 0.0
    %1910 = vmatpush1.msra.mxu0 %v1868
    %1911 = vmatprep.subr.mxu0 0.0
    %1912 = vmatpush1.msra.mxu0 %v1869
    %1913 = vmatprep.subr.mxu0 0.0
    %1914 = vmatpush1.msra.mxu0 %v1870
    %1915 = vmatprep.subr.mxu0 0.0
    %1916 = vmatpush1.msra.mxu0 %v1871
    %1917 = vmatprep.subr.mxu0 0.0
    %1918 = vmatpush1.msra.mxu0 %v1872
    %1919 = vmatprep.subr.mxu0 0.0
    %1920 = vmatpush1.msra.mxu0 %v1873
    %1921 = vmatprep.subr.mxu0 0.0
    %1922 = vmatpush1.msra.mxu0 0.0
    %1923 = vmatprep.subr.mxu0 0.0
    %1924 = vmatpush1.msra.mxu0 0.0
    %1925 = vmatprep.subr.mxu0 0.0
    %1926 = vmatpush1.msra.mxu0 0.0
    %1927 = vmatprep.subr.mxu0 0.0
    %1928 = vmatpush1.msra.mxu0 0.0
    %1929 = vmatprep.subr.mxu0 0.0
    %1930 = vmatpush1.msra.mxu0 0.0
    %1931 = vmatprep.subr.mxu0 0.0
    %1932 = vmatpush1.msra.mxu0 0.0
    %1933 = vmatprep.subr.mxu0 0.0
    %1934 = vmatpush1.msra.mxu0 0.0
    %1935 = vmatprep.subr.mxu0 0.0
    %1936 = vmatpush1.msra.mxu0 0.0
    %1937 = vmatprep.subr.mxu0 0.0
    %1938 = vmatpush1.msra.mxu0 0.0
    %1939 = vmatprep.subr.mxu0 0.0
    %1940 = vmatpush1.msra.mxu0 0.0
    %1941 = vmatprep.subr.mxu0 0.0
    %1942 = vmatpush1.msra.mxu0 0.0
    %1943 = vmatprep.subr.mxu0 0.0
    %1944 = vmatpush1.msra.mxu0 0.0
    %1945 = vmatprep.subr.mxu0 0.0
    %1946 = vmatpush1.msra.mxu0 0.0
    %1947 = vmatprep.subr.mxu0 0.0
    %1948 = vmatpush1.msra.mxu0 0.0
    %1949 = vmatprep.subr.mxu0 0.0
    %1950 = vmatpush1.msra.mxu0 0.0
    %1951 = vmatprep.subr.mxu0 0.0
    %1952 = vmatpush1.msra.mxu0 0.0
    %1953 = vmatprep.subr.mxu0 0.0
    %1954 = vmatpush1.msra.mxu0 0.0
    %1955 = vmatprep.subr.mxu0 0.0
    %1956 = vmatpush1.msra.mxu0 0.0
    %1957 = vmatprep.subr.mxu0 0.0
    %1958 = vmatpush1.msra.mxu0 0.0
    %1959 = vmatprep.subr.mxu0 0.0
    %1960 = vmatpush1.msra.mxu0 0.0
    %1961 = vmatprep.subr.mxu0 0.0
    %1962 = vmatpush1.msra.mxu0 0.0
    %1963 = vmatprep.subr.mxu0 0.0
    %1964 = vmatpush1.msra.mxu0 0.0
    %1965 = vmatprep.subr.mxu0 0.0
    %1966 = vmatpush1.msra.mxu0 0.0
    %1967 = vmatprep.subr.mxu0 0.0
    %1968 = vmatpush1.msra.mxu0 0.0
    %1969 = vmatprep.mubr.f32.mxu0 0.0
    %1970 = vmatmul.mubr.f32.gmra.mrb[0].mxu0 %v1882
    %v1971 = vpop.f32.mrb[0].mxu0
    %v1972 = vadd.f32 %v1879, %v1971
    %v1973 = vpop.f32.mrb[0].mxu0
    %1974 = vmatprep.mubr.f32.mxu0 0.0
    %1975 = vmatmul.mubr.f32.gmra.mrb[0].mxu0 %v1885
    %v1976 = vpop.f32.mrb[0].mxu0
    %v1977 = vadd.f32 %v1879, %v1976
    %v1978 = vpop.f32.mrb[0].mxu0
    %1979 = vmatprep.mubr.f32.mxu0 0.0
    %1980 = vmatmul.mubr.f32.gmra.mrb[0].mxu0 %v1888
    %v1981 = vpop.f32.mrb[0].mxu0
    %v1982 = vadd.f32 %v1879, %v1981
    %v1983 = vpop.f32.mrb[0].mxu0
    %1984 = vmatprep.mubr.f32.mxu0 0.0
    %1985 = vmatmul.mubr.f32.gmra.mrb[0].mxu0 %v1891
    %v1986 = vpop.f32.mrb[0].mxu0
    %v1987 = vadd.f32 %v1879, %v1986
    %v1988 = vpop.f32.mrb[0].mxu0
    %1989 = vmatprep.mubr.f32.mxu0 0.0
    %1990 = vmatmul.mubr.f32.gmra.mrb[0].mxu0 %v1894
    %v1991 = vpop.f32.mrb[0].mxu0
    %v1992 = vadd.f32 %v1879, %v1991
    %v1993 = vpop.f32.mrb[0].mxu0
    %1994 = vmatprep.mubr.f32.mxu0 0.0
    %1995 = vmatmul.mubr.f32.gmra.mrb[0].mxu0 %v1897
    %v1996 = vpop.f32.mrb[0].mxu0
    %v1997 = vadd.f32 %v1879, %v1996
    %v1998 = vpop.f32.mrb[0].mxu0
    %1999 = vmatprep.mubr.f32.mxu0 0.0
    %2000 = vmatmul.mubr.f32.gmra.mrb[0].mxu0 %v1900
    %v2001 = vpop.f32.mrb[0].mxu0
    %v2002 = vadd.f32 %v1879, %v2001
    %v2003 = vpop.f32.mrb[0].mxu0
    %2004 = vmatprep.mubr.f32.mxu0 0.0
    %2005 = vmatmul.mubr.f32.gmra.mrb[0].mxu0 %v1903
    %v2006 = vpop.f32.mrb[0].mxu0
    %v2007 = vadd.f32 %v1879, %v2006
    %v2008 = vpop.f32.mrb[0].mxu0
    %2009 = vdwg.mxu0
    %v2010 = vxor.u32 %v1972, 2147483648
    %v2011 = vxor.u32 %v1977, 2147483648
    %v2012 = vxor.u32 %v1982, 2147483648
    %v2013 = vxor.u32 %v1987, 2147483648
    %v2014 = vxor.u32 %v1992, 2147483648
    %v2015 = vxor.u32 %v1997, 2147483648
    %v2016 = vxor.u32 %v2002, 2147483648
    %v2017 = vxor.u32 %v2007, 2147483648
    %v2018 = vmul.f32 %v2010, 1.442695
    %v2019 = vpow.pop %v2018
    %v2020 = vmul.f32 %v2011, 1.442695
    %v2021 = vpow.pop %v2020
    %v2022 = vmul.f32 %v2012, 1.442695
    %v2023 = vpow.pop %v2022
    %v2024 = vmul.f32 %v2013, 1.442695
    %v2025 = vpow.pop %v2024
    %v2026 = vmul.f32 %v2014, 1.442695
    %v2027 = vpow.pop %v2026
    %v2028 = vmul.f32 %v2015, 1.442695
    %v2029 = vpow.pop %v2028
    %v2030 = vmul.f32 %v2016, 1.442695
    %v2031 = vpow.pop %v2030
    %v2032 = vmul.f32 %v2017, 1.442695
    %v2033 = vpow.pop %v2032
    %v2034 = vadd.f32 %v2019, 1.0
    %v2035 = vadd.f32 %v2021, 1.0
    %v2036 = vadd.f32 %v2023, 1.0
    %v2037 = vadd.f32 %v2025, 1.0
    %v2038 = vadd.f32 %v2027, 1.0
    %v2039 = vadd.f32 %v2029, 1.0
    %v2040 = vadd.f32 %v2031, 1.0
    %v2041 = vadd.f32 %v2033, 1.0
    %v2042 = vrcp.pop %v2034
    %v2043 = vmul.f32 1.0, %v2042
    %v2044 = vrcp.pop %v2035
    %v2045 = vmul.f32 1.0, %v2044
    %v2046 = vrcp.pop %v2036
    %v2047 = vmul.f32 1.0, %v2046
    %v2048 = vrcp.pop %v2037
    %v2049 = vmul.f32 1.0, %v2048
    %v2050 = vrcp.pop %v2038
    %v2051 = vmul.f32 1.0, %v2050
    %v2052 = vrcp.pop %v2039
    %v2053 = vmul.f32 1.0, %v2052
    %v2054 = vrcp.pop %v2040
    %v2055 = vmul.f32 1.0, %v2054
    %v2056 = vrcp.pop %v2041
    %v2057 = vmul.f32 1.0, %v2056
    %vm2058 = vcmask 23552
    %2059 = vst.msk [vmem:[%s8] sm:$0xff] %vm2058, %v2043
    %2060 = vst.msk [vmem:[%s8 + $0x8] sm:$0xff] %vm2058, %v2045
    %2061 = vst.msk [vmem:[%s8 + $0x10] sm:$0xff] %vm2058, %v2047
    %2062 = vst.msk [vmem:[%s8 + $0x18] sm:$0xff] %vm2058, %v2049
    %2063 = vst.msk [vmem:[%s8 + $0x20] sm:$0xff] %vm2058, %v2051
    %2064 = vst.msk [vmem:[%s8 + $0x28] sm:$0xff] %vm2058, %v2053
    %2065 = vst.msk [vmem:[%s8 + $0x30] sm:$0xff] %vm2058, %v2055
    %2066 = vst.msk [vmem:[%s8 + $0x38] sm:$0xff] %vm2058, %v2057
    // Predicated region
    $region30: #{hedln_forward_pallas.7} parent=1 // pred_check
      _
    $region31: #{hedln_forward_pallas.7} parent=1 // pred_check_branch
      %2068 = sbr.rel (0) target = $region33
    $region32: #{hedln_forward_pallas.7} parent=1 // pred_region
      %s2070 = ssub.s32 1024, 1024
      %2071 = vsyncadd [#allocation3], %s2070
      %s2072 = sshll.u32 [#allocation2], 4
      %s2073 = int_to_ptr.vmem [resolvable:$true] %s2072
      %2078 = dma.vmem_to_hbm [thread:$0]  %s2073, 1024, %s7, [#allocation3], 128, 128, 8
    $region33: #{hedln_forward_pallas.7} parent=1 // pred_fallthru
      _
    // Predicated region
    $region34: #{hedln_forward_pallas.7} parent=1 // pred_check
      _
    $region35: #{hedln_forward_pallas.7} parent=1 // pred_check_branch
      %2080 = sbr.rel (0) target = $region37
    $region36: #{hedln_forward_pallas.7} parent=1 // pred_region
      _
    $region37: #{hedln_forward_pallas.7} parent=1 // pred_fallthru
      _
    // Predicated region
    $region38: #{hedln_forward_pallas.7} parent=1 // pred_check
      _
    $region39: #{hedln_forward_pallas.7} parent=1 // pred_check_branch
      %2082 = sbr.rel (0) target = $region41
    $region40: #{hedln_forward_pallas.7} parent=1 // pred_region
      %2083 = dma.done [#allocation3], 1024
    $region41: #{hedln_forward_pallas.7} parent=1 // pred_fallthru
      _
    // Predicated region
    $region42: #{hedln_forward_pallas.7} parent=1 // pred_check
      _
    $region43: #{hedln_forward_pallas.7} parent=1 // pred_check_branch
      %2085 = sbr.rel (0) target = $region45
    $region44: #{hedln_forward_pallas.7} parent=1 // pred_region
      _
    $region45: #{hedln_forward_pallas.7} parent=1 // pred_fallthru
      _
    %2086 = vsyncpa [#allocation3], 1

// kernel: hedln_forward_pallas.4
$region0: #{hedln_forward_pallas.4}
  #allocation0 [shape = 'u32[]', space=smem, size = 0x4, offset = 0x4, fixed_abs, tag = 'smem constant byte address 0x4 - core index']
  #allocation1 [shape = 'u32[144,128]{1,0:T(1,128)}', space=vmem, size = 0x12000, scoped, tag = 'internal scratch']
  %s0 = inlined_call_operand.vmem [shape: f32[64,8], index: 0, kind: input, shape index: {}]
  %s1 = inlined_call_operand.vmem [shape: f32[8,256], index: 1, kind: input, shape index: {}]
  %s2 = inlined_call_operand.vmem [shape: f32[32,128], index: 2, kind: input, shape index: {}]
  %s3 = inlined_call_operand.vmem [shape: f32[32,128], index: 3, kind: input, shape index: {}]
  %s4 = inlined_call_operand.vmem [shape: f32[1,256], index: 4, kind: input, shape index: {}]
  %s5 = inlined_call_operand.vmem [shape: f32[64,64], index: 5, kind: output, shape index: {}]
  %s6 = sld [smem:[#allocation0]]
  $region30: #{hedln_forward_pallas.4} parent=0
    _
  %s8 = ssub.s32 1, %s6
  %s9 = scalar_select 0, %s8, %s6
  // Predicated region
  $region2: #{hedln_forward_pallas.4} parent=0 // pred_check
    _
  $region3: #{hedln_forward_pallas.4} parent=0 // pred_check_branch
    %11 = sbr.rel (0) target = $region5
  $region4: #{hedln_forward_pallas.4} parent=0 // pred_region
    _
  $region5: #{hedln_forward_pallas.4} parent=0 // pred_fallthru
    _
  // Predicated region
  $region6: #{hedln_forward_pallas.4} parent=0 // pred_check
    _
  $region7: #{hedln_forward_pallas.4} parent=0 // pred_check_branch
    %13 = sbr.rel (0) target = $region9
  $region8: #{hedln_forward_pallas.4} parent=0 // pred_region
    _
  $region9: #{hedln_forward_pallas.4} parent=0 // pred_fallthru
    _
  // Predicated region
  $region10: #{hedln_forward_pallas.4} parent=0 // pred_check
    _
  $region11: #{hedln_forward_pallas.4} parent=0 // pred_check_branch
    %15 = sbr.rel (0) target = $region13
  $region12: #{hedln_forward_pallas.4} parent=0 // pred_region
    _
  $region13: #{hedln_forward_pallas.4} parent=0 // pred_fallthru
    _
  // Predicated region
  $region14: #{hedln_forward_pallas.4} parent=0 // pred_check
    _
  $region15: #{hedln_forward_pallas.4} parent=0 // pred_check_branch
    %17 = sbr.rel (0) target = $region17
  $region16: #{hedln_forward_pallas.4} parent=0 // pred_region
    _
  $region17: #{hedln_forward_pallas.4} parent=0 // pred_fallthru
    _
  // Predicated region
  $region18: #{hedln_forward_pallas.4} parent=0 // pred_check
    _
  $region19: #{hedln_forward_pallas.4} parent=0 // pred_check_branch
    %19 = sbr.rel (0) target = $region21
  $region20: #{hedln_forward_pallas.4} parent=0 // pred_region
    _
  $region21: #{hedln_forward_pallas.4} parent=0 // pred_fallthru
    _
  %v20 = vld [vmem:[%s0] sm:$0xff]
  %v21 = vld [vmem:[%s0 + $0x8] sm:$0xff]
  %v22 = vld [vmem:[%s0 + $0x10] sm:$0xff]
  %v23 = vld [vmem:[%s0 + $0x18] sm:$0xff]
  %v24 = vld [vmem:[%s0 + $0x20] sm:$0xff]
  %v25 = vld [vmem:[%s0 + $0x28] sm:$0xff]
  %v26 = vld [vmem:[%s0 + $0x30] sm:$0xff]
  %v27 = vld [vmem:[%s0 + $0x38] sm:$0xff]
  %v28 = vld [vmem:[%s1] sm:$0xff]
  %v29 = vld [vmem:[%s1 + $0x8] sm:$0xff]
  %v30 = vld [vmem:[%s4] sm:$0x3]
  %v32 = vlaneseq
  %v33 = vshrl.u32 %v32, 7
  %v34 = vsub.s32 0, %v33
  %v35 = vrot.slane %v30, %v34
  %v36 = vlaneseq
  %v37 = vshrl.u32 %v36, 7
  %v38 = vsub.s32 1, %v37
  %v39 = vrot.slane %v30, %v38
  %vm42 = vcmask 64512
  %v44 = vsel %vm42, %v20, 0
  %v47 = vsel %vm42, %v21, 0
  %v50 = vsel %vm42, %v22, 0
  %v53 = vsel %vm42, %v23, 0
  %v56 = vsel %vm42, %v24, 0
  %v59 = vsel %vm42, %v25, 0
  %v62 = vsel %vm42, %v26, 0
  %v65 = vsel %vm42, %v27, 0
  %67 = vmatprep.subr.mxu0 %v29
  %68 = vmatpush1.msra.mxu0 %v28
  %69 = vmatprep.subr.mxu0 0.0
  %70 = vmatpush1.msra.mxu0 0.0
  %71 = vmatprep.subr.mxu0 0.0
  %72 = vmatpush1.msra.mxu0 0.0
  %73 = vmatprep.subr.mxu0 0.0
  %74 = vmatpush1.msra.mxu0 0.0
  %75 = vmatprep.subr.mxu0 0.0
  %76 = vmatpush1.msra.mxu0 0.0
  %77 = vmatprep.subr.mxu0 0.0
  %78 = vmatpush1.msra.mxu0 0.0
  %79 = vmatprep.subr.mxu0 0.0
  %80 = vmatpush1.msra.mxu0 0.0
  %81 = vmatprep.subr.mxu0 0.0
  %82 = vmatpush1.msra.mxu0 0.0
  %83 = vmatprep.subr.mxu0 0.0
  %84 = vmatpush1.msra.mxu0 0.0
  %85 = vmatprep.subr.mxu0 0.0
  %86 = vmatpush1.msra.mxu0 0.0
  %87 = vmatprep.subr.mxu0 0.0
  %88 = vmatpush1.msra.mxu0 0.0
  %89 = vmatprep.subr.mxu0 0.0
  %90 = vmatpush1.msra.mxu0 0.0
  %91 = vmatprep.subr.mxu0 0.0
  %92 = vmatpush1.msra.mxu0 0.0
  %93 = vmatprep.subr.mxu0 0.0
  %94 = vmatpush1.msra.mxu0 0.0
  %95 = vmatprep.subr.mxu0 0.0
  %96 = vmatpush1.msra.mxu0 0.0
  %97 = vmatprep.subr.mxu0 0.0
  %98 = vmatpush1.msra.mxu0 0.0
  %99 = vmatprep.subr.mxu0 0.0
  %100 = vmatpush1.msra.mxu0 0.0
  %101 = vmatprep.subr.mxu0 0.0
  %102 = vmatpush1.msra.mxu0 0.0
  %103 = vmatprep.subr.mxu0 0.0
  %104 = vmatpush1.msra.mxu0 0.0
  %105 = vmatprep.subr.mxu0 0.0
  %106 = vmatpush1.msra.mxu0 0.0
  %107 = vmatprep.subr.mxu0 0.0
  %108 = vmatpush1.msra.mxu0 0.0
  %109 = vmatprep.subr.mxu0 0.0
  %110 = vmatpush1.msra.mxu0 0.0
  %111 = vmatprep.subr.mxu0 0.0
  %112 = vmatpush1.msra.mxu0 0.0
  %113 = vmatprep.subr.mxu0 0.0
  %114 = vmatpush1.msra.mxu0 0.0
  %115 = vmatprep.subr.mxu0 0.0
  %116 = vmatpush1.msra.mxu0 0.0
  %117 = vmatprep.subr.mxu0 0.0
  %118 = vmatpush1.msra.mxu0 0.0
  %119 = vmatprep.subr.mxu0 0.0
  %120 = vmatpush1.msra.mxu0 0.0
  %121 = vmatprep.subr.mxu0 0.0
  %122 = vmatpush1.msra.mxu0 0.0
  %123 = vmatprep.subr.mxu0 0.0
  %124 = vmatpush1.msra.mxu0 0.0
  %125 = vmatprep.subr.mxu0 0.0
  %126 = vmatpush1.msra.mxu0 0.0
  %127 = vmatprep.subr.mxu0 0.0
  %128 = vmatpush1.msra.mxu0 0.0
  %129 = vmatprep.subr.mxu0 0.0
  %130 = vmatpush1.msra.mxu0 0.0
  %131 = vmatprep.mubr.f32.mxu0 0.0
  %132 = vmatmul.mubr.f32.gmra.mrb[0].mxu0 %v44
  %v133 = vpop.f32.mrb[0].mxu0
  %v134 = vadd.f32 %v35, %v133
  %v135 = vpop.f32.mrb[0].mxu0
  %v136 = vadd.f32 %v39, %v135
  %137 = vmatprep.mubr.f32.mxu0 0.0
  %138 = vmatmul.mubr.f32.gmra.mrb[0].mxu0 %v47
  %v139 = vpop.f32.mrb[0].mxu0
  %v140 = vadd.f32 %v35, %v139
  %v141 = vpop.f32.mrb[0].mxu0
  %v142 = vadd.f32 %v39, %v141
  %143 = vmatprep.mubr.f32.mxu0 0.0
  %144 = vmatmul.mubr.f32.gmra.mrb[0].mxu0 %v50
  %v145 = vpop.f32.mrb[0].mxu0
  %v146 = vadd.f32 %v35, %v145
  %v147 = vpop.f32.mrb[0].mxu0
  %v148 = vadd.f32 %v39, %v147
  %149 = vmatprep.mubr.f32.mxu0 0.0
  %150 = vmatmul.mubr.f32.gmra.mrb[0].mxu0 %v53
  %v151 = vpop.f32.mrb[0].mxu0
  %v152 = vadd.f32 %v35, %v151
  %v153 = vpop.f32.mrb[0].mxu0
  %v154 = vadd.f32 %v39, %v153
  %155 = vmatprep.mubr.f32.mxu0 0.0
  %156 = vmatmul.mubr.f32.gmra.mrb[0].mxu0 %v56
  %v157 = vpop.f32.mrb[0].mxu0
  %v158 = vadd.f32 %v35, %v157
  %v159 = vpop.f32.mrb[0].mxu0
  %v160 = vadd.f32 %v39, %v159
  %161 = vmatprep.mubr.f32.mxu0 0.0
  %162 = vmatmul.mubr.f32.gmra.mrb[0].mxu0 %v59
  %v163 = vpop.f32.mrb[0].mxu0
  %v164 = vadd.f32 %v35, %v163
  %v165 = vpop.f32.mrb[0].mxu0
  %v166 = vadd.f32 %v39, %v165
  %167 = vmatprep.mubr.f32.mxu0 0.0
  %168 = vmatmul.mubr.f32.gmra.mrb[0].mxu0 %v62
  %v169 = vpop.f32.mrb[0].mxu0
  %v170 = vadd.f32 %v35, %v169
  %v171 = vpop.f32.mrb[0].mxu0
  %v172 = vadd.f32 %v39, %v171
  %173 = vmatprep.mubr.f32.mxu0 0.0
  %174 = vmatmul.mubr.f32.gmra.mrb[0].mxu0 %v65
  %v175 = vpop.f32.mrb[0].mxu0
  %v176 = vadd.f32 %v35, %v175
  %v177 = vpop.f32.mrb[0].mxu0
  %v178 = vadd.f32 %v39, %v177
  %179 = vdwg.mxu0
  %v180 = vld [vmem:[%s2] sm:$0xff]
  %v181 = vld [vmem:[%s2 + $0x8] sm:$0xff]
  %v182 = vld [vmem:[%s2 + $0x10] sm:$0xff]
  %v183 = vld [vmem:[%s2 + $0x18] sm:$0xff]
  %v184 = vld [vmem:[%s3] sm:$0xff]
  %v185 = vld [vmem:[%s3 + $0x8] sm:$0xff]
  %v186 = vld [vmem:[%s3 + $0x10] sm:$0xff]
  %v187 = vld [vmem:[%s3 + $0x18] sm:$0xff]
  %vm188 = vcmask 261120
  %v190 = vsel %vm188, 0.0, 0
  %192 = vmatprep.subr.mxu0 0.0
  %193 = vmatpush1.msra.mxu0 %v180
  %194 = vmatprep.subr.mxu0 0.0
  %195 = vmatpush1.msra.mxu0 %v181
  %196 = vmatprep.subr.mxu0 0.0
  %197 = vmatpush1.msra.mxu0 %v182
  %198 = vmatprep.subr.mxu0 0.0
  %199 = vmatpush1.msra.mxu0 %v183
  %200 = vmatprep.subr.mxu0 0.0
  %201 = vmatpush1.msra.mxu0 0.0
  %202 = vmatprep.subr.mxu0 0.0
  %203 = vmatpush1.msra.mxu0 0.0
  %204 = vmatprep.subr.mxu0 0.0
  %205 = vmatpush1.msra.mxu0 0.0
  %206 = vmatprep.subr.mxu0 0.0
  %207 = vmatpush1.msra.mxu0 0.0
  %208 = vmatprep.subr.mxu0 0.0
  %209 = vmatpush1.msra.mxu0 0.0
  %210 = vmatprep.subr.mxu0 0.0
  %211 = vmatpush1.msra.mxu0 0.0
  %212 = vmatprep.subr.mxu0 0.0
  %213 = vmatpush1.msra.mxu0 0.0
  %214 = vmatprep.subr.mxu0 0.0
  %215 = vmatpush1.msra.mxu0 0.0
  %216 = vmatprep.subr.mxu0 0.0
  %217 = vmatpush1.msra.mxu0 0.0
  %218 = vmatprep.subr.mxu0 0.0
  %219 = vmatpush1.msra.mxu0 0.0
  %220 = vmatprep.subr.mxu0 0.0
  %221 = vmatpush1.msra.mxu0 0.0
  %222 = vmatprep.subr.mxu0 0.0
  %223 = vmatpush1.msra.mxu0 0.0
  %224 = vmatprep.subr.mxu0 0.0
  %225 = vmatpush1.msra.mxu0 0.0
  %226 = vmatprep.subr.mxu0 0.0
  %227 = vmatpush1.msra.mxu0 0.0
  %228 = vmatprep.subr.mxu0 0.0
  %229 = vmatpush1.msra.mxu0 0.0
  %230 = vmatprep.subr.mxu0 0.0
  %231 = vmatpush1.msra.mxu0 0.0
  %232 = vmatprep.subr.mxu0 0.0
  %233 = vmatpush1.msra.mxu0 0.0
  %234 = vmatprep.subr.mxu0 0.0
  %235 = vmatpush1.msra.mxu0 0.0
  %236 = vmatprep.subr.mxu0 0.0
  %237 = vmatpush1.msra.mxu0 0.0
  %238 = vmatprep.subr.mxu0 0.0
  %239 = vmatpush1.msra.mxu0 0.0
  %240 = vmatprep.subr.mxu0 0.0
  %241 = vmatpush1.msra.mxu0 0.0
  %242 = vmatprep.subr.mxu0 0.0
  %243 = vmatpush1.msra.mxu0 0.0
  %244 = vmatprep.subr.mxu0 0.0
  %245 = vmatpush1.msra.mxu0 0.0
  %246 = vmatprep.subr.mxu0 0.0
  %247 = vmatpush1.msra.mxu0 0.0
  %248 = vmatprep.subr.mxu0 0.0
  %249 = vmatpush1.msra.mxu0 0.0
  %250 = vmatprep.subr.mxu0 0.0
  %251 = vmatpush1.msra.mxu0 0.0
  %252 = vmatprep.subr.mxu0 0.0
  %253 = vmatpush1.msra.mxu0 0.0
  %254 = vmatprep.subr.mxu0 0.0
  %255 = vmatpush1.msra.mxu0 0.0
  %256 = vmatprep.mubr.f32.mxu0 0.0
  %257 = vmatmul.mubr.f32.gmra.mrb[0].mxu0 %v190
  %v258 = vpop.f32.mrb[0].mxu0
  %v259 = vadd.f32 0.0, %v258
  %v260 = vpop.f32.mrb[0].mxu0
  %261 = vdwg.mxu0
  %v262 = vadd.f32 %v134, %v259
  %263 = vmatprep.subr.mxu0 0.0
  %264 = vmatpush1.msra.mxu0 %v184
  %265 = vmatprep.subr.mxu0 0.0
  %266 = vmatpush1.msra.mxu0 %v185
  %267 = vmatprep.subr.mxu0 0.0
  %268 = vmatpush1.msra.mxu0 %v186
  %269 = vmatprep.subr.mxu0 0.0
  %270 = vmatpush1.msra.mxu0 %v187
  %271 = vmatprep.subr.mxu0 0.0
  %272 = vmatpush1.msra.mxu0 0.0
  %273 = vmatprep.subr.mxu0 0.0
  %274 = vmatpush1.msra.mxu0 0.0
  %275 = vmatprep.subr.mxu0 0.0
  %276 = vmatpush1.msra.mxu0 0.0
  %277 = vmatprep.subr.mxu0 0.0
  %278 = vmatpush1.msra.mxu0 0.0
  %279 = vmatprep.subr.mxu0 0.0
  %280 = vmatpush1.msra.mxu0 0.0
  %281 = vmatprep.subr.mxu0 0.0
  %282 = vmatpush1.msra.mxu0 0.0
  %283 = vmatprep.subr.mxu0 0.0
  %284 = vmatpush1.msra.mxu0 0.0
  %285 = vmatprep.subr.mxu0 0.0
  %286 = vmatpush1.msra.mxu0 0.0
  %287 = vmatprep.subr.mxu0 0.0
  %288 = vmatpush1.msra.mxu0 0.0
  %289 = vmatprep.subr.mxu0 0.0
  %290 = vmatpush1.msra.mxu0 0.0
  %291 = vmatprep.subr.mxu0 0.0
  %292 = vmatpush1.msra.mxu0 0.0
  %293 = vmatprep.subr.mxu0 0.0
  %294 = vmatpush1.msra.mxu0 0.0
  %295 = vmatprep.subr.mxu0 0.0
  %296 = vmatpush1.msra.mxu0 0.0
  %297 = vmatprep.subr.mxu0 0.0
  %298 = vmatpush1.msra.mxu0 0.0
  %299 = vmatprep.subr.mxu0 0.0
  %300 = vmatpush1.msra.mxu0 0.0
  %301 = vmatprep.subr.mxu0 0.0
  %302 = vmatpush1.msra.mxu0 0.0
  %303 = vmatprep.subr.mxu0 0.0
  %304 = vmatpush1.msra.mxu0 0.0
  %305 = vmatprep.subr.mxu0 0.0
  %306 = vmatpush1.msra.mxu0 0.0
  %307 = vmatprep.subr.mxu0 0.0
  %308 = vmatpush1.msra.mxu0 0.0
  %309 = vmatprep.subr.mxu0 0.0
  %310 = vmatpush1.msra.mxu0 0.0
  %311 = vmatprep.subr.mxu0 0.0
  %312 = vmatpush1.msra.mxu0 0.0
  %313 = vmatprep.subr.mxu0 0.0
  %314 = vmatpush1.msra.mxu0 0.0
  %315 = vmatprep.subr.mxu0 0.0
  %316 = vmatpush1.msra.mxu0 0.0
  %317 = vmatprep.subr.mxu0 0.0
  %318 = vmatpush1.msra.mxu0 0.0
  %319 = vmatprep.subr.mxu0 0.0
  %320 = vmatpush1.msra.mxu0 0.0
  %321 = vmatprep.subr.mxu0 0.0
  %322 = vmatpush1.msra.mxu0 0.0
  %323 = vmatprep.subr.mxu0 0.0
  %324 = vmatpush1.msra.mxu0 0.0
  %325 = vmatprep.subr.mxu0 0.0
  %326 = vmatpush1.msra.mxu0 0.0
  %327 = vmatprep.mubr.f32.mxu0 0.0
  %328 = vmatmul.mubr.f32.gmra.mrb[0].mxu0 %v190
  %v329 = vpop.f32.mrb[0].mxu0
  %v330 = vadd.f32 0.0, %v329
  %v331 = vpop.f32.mrb[0].mxu0
  %332 = vdwg.mxu0
  %v333 = vadd.f32 %v178, %v330
  %v334 = vxor.u32 %v262, 2147483648
  %v335 = vmul.f32 %v334, 1.442695
  %v336 = vpow.pop %v335
  %v337 = vadd.f32 %v336, 1.0
  %v338 = vrcp.pop %v337
  %v339 = vmul.f32 1.0, %v338
  %v340 = vtanh.pop %v262
  %v341 = vmul.f32 %v339, 0.0
  %343 = vrot.lane.b32.xlu0 %v340, 64
  %v344 = vpop.permute.xlu0 %343
  %v346 = vmul.f32 %v339, %v344
  %348 = vrot.lane.b32.xlu0 %v346, 32
  %v349 = vpop.permute.xlu0 %348
  %v351 = vadd.f32 %v341, %v349
  %v352 = vtanh.pop %v351
  %354 = vrot.lane.b32.xlu0 %v352, 64
  %v355 = vpop.permute.xlu0 %354
  %v357 = vmul.f32 %v339, %v355
  %v358 = vxor.u32 %v333, 2147483648
  %v359 = vmul.f32 %v358, 1.442695
  %v360 = vpow.pop %v359
  %v361 = vadd.f32 %v360, 1.0
  %v362 = vrcp.pop %v361
  %v363 = vmul.f32 1.0, %v362
  %v364 = vtanh.pop %v333
  %v365 = vmul.f32 %v363, 0.0
  %367 = vrot.lane.b32.xlu0 %v364, 64
  %v368 = vpop.permute.xlu0 %367
  %v370 = vmul.f32 %v363, %v368
  %372 = vrot.lane.b32.xlu0 %v370, 32
  %v373 = vpop.permute.xlu0 %372
  %v375 = vadd.f32 %v365, %v373
  %v376 = vtanh.pop %v375
  %378 = vrot.lane.b32.xlu0 %v376, 64
  %v379 = vpop.permute.xlu0 %378
  %v381 = vmul.f32 %v363, %v379
  %383 = vrot.lane.b32.xlu0 %v357, 32
  %v384 = vpop.permute.xlu0 %383
  %386 = vst.msk [vmem:[%s5] sm:$0xff] %vm188, %v384
  %388 = vrot.lane.b32.xlu0 %v381, 64
  %v389 = vpop.permute.xlu0 %388
  %vm391 = vcmask 523520
  %392 = vst.msk [vmem:[%s5 + $0x38] sm:$0xff] %vm391, %v389
  %v393 = vsel %vm188, %v384, 0
  %395 = vmatprep.subr.mxu0 0.0
  %396 = vmatpush1.msra.mxu0 %v180
  %397 = vmatprep.subr.mxu0 0.0
  %398 = vmatpush1.msra.mxu0 %v181
  %399 = vmatprep.subr.mxu0 0.0
  %400 = vmatpush1.msra.mxu0 %v182
  %401 = vmatprep.subr.mxu0 0.0
  %402 = vmatpush1.msra.mxu0 %v183
  %403 = vmatprep.subr.mxu0 0.0
  %404 = vmatpush1.msra.mxu0 0.0
  %405 = vmatprep.subr.mxu0 0.0
  %406 = vmatpush1.msra.mxu0 0.0
  %407 = vmatprep.subr.mxu0 0.0
  %408 = vmatpush1.msra.mxu0 0.0
  %409 = vmatprep.subr.mxu0 0.0
  %410 = vmatpush1.msra.mxu0 0.0
  %411 = vmatprep.subr.mxu0 0.0
  %412 = vmatpush1.msra.mxu0 0.0
  %413 = vmatprep.subr.mxu0 0.0
  %414 = vmatpush1.msra.mxu0 0.0
  %415 = vmatprep.subr.mxu0 0.0
  %416 = vmatpush1.msra.mxu0 0.0
  %417 = vmatprep.subr.mxu0 0.0
  %418 = vmatpush1.msra.mxu0 0.0
  %419 = vmatprep.subr.mxu0 0.0
  %420 = vmatpush1.msra.mxu0 0.0
  %421 = vmatprep.subr.mxu0 0.0
  %422 = vmatpush1.msra.mxu0 0.0
  %423 = vmatprep.subr.mxu0 0.0
  %424 = vmatpush1.msra.mxu0 0.0
  %425 = vmatprep.subr.mxu0 0.0
  %426 = vmatpush1.msra.mxu0 0.0
  %427 = vmatprep.subr.mxu0 0.0
  %428 = vmatpush1.msra.mxu0 0.0
  %429 = vmatprep.subr.mxu0 0.0
  %430 = vmatpush1.msra.mxu0 0.0
  %431 = vmatprep.subr.mxu0 0.0
  %432 = vmatpush1.msra.mxu0 0.0
  %433 = vmatprep.subr.mxu0 0.0
  %434 = vmatpush1.msra.mxu0 0.0
  %435 = vmatprep.subr.mxu0 0.0
  %436 = vmatpush1.msra.mxu0 0.0
  %437 = vmatprep.subr.mxu0 0.0
  %438 = vmatpush1.msra.mxu0 0.0
  %439 = vmatprep.subr.mxu0 0.0
  %440 = vmatpush1.msra.mxu0 0.0
  %441 = vmatprep.subr.mxu0 0.0
  %442 = vmatpush1.msra.mxu0 0.0
  %443 = vmatprep.subr.mxu0 0.0
  %444 = vmatpush1.msra.mxu0 0.0
  %445 = vmatprep.subr.mxu0 0.0
  %446 = vmatpush1.msra.mxu0 0.0
  %447 = vmatprep.subr.mxu0 0.0
  %448 = vmatpush1.msra.mxu0 0.0
  %449 = vmatprep.subr.mxu0 0.0
  %450 = vmatpush1.msra.mxu0 0.0
  %451 = vmatprep.subr.mxu0 0.0
  %452 = vmatpush1.msra.mxu0 0.0
  %453 = vmatprep.subr.mxu0 0.0
  %454 = vmatpush1.msra.mxu0 0.0
  %455 = vmatprep.subr.mxu0 0.0
  %456 = vmatpush1.msra.mxu0 0.0
  %457 = vmatprep.subr.mxu0 0.0
  %458 = vmatpush1.msra.mxu0 0.0
  %459 = vmatprep.mubr.f32.mxu0 0.0
  %460 = vmatmul.mubr.f32.gmra.mrb[0].mxu0 %v393
  %v461 = vpop.f32.mrb[0].mxu0
  %v462 = vadd.f32 0.0, %v461
  %v463 = vpop.f32.mrb[0].mxu0
  %464 = vdwg.mxu0
  %v465 = vadd.f32 %v140, %v462
  %466 = vrot.lane.b32.xlu0 %v381, 32
  %v467 = vpop.permute.xlu0 %466
  %v468 = vsel %vm188, %v467, 0
  %470 = vmatprep.subr.mxu0 0.0
  %471 = vmatpush1.msra.mxu0 %v184
  %472 = vmatprep.subr.mxu0 0.0
  %473 = vmatpush1.msra.mxu0 %v185
  %474 = vmatprep.subr.mxu0 0.0
  %475 = vmatpush1.msra.mxu0 %v186
  %476 = vmatprep.subr.mxu0 0.0
  %477 = vmatpush1.msra.mxu0 %v187
  %478 = vmatprep.subr.mxu0 0.0
  %479 = vmatpush1.msra.mxu0 0.0
  %480 = vmatprep.subr.mxu0 0.0
  %481 = vmatpush1.msra.mxu0 0.0
  %482 = vmatprep.subr.mxu0 0.0
  %483 = vmatpush1.msra.mxu0 0.0
  %484 = vmatprep.subr.mxu0 0.0
  %485 = vmatpush1.msra.mxu0 0.0
  %486 = vmatprep.subr.mxu0 0.0
  %487 = vmatpush1.msra.mxu0 0.0
  %488 = vmatprep.subr.mxu0 0.0
  %489 = vmatpush1.msra.mxu0 0.0
  %490 = vmatprep.subr.mxu0 0.0
  %491 = vmatpush1.msra.mxu0 0.0
  %492 = vmatprep.subr.mxu0 0.0
  %493 = vmatpush1.msra.mxu0 0.0
  %494 = vmatprep.subr.mxu0 0.0
  %495 = vmatpush1.msra.mxu0 0.0
  %496 = vmatprep.subr.mxu0 0.0
  %497 = vmatpush1.msra.mxu0 0.0
  %498 = vmatprep.subr.mxu0 0.0
  %499 = vmatpush1.msra.mxu0 0.0
  %500 = vmatprep.subr.mxu0 0.0
  %501 = vmatpush1.msra.mxu0 0.0
  %502 = vmatprep.subr.mxu0 0.0
  %503 = vmatpush1.msra.mxu0 0.0
  %504 = vmatprep.subr.mxu0 0.0
  %505 = vmatpush1.msra.mxu0 0.0
  %506 = vmatprep.subr.mxu0 0.0
  %507 = vmatpush1.msra.mxu0 0.0
  %508 = vmatprep.subr.mxu0 0.0
  %509 = vmatpush1.msra.mxu0 0.0
  %510 = vmatprep.subr.mxu0 0.0
  %511 = vmatpush1.msra.mxu0 0.0
  %512 = vmatprep.subr.mxu0 0.0
  %513 = vmatpush1.msra.mxu0 0.0
  %514 = vmatprep.subr.mxu0 0.0
  %515 = vmatpush1.msra.mxu0 0.0
  %516 = vmatprep.subr.mxu0 0.0
  %517 = vmatpush1.msra.mxu0 0.0
  %518 = vmatprep.subr.mxu0 0.0
  %519 = vmatpush1.msra.mxu0 0.0
  %520 = vmatprep.subr.mxu0 0.0
  %521 = vmatpush1.msra.mxu0 0.0
  %522 = vmatprep.subr.mxu0 0.0
  %523 = vmatpush1.msra.mxu0 0.0
  %524 = vmatprep.subr.mxu0 0.0
  %525 = vmatpush1.msra.mxu0 0.0
  %526 = vmatprep.subr.mxu0 0.0
  %527 = vmatpush1.msra.mxu0 0.0
  %528 = vmatprep.subr.mxu0 0.0
  %529 = vmatpush1.msra.mxu0 0.0
  %530 = vmatprep.subr.mxu0 0.0
  %531 = vmatpush1.msra.mxu0 0.0
  %532 = vmatprep.subr.mxu0 0.0
  %533 = vmatpush1.msra.mxu0 0.0
  %534 = vmatprep.mubr.f32.mxu0 0.0
  %535 = vmatmul.mubr.f32.gmra.mrb[0].mxu0 %v468
  %v536 = vpop.f32.mrb[0].mxu0
  %v537 = vadd.f32 0.0, %v536
  %v538 = vpop.f32.mrb[0].mxu0
  %539 = vdwg.mxu0
  %v540 = vadd.f32 %v172, %v537
  %v541 = vxor.u32 %v465, 2147483648
  %v542 = vmul.f32 %v541, 1.442695
  %v543 = vpow.pop %v542
  %v544 = vadd.f32 %v543, 1.0
  %v545 = vrcp.pop %v544
  %v546 = vmul.f32 1.0, %v545
  %v547 = vtanh.pop %v465
  %v548 = vmul.f32 %v546, %v351
  %550 = vrot.lane.b32.xlu0 %v547, 64
  %v551 = vpop.permute.xlu0 %550
  %v553 = vmul.f32 %v546, %v551
  %555 = vrot.lane.b32.xlu0 %v553, 32
  %v556 = vpop.permute.xlu0 %555
  %v558 = vadd.f32 %v548, %v556
  %v559 = vtanh.pop %v558
  %561 = vrot.lane.b32.xlu0 %v559, 64
  %v562 = vpop.permute.xlu0 %561
  %v564 = vmul.f32 %v546, %v562
  %v565 = vxor.u32 %v540, 2147483648
  %v566 = vmul.f32 %v565, 1.442695
  %v567 = vpow.pop %v566
  %v568 = vadd.f32 %v567, 1.0
  %v569 = vrcp.pop %v568
  %v570 = vmul.f32 1.0, %v569
  %v571 = vtanh.pop %v540
  %v572 = vmul.f32 %v570, %v375
  %574 = vrot.lane.b32.xlu0 %v571, 64
  %v575 = vpop.permute.xlu0 %574
  %v577 = vmul.f32 %v570, %v575
  %579 = vrot.lane.b32.xlu0 %v577, 32
  %v580 = vpop.permute.xlu0 %579
  %v582 = vadd.f32 %v572, %v580
  %v583 = vtanh.pop %v582
  %585 = vrot.lane.b32.xlu0 %v583, 64
  %v586 = vpop.permute.xlu0 %585
  %v588 = vmul.f32 %v570, %v586
  %590 = vrot.lane.b32.xlu0 %v564, 32
  %v591 = vpop.permute.xlu0 %590
  %593 = vst.msk [vmem:[%s5 + $0x8] sm:$0xff] %vm188, %v591
  %595 = vrot.lane.b32.xlu0 %v588, 64
  %v596 = vpop.permute.xlu0 %595
  %598 = vst.msk [vmem:[%s5 + $0x30] sm:$0xff] %vm391, %v596
  %v599 = vsel %vm188, %v591, 0
  %601 = vmatprep.subr.mxu0 0.0
  %602 = vmatpush1.msra.mxu0 %v180
  %603 = vmatprep.subr.mxu0 0.0
  %604 = vmatpush1.msra.mxu0 %v181
  %605 = vmatprep.subr.mxu0 0.0
  %606 = vmatpush1.msra.mxu0 %v182
  %607 = vmatprep.subr.mxu0 0.0
  %608 = vmatpush1.msra.mxu0 %v183
  %609 = vmatprep.subr.mxu0 0.0
  %610 = vmatpush1.msra.mxu0 0.0
  %611 = vmatprep.subr.mxu0 0.0
  %612 = vmatpush1.msra.mxu0 0.0
  %613 = vmatprep.subr.mxu0 0.0
  %614 = vmatpush1.msra.mxu0 0.0
  %615 = vmatprep.subr.mxu0 0.0
  %616 = vmatpush1.msra.mxu0 0.0
  %617 = vmatprep.subr.mxu0 0.0
  %618 = vmatpush1.msra.mxu0 0.0
  %619 = vmatprep.subr.mxu0 0.0
  %620 = vmatpush1.msra.mxu0 0.0
  %621 = vmatprep.subr.mxu0 0.0
  %622 = vmatpush1.msra.mxu0 0.0
  %623 = vmatprep.subr.mxu0 0.0
  %624 = vmatpush1.msra.mxu0 0.0
  %625 = vmatprep.subr.mxu0 0.0
  %626 = vmatpush1.msra.mxu0 0.0
  %627 = vmatprep.subr.mxu0 0.0
  %628 = vmatpush1.msra.mxu0 0.0
  %629 = vmatprep.subr.mxu0 0.0
  %630 = vmatpush1.msra.mxu0 0.0
  %631 = vmatprep.subr.mxu0 0.0
  %632 = vmatpush1.msra.mxu0 0.0
  %633 = vmatprep.subr.mxu0 0.0
  %634 = vmatpush1.msra.mxu0 0.0
  %635 = vmatprep.subr.mxu0 0.0
  %636 = vmatpush1.msra.mxu0 0.0
  %637 = vmatprep.subr.mxu0 0.0
  %638 = vmatpush1.msra.mxu0 0.0
  %639 = vmatprep.subr.mxu0 0.0
  %640 = vmatpush1.msra.mxu0 0.0
  %641 = vmatprep.subr.mxu0 0.0
  %642 = vmatpush1.msra.mxu0 0.0
  %643 = vmatprep.subr.mxu0 0.0
  %644 = vmatpush1.msra.mxu0 0.0
  %645 = vmatprep.subr.mxu0 0.0
  %646 = vmatpush1.msra.mxu0 0.0
  %647 = vmatprep.subr.mxu0 0.0
  %648 = vmatpush1.msra.mxu0 0.0
  %649 = vmatprep.subr.mxu0 0.0
  %650 = vmatpush1.msra.mxu0 0.0
  %651 = vmatprep.subr.mxu0 0.0
  %652 = vmatpush1.msra.mxu0 0.0
  %653 = vmatprep.subr.mxu0 0.0
  %654 = vmatpush1.msra.mxu0 0.0
  %655 = vmatprep.subr.mxu0 0.0
  %656 = vmatpush1.msra.mxu0 0.0
  %657 = vmatprep.subr.mxu0 0.0
  %658 = vmatpush1.msra.mxu0 0.0
  %659 = vmatprep.subr.mxu0 0.0
  %660 = vmatpush1.msra.mxu0 0.0
  %661 = vmatprep.subr.mxu0 0.0
  %662 = vmatpush1.msra.mxu0 0.0
  %663 = vmatprep.subr.mxu0 0.0
  %664 = vmatpush1.msra.mxu0 0.0
  %665 = vmatprep.mubr.f32.mxu0 0.0
  %666 = vmatmul.mubr.f32.gmra.mrb[0].mxu0 %v599
  %v667 = vpop.f32.mrb[0].mxu0
  %v668 = vadd.f32 0.0, %v667
  %v669 = vpop.f32.mrb[0].mxu0
  %670 = vdwg.mxu0
  %v671 = vadd.f32 %v146, %v668
  %672 = vrot.lane.b32.xlu0 %v588, 32
  %v673 = vpop.permute.xlu0 %672
  %v674 = vsel %vm188, %v673, 0
  %676 = vmatprep.subr.mxu0 0.0
  %677 = vmatpush1.msra.mxu0 %v184
  %678 = vmatprep.subr.mxu0 0.0
  %679 = vmatpush1.msra.mxu0 %v185
  %680 = vmatprep.subr.mxu0 0.0
  %681 = vmatpush1.msra.mxu0 %v186
  %682 = vmatprep.subr.mxu0 0.0
  %683 = vmatpush1.msra.mxu0 %v187
  %684 = vmatprep.subr.mxu0 0.0
  %685 = vmatpush1.msra.mxu0 0.0
  %686 = vmatprep.subr.mxu0 0.0
  %687 = vmatpush1.msra.mxu0 0.0
  %688 = vmatprep.subr.mxu0 0.0
  %689 = vmatpush1.msra.mxu0 0.0
  %690 = vmatprep.subr.mxu0 0.0
  %691 = vmatpush1.msra.mxu0 0.0
  %692 = vmatprep.subr.mxu0 0.0
  %693 = vmatpush1.msra.mxu0 0.0
  %694 = vmatprep.subr.mxu0 0.0
  %695 = vmatpush1.msra.mxu0 0.0
  %696 = vmatprep.subr.mxu0 0.0
  %697 = vmatpush1.msra.mxu0 0.0
  %698 = vmatprep.subr.mxu0 0.0
  %699 = vmatpush1.msra.mxu0 0.0
  %700 = vmatprep.subr.mxu0 0.0
  %701 = vmatpush1.msra.mxu0 0.0
  %702 = vmatprep.subr.mxu0 0.0
  %703 = vmatpush1.msra.mxu0 0.0
  %704 = vmatprep.subr.mxu0 0.0
  %705 = vmatpush1.msra.mxu0 0.0
  %706 = vmatprep.subr.mxu0 0.0
  %707 = vmatpush1.msra.mxu0 0.0
  %708 = vmatprep.subr.mxu0 0.0
  %709 = vmatpush1.msra.mxu0 0.0
  %710 = vmatprep.subr.mxu0 0.0
  %711 = vmatpush1.msra.mxu0 0.0
  %712 = vmatprep.subr.mxu0 0.0
  %713 = vmatpush1.msra.mxu0 0.0
  %714 = vmatprep.subr.mxu0 0.0
  %715 = vmatpush1.msra.mxu0 0.0
  %716 = vmatprep.subr.mxu0 0.0
  %717 = vmatpush1.msra.mxu0 0.0
  %718 = vmatprep.subr.mxu0 0.0
  %719 = vmatpush1.msra.mxu0 0.0
  %720 = vmatprep.subr.mxu0 0.0
  %721 = vmatpush1.msra.mxu0 0.0
  %722 = vmatprep.subr.mxu0 0.0
  %723 = vmatpush1.msra.mxu0 0.0
  %724 = vmatprep.subr.mxu0 0.0
  %725 = vmatpush1.msra.mxu0 0.0
  %726 = vmatprep.subr.mxu0 0.0
  %727 = vmatpush1.msra.mxu0 0.0
  %728 = vmatprep.subr.mxu0 0.0
  %729 = vmatpush1.msra.mxu0 0.0
  %730 = vmatprep.subr.mxu0 0.0
  %731 = vmatpush1.msra.mxu0 0.0
  %732 = vmatprep.subr.mxu0 0.0
  %733 = vmatpush1.msra.mxu0 0.0
  %734 = vmatprep.subr.mxu0 0.0
  %735 = vmatpush1.msra.mxu0 0.0
  %736 = vmatprep.subr.mxu0 0.0
  %737 = vmatpush1.msra.mxu0 0.0
  %738 = vmatprep.subr.mxu0 0.0
  %739 = vmatpush1.msra.mxu0 0.0
  %740 = vmatprep.mubr.f32.mxu0 0.0
  %741 = vmatmul.mubr.f32.gmra.mrb[0].mxu0 %v674
  %v742 = vpop.f32.mrb[0].mxu0
  %v743 = vadd.f32 0.0, %v742
  %v744 = vpop.f32.mrb[0].mxu0
  %745 = vdwg.mxu0
  %v746 = vadd.f32 %v166, %v743
  %v747 = vxor.u32 %v671, 2147483648
  %v748 = vmul.f32 %v747, 1.442695
  %v749 = vpow.pop %v748
  %v750 = vadd.f32 %v749, 1.0
  %v751 = vrcp.pop %v750
  %v752 = vmul.f32 1.0, %v751
  %v753 = vtanh.pop %v671
  %v754 = vmul.f32 %v752, %v558
  %756 = vrot.lane.b32.xlu0 %v753, 64
  %v757 = vpop.permute.xlu0 %756
  %v759 = vmul.f32 %v752, %v757
  %761 = vrot.lane.b32.xlu0 %v759, 32
  %v762 = vpop.permute.xlu0 %761
  %v764 = vadd.f32 %v754, %v762
  %v765 = vtanh.pop %v764
  %767 = vrot.lane.b32.xlu0 %v765, 64
  %v768 = vpop.permute.xlu0 %767
  %v770 = vmul.f32 %v752, %v768
  %v771 = vxor.u32 %v746, 2147483648
  %v772 = vmul.f32 %v771, 1.442695
  %v773 = vpow.pop %v772
  %v774 = vadd.f32 %v773, 1.0
  %v775 = vrcp.pop %v774
  %v776 = vmul.f32 1.0, %v775
  %v777 = vtanh.pop %v746
  %v778 = vmul.f32 %v776, %v582
  %780 = vrot.lane.b32.xlu0 %v777, 64
  %v781 = vpop.permute.xlu0 %780
  %v783 = vmul.f32 %v776, %v781
  %785 = vrot.lane.b32.xlu0 %v783, 32
  %v786 = vpop.permute.xlu0 %785
  %v788 = vadd.f32 %v778, %v786
  %v789 = vtanh.pop %v788
  %791 = vrot.lane.b32.xlu0 %v789, 64
  %v792 = vpop.permute.xlu0 %791
  %v794 = vmul.f32 %v776, %v792
  %796 = vrot.lane.b32.xlu0 %v770, 32
  %v797 = vpop.permute.xlu0 %796
  %799 = vst.msk [vmem:[%s5 + $0x10] sm:$0xff] %vm188, %v797
  %801 = vrot.lane.b32.xlu0 %v794, 64
  %v802 = vpop.permute.xlu0 %801
  %804 = vst.msk [vmem:[%s5 + $0x28] sm:$0xff] %vm391, %v802
  %v805 = vsel %vm188, %v797, 0
  %807 = vmatprep.subr.mxu0 0.0
  %808 = vmatpush1.msra.mxu0 %v180
  %809 = vmatprep.subr.mxu0 0.0
  %810 = vmatpush1.msra.mxu0 %v181
  %811 = vmatprep.subr.mxu0 0.0
  %812 = vmatpush1.msra.mxu0 %v182
  %813 = vmatprep.subr.mxu0 0.0
  %814 = vmatpush1.msra.mxu0 %v183
  %815 = vmatprep.subr.mxu0 0.0
  %816 = vmatpush1.msra.mxu0 0.0
  %817 = vmatprep.subr.mxu0 0.0
  %818 = vmatpush1.msra.mxu0 0.0
  %819 = vmatprep.subr.mxu0 0.0
  %820 = vmatpush1.msra.mxu0 0.0
  %821 = vmatprep.subr.mxu0 0.0
  %822 = vmatpush1.msra.mxu0 0.0
  %823 = vmatprep.subr.mxu0 0.0
  %824 = vmatpush1.msra.mxu0 0.0
  %825 = vmatprep.subr.mxu0 0.0
  %826 = vmatpush1.msra.mxu0 0.0
  %827 = vmatprep.subr.mxu0 0.0
  %828 = vmatpush1.msra.mxu0 0.0
  %829 = vmatprep.subr.mxu0 0.0
  %830 = vmatpush1.msra.mxu0 0.0
  %831 = vmatprep.subr.mxu0 0.0
  %832 = vmatpush1.msra.mxu0 0.0
  %833 = vmatprep.subr.mxu0 0.0
  %834 = vmatpush1.msra.mxu0 0.0
  %835 = vmatprep.subr.mxu0 0.0
  %836 = vmatpush1.msra.mxu0 0.0
  %837 = vmatprep.subr.mxu0 0.0
  %838 = vmatpush1.msra.mxu0 0.0
  %839 = vmatprep.subr.mxu0 0.0
  %840 = vmatpush1.msra.mxu0 0.0
  %841 = vmatprep.subr.mxu0 0.0
  %842 = vmatpush1.msra.mxu0 0.0
  %843 = vmatprep.subr.mxu0 0.0
  %844 = vmatpush1.msra.mxu0 0.0
  %845 = vmatprep.subr.mxu0 0.0
  %846 = vmatpush1.msra.mxu0 0.0
  %847 = vmatprep.subr.mxu0 0.0
  %848 = vmatpush1.msra.mxu0 0.0
  %849 = vmatprep.subr.mxu0 0.0
  %850 = vmatpush1.msra.mxu0 0.0
  %851 = vmatprep.subr.mxu0 0.0
  %852 = vmatpush1.msra.mxu0 0.0
  %853 = vmatprep.subr.mxu0 0.0
  %854 = vmatpush1.msra.mxu0 0.0
  %855 = vmatprep.subr.mxu0 0.0
  %856 = vmatpush1.msra.mxu0 0.0
  %857 = vmatprep.subr.mxu0 0.0
  %858 = vmatpush1.msra.mxu0 0.0
  %859 = vmatprep.subr.mxu0 0.0
  %860 = vmatpush1.msra.mxu0 0.0
  %861 = vmatprep.subr.mxu0 0.0
  %862 = vmatpush1.msra.mxu0 0.0
  %863 = vmatprep.subr.mxu0 0.0
  %864 = vmatpush1.msra.mxu0 0.0
  %865 = vmatprep.subr.mxu0 0.0
  %866 = vmatpush1.msra.mxu0 0.0
  %867 = vmatprep.subr.mxu0 0.0
  %868 = vmatpush1.msra.mxu0 0.0
  %869 = vmatprep.subr.mxu0 0.0
  %870 = vmatpush1.msra.mxu0 0.0
  %871 = vmatprep.mubr.f32.mxu0 0.0
  %872 = vmatmul.mubr.f32.gmra.mrb[0].mxu0 %v805
  %v873 = vpop.f32.mrb[0].mxu0
  %v874 = vadd.f32 0.0, %v873
  %v875 = vpop.f32.mrb[0].mxu0
  %876 = vdwg.mxu0
  %v877 = vadd.f32 %v152, %v874
  %878 = vrot.lane.b32.xlu0 %v794, 32
  %v879 = vpop.permute.xlu0 %878
  %v880 = vsel %vm188, %v879, 0
  %882 = vmatprep.subr.mxu0 0.0
  %883 = vmatpush1.msra.mxu0 %v184
  %884 = vmatprep.subr.mxu0 0.0
  %885 = vmatpush1.msra.mxu0 %v185
  %886 = vmatprep.subr.mxu0 0.0
  %887 = vmatpush1.msra.mxu0 %v186
  %888 = vmatprep.subr.mxu0 0.0
  %889 = vmatpush1.msra.mxu0 %v187
  %890 = vmatprep.subr.mxu0 0.0
  %891 = vmatpush1.msra.mxu0 0.0
  %892 = vmatprep.subr.mxu0 0.0
  %893 = vmatpush1.msra.mxu0 0.0
  %894 = vmatprep.subr.mxu0 0.0
  %895 = vmatpush1.msra.mxu0 0.0
  %896 = vmatprep.subr.mxu0 0.0
  %897 = vmatpush1.msra.mxu0 0.0
  %898 = vmatprep.subr.mxu0 0.0
  %899 = vmatpush1.msra.mxu0 0.0
  %900 = vmatprep.subr.mxu0 0.0
  %901 = vmatpush1.msra.mxu0 0.0
  %902 = vmatprep.subr.mxu0 0.0
  %903 = vmatpush1.msra.mxu0 0.0
  %904 = vmatprep.subr.mxu0 0.0
  %905 = vmatpush1.msra.mxu0 0.0
  %906 = vmatprep.subr.mxu0 0.0
  %907 = vmatpush1.msra.mxu0 0.0
  %908 = vmatprep.subr.mxu0 0.0
  %909 = vmatpush1.msra.mxu0 0.0
  %910 = vmatprep.subr.mxu0 0.0
  %911 = vmatpush1.msra.mxu0 0.0
  %912 = vmatprep.subr.mxu0 0.0
  %913 = vmatpush1.msra.mxu0 0.0
  %914 = vmatprep.subr.mxu0 0.0
  %915 = vmatpush1.msra.mxu0 0.0
  %916 = vmatprep.subr.mxu0 0.0
  %917 = vmatpush1.msra.mxu0 0.0
  %918 = vmatprep.subr.mxu0 0.0
  %919 = vmatpush1.msra.mxu0 0.0
  %920 = vmatprep.subr.mxu0 0.0
  %921 = vmatpush1.msra.mxu0 0.0
  %922 = vmatprep.subr.mxu0 0.0
  %923 = vmatpush1.msra.mxu0 0.0
  %924 = vmatprep.subr.mxu0 0.0
  %925 = vmatpush1.msra.mxu0 0.0
  %926 = vmatprep.subr.mxu0 0.0
  %927 = vmatpush1.msra.mxu0 0.0
  %928 = vmatprep.subr.mxu0 0.0
  %929 = vmatpush1.msra.mxu0 0.0
  %930 = vmatprep.subr.mxu0 0.0
  %931 = vmatpush1.msra.mxu0 0.0
  %932 = vmatprep.subr.mxu0 0.0
  %933 = vmatpush1.msra.mxu0 0.0
  %934 = vmatprep.subr.mxu0 0.0
  %935 = vmatpush1.msra.mxu0 0.0
  %936 = vmatprep.subr.mxu0 0.0
  %937 = vmatpush1.msra.mxu0 0.0
  %938 = vmatprep.subr.mxu0 0.0
  %939 = vmatpush1.msra.mxu0 0.0
  %940 = vmatprep.subr.mxu0 0.0
  %941 = vmatpush1.msra.mxu0 0.0
  %942 = vmatprep.subr.mxu0 0.0
  %943 = vmatpush1.msra.mxu0 0.0
  %944 = vmatprep.subr.mxu0 0.0
  %945 = vmatpush1.msra.mxu0 0.0
  %946 = vmatprep.mubr.f32.mxu0 0.0
  %947 = vmatmul.mubr.f32.gmra.mrb[0].mxu0 %v880
  %v948 = vpop.f32.mrb[0].mxu0
  %v949 = vadd.f32 0.0, %v948
  %v950 = vpop.f32.mrb[0].mxu0
  %951 = vdwg.mxu0
  %v952 = vadd.f32 %v160, %v949
  %v953 = vxor.u32 %v877, 2147483648
  %v954 = vmul.f32 %v953, 1.442695
  %v955 = vpow.pop %v954
  %v956 = vadd.f32 %v955, 1.0
  %v957 = vrcp.pop %v956
  %v958 = vmul.f32 1.0, %v957
  %v959 = vtanh.pop %v877
  %v960 = vmul.f32 %v958, %v764
  %962 = vrot.lane.b32.xlu0 %v959, 64
  %v963 = vpop.permute.xlu0 %962
  %v965 = vmul.f32 %v958, %v963
  %967 = vrot.lane.b32.xlu0 %v965, 32
  %v968 = vpop.permute.xlu0 %967
  %v970 = vadd.f32 %v960, %v968
  %v971 = vtanh.pop %v970
  %973 = vrot.lane.b32.xlu0 %v971, 64
  %v974 = vpop.permute.xlu0 %973
  %v976 = vmul.f32 %v958, %v974
  %v977 = vxor.u32 %v952, 2147483648
  %v978 = vmul.f32 %v977, 1.442695
  %v979 = vpow.pop %v978
  %v980 = vadd.f32 %v979, 1.0
  %v981 = vrcp.pop %v980
  %v982 = vmul.f32 1.0, %v981
  %v983 = vtanh.pop %v952
  %v984 = vmul.f32 %v982, %v788
  %986 = vrot.lane.b32.xlu0 %v983, 64
  %v987 = vpop.permute.xlu0 %986
  %v989 = vmul.f32 %v982, %v987
  %991 = vrot.lane.b32.xlu0 %v989, 32
  %v992 = vpop.permute.xlu0 %991
  %v994 = vadd.f32 %v984, %v992
  %v995 = vtanh.pop %v994
  %997 = vrot.lane.b32.xlu0 %v995, 64
  %v998 = vpop.permute.xlu0 %997
  %v1000 = vmul.f32 %v982, %v998
  %1002 = vrot.lane.b32.xlu0 %v976, 32
  %v1003 = vpop.permute.xlu0 %1002
  %1005 = vst.msk [vmem:[%s5 + $0x18] sm:$0xff] %vm188, %v1003
  %1007 = vrot.lane.b32.xlu0 %v1000, 64
  %v1008 = vpop.permute.xlu0 %1007
  %1010 = vst.msk [vmem:[%s5 + $0x20] sm:$0xff] %vm391, %v1008
  %v1011 = vsel %vm188, %v1003, 0
  %1013 = vmatprep.subr.mxu0 0.0
  %1014 = vmatpush1.msra.mxu0 %v180
  %1015 = vmatprep.subr.mxu0 0.0
  %1016 = vmatpush1.msra.mxu0 %v181
  %1017 = vmatprep.subr.mxu0 0.0
  %1018 = vmatpush1.msra.mxu0 %v182
  %1019 = vmatprep.subr.mxu0 0.0
  %1020 = vmatpush1.msra.mxu0 %v183
  %1021 = vmatprep.subr.mxu0 0.0
  %1022 = vmatpush1.msra.mxu0 0.0
  %1023 = vmatprep.subr.mxu0 0.0
  %1024 = vmatpush1.msra.mxu0 0.0
  %1025 = vmatprep.subr.mxu0 0.0
  %1026 = vmatpush1.msra.mxu0 0.0
  %1027 = vmatprep.subr.mxu0 0.0
  %1028 = vmatpush1.msra.mxu0 0.0
  %1029 = vmatprep.subr.mxu0 0.0
  %1030 = vmatpush1.msra.mxu0 0.0
  %1031 = vmatprep.subr.mxu0 0.0
  %1032 = vmatpush1.msra.mxu0 0.0
  %1033 = vmatprep.subr.mxu0 0.0
  %1034 = vmatpush1.msra.mxu0 0.0
  %1035 = vmatprep.subr.mxu0 0.0
  %1036 = vmatpush1.msra.mxu0 0.0
  %1037 = vmatprep.subr.mxu0 0.0
  %1038 = vmatpush1.msra.mxu0 0.0
  %1039 = vmatprep.subr.mxu0 0.0
  %1040 = vmatpush1.msra.mxu0 0.0
  %1041 = vmatprep.subr.mxu0 0.0
  %1042 = vmatpush1.msra.mxu0 0.0
  %1043 = vmatprep.subr.mxu0 0.0
  %1044 = vmatpush1.msra.mxu0 0.0
  %1045 = vmatprep.subr.mxu0 0.0
  %1046 = vmatpush1.msra.mxu0 0.0
  %1047 = vmatprep.subr.mxu0 0.0
  %1048 = vmatpush1.msra.mxu0 0.0
  %1049 = vmatprep.subr.mxu0 0.0
  %1050 = vmatpush1.msra.mxu0 0.0
  %1051 = vmatprep.subr.mxu0 0.0
  %1052 = vmatpush1.msra.mxu0 0.0
  %1053 = vmatprep.subr.mxu0 0.0
  %1054 = vmatpush1.msra.mxu0 0.0
  %1055 = vmatprep.subr.mxu0 0.0
  %1056 = vmatpush1.msra.mxu0 0.0
  %1057 = vmatprep.subr.mxu0 0.0
  %1058 = vmatpush1.msra.mxu0 0.0
  %1059 = vmatprep.subr.mxu0 0.0
  %1060 = vmatpush1.msra.mxu0 0.0
  %1061 = vmatprep.subr.mxu0 0.0
  %1062 = vmatpush1.msra.mxu0 0.0
  %1063 = vmatprep.subr.mxu0 0.0
  %1064 = vmatpush1.msra.mxu0 0.0
  %1065 = vmatprep.subr.mxu0 0.0
  %1066 = vmatpush1.msra.mxu0 0.0
  %1067 = vmatprep.subr.mxu0 0.0
  %1068 = vmatpush1.msra.mxu0 0.0
  %1069 = vmatprep.subr.mxu0 0.0
  %1070 = vmatpush1.msra.mxu0 0.0
  %1071 = vmatprep.subr.mxu0 0.0
  %1072 = vmatpush1.msra.mxu0 0.0
  %1073 = vmatprep.subr.mxu0 0.0
  %1074 = vmatpush1.msra.mxu0 0.0
  %1075 = vmatprep.subr.mxu0 0.0
  %1076 = vmatpush1.msra.mxu0 0.0
  %1077 = vmatprep.mubr.f32.mxu0 0.0
  %1078 = vmatmul.mubr.f32.gmra.mrb[0].mxu0 %v1011
  %v1079 = vpop.f32.mrb[0].mxu0
  %v1080 = vadd.f32 0.0, %v1079
  %v1081 = vpop.f32.mrb[0].mxu0
  %1082 = vdwg.mxu0
  %v1083 = vadd.f32 %v158, %v1080
  %1084 = vrot.lane.b32.xlu0 %v1000, 32
  %v1085 = vpop.permute.xlu0 %1084
  %v1086 = vsel %vm188, %v1085, 0
  %1088 = vmatprep.subr.mxu0 0.0
  %1089 = vmatpush1.msra.mxu0 %v184
  %1090 = vmatprep.subr.mxu0 0.0
  %1091 = vmatpush1.msra.mxu0 %v185
  %1092 = vmatprep.subr.mxu0 0.0
  %1093 = vmatpush1.msra.mxu0 %v186
  %1094 = vmatprep.subr.mxu0 0.0
  %1095 = vmatpush1.msra.mxu0 %v187
  %1096 = vmatprep.subr.mxu0 0.0
  %1097 = vmatpush1.msra.mxu0 0.0
  %1098 = vmatprep.subr.mxu0 0.0
  %1099 = vmatpush1.msra.mxu0 0.0
  %1100 = vmatprep.subr.mxu0 0.0
  %1101 = vmatpush1.msra.mxu0 0.0
  %1102 = vmatprep.subr.mxu0 0.0
  %1103 = vmatpush1.msra.mxu0 0.0
  %1104 = vmatprep.subr.mxu0 0.0
  %1105 = vmatpush1.msra.mxu0 0.0
  %1106 = vmatprep.subr.mxu0 0.0
  %1107 = vmatpush1.msra.mxu0 0.0
  %1108 = vmatprep.subr.mxu0 0.0
  %1109 = vmatpush1.msra.mxu0 0.0
  %1110 = vmatprep.subr.mxu0 0.0
  %1111 = vmatpush1.msra.mxu0 0.0
  %1112 = vmatprep.subr.mxu0 0.0
  %1113 = vmatpush1.msra.mxu0 0.0
  %1114 = vmatprep.subr.mxu0 0.0
  %1115 = vmatpush1.msra.mxu0 0.0
  %1116 = vmatprep.subr.mxu0 0.0
  %1117 = vmatpush1.msra.mxu0 0.0
  %1118 = vmatprep.subr.mxu0 0.0
  %1119 = vmatpush1.msra.mxu0 0.0
  %1120 = vmatprep.subr.mxu0 0.0
  %1121 = vmatpush1.msra.mxu0 0.0
  %1122 = vmatprep.subr.mxu0 0.0
  %1123 = vmatpush1.msra.mxu0 0.0
  %1124 = vmatprep.subr.mxu0 0.0
  %1125 = vmatpush1.msra.mxu0 0.0
  %1126 = vmatprep.subr.mxu0 0.0
  %1127 = vmatpush1.msra.mxu0 0.0
  %1128 = vmatprep.subr.mxu0 0.0
  %1129 = vmatpush1.msra.mxu0 0.0
  %1130 = vmatprep.subr.mxu0 0.0
  %1131 = vmatpush1.msra.mxu0 0.0
  %1132 = vmatprep.subr.mxu0 0.0
  %1133 = vmatpush1.msra.mxu0 0.0
  %1134 = vmatprep.subr.mxu0 0.0
  %1135 = vmatpush1.msra.mxu0 0.0
  %1136 = vmatprep.subr.mxu0 0.0
  %1137 = vmatpush1.msra.mxu0 0.0
  %1138 = vmatprep.subr.mxu0 0.0
  %1139 = vmatpush1.msra.mxu0 0.0
  %1140 = vmatprep.subr.mxu0 0.0
  %1141 = vmatpush1.msra.mxu0 0.0
  %1142 = vmatprep.subr.mxu0 0.0
  %1143 = vmatpush1.msra.mxu0 0.0
  %1144 = vmatprep.subr.mxu0 0.0
  %1145 = vmatpush1.msra.mxu0 0.0
  %1146 = vmatprep.subr.mxu0 0.0
  %1147 = vmatpush1.msra.mxu0 0.0
  %1148 = vmatprep.subr.mxu0 0.0
  %1149 = vmatpush1.msra.mxu0 0.0
  %1150 = vmatprep.subr.mxu0 0.0
  %1151 = vmatpush1.msra.mxu0 0.0
  %1152 = vmatprep.mubr.f32.mxu0 0.0
  %1153 = vmatmul.mubr.f32.gmra.mrb[0].mxu0 %v1086
  %v1154 = vpop.f32.mrb[0].mxu0
  %v1155 = vadd.f32 0.0, %v1154
  %v1156 = vpop.f32.mrb[0].mxu0
  %1157 = vdwg.mxu0
  %v1158 = vadd.f32 %v154, %v1155
  %v1159 = vxor.u32 %v1083, 2147483648
  %v1160 = vmul.f32 %v1159, 1.442695
  %v1161 = vpow.pop %v1160
  %v1162 = vadd.f32 %v1161, 1.0
  %v1163 = vrcp.pop %v1162
  %v1164 = vmul.f32 1.0, %v1163
  %v1165 = vtanh.pop %v1083
  %v1166 = vmul.f32 %v1164, %v970
  %1168 = vrot.lane.b32.xlu0 %v1165, 64
  %v1169 = vpop.permute.xlu0 %1168
  %v1171 = vmul.f32 %v1164, %v1169
  %1173 = vrot.lane.b32.xlu0 %v1171, 32
  %v1174 = vpop.permute.xlu0 %1173
  %v1176 = vadd.f32 %v1166, %v1174
  %v1177 = vtanh.pop %v1176
  %1179 = vrot.lane.b32.xlu0 %v1177, 64
  %v1180 = vpop.permute.xlu0 %1179
  %v1182 = vmul.f32 %v1164, %v1180
  %v1183 = vxor.u32 %v1158, 2147483648
  %v1184 = vmul.f32 %v1183, 1.442695
  %v1185 = vpow.pop %v1184
  %v1186 = vadd.f32 %v1185, 1.0
  %v1187 = vrcp.pop %v1186
  %v1188 = vmul.f32 1.0, %v1187
  %v1189 = vtanh.pop %v1158
  %v1190 = vmul.f32 %v1188, %v994
  %1192 = vrot.lane.b32.xlu0 %v1189, 64
  %v1193 = vpop.permute.xlu0 %1192
  %v1195 = vmul.f32 %v1188, %v1193
  %1197 = vrot.lane.b32.xlu0 %v1195, 32
  %v1198 = vpop.permute.xlu0 %1197
  %v1200 = vadd.f32 %v1190, %v1198
  %v1201 = vtanh.pop %v1200
  %1203 = vrot.lane.b32.xlu0 %v1201, 64
  %v1204 = vpop.permute.xlu0 %1203
  %v1206 = vmul.f32 %v1188, %v1204
  %1208 = vrot.lane.b32.xlu0 %v1182, 32
  %v1209 = vpop.permute.xlu0 %1208
  %1211 = vst.msk [vmem:[%s5 + $0x20] sm:$0xff] %vm188, %v1209
  %1213 = vrot.lane.b32.xlu0 %v1206, 64
  %v1214 = vpop.permute.xlu0 %1213
  %1216 = vst.msk [vmem:[%s5 + $0x18] sm:$0xff] %vm391, %v1214
  %v1217 = vsel %vm188, %v1209, 0
  %1219 = vmatprep.subr.mxu0 0.0
  %1220 = vmatpush1.msra.mxu0 %v180
  %1221 = vmatprep.subr.mxu0 0.0
  %1222 = vmatpush1.msra.mxu0 %v181
  %1223 = vmatprep.subr.mxu0 0.0
  %1224 = vmatpush1.msra.mxu0 %v182
  %1225 = vmatprep.subr.mxu0 0.0
  %1226 = vmatpush1.msra.mxu0 %v183
  %1227 = vmatprep.subr.mxu0 0.0
  %1228 = vmatpush1.msra.mxu0 0.0
  %1229 = vmatprep.subr.mxu0 0.0
  %1230 = vmatpush1.msra.mxu0 0.0
  %1231 = vmatprep.subr.mxu0 0.0
  %1232 = vmatpush1.msra.mxu0 0.0
  %1233 = vmatprep.subr.mxu0 0.0
  %1234 = vmatpush1.msra.mxu0 0.0
  %1235 = vmatprep.subr.mxu0 0.0
  %1236 = vmatpush1.msra.mxu0 0.0
  %1237 = vmatprep.subr.mxu0 0.0
  %1238 = vmatpush1.msra.mxu0 0.0
  %1239 = vmatprep.subr.mxu0 0.0
  %1240 = vmatpush1.msra.mxu0 0.0
  %1241 = vmatprep.subr.mxu0 0.0
  %1242 = vmatpush1.msra.mxu0 0.0
  %1243 = vmatprep.subr.mxu0 0.0
  %1244 = vmatpush1.msra.mxu0 0.0
  %1245 = vmatprep.subr.mxu0 0.0
  %1246 = vmatpush1.msra.mxu0 0.0
  %1247 = vmatprep.subr.mxu0 0.0
  %1248 = vmatpush1.msra.mxu0 0.0
  %1249 = vmatprep.subr.mxu0 0.0
  %1250 = vmatpush1.msra.mxu0 0.0
  %1251 = vmatprep.subr.mxu0 0.0
  %1252 = vmatpush1.msra.mxu0 0.0
  %1253 = vmatprep.subr.mxu0 0.0
  %1254 = vmatpush1.msra.mxu0 0.0
  %1255 = vmatprep.subr.mxu0 0.0
  %1256 = vmatpush1.msra.mxu0 0.0
  %1257 = vmatprep.subr.mxu0 0.0
  %1258 = vmatpush1.msra.mxu0 0.0
  %1259 = vmatprep.subr.mxu0 0.0
  %1260 = vmatpush1.msra.mxu0 0.0
  %1261 = vmatprep.subr.mxu0 0.0
  %1262 = vmatpush1.msra.mxu0 0.0
  %1263 = vmatprep.subr.mxu0 0.0
  %1264 = vmatpush1.msra.mxu0 0.0
  %1265 = vmatprep.subr.mxu0 0.0
  %1266 = vmatpush1.msra.mxu0 0.0
  %1267 = vmatprep.subr.mxu0 0.0
  %1268 = vmatpush1.msra.mxu0 0.0
  %1269 = vmatprep.subr.mxu0 0.0
  %1270 = vmatpush1.msra.mxu0 0.0
  %1271 = vmatprep.subr.mxu0 0.0
  %1272 = vmatpush1.msra.mxu0 0.0
  %1273 = vmatprep.subr.mxu0 0.0
  %1274 = vmatpush1.msra.mxu0 0.0
  %1275 = vmatprep.subr.mxu0 0.0
  %1276 = vmatpush1.msra.mxu0 0.0
  %1277 = vmatprep.subr.mxu0 0.0
  %1278 = vmatpush1.msra.mxu0 0.0
  %1279 = vmatprep.subr.mxu0 0.0
  %1280 = vmatpush1.msra.mxu0 0.0
  %1281 = vmatprep.subr.mxu0 0.0
  %1282 = vmatpush1.msra.mxu0 0.0
  %1283 = vmatprep.mubr.f32.mxu0 0.0
  %1284 = vmatmul.mubr.f32.gmra.mrb[0].mxu0 %v1217
  %v1285 = vpop.f32.mrb[0].mxu0
  %v1286 = vadd.f32 0.0, %v1285
  %v1287 = vpop.f32.mrb[0].mxu0
  %1288 = vdwg.mxu0
  %v1289 = vadd.f32 %v164, %v1286
  %1290 = vrot.lane.b32.xlu0 %v1206, 32
  %v1291 = vpop.permute.xlu0 %1290
  %v1292 = vsel %vm188, %v1291, 0
  %1294 = vmatprep.subr.mxu0 0.0
  %1295 = vmatpush1.msra.mxu0 %v184
  %1296 = vmatprep.subr.mxu0 0.0
  %1297 = vmatpush1.msra.mxu0 %v185
  %1298 = vmatprep.subr.mxu0 0.0
  %1299 = vmatpush1.msra.mxu0 %v186
  %1300 = vmatprep.subr.mxu0 0.0
  %1301 = vmatpush1.msra.mxu0 %v187
  %1302 = vmatprep.subr.mxu0 0.0
  %1303 = vmatpush1.msra.mxu0 0.0
  %1304 = vmatprep.subr.mxu0 0.0
  %1305 = vmatpush1.msra.mxu0 0.0
  %1306 = vmatprep.subr.mxu0 0.0
  %1307 = vmatpush1.msra.mxu0 0.0
  %1308 = vmatprep.subr.mxu0 0.0
  %1309 = vmatpush1.msra.mxu0 0.0
  %1310 = vmatprep.subr.mxu0 0.0
  %1311 = vmatpush1.msra.mxu0 0.0
  %1312 = vmatprep.subr.mxu0 0.0
  %1313 = vmatpush1.msra.mxu0 0.0
  %1314 = vmatprep.subr.mxu0 0.0
  %1315 = vmatpush1.msra.mxu0 0.0
  %1316 = vmatprep.subr.mxu0 0.0
  %1317 = vmatpush1.msra.mxu0 0.0
  %1318 = vmatprep.subr.mxu0 0.0
  %1319 = vmatpush1.msra.mxu0 0.0
  %1320 = vmatprep.subr.mxu0 0.0
  %1321 = vmatpush1.msra.mxu0 0.0
  %1322 = vmatprep.subr.mxu0 0.0
  %1323 = vmatpush1.msra.mxu0 0.0
  %1324 = vmatprep.subr.mxu0 0.0
  %1325 = vmatpush1.msra.mxu0 0.0
  %1326 = vmatprep.subr.mxu0 0.0
  %1327 = vmatpush1.msra.mxu0 0.0
  %1328 = vmatprep.subr.mxu0 0.0
  %1329 = vmatpush1.msra.mxu0 0.0
  %1330 = vmatprep.subr.mxu0 0.0
  %1331 = vmatpush1.msra.mxu0 0.0
  %1332 = vmatprep.subr.mxu0 0.0
  %1333 = vmatpush1.msra.mxu0 0.0
  %1334 = vmatprep.subr.mxu0 0.0
  %1335 = vmatpush1.msra.mxu0 0.0
  %1336 = vmatprep.subr.mxu0 0.0
  %1337 = vmatpush1.msra.mxu0 0.0
  %1338 = vmatprep.subr.mxu0 0.0
  %1339 = vmatpush1.msra.mxu0 0.0
  %1340 = vmatprep.subr.mxu0 0.0
  %1341 = vmatpush1.msra.mxu0 0.0
  %1342 = vmatprep.subr.mxu0 0.0
  %1343 = vmatpush1.msra.mxu0 0.0
  %1344 = vmatprep.subr.mxu0 0.0
  %1345 = vmatpush1.msra.mxu0 0.0
  %1346 = vmatprep.subr.mxu0 0.0
  %1347 = vmatpush1.msra.mxu0 0.0
  %1348 = vmatprep.subr.mxu0 0.0
  %1349 = vmatpush1.msra.mxu0 0.0
  %1350 = vmatprep.subr.mxu0 0.0
  %1351 = vmatpush1.msra.mxu0 0.0
  %1352 = vmatprep.subr.mxu0 0.0
  %1353 = vmatpush1.msra.mxu0 0.0
  %1354 = vmatprep.subr.mxu0 0.0
  %1355 = vmatpush1.msra.mxu0 0.0
  %1356 = vmatprep.subr.mxu0 0.0
  %1357 = vmatpush1.msra.mxu0 0.0
  %1358 = vmatprep.mubr.f32.mxu0 0.0
  %1359 = vmatmul.mubr.f32.gmra.mrb[0].mxu0 %v1292
  %v1360 = vpop.f32.mrb[0].mxu0
  %v1361 = vadd.f32 0.0, %v1360
  %v1362 = vpop.f32.mrb[0].mxu0
  %1363 = vdwg.mxu0
  %v1364 = vadd.f32 %v148, %v1361
  %v1365 = vxor.u32 %v1289, 2147483648
  %v1366 = vmul.f32 %v1365, 1.442695
  %v1367 = vpow.pop %v1366
  %v1368 = vadd.f32 %v1367, 1.0
  %v1369 = vrcp.pop %v1368
  %v1370 = vmul.f32 1.0, %v1369
  %v1371 = vtanh.pop %v1289
  %v1372 = vmul.f32 %v1370, %v1176
  %1374 = vrot.lane.b32.xlu0 %v1371, 64
  %v1375 = vpop.permute.xlu0 %1374
  %v1377 = vmul.f32 %v1370, %v1375
  %1379 = vrot.lane.b32.xlu0 %v1377, 32
  %v1380 = vpop.permute.xlu0 %1379
  %v1382 = vadd.f32 %v1372, %v1380
  %v1383 = vtanh.pop %v1382
  %1385 = vrot.lane.b32.xlu0 %v1383, 64
  %v1386 = vpop.permute.xlu0 %1385
  %v1388 = vmul.f32 %v1370, %v1386
  %v1389 = vxor.u32 %v1364, 2147483648
  %v1390 = vmul.f32 %v1389, 1.442695
  %v1391 = vpow.pop %v1390
  %v1392 = vadd.f32 %v1391, 1.0
  %v1393 = vrcp.pop %v1392
  %v1394 = vmul.f32 1.0, %v1393
  %v1395 = vtanh.pop %v1364
  %v1396 = vmul.f32 %v1394, %v1200
  %1398 = vrot.lane.b32.xlu0 %v1395, 64
  %v1399 = vpop.permute.xlu0 %1398
  %v1401 = vmul.f32 %v1394, %v1399
  %1403 = vrot.lane.b32.xlu0 %v1401, 32
  %v1404 = vpop.permute.xlu0 %1403
  %v1406 = vadd.f32 %v1396, %v1404
  %v1407 = vtanh.pop %v1406
  %1409 = vrot.lane.b32.xlu0 %v1407, 64
  %v1410 = vpop.permute.xlu0 %1409
  %v1412 = vmul.f32 %v1394, %v1410
  %1414 = vrot.lane.b32.xlu0 %v1388, 32
  %v1415 = vpop.permute.xlu0 %1414
  %1417 = vst.msk [vmem:[%s5 + $0x28] sm:$0xff] %vm188, %v1415
  %1419 = vrot.lane.b32.xlu0 %v1412, 64
  %v1420 = vpop.permute.xlu0 %1419
  %1422 = vst.msk [vmem:[%s5 + $0x10] sm:$0xff] %vm391, %v1420
  %v1423 = vsel %vm188, %v1415, 0
  %1425 = vmatprep.subr.mxu0 0.0
  %1426 = vmatpush1.msra.mxu0 %v180
  %1427 = vmatprep.subr.mxu0 0.0
  %1428 = vmatpush1.msra.mxu0 %v181
  %1429 = vmatprep.subr.mxu0 0.0
  %1430 = vmatpush1.msra.mxu0 %v182
  %1431 = vmatprep.subr.mxu0 0.0
  %1432 = vmatpush1.msra.mxu0 %v183
  %1433 = vmatprep.subr.mxu0 0.0
  %1434 = vmatpush1.msra.mxu0 0.0
  %1435 = vmatprep.subr.mxu0 0.0
  %1436 = vmatpush1.msra.mxu0 0.0
  %1437 = vmatprep.subr.mxu0 0.0
  %1438 = vmatpush1.msra.mxu0 0.0
  %1439 = vmatprep.subr.mxu0 0.0
  %1440 = vmatpush1.msra.mxu0 0.0
  %1441 = vmatprep.subr.mxu0 0.0
  %1442 = vmatpush1.msra.mxu0 0.0
  %1443 = vmatprep.subr.mxu0 0.0
  %1444 = vmatpush1.msra.mxu0 0.0
  %1445 = vmatprep.subr.mxu0 0.0
  %1446 = vmatpush1.msra.mxu0 0.0
  %1447 = vmatprep.subr.mxu0 0.0
  %1448 = vmatpush1.msra.mxu0 0.0
  %1449 = vmatprep.subr.mxu0 0.0
  %1450 = vmatpush1.msra.mxu0 0.0
  %1451 = vmatprep.subr.mxu0 0.0
  %1452 = vmatpush1.msra.mxu0 0.0
  %1453 = vmatprep.subr.mxu0 0.0
  %1454 = vmatpush1.msra.mxu0 0.0
  %1455 = vmatprep.subr.mxu0 0.0
  %1456 = vmatpush1.msra.mxu0 0.0
  %1457 = vmatprep.subr.mxu0 0.0
  %1458 = vmatpush1.msra.mxu0 0.0
  %1459 = vmatprep.subr.mxu0 0.0
  %1460 = vmatpush1.msra.mxu0 0.0
  %1461 = vmatprep.subr.mxu0 0.0
  %1462 = vmatpush1.msra.mxu0 0.0
  %1463 = vmatprep.subr.mxu0 0.0
  %1464 = vmatpush1.msra.mxu0 0.0
  %1465 = vmatprep.subr.mxu0 0.0
  %1466 = vmatpush1.msra.mxu0 0.0
  %1467 = vmatprep.subr.mxu0 0.0
  %1468 = vmatpush1.msra.mxu0 0.0
  %1469 = vmatprep.subr.mxu0 0.0
  %1470 = vmatpush1.msra.mxu0 0.0
  %1471 = vmatprep.subr.mxu0 0.0
  %1472 = vmatpush1.msra.mxu0 0.0
  %1473 = vmatprep.subr.mxu0 0.0
  %1474 = vmatpush1.msra.mxu0 0.0
  %1475 = vmatprep.subr.mxu0 0.0
  %1476 = vmatpush1.msra.mxu0 0.0
  %1477 = vmatprep.subr.mxu0 0.0
  %1478 = vmatpush1.msra.mxu0 0.0
  %1479 = vmatprep.subr.mxu0 0.0
  %1480 = vmatpush1.msra.mxu0 0.0
  %1481 = vmatprep.subr.mxu0 0.0
  %1482 = vmatpush1.msra.mxu0 0.0
  %1483 = vmatprep.subr.mxu0 0.0
  %1484 = vmatpush1.msra.mxu0 0.0
  %1485 = vmatprep.subr.mxu0 0.0
  %1486 = vmatpush1.msra.mxu0 0.0
  %1487 = vmatprep.subr.mxu0 0.0
  %1488 = vmatpush1.msra.mxu0 0.0
  %1489 = vmatprep.mubr.f32.mxu0 0.0
  %1490 = vmatmul.mubr.f32.gmra.mrb[0].mxu0 %v1423
  %v1491 = vpop.f32.mrb[0].mxu0
  %v1492 = vadd.f32 0.0, %v1491
  %v1493 = vpop.f32.mrb[0].mxu0
  %1494 = vdwg.mxu0
  %v1495 = vadd.f32 %v170, %v1492
  %1496 = vrot.lane.b32.xlu0 %v1412, 32
  %v1497 = vpop.permute.xlu0 %1496
  %v1498 = vsel %vm188, %v1497, 0
  %1500 = vmatprep.subr.mxu0 0.0
  %1501 = vmatpush1.msra.mxu0 %v184
  %1502 = vmatprep.subr.mxu0 0.0
  %1503 = vmatpush1.msra.mxu0 %v185
  %1504 = vmatprep.subr.mxu0 0.0
  %1505 = vmatpush1.msra.mxu0 %v186
  %1506 = vmatprep.subr.mxu0 0.0
  %1507 = vmatpush1.msra.mxu0 %v187
  %1508 = vmatprep.subr.mxu0 0.0
  %1509 = vmatpush1.msra.mxu0 0.0
  %1510 = vmatprep.subr.mxu0 0.0
  %1511 = vmatpush1.msra.mxu0 0.0
  %1512 = vmatprep.subr.mxu0 0.0
  %1513 = vmatpush1.msra.mxu0 0.0
  %1514 = vmatprep.subr.mxu0 0.0
  %1515 = vmatpush1.msra.mxu0 0.0
  %1516 = vmatprep.subr.mxu0 0.0
  %1517 = vmatpush1.msra.mxu0 0.0
  %1518 = vmatprep.subr.mxu0 0.0
  %1519 = vmatpush1.msra.mxu0 0.0
  %1520 = vmatprep.subr.mxu0 0.0
  %1521 = vmatpush1.msra.mxu0 0.0
  %1522 = vmatprep.subr.mxu0 0.0
  %1523 = vmatpush1.msra.mxu0 0.0
  %1524 = vmatprep.subr.mxu0 0.0
  %1525 = vmatpush1.msra.mxu0 0.0
  %1526 = vmatprep.subr.mxu0 0.0
  %1527 = vmatpush1.msra.mxu0 0.0
  %1528 = vmatprep.subr.mxu0 0.0
  %1529 = vmatpush1.msra.mxu0 0.0
  %1530 = vmatprep.subr.mxu0 0.0
  %1531 = vmatpush1.msra.mxu0 0.0
  %1532 = vmatprep.subr.mxu0 0.0
  %1533 = vmatpush1.msra.mxu0 0.0
  %1534 = vmatprep.subr.mxu0 0.0
  %1535 = vmatpush1.msra.mxu0 0.0
  %1536 = vmatprep.subr.mxu0 0.0
  %1537 = vmatpush1.msra.mxu0 0.0
  %1538 = vmatprep.subr.mxu0 0.0
  %1539 = vmatpush1.msra.mxu0 0.0
  %1540 = vmatprep.subr.mxu0 0.0
  %1541 = vmatpush1.msra.mxu0 0.0
  %1542 = vmatprep.subr.mxu0 0.0
  %1543 = vmatpush1.msra.mxu0 0.0
  %1544 = vmatprep.subr.mxu0 0.0
  %1545 = vmatpush1.msra.mxu0 0.0
  %1546 = vmatprep.subr.mxu0 0.0
  %1547 = vmatpush1.msra.mxu0 0.0
  %1548 = vmatprep.subr.mxu0 0.0
  %1549 = vmatpush1.msra.mxu0 0.0
  %1550 = vmatprep.subr.mxu0 0.0
  %1551 = vmatpush1.msra.mxu0 0.0
  %1552 = vmatprep.subr.mxu0 0.0
  %1553 = vmatpush1.msra.mxu0 0.0
  %1554 = vmatprep.subr.mxu0 0.0
  %1555 = vmatpush1.msra.mxu0 0.0
  %1556 = vmatprep.subr.mxu0 0.0
  %1557 = vmatpush1.msra.mxu0 0.0
  %1558 = vmatprep.subr.mxu0 0.0
  %1559 = vmatpush1.msra.mxu0 0.0
  %1560 = vmatprep.subr.mxu0 0.0
  %1561 = vmatpush1.msra.mxu0 0.0
  %1562 = vmatprep.subr.mxu0 0.0
  %1563 = vmatpush1.msra.mxu0 0.0
  %1564 = vmatprep.mubr.f32.mxu0 0.0
  %1565 = vmatmul.mubr.f32.gmra.mrb[0].mxu0 %v1498
  %v1566 = vpop.f32.mrb[0].mxu0
  %v1567 = vadd.f32 0.0, %v1566
  %v1568 = vpop.f32.mrb[0].mxu0
  %1569 = vdwg.mxu0
  %v1570 = vadd.f32 %v142, %v1567
  %v1571 = vxor.u32 %v1495, 2147483648
  %v1572 = vmul.f32 %v1571, 1.442695
  %v1573 = vpow.pop %v1572
  %v1574 = vadd.f32 %v1573, 1.0
  %v1575 = vrcp.pop %v1574
  %v1576 = vmul.f32 1.0, %v1575
  %v1577 = vtanh.pop %v1495
  %v1578 = vmul.f32 %v1576, %v1382
  %1580 = vrot.lane.b32.xlu0 %v1577, 64
  %v1581 = vpop.permute.xlu0 %1580
  %v1583 = vmul.f32 %v1576, %v1581
  %1585 = vrot.lane.b32.xlu0 %v1583, 32
  %v1586 = vpop.permute.xlu0 %1585
  %v1588 = vadd.f32 %v1578, %v1586
  %v1589 = vtanh.pop %v1588
  %1591 = vrot.lane.b32.xlu0 %v1589, 64
  %v1592 = vpop.permute.xlu0 %1591
  %v1594 = vmul.f32 %v1576, %v1592
  %v1595 = vxor.u32 %v1570, 2147483648
  %v1596 = vmul.f32 %v1595, 1.442695
  %v1597 = vpow.pop %v1596
  %v1598 = vadd.f32 %v1597, 1.0
  %v1599 = vrcp.pop %v1598
  %v1600 = vmul.f32 1.0, %v1599
  %v1601 = vtanh.pop %v1570
  %v1602 = vmul.f32 %v1600, %v1406
  %1604 = vrot.lane.b32.xlu0 %v1601, 64
  %v1605 = vpop.permute.xlu0 %1604
  %v1607 = vmul.f32 %v1600, %v1605
  %1609 = vrot.lane.b32.xlu0 %v1607, 32
  %v1610 = vpop.permute.xlu0 %1609
  %v1612 = vadd.f32 %v1602, %v1610
  %v1613 = vtanh.pop %v1612
  %1615 = vrot.lane.b32.xlu0 %v1613, 64
  %v1616 = vpop.permute.xlu0 %1615
  %v1618 = vmul.f32 %v1600, %v1616
  %1620 = vrot.lane.b32.xlu0 %v1594, 32
  %v1621 = vpop.permute.xlu0 %1620
  %1623 = vst.msk [vmem:[%s5 + $0x30] sm:$0xff] %vm188, %v1621
  %1625 = vrot.lane.b32.xlu0 %v1618, 64
  %v1626 = vpop.permute.xlu0 %1625
  %1628 = vst.msk [vmem:[%s5 + $0x8] sm:$0xff] %vm391, %v1626
  %v1629 = vsel %vm188, %v1621, 0
  %1631 = vmatprep.subr.mxu0 0.0
  %1632 = vmatpush1.msra.mxu0 %v180
  %1633 = vmatprep.subr.mxu0 0.0
  %1634 = vmatpush1.msra.mxu0 %v181
  %1635 = vmatprep.subr.mxu0 0.0
  %1636 = vmatpush1.msra.mxu0 %v182
  %1637 = vmatprep.subr.mxu0 0.0
  %1638 = vmatpush1.msra.mxu0 %v183
  %1639 = vmatprep.subr.mxu0 0.0
  %1640 = vmatpush1.msra.mxu0 0.0
  %1641 = vmatprep.subr.mxu0 0.0
  %1642 = vmatpush1.msra.mxu0 0.0
  %1643 = vmatprep.subr.mxu0 0.0
  %1644 = vmatpush1.msra.mxu0 0.0
  %1645 = vmatprep.subr.mxu0 0.0
  %1646 = vmatpush1.msra.mxu0 0.0
  %1647 = vmatprep.subr.mxu0 0.0
  %1648 = vmatpush1.msra.mxu0 0.0
  %1649 = vmatprep.subr.mxu0 0.0
  %1650 = vmatpush1.msra.mxu0 0.0
  %1651 = vmatprep.subr.mxu0 0.0
  %1652 = vmatpush1.msra.mxu0 0.0
  %1653 = vmatprep.subr.mxu0 0.0
  %1654 = vmatpush1.msra.mxu0 0.0
  %1655 = vmatprep.subr.mxu0 0.0
  %1656 = vmatpush1.msra.mxu0 0.0
  %1657 = vmatprep.subr.mxu0 0.0
  %1658 = vmatpush1.msra.mxu0 0.0
  %1659 = vmatprep.subr.mxu0 0.0
  %1660 = vmatpush1.msra.mxu0 0.0
  %1661 = vmatprep.subr.mxu0 0.0
  %1662 = vmatpush1.msra.mxu0 0.0
  %1663 = vmatprep.subr.mxu0 0.0
  %1664 = vmatpush1.msra.mxu0 0.0
  %1665 = vmatprep.subr.mxu0 0.0
  %1666 = vmatpush1.msra.mxu0 0.0
  %1667 = vmatprep.subr.mxu0 0.0
  %1668 = vmatpush1.msra.mxu0 0.0
  %1669 = vmatprep.subr.mxu0 0.0
  %1670 = vmatpush1.msra.mxu0 0.0
  %1671 = vmatprep.subr.mxu0 0.0
  %1672 = vmatpush1.msra.mxu0 0.0
  %1673 = vmatprep.subr.mxu0 0.0
  %1674 = vmatpush1.msra.mxu0 0.0
  %1675 = vmatprep.subr.mxu0 0.0
  %1676 = vmatpush1.msra.mxu0 0.0
  %1677 = vmatprep.subr.mxu0 0.0
  %1678 = vmatpush1.msra.mxu0 0.0
  %1679 = vmatprep.subr.mxu0 0.0
  %1680 = vmatpush1.msra.mxu0 0.0
  %1681 = vmatprep.subr.mxu0 0.0
  %1682 = vmatpush1.msra.mxu0 0.0
  %1683 = vmatprep.subr.mxu0 0.0
  %1684 = vmatpush1.msra.mxu0 0.0
  %1685 = vmatprep.subr.mxu0 0.0
  %1686 = vmatpush1.msra.mxu0 0.0
  %1687 = vmatprep.subr.mxu0 0.0
  %1688 = vmatpush1.msra.mxu0 0.0
  %1689 = vmatprep.subr.mxu0 0.0
  %1690 = vmatpush1.msra.mxu0 0.0
  %1691 = vmatprep.subr.mxu0 0.0
  %1692 = vmatpush1.msra.mxu0 0.0
  %1693 = vmatprep.subr.mxu0 0.0
  %1694 = vmatpush1.msra.mxu0 0.0
  %1695 = vmatprep.mubr.f32.mxu0 0.0
  %1696 = vmatmul.mubr.f32.gmra.mrb[0].mxu0 %v1629
  %v1697 = vpop.f32.mrb[0].mxu0
  %v1698 = vadd.f32 0.0, %v1697
  %v1699 = vpop.f32.mrb[0].mxu0
  %1700 = vdwg.mxu0
  %v1701 = vadd.f32 %v176, %v1698
  %1702 = vrot.lane.b32.xlu0 %v1618, 32
  %v1703 = vpop.permute.xlu0 %1702
  %v1704 = vsel %vm188, %v1703, 0
  %1706 = vmatprep.subr.mxu0 0.0
  %1707 = vmatpush1.msra.mxu0 %v184
  %1708 = vmatprep.subr.mxu0 0.0
  %1709 = vmatpush1.msra.mxu0 %v185
  %1710 = vmatprep.subr.mxu0 0.0
  %1711 = vmatpush1.msra.mxu0 %v186
  %1712 = vmatprep.subr.mxu0 0.0
  %1713 = vmatpush1.msra.mxu0 %v187
  %1714 = vmatprep.subr.mxu0 0.0
  %1715 = vmatpush1.msra.mxu0 0.0
  %1716 = vmatprep.subr.mxu0 0.0
  %1717 = vmatpush1.msra.mxu0 0.0
  %1718 = vmatprep.subr.mxu0 0.0
  %1719 = vmatpush1.msra.mxu0 0.0
  %1720 = vmatprep.subr.mxu0 0.0
  %1721 = vmatpush1.msra.mxu0 0.0
  %1722 = vmatprep.subr.mxu0 0.0
  %1723 = vmatpush1.msra.mxu0 0.0
  %1724 = vmatprep.subr.mxu0 0.0
  %1725 = vmatpush1.msra.mxu0 0.0
  %1726 = vmatprep.subr.mxu0 0.0
  %1727 = vmatpush1.msra.mxu0 0.0
  %1728 = vmatprep.subr.mxu0 0.0
  %1729 = vmatpush1.msra.mxu0 0.0
  %1730 = vmatprep.subr.mxu0 0.0
  %1731 = vmatpush1.msra.mxu0 0.0
  %1732 = vmatprep.subr.mxu0 0.0
  %1733 = vmatpush1.msra.mxu0 0.0
  %1734 = vmatprep.subr.mxu0 0.0
  %1735 = vmatpush1.msra.mxu0 0.0
  %1736 = vmatprep.subr.mxu0 0.0
  %1737 = vmatpush1.msra.mxu0 0.0
  %1738 = vmatprep.subr.mxu0 0.0
  %1739 = vmatpush1.msra.mxu0 0.0
  %1740 = vmatprep.subr.mxu0 0.0
  %1741 = vmatpush1.msra.mxu0 0.0
  %1742 = vmatprep.subr.mxu0 0.0
  %1743 = vmatpush1.msra.mxu0 0.0
  %1744 = vmatprep.subr.mxu0 0.0
  %1745 = vmatpush1.msra.mxu0 0.0
  %1746 = vmatprep.subr.mxu0 0.0
  %1747 = vmatpush1.msra.mxu0 0.0
  %1748 = vmatprep.subr.mxu0 0.0
  %1749 = vmatpush1.msra.mxu0 0.0
  %1750 = vmatprep.subr.mxu0 0.0
  %1751 = vmatpush1.msra.mxu0 0.0
  %1752 = vmatprep.subr.mxu0 0.0
  %1753 = vmatpush1.msra.mxu0 0.0
  %1754 = vmatprep.subr.mxu0 0.0
  %1755 = vmatpush1.msra.mxu0 0.0
  %1756 = vmatprep.subr.mxu0 0.0
  %1757 = vmatpush1.msra.mxu0 0.0
  %1758 = vmatprep.subr.mxu0 0.0
  %1759 = vmatpush1.msra.mxu0 0.0
  %1760 = vmatprep.subr.mxu0 0.0
  %1761 = vmatpush1.msra.mxu0 0.0
  %1762 = vmatprep.subr.mxu0 0.0
  %1763 = vmatpush1.msra.mxu0 0.0
  %1764 = vmatprep.subr.mxu0 0.0
  %1765 = vmatpush1.msra.mxu0 0.0
  %1766 = vmatprep.subr.mxu0 0.0
  %1767 = vmatpush1.msra.mxu0 0.0
  %1768 = vmatprep.subr.mxu0 0.0
  %1769 = vmatpush1.msra.mxu0 0.0
  %1770 = vmatprep.mubr.f32.mxu0 0.0
  %1771 = vmatmul.mubr.f32.gmra.mrb[0].mxu0 %v1704
  %v1772 = vpop.f32.mrb[0].mxu0
  %v1773 = vadd.f32 0.0, %v1772
  %v1774 = vpop.f32.mrb[0].mxu0
  %1775 = vdwg.mxu0
  %v1776 = vadd.f32 %v136, %v1773
  %v1777 = vxor.u32 %v1701, 2147483648
  %v1778 = vmul.f32 %v1777, 1.442695
  %v1779 = vpow.pop %v1778
  %v1780 = vadd.f32 %v1779, 1.0
  %v1781 = vrcp.pop %v1780
  %v1782 = vmul.f32 1.0, %v1781
  %v1783 = vtanh.pop %v1701
  %v1784 = vmul.f32 %v1782, %v1588
  %1786 = vrot.lane.b32.xlu0 %v1783, 64
  %v1787 = vpop.permute.xlu0 %1786
  %v1789 = vmul.f32 %v1782, %v1787
  %1791 = vrot.lane.b32.xlu0 %v1789, 32
  %v1792 = vpop.permute.xlu0 %1791
  %v1794 = vadd.f32 %v1784, %v1792
  %v1795 = vtanh.pop %v1794
  %1797 = vrot.lane.b32.xlu0 %v1795, 64
  %v1798 = vpop.permute.xlu0 %1797
  %v1800 = vmul.f32 %v1782, %v1798
  %v1801 = vxor.u32 %v1776, 2147483648
  %v1802 = vmul.f32 %v1801, 1.442695
  %v1803 = vpow.pop %v1802
  %v1804 = vadd.f32 %v1803, 1.0
  %v1805 = vrcp.pop %v1804
  %v1806 = vmul.f32 1.0, %v1805
  %v1807 = vtanh.pop %v1776
  %v1808 = vmul.f32 %v1806, %v1612
  %1810 = vrot.lane.b32.xlu0 %v1807, 64
  %v1811 = vpop.permute.xlu0 %1810
  %v1813 = vmul.f32 %v1806, %v1811
  %1815 = vrot.lane.b32.xlu0 %v1813, 32
  %v1816 = vpop.permute.xlu0 %1815
  %v1818 = vadd.f32 %v1808, %v1816
  %v1819 = vtanh.pop %v1818
  %1821 = vrot.lane.b32.xlu0 %v1819, 64
  %v1822 = vpop.permute.xlu0 %1821
  %v1824 = vmul.f32 %v1806, %v1822
  %1826 = vrot.lane.b32.xlu0 %v1800, 32
  %v1827 = vpop.permute.xlu0 %1826
  %1829 = vst.msk [vmem:[%s5 + $0x38] sm:$0xff] %vm188, %v1827
  %1831 = vrot.lane.b32.xlu0 %v1824, 64
  %v1832 = vpop.permute.xlu0 %1831
  %1834 = vst.msk [vmem:[%s5] sm:$0xff] %vm391, %v1832
  // Predicated region
  $region22: #{hedln_forward_pallas.4} parent=0 // pred_check
    _
  $region23: #{hedln_forward_pallas.4} parent=0 // pred_check_branch
    %1836 = sbr.rel (0) target = $region25
  $region24: #{hedln_forward_pallas.4} parent=0 // pred_region
    _
  $region25: #{hedln_forward_pallas.4} parent=0 // pred_fallthru
    _
  // Predicated region
  $region26: #{hedln_forward_pallas.4} parent=0 // pred_check
    _
  $region27: #{hedln_forward_pallas.4} parent=0 // pred_check_branch
    %1838 = sbr.rel (0) target = $region29
  $region28: #{hedln_forward_pallas.4} parent=0 // pred_region
    _
  $region29: #{hedln_forward_pallas.4} parent=0 // pred_fallthru
    _

</llo_original>
